<compile_context>
chip_gen: v6e
topology: v6e:2x2x1
jax: 0.10.0
libtpu: 0.0.40
codegen_flags: <defaults>
</compile_context>

<pallas_src>
import math
import functools

import jax
import jax.numpy as jnp
from jax.experimental import pallas as pl
from jax.experimental.pallas import tpu as pltpu

_MIB = 1024 * 1024


def _round_up(x, m):
    return -(-x // m) * m


def _tile_bytes(sublane, lane, itemsize):
    """VMEM footprint of a (sublane, lane) tile after (8,128) layout padding."""
    sub_mult = 8 * max(1, 4 // max(itemsize, 1))     # f32 -> 8, bf16 -> 16
    return (_round_up(max(sublane, 1), sub_mult)
            * _round_up(max(lane, 1), 128) * itemsize)


def _tpu_limits():
    """(physical VMEM bytes, tensorcores per chip), conservative fallbacks."""
    vmem = 64 * _MIB
    cores = 1
    try:
        info = pltpu.get_tpu_info()
        vmem = int(getattr(info, "vmem_capacity_bytes", vmem) or vmem)
        cores = int(getattr(info, "num_cores",
                            getattr(info, "tensorcores_per_chip", cores)) or cores)
    except Exception:
        pass
    try:
        dev = jax.devices()[0]
        cores = max(cores, int(getattr(dev, "num_cores", 1) or 1))
    except Exception:
        pass
    return vmem, max(1, cores)


def _pick_tiling(hb, nq, ng, d, q_isize, k_isize, o_isize, use_vpu):
    """Choose T (fused-batch slices per grid step) and the VMEM limit."""
    vmem_phys, num_cores = _tpu_limits()
    if vmem_phys >= 128 * _MIB:        # v5e / v6e (128 MiB physical)
        tile_budget = 72 * _MIB
        vmem_limit = 100 * _MIB
    else:                              # v7x-class (64 MiB physical per TC)
        tile_budget = 24 * _MIB
        vmem_limit = 40 * _MIB
    vmem_limit = min(vmem_limit, vmem_phys)

    # Double-buffered input/output tiles for one fused-batch slice ...
    per_slice = 2 * (_tile_bytes(nq, d, q_isize)
                     + _tile_bytes(ng, d, k_isize)
                     + _tile_bytes(nq, ng, o_isize))
    # ... plus in-kernel f32 intermediates (qk / sq / exp staging).
    per_slice += 3 * _tile_bytes(nq, ng, 4)
    if use_vpu:
        # Broadcasted (nq, ng, d) f32 difference tensor on the VPU path.
        per_slice += nq * _tile_bytes(ng, d, 4)

    t = max(1, tile_budget // max(per_slice, 1))
    if num_cores > 1:
        # Keep >= ~2 grid steps per core so "parallel" sharding has work.
        t = min(t, max(1, hb // (2 * num_cores)))
    return min(t, hb), int(vmem_limit)


def _rbf_l2_kernel(q_ref, k_ref, o_ref, *, gamma, use_vpu):
    # q_ref: (T, Nq, D), k_ref: (T, Ng, D), o_ref: (T, Nq, Ng)
    if use_vpu:
        # Small-D path: squared L2 distance directly on the VPU (no MXU,
        # no norms-minus-2qk cancellation).
        q = q_ref[...].astype(jnp.float32)
        k = k_ref[...].astype(jnp.float32)
        diff = q[:, :, None, :] - k[:, None, :, :]          # (T, Nq, Ng, D)
        sq = jnp.sum(diff * diff, axis=-1)                   # (T, Nq, Ng)
    else:
        q = q_ref[...]
        k = k_ref[...]
        qn = jnp.sum(q.astype(jnp.float32) ** 2, axis=-1)    # (T, Nq)
        kn = jnp.sum(k.astype(jnp.float32) ** 2, axis=-1)    # (T, Ng)
        # Batched Q @ K^T contracting the lane dims; native-dtype operands
        # (bf16 stays bf16 on the MXU), f32 accumulation.
        qk = jax.lax.dot_general(
            q, k,
            dimension_numbers=(((2,), (2,)), ((0,), (0,))),
            preferred_element_type=jnp.float32,
        )                                                    # (T, Nq, Ng)
        sq = qn[:, :, None] + kn[:, None, :] - 2.0 * qk
    # sqrt(.) followed by .pow(2) is the identity on the clamped value:
    # skip both, clamp negatives from floating-point cancellation.
    o_ref[...] = jnp.exp(-gamma * jnp.maximum(sq, 0.0)).astype(o_ref.dtype)


def rbf_kernel_l2(Q, K, rbf_gamma=0.025, out_dtype=None):
    """Pallas implementation of RBFKernel_L2.forward (4-D or 5-D inputs)."""
    assert Q.shape[-1] == K.shape[-1], "Q/K feature dims must match"
    assert Q.shape[:-2] == K.shape[:-2], "Q/K leading dims must match"
    lead = Q.shape[:-2]                      # (H, B) or (H, B, num_steps)
    Nq, D = Q.shape[-2], Q.shape[-1]
    Ng = K.shape[-2]
    HB = int(math.prod(lead)) if lead else 1
    if out_dtype is None:
        out_dtype = jnp.result_type(Q.dtype, K.dtype)
    o_isize = jnp.dtype(out_dtype).itemsize

    q = Q.reshape(HB, Nq, D)
    k = K.reshape(HB, Ng, D)

    # Lane-dense output: pad graph_size up to a multiple of 128 (unmasked
    # vector stores) and n_query to a multiple of 8 (sublane alignment).
    # Padded rows/cols of the result hold exp(-gamma*||q||^2) garbage and are
    # sliced off below.
    Nq_p = _round_up(Nq, 8)
    Ng_p = _round_up(Ng, 128)
    if Nq_p != Nq:
        q = jnp.pad(q, ((0, 0), (0, Nq_p - Nq), (0, 0)))
    if Ng_p != Ng:
        k = jnp.pad(k, ((0, 0), (0, Ng_p - Ng), (0, 0)))

    # Tiny feature dim / tile -> VPU path; otherwise MXU matmul path.
    use_vpu = (D <= 32) and (Nq_p * Ng_p <= 128 * 256)

    T, vmem_limit = _pick_tiling(HB, Nq_p, Ng_p, D,
                                 q.dtype.itemsize, k.dtype.itemsize,
                                 o_isize, use_vpu)

    # Pad the fused head*batch axis to a multiple of T (instead of shrinking T
    # to a divisor of HB); padded slices are sliced off afterwards.
    HB_p = _round_up(HB, T)
    if HB_p != HB:
        q = jnp.pad(q, ((0, HB_p - HB), (0, 0), (0, 0)))
        k = jnp.pad(k, ((0, HB_p - HB), (0, 0), (0, 0)))
    grid = (HB_p // T,)

    kernel = functools.partial(_rbf_l2_kernel,
                               gamma=float(rbf_gamma), use_vpu=use_vpu)

    cost = pl.CostEstimate(
        flops=(3 if use_vpu else 2) * HB * Nq * Ng * D      # distance / matmul
        + (0 if use_vpu else 2 * HB * (Nq + Ng) * D)         # squared norms
        + 3 * HB * Nq * Ng,                                  # combine/scale/clamp
        transcendentals=HB * Nq * Ng,                        # exp only (sqrt gone)
        bytes_accessed=(q.size * q.dtype.itemsize
                        + k.size * k.dtype.itemsize
                        + HB_p * Nq_p * Ng_p * o_isize),
    )

    out = pl.pallas_call(
        kernel,
        out_shape=jax.ShapeDtypeStruct((HB_p, Nq_p, Ng_p), out_dtype),
        grid_spec=pltpu.PrefetchScalarGridSpec(
            num_scalar_prefetch=0,
            grid=grid,
            in_specs=[
                pl.BlockSpec((T, Nq_p, D), lambda i: (i, 0, 0)),
                pl.BlockSpec((T, Ng_p, D), lambda i: (i, 0, 0)),
            ],
            out_specs=pl.BlockSpec((T, Nq_p, Ng_p), lambda i: (i, 0, 0)),
        ),
        compiler_params=pltpu.CompilerParams(
            dimension_semantics=("parallel",),
            vmem_limit_bytes=vmem_limit,
        ),
        cost_estimate=cost,
    )(q, k)

    out = out[:HB, :Nq, :Ng]
    return out.reshape(*lead, Nq, Ng)


def _reference(Q, K, rbf_gamma):
    # Mirrors the PyTorch formula (sqrt then pow(2)).
    qn = jnp.sum(Q.astype(jnp.float32) ** 2, axis=-1)[..., :, None]
    kn = jnp.sum(K.astype(jnp.float32) ** 2, axis=-1)[..., None, :]
    qk = jnp.einsum("...qd,...kd->...qk", Q.astype(jnp.float32),
                    K.astype(jnp.float32))
    sq = jnp.maximum(qn + kn - 2.0 * qk, 0.0)
    dist = jnp.sqrt(sq)
    return jnp.exp(-rbf_gamma * dist ** 2)


if __name__ == "__main__":
    # Small shapes consistent with the module: n_heads=2, embed_dim=32 -> dim=16
    n_heads = 2
    embed_dim = 32
    dim = embed_dim // n_heads
    batch = 2
    n_query = 8
    graph_size = 8
    rbf_gamma = 0.025

    key = jax.random.PRNGKey(0)
    kq, kk, kq5, kk5 = jax.random.split(key, 4)

    # 4-D case: (n_heads, batch, n_query, dim) x (n_heads, batch, graph_size, dim)
    Q = jax.random.normal(kq, (n_heads, batch, n_query, dim), dtype=jnp.float32)
    K = jax.random.normal(kk, (n_heads, batch, graph_size, dim), dtype=jnp.float32)
    out = jax.block_until_ready(rbf_kernel_l2(Q, K, rbf_gamma=rbf_gamma))
    ref = _reference(Q, K, rbf_gamma)
    assert out.shape == (n_heads, batch, n_query, graph_size)
    assert jnp.allclose(out, ref, atol=1e-4, rtol=1e-4)

    # 5-D case: (n_heads, batch, num_steps, n_query, dim)
    num_steps = 3
    Q5 = jax.random.normal(kq5, (n_heads, batch, num_steps, n_query, dim),
                           dtype=jnp.float32)
    K5 = jax.random.normal(kk5, (n_heads, batch, num_steps, graph_size, dim),
                           dtype=jnp.float32)
    out5 = jax.block_until_ready(rbf_kernel_l2(Q5, K5, rbf_gamma=rbf_gamma))
    ref5 = _reference(Q5, K5, rbf_gamma)
    assert out5.shape == (n_heads, batch, num_steps, n_query, graph_size)
    assert jnp.allclose(out5, ref5, atol=1e-4, rtol=1e-4)

    print("KERNEL_OK")
</pallas_src>

<mosaic_0001>
module attributes {stable_mosaic.version = 11 : i64} {
  func.func @_rbf_l2_kernel(%arg0: i32, %arg1: memref<4x8x16xf32, #tpu.memory_space<vmem>>, %arg2: memref<4x128x16xf32, #tpu.memory_space<vmem>>, %arg3: memref<4x8x128xf32, #tpu.memory_space<vmem>>) attributes {dimension_semantics = [#tpu.dimension_semantics<parallel>], iteration_bounds = array<i64: 1>, scalar_prefetch = 0 : i64, scratch_operands = 0 : i64, tpu.core_type = #tpu.core_type<tc>, window_params = [{transform_indices = @transform_0, window_bounds = array<i64: 4, 8, 16>}, {transform_indices = @transform_1, window_bounds = array<i64: 4, 128, 16>}, {transform_indices = @transform_2, window_bounds = array<i64: 4, 8, 128>}]} {
    %c0 = arith.constant 0 : index
    %c0_0 = arith.constant 0 : index
    %c0_1 = arith.constant 0 : index
    %0 = vector.load %arg1[%c0, %c0_0, %c0_1] : memref<4x8x16xf32, #tpu.memory_space<vmem>>, vector<4x8x16xf32>
    %c0_2 = arith.constant 0 : index
    %c0_3 = arith.constant 0 : index
    %c0_4 = arith.constant 0 : index
    %1 = vector.load %arg2[%c0_2, %c0_3, %c0_4] : memref<4x128x16xf32, #tpu.memory_space<vmem>>, vector<4x128x16xf32>
    %2 = vector.shape_cast %0 : vector<4x8x16xf32> to vector<4x8x1x16xf32>
    %3 = vector.shape_cast %1 : vector<4x128x16xf32> to vector<4x1x128x16xf32>
    %4 = vector.broadcast %2 : vector<4x8x1x16xf32> to vector<4x8x128x16xf32>
    %5 = vector.broadcast %3 : vector<4x1x128x16xf32> to vector<4x8x128x16xf32>
    %6 = arith.subf %4, %5 : vector<4x8x128x16xf32>
    %7 = arith.mulf %6, %6 : vector<4x8x128x16xf32>
    %cst = arith.constant dense<0.000000e+00> : vector<4x8x128xf32>
    %8 = vector.multi_reduction <add>, %7, %cst [3] : vector<4x8x128x16xf32> to vector<4x8x128xf32>
    %cst_5 = arith.constant 0.000000e+00 : f32
    %9 = vector.broadcast %cst_5 : f32 to vector<4x8x128xf32>
    %10 = arith.maximumf %8, %9 : vector<4x8x128xf32>
    %cst_6 = arith.constant -2.500000e-02 : f32
    %11 = vector.broadcast %cst_6 : f32 to vector<4x8x128xf32>
    %12 = arith.mulf %11, %10 : vector<4x8x128xf32>
    %13 = math.exp %12 : vector<4x8x128xf32>
    %c0_7 = arith.constant 0 : index
    %c0_8 = arith.constant 0 : index
    %c0_9 = arith.constant 0 : index
    %14 = vector.load %arg3[%c0_7, %c0_8, %c0_9] : memref<4x8x128xf32, #tpu.memory_space<vmem>>, vector<4x8x128xf32>
    tpu.vector_store %arg3[%c0_7, %c0_8, %c0_9], %13 {strides = array<i32>} : memref<4x8x128xf32, #tpu.memory_space<vmem>>, vector<4x8x128xf32>,
    return
  }
  func.func @transform_0(%arg0: i32) -> (i32, i32, i32) {
    %c0_i32 = arith.constant 0 : i32
    %c0_i32_0 = arith.constant 0 : i32
    %c0_i32_1 = arith.constant 0 : i32
    return %arg0, %c0_i32, %c0_i32_0 : i32, i32, i32
  }
  func.func @transform_1(%arg0: i32) -> (i32, i32, i32) {
    %c0_i32 = arith.constant 0 : i32
    %c0_i32_0 = arith.constant 0 : i32
    %c0_i32_1 = arith.constant 0 : i32
    return %arg0, %c0_i32, %c0_i32_0 : i32, i32, i32
  }
  func.func @transform_2(%arg0: i32) -> (i32, i32, i32) {
    %c0_i32 = arith.constant 0 : i32
    %c0_i32_0 = arith.constant 0 : i32
    %c0_i32_1 = arith.constant 0 : i32
    return %arg0, %c0_i32, %c0_i32_0 : i32, i32, i32
  }
}

</mosaic_0001>

<llo_original>
// kernel: tpu_custom_call.1
$region0: #{tpu_custom_call.1}
  #allocation0 [shape = 'u32[]', space=smem, size = 0x4, offset = 0x4, fixed_abs, tag = 'smem constant byte address 0x4 - core index']
  #allocation1 [shape = 'u32[144,128]{1,0:T(1,128)}', space=vmem, size = 0x12000, scoped, tag = 'internal scratch']
  %s0 = inlined_call_operand.vmem [shape: f32[4,8,16], index: 0, kind: input, shape index: {}]
  %s1 = inlined_call_operand.vmem [shape: f32[4,128,16], index: 1, kind: input, shape index: {}]
  %s2 = inlined_call_operand.hbm [shape: f32[4,8,128], index: 2, kind: output, shape index: {}]
  %s3 = sld [smem:[#allocation0]]
  $region18: #{tpu_custom_call.1} parent=0
    _
  %s5 = ssub.s32 1, %s3
  %s6 = scalar_select 0, %s5, %s3
  $region1: #{tpu_custom_call.1} parent=0
    #allocation2 [shape = 'u8[16384]{0}', space=vmem, size = 0x4000, scoped, tag = 'output window, operand 0, single buffered']
    #allocation3 [shape = 's32[1]{0}', space=sflag, size = 0x4, scoped, tag = 'scoped memory for tpu_custom_call.1']
    %7 = vsyncpa [#allocation3], 0
    // Predicated region
    $region2: #{tpu_custom_call.1} parent=1 // pred_check
      _
    $region3: #{tpu_custom_call.1} parent=1 // pred_check_branch
      %9 = sbr.rel (0) target = $region5
    $region4: #{tpu_custom_call.1} parent=1 // pred_region
      _
    $region5: #{tpu_custom_call.1} parent=1 // pred_fallthru
      _
    // Predicated region
    $region6: #{tpu_custom_call.1} parent=1 // pred_check
      _
    $region7: #{tpu_custom_call.1} parent=1 // pred_check_branch
      %11 = sbr.rel (0) target = $region9
    $region8: #{tpu_custom_call.1} parent=1 // pred_region
      _
    $region9: #{tpu_custom_call.1} parent=1 // pred_fallthru
      _
    %v12 = vld [vmem:[%s0] sm:$0xff]
    %v13 = vld [vmem:[%s0 + $0x8] sm:$0xff]
    %v14 = vld [vmem:[%s0 + $0x10] sm:$0xff]
    %v15 = vld [vmem:[%s0 + $0x18] sm:$0xff]
    %v16 = vld [vmem:[%s1] sm:$0xff]
    %v17 = vld [vmem:[%s1 + $0x8] sm:$0xff]
    %v18 = vld [vmem:[%s1 + $0x10] sm:$0xff]
    %v19 = vld [vmem:[%s1 + $0x18] sm:$0xff]
    %v20 = vld [vmem:[%s1 + $0x20] sm:$0xff]
    %v21 = vld [vmem:[%s1 + $0x28] sm:$0xff]
    %v22 = vld [vmem:[%s1 + $0x30] sm:$0xff]
    %v23 = vld [vmem:[%s1 + $0x38] sm:$0xff]
    %v24 = vld [vmem:[%s1 + $0x40] sm:$0xff]
    %v25 = vld [vmem:[%s1 + $0x48] sm:$0xff]
    %v26 = vld [vmem:[%s1 + $0x50] sm:$0xff]
    %v27 = vld [vmem:[%s1 + $0x58] sm:$0xff]
    %v28 = vld [vmem:[%s1 + $0x60] sm:$0xff]
    %v29 = vld [vmem:[%s1 + $0x68] sm:$0xff]
    %v30 = vld [vmem:[%s1 + $0x70] sm:$0xff]
    %v31 = vld [vmem:[%s1 + $0x78] sm:$0xff]
    %v32 = vld [vmem:[%s1 + $0x80] sm:$0xff]
    %v33 = vld [vmem:[%s1 + $0x88] sm:$0xff]
    %v34 = vld [vmem:[%s1 + $0x90] sm:$0xff]
    %v35 = vld [vmem:[%s1 + $0x98] sm:$0xff]
    %v36 = vld [vmem:[%s1 + $0xa0] sm:$0xff]
    %v37 = vld [vmem:[%s1 + $0xa8] sm:$0xff]
    %v38 = vld [vmem:[%s1 + $0xb0] sm:$0xff]
    %v39 = vld [vmem:[%s1 + $0xb8] sm:$0xff]
    %v40 = vld [vmem:[%s1 + $0xc0] sm:$0xff]
    %v41 = vld [vmem:[%s1 + $0xc8] sm:$0xff]
    %v42 = vld [vmem:[%s1 + $0xd0] sm:$0xff]
    %v43 = vld [vmem:[%s1 + $0xd8] sm:$0xff]
    %v44 = vld [vmem:[%s1 + $0xe0] sm:$0xff]
    %v45 = vld [vmem:[%s1 + $0xe8] sm:$0xff]
    %v46 = vld [vmem:[%s1 + $0xf0] sm:$0xff]
    %v47 = vld [vmem:[%s1 + $0xf8] sm:$0xff]
    %v48 = vld [vmem:[%s1 + $0x100] sm:$0xff]
    %v49 = vld [vmem:[%s1 + $0x108] sm:$0xff]
    %v50 = vld [vmem:[%s1 + $0x110] sm:$0xff]
    %v51 = vld [vmem:[%s1 + $0x118] sm:$0xff]
    %v52 = vld [vmem:[%s1 + $0x120] sm:$0xff]
    %v53 = vld [vmem:[%s1 + $0x128] sm:$0xff]
    %v54 = vld [vmem:[%s1 + $0x130] sm:$0xff]
    %v55 = vld [vmem:[%s1 + $0x138] sm:$0xff]
    %v56 = vld [vmem:[%s1 + $0x140] sm:$0xff]
    %v57 = vld [vmem:[%s1 + $0x148] sm:$0xff]
    %v58 = vld [vmem:[%s1 + $0x150] sm:$0xff]
    %v59 = vld [vmem:[%s1 + $0x158] sm:$0xff]
    %v60 = vld [vmem:[%s1 + $0x160] sm:$0xff]
    %v61 = vld [vmem:[%s1 + $0x168] sm:$0xff]
    %v62 = vld [vmem:[%s1 + $0x170] sm:$0xff]
    %v63 = vld [vmem:[%s1 + $0x178] sm:$0xff]
    %v64 = vld [vmem:[%s1 + $0x180] sm:$0xff]
    %v65 = vld [vmem:[%s1 + $0x188] sm:$0xff]
    %v66 = vld [vmem:[%s1 + $0x190] sm:$0xff]
    %v67 = vld [vmem:[%s1 + $0x198] sm:$0xff]
    %v68 = vld [vmem:[%s1 + $0x1a0] sm:$0xff]
    %v69 = vld [vmem:[%s1 + $0x1a8] sm:$0xff]
    %v70 = vld [vmem:[%s1 + $0x1b0] sm:$0xff]
    %v71 = vld [vmem:[%s1 + $0x1b8] sm:$0xff]
    %v72 = vld [vmem:[%s1 + $0x1c0] sm:$0xff]
    %v73 = vld [vmem:[%s1 + $0x1c8] sm:$0xff]
    %v74 = vld [vmem:[%s1 + $0x1d0] sm:$0xff]
    %v75 = vld [vmem:[%s1 + $0x1d8] sm:$0xff]
    %v76 = vld [vmem:[%s1 + $0x1e0] sm:$0xff]
    %v77 = vld [vmem:[%s1 + $0x1e8] sm:$0xff]
    %v78 = vld [vmem:[%s1 + $0x1f0] sm:$0xff]
    %v79 = vld [vmem:[%s1 + $0x1f8] sm:$0xff]
    %v84 = vcombine.high %v12, %v12
    %v86 = vunpack.c.l.s4 1966171168
    %v87 = vunpack.c.0.s8 %v86
    %v88 = vlaneseq
    %v89 = vshrl.u32 %v88, 7
    %v90 = vsub.s32 %v87, %v89
    %v91 = vrot.slane %v12, %v90
    %v93 = vunpack.c.l.s4 1966171168
    %v94 = vunpack.c.0.s8 %v93
    %v95 = vlaneseq
    %v96 = vshrl.u32 %v95, 7
    %v97 = vsub.s32 %v94, %v96
    %v98 = vrot.slane %v84, %v97
    %v99 = vcombine.high %v91, %v91
    %v100 = vcombine.high %v98, %v98
    %v102 = vunpack.c.l.s4 1966171168
    %v103 = vunpack.c.0.s8 %v102
    %v104 = vlaneseq
    %v105 = vshrl.u32 %v104, 7
    %v106 = vsub.s32 %v103, %v105
    %v107 = vrot.slane %v91, %v106
    %v109 = vunpack.c.l.s4 1966171168
    %v110 = vunpack.c.0.s8 %v109
    %v111 = vlaneseq
    %v112 = vshrl.u32 %v111, 7
    %v113 = vsub.s32 %v110, %v112
    %v114 = vrot.slane %v98, %v113
    %v116 = vunpack.c.l.s4 1966171168
    %v117 = vunpack.c.0.s8 %v116
    %v118 = vlaneseq
    %v119 = vshrl.u32 %v118, 7
    %v120 = vsub.s32 %v117, %v119
    %v121 = vrot.slane %v99, %v120
    %v123 = vunpack.c.l.s4 1966171168
    %v124 = vunpack.c.0.s8 %v123
    %v125 = vlaneseq
    %v126 = vshrl.u32 %v125, 7
    %v127 = vsub.s32 %v124, %v126
    %v128 = vrot.slane %v100, %v127
    %v129 = vcombine.high %v107, %v107
    %v130 = vcombine.high %v114, %v114
    %v131 = vcombine.high %v121, %v121
    %v132 = vcombine.high %v128, %v128
    %v133 = vcombine.high %v13, %v13
    %v135 = vunpack.c.l.s4 1966171168
    %v136 = vunpack.c.0.s8 %v135
    %v137 = vlaneseq
    %v138 = vshrl.u32 %v137, 7
    %v139 = vsub.s32 %v136, %v138
    %v140 = vrot.slane %v13, %v139
    %v142 = vunpack.c.l.s4 1966171168
    %v143 = vunpack.c.0.s8 %v142
    %v144 = vlaneseq
    %v145 = vshrl.u32 %v144, 7
    %v146 = vsub.s32 %v143, %v145
    %v147 = vrot.slane %v133, %v146
    %v148 = vcombine.high %v140, %v140
    %v149 = vcombine.high %v147, %v147
    %v151 = vunpack.c.l.s4 1966171168
    %v152 = vunpack.c.0.s8 %v151
    %v153 = vlaneseq
    %v154 = vshrl.u32 %v153, 7
    %v155 = vsub.s32 %v152, %v154
    %v156 = vrot.slane %v140, %v155
    %v158 = vunpack.c.l.s4 1966171168
    %v159 = vunpack.c.0.s8 %v158
    %v160 = vlaneseq
    %v161 = vshrl.u32 %v160, 7
    %v162 = vsub.s32 %v159, %v161
    %v163 = vrot.slane %v147, %v162
    %v165 = vunpack.c.l.s4 1966171168
    %v166 = vunpack.c.0.s8 %v165
    %v167 = vlaneseq
    %v168 = vshrl.u32 %v167, 7
    %v169 = vsub.s32 %v166, %v168
    %v170 = vrot.slane %v148, %v169
    %v172 = vunpack.c.l.s4 1966171168
    %v173 = vunpack.c.0.s8 %v172
    %v174 = vlaneseq
    %v175 = vshrl.u32 %v174, 7
    %v176 = vsub.s32 %v173, %v175
    %v177 = vrot.slane %v149, %v176
    %v178 = vcombine.high %v156, %v156
    %v179 = vcombine.high %v163, %v163
    %v180 = vcombine.high %v170, %v170
    %v181 = vcombine.high %v177, %v177
    %v182 = vcombine.high %v14, %v14
    %v184 = vunpack.c.l.s4 1966171168
    %v185 = vunpack.c.0.s8 %v184
    %v186 = vlaneseq
    %v187 = vshrl.u32 %v186, 7
    %v188 = vsub.s32 %v185, %v187
    %v189 = vrot.slane %v14, %v188
    %v191 = vunpack.c.l.s4 1966171168
    %v192 = vunpack.c.0.s8 %v191
    %v193 = vlaneseq
    %v194 = vshrl.u32 %v193, 7
    %v195 = vsub.s32 %v192, %v194
    %v196 = vrot.slane %v182, %v195
    %v197 = vcombine.high %v189, %v189
    %v198 = vcombine.high %v196, %v196
    %v200 = vunpack.c.l.s4 1966171168
    %v201 = vunpack.c.0.s8 %v200
    %v202 = vlaneseq
    %v203 = vshrl.u32 %v202, 7
    %v204 = vsub.s32 %v201, %v203
    %v205 = vrot.slane %v189, %v204
    %v207 = vunpack.c.l.s4 1966171168
    %v208 = vunpack.c.0.s8 %v207
    %v209 = vlaneseq
    %v210 = vshrl.u32 %v209, 7
    %v211 = vsub.s32 %v208, %v210
    %v212 = vrot.slane %v196, %v211
    %v214 = vunpack.c.l.s4 1966171168
    %v215 = vunpack.c.0.s8 %v214
    %v216 = vlaneseq
    %v217 = vshrl.u32 %v216, 7
    %v218 = vsub.s32 %v215, %v217
    %v219 = vrot.slane %v197, %v218
    %v221 = vunpack.c.l.s4 1966171168
    %v222 = vunpack.c.0.s8 %v221
    %v223 = vlaneseq
    %v224 = vshrl.u32 %v223, 7
    %v225 = vsub.s32 %v222, %v224
    %v226 = vrot.slane %v198, %v225
    %v227 = vcombine.high %v205, %v205
    %v228 = vcombine.high %v212, %v212
    %v229 = vcombine.high %v219, %v219
    %v230 = vcombine.high %v226, %v226
    %v231 = vcombine.high %v15, %v15
    %v233 = vunpack.c.l.s4 1966171168
    %v234 = vunpack.c.0.s8 %v233
    %v235 = vlaneseq
    %v236 = vshrl.u32 %v235, 7
    %v237 = vsub.s32 %v234, %v236
    %v238 = vrot.slane %v15, %v237
    %v240 = vunpack.c.l.s4 1966171168
    %v241 = vunpack.c.0.s8 %v240
    %v242 = vlaneseq
    %v243 = vshrl.u32 %v242, 7
    %v244 = vsub.s32 %v241, %v243
    %v245 = vrot.slane %v231, %v244
    %v246 = vcombine.high %v238, %v238
    %v247 = vcombine.high %v245, %v245
    %v249 = vunpack.c.l.s4 1966171168
    %v250 = vunpack.c.0.s8 %v249
    %v251 = vlaneseq
    %v252 = vshrl.u32 %v251, 7
    %v253 = vsub.s32 %v250, %v252
    %v254 = vrot.slane %v238, %v253
    %v256 = vunpack.c.l.s4 1966171168
    %v257 = vunpack.c.0.s8 %v256
    %v258 = vlaneseq
    %v259 = vshrl.u32 %v258, 7
    %v260 = vsub.s32 %v257, %v259
    %v261 = vrot.slane %v245, %v260
    %v263 = vunpack.c.l.s4 1966171168
    %v264 = vunpack.c.0.s8 %v263
    %v265 = vlaneseq
    %v266 = vshrl.u32 %v265, 7
    %v267 = vsub.s32 %v264, %v266
    %v268 = vrot.slane %v246, %v267
    %v270 = vunpack.c.l.s4 1966171168
    %v271 = vunpack.c.0.s8 %v270
    %v272 = vlaneseq
    %v273 = vshrl.u32 %v272, 7
    %v274 = vsub.s32 %v271, %v273
    %v275 = vrot.slane %v247, %v274
    %v276 = vcombine.high %v254, %v254
    %v277 = vcombine.high %v261, %v261
    %v278 = vcombine.high %v268, %v268
    %v279 = vcombine.high %v275, %v275
    %v280 = vlaneseq
    %v281 = vshrl.u32 %v280, 7
    %v282 = vsub.s32 0, %v281
    %v283 = vrot.slane %v107, %v282
    %v284 = vlaneseq
    %v285 = vshrl.u32 %v284, 7
    %v286 = vsub.s32 0, %v285
    %v287 = vrot.slane %v121, %v286
    %v288 = vlaneseq
    %v289 = vshrl.u32 %v288, 7
    %v290 = vsub.s32 0, %v289
    %v291 = vrot.slane %v129, %v290
    %v292 = vlaneseq
    %v293 = vshrl.u32 %v292, 7
    %v294 = vsub.s32 0, %v293
    %v295 = vrot.slane %v131, %v294
    %v296 = vlaneseq
    %v297 = vshrl.u32 %v296, 7
    %v298 = vsub.s32 0, %v297
    %v299 = vrot.slane %v114, %v298
    %v300 = vlaneseq
    %v301 = vshrl.u32 %v300, 7
    %v302 = vsub.s32 0, %v301
    %v303 = vrot.slane %v128, %v302
    %v304 = vlaneseq
    %v305 = vshrl.u32 %v304, 7
    %v306 = vsub.s32 0, %v305
    %v307 = vrot.slane %v130, %v306
    %v308 = vlaneseq
    %v309 = vshrl.u32 %v308, 7
    %v310 = vsub.s32 0, %v309
    %v311 = vrot.slane %v132, %v310
    %v312 = vlaneseq
    %v313 = vshrl.u32 %v312, 7
    %v314 = vsub.s32 0, %v313
    %v315 = vrot.slane %v156, %v314
    %v316 = vlaneseq
    %v317 = vshrl.u32 %v316, 7
    %v318 = vsub.s32 0, %v317
    %v319 = vrot.slane %v170, %v318
    %v320 = vlaneseq
    %v321 = vshrl.u32 %v320, 7
    %v322 = vsub.s32 0, %v321
    %v323 = vrot.slane %v178, %v322
    %v324 = vlaneseq
    %v325 = vshrl.u32 %v324, 7
    %v326 = vsub.s32 0, %v325
    %v327 = vrot.slane %v180, %v326
    %v328 = vlaneseq
    %v329 = vshrl.u32 %v328, 7
    %v330 = vsub.s32 0, %v329
    %v331 = vrot.slane %v163, %v330
    %v332 = vlaneseq
    %v333 = vshrl.u32 %v332, 7
    %v334 = vsub.s32 0, %v333
    %v335 = vrot.slane %v177, %v334
    %v336 = vlaneseq
    %v337 = vshrl.u32 %v336, 7
    %v338 = vsub.s32 0, %v337
    %v339 = vrot.slane %v179, %v338
    %v340 = vlaneseq
    %v341 = vshrl.u32 %v340, 7
    %v342 = vsub.s32 0, %v341
    %v343 = vrot.slane %v181, %v342
    %v344 = vlaneseq
    %v345 = vshrl.u32 %v344, 7
    %v346 = vsub.s32 0, %v345
    %v347 = vrot.slane %v205, %v346
    %v348 = vlaneseq
    %v349 = vshrl.u32 %v348, 7
    %v350 = vsub.s32 0, %v349
    %v351 = vrot.slane %v219, %v350
    %v352 = vlaneseq
    %v353 = vshrl.u32 %v352, 7
    %v354 = vsub.s32 0, %v353
    %v355 = vrot.slane %v227, %v354
    %v356 = vlaneseq
    %v357 = vshrl.u32 %v356, 7
    %v358 = vsub.s32 0, %v357
    %v359 = vrot.slane %v229, %v358
    %v360 = vlaneseq
    %v361 = vshrl.u32 %v360, 7
    %v362 = vsub.s32 0, %v361
    %v363 = vrot.slane %v212, %v362
    %v364 = vlaneseq
    %v365 = vshrl.u32 %v364, 7
    %v366 = vsub.s32 0, %v365
    %v367 = vrot.slane %v226, %v366
    %v368 = vlaneseq
    %v369 = vshrl.u32 %v368, 7
    %v370 = vsub.s32 0, %v369
    %v371 = vrot.slane %v228, %v370
    %v372 = vlaneseq
    %v373 = vshrl.u32 %v372, 7
    %v374 = vsub.s32 0, %v373
    %v375 = vrot.slane %v230, %v374
    %v376 = vlaneseq
    %v377 = vshrl.u32 %v376, 7
    %v378 = vsub.s32 0, %v377
    %v379 = vrot.slane %v254, %v378
    %v380 = vlaneseq
    %v381 = vshrl.u32 %v380, 7
    %v382 = vsub.s32 0, %v381
    %v383 = vrot.slane %v268, %v382
    %v384 = vlaneseq
    %v385 = vshrl.u32 %v384, 7
    %v386 = vsub.s32 0, %v385
    %v387 = vrot.slane %v276, %v386
    %v388 = vlaneseq
    %v389 = vshrl.u32 %v388, 7
    %v390 = vsub.s32 0, %v389
    %v391 = vrot.slane %v278, %v390
    %v392 = vlaneseq
    %v393 = vshrl.u32 %v392, 7
    %v394 = vsub.s32 0, %v393
    %v395 = vrot.slane %v261, %v394
    %v396 = vlaneseq
    %v397 = vshrl.u32 %v396, 7
    %v398 = vsub.s32 0, %v397
    %v399 = vrot.slane %v275, %v398
    %v400 = vlaneseq
    %v401 = vshrl.u32 %v400, 7
    %v402 = vsub.s32 0, %v401
    %v403 = vrot.slane %v277, %v402
    %v404 = vlaneseq
    %v405 = vshrl.u32 %v404, 7
    %v406 = vsub.s32 0, %v405
    %v407 = vrot.slane %v279, %v406
    %v440 = vsub.f32 %v283, %v16
    %v441 = vsub.f32 %v283, %v17
    %v442 = vsub.f32 %v283, %v18
    %v443 = vsub.f32 %v283, %v19
    %v444 = vsub.f32 %v283, %v20
    %v445 = vsub.f32 %v283, %v21
    %v446 = vsub.f32 %v283, %v22
    %v447 = vsub.f32 %v283, %v23
    %v448 = vsub.f32 %v283, %v24
    %v449 = vsub.f32 %v283, %v25
    %v450 = vsub.f32 %v283, %v26
    %v451 = vsub.f32 %v283, %v27
    %v452 = vsub.f32 %v283, %v28
    %v453 = vsub.f32 %v283, %v29
    %v454 = vsub.f32 %v283, %v30
    %v455 = vsub.f32 %v283, %v31
    %v456 = vsub.f32 %v287, %v16
    %v457 = vsub.f32 %v287, %v17
    %v458 = vsub.f32 %v287, %v18
    %v459 = vsub.f32 %v287, %v19
    %v460 = vsub.f32 %v287, %v20
    %v461 = vsub.f32 %v287, %v21
    %v462 = vsub.f32 %v287, %v22
    %v463 = vsub.f32 %v287, %v23
    %v464 = vsub.f32 %v287, %v24
    %v465 = vsub.f32 %v287, %v25
    %v466 = vsub.f32 %v287, %v26
    %v467 = vsub.f32 %v287, %v27
    %v468 = vsub.f32 %v287, %v28
    %v469 = vsub.f32 %v287, %v29
    %v470 = vsub.f32 %v287, %v30
    %v471 = vsub.f32 %v287, %v31
    %v472 = vsub.f32 %v291, %v16
    %v473 = vsub.f32 %v291, %v17
    %v474 = vsub.f32 %v291, %v18
    %v475 = vsub.f32 %v291, %v19
    %v476 = vsub.f32 %v291, %v20
    %v477 = vsub.f32 %v291, %v21
    %v478 = vsub.f32 %v291, %v22
    %v479 = vsub.f32 %v291, %v23
    %v480 = vsub.f32 %v291, %v24
    %v481 = vsub.f32 %v291, %v25
    %v482 = vsub.f32 %v291, %v26
    %v483 = vsub.f32 %v291, %v27
    %v484 = vsub.f32 %v291, %v28
    %v485 = vsub.f32 %v291, %v29
    %v486 = vsub.f32 %v291, %v30
    %v487 = vsub.f32 %v291, %v31
    %v488 = vsub.f32 %v295, %v16
    %v489 = vsub.f32 %v295, %v17
    %v490 = vsub.f32 %v295, %v18
    %v491 = vsub.f32 %v295, %v19
    %v492 = vsub.f32 %v295, %v20
    %v493 = vsub.f32 %v295, %v21
    %v494 = vsub.f32 %v295, %v22
    %v495 = vsub.f32 %v295, %v23
    %v496 = vsub.f32 %v295, %v24
    %v497 = vsub.f32 %v295, %v25
    %v498 = vsub.f32 %v295, %v26
    %v499 = vsub.f32 %v295, %v27
    %v500 = vsub.f32 %v295, %v28
    %v501 = vsub.f32 %v295, %v29
    %v502 = vsub.f32 %v295, %v30
    %v503 = vsub.f32 %v295, %v31
    %v504 = vsub.f32 %v299, %v16
    %v505 = vsub.f32 %v299, %v17
    %v506 = vsub.f32 %v299, %v18
    %v507 = vsub.f32 %v299, %v19
    %v508 = vsub.f32 %v299, %v20
    %v509 = vsub.f32 %v299, %v21
    %v510 = vsub.f32 %v299, %v22
    %v511 = vsub.f32 %v299, %v23
    %v512 = vsub.f32 %v299, %v24
    %v513 = vsub.f32 %v299, %v25
    %v514 = vsub.f32 %v299, %v26
    %v515 = vsub.f32 %v299, %v27
    %v516 = vsub.f32 %v299, %v28
    %v517 = vsub.f32 %v299, %v29
    %v518 = vsub.f32 %v299, %v30
    %v519 = vsub.f32 %v299, %v31
    %v520 = vsub.f32 %v303, %v16
    %v521 = vsub.f32 %v303, %v17
    %v522 = vsub.f32 %v303, %v18
    %v523 = vsub.f32 %v303, %v19
    %v524 = vsub.f32 %v303, %v20
    %v525 = vsub.f32 %v303, %v21
    %v526 = vsub.f32 %v303, %v22
    %v527 = vsub.f32 %v303, %v23
    %v528 = vsub.f32 %v303, %v24
    %v529 = vsub.f32 %v303, %v25
    %v530 = vsub.f32 %v303, %v26
    %v531 = vsub.f32 %v303, %v27
    %v532 = vsub.f32 %v303, %v28
    %v533 = vsub.f32 %v303, %v29
    %v534 = vsub.f32 %v303, %v30
    %v535 = vsub.f32 %v303, %v31
    %v536 = vsub.f32 %v307, %v16
    %v537 = vsub.f32 %v307, %v17
    %v538 = vsub.f32 %v307, %v18
    %v539 = vsub.f32 %v307, %v19
    %v540 = vsub.f32 %v307, %v20
    %v541 = vsub.f32 %v307, %v21
    %v542 = vsub.f32 %v307, %v22
    %v543 = vsub.f32 %v307, %v23
    %v544 = vsub.f32 %v307, %v24
    %v545 = vsub.f32 %v307, %v25
    %v546 = vsub.f32 %v307, %v26
    %v547 = vsub.f32 %v307, %v27
    %v548 = vsub.f32 %v307, %v28
    %v549 = vsub.f32 %v307, %v29
    %v550 = vsub.f32 %v307, %v30
    %v551 = vsub.f32 %v307, %v31
    %v552 = vsub.f32 %v311, %v16
    %v553 = vsub.f32 %v311, %v17
    %v554 = vsub.f32 %v311, %v18
    %v555 = vsub.f32 %v311, %v19
    %v556 = vsub.f32 %v311, %v20
    %v557 = vsub.f32 %v311, %v21
    %v558 = vsub.f32 %v311, %v22
    %v559 = vsub.f32 %v311, %v23
    %v560 = vsub.f32 %v311, %v24
    %v561 = vsub.f32 %v311, %v25
    %v562 = vsub.f32 %v311, %v26
    %v563 = vsub.f32 %v311, %v27
    %v564 = vsub.f32 %v311, %v28
    %v565 = vsub.f32 %v311, %v29
    %v566 = vsub.f32 %v311, %v30
    %v567 = vsub.f32 %v311, %v31
    %v568 = vsub.f32 %v315, %v32
    %v569 = vsub.f32 %v315, %v33
    %v570 = vsub.f32 %v315, %v34
    %v571 = vsub.f32 %v315, %v35
    %v572 = vsub.f32 %v315, %v36
    %v573 = vsub.f32 %v315, %v37
    %v574 = vsub.f32 %v315, %v38
    %v575 = vsub.f32 %v315, %v39
    %v576 = vsub.f32 %v315, %v40
    %v577 = vsub.f32 %v315, %v41
    %v578 = vsub.f32 %v315, %v42
    %v579 = vsub.f32 %v315, %v43
    %v580 = vsub.f32 %v315, %v44
    %v581 = vsub.f32 %v315, %v45
    %v582 = vsub.f32 %v315, %v46
    %v583 = vsub.f32 %v315, %v47
    %v584 = vsub.f32 %v319, %v32
    %v585 = vsub.f32 %v319, %v33
    %v586 = vsub.f32 %v319, %v34
    %v587 = vsub.f32 %v319, %v35
    %v588 = vsub.f32 %v319, %v36
    %v589 = vsub.f32 %v319, %v37
    %v590 = vsub.f32 %v319, %v38
    %v591 = vsub.f32 %v319, %v39
    %v592 = vsub.f32 %v319, %v40
    %v593 = vsub.f32 %v319, %v41
    %v594 = vsub.f32 %v319, %v42
    %v595 = vsub.f32 %v319, %v43
    %v596 = vsub.f32 %v319, %v44
    %v597 = vsub.f32 %v319, %v45
    %v598 = vsub.f32 %v319, %v46
    %v599 = vsub.f32 %v319, %v47
    %v600 = vsub.f32 %v323, %v32
    %v601 = vsub.f32 %v323, %v33
    %v602 = vsub.f32 %v323, %v34
    %v603 = vsub.f32 %v323, %v35
    %v604 = vsub.f32 %v323, %v36
    %v605 = vsub.f32 %v323, %v37
    %v606 = vsub.f32 %v323, %v38
    %v607 = vsub.f32 %v323, %v39
    %v608 = vsub.f32 %v323, %v40
    %v609 = vsub.f32 %v323, %v41
    %v610 = vsub.f32 %v323, %v42
    %v611 = vsub.f32 %v323, %v43
    %v612 = vsub.f32 %v323, %v44
    %v613 = vsub.f32 %v323, %v45
    %v614 = vsub.f32 %v323, %v46
    %v615 = vsub.f32 %v323, %v47
    %v616 = vsub.f32 %v327, %v32
    %v617 = vsub.f32 %v327, %v33
    %v618 = vsub.f32 %v327, %v34
    %v619 = vsub.f32 %v327, %v35
    %v620 = vsub.f32 %v327, %v36
    %v621 = vsub.f32 %v327, %v37
    %v622 = vsub.f32 %v327, %v38
    %v623 = vsub.f32 %v327, %v39
    %v624 = vsub.f32 %v327, %v40
    %v625 = vsub.f32 %v327, %v41
    %v626 = vsub.f32 %v327, %v42
    %v627 = vsub.f32 %v327, %v43
    %v628 = vsub.f32 %v327, %v44
    %v629 = vsub.f32 %v327, %v45
    %v630 = vsub.f32 %v327, %v46
    %v631 = vsub.f32 %v327, %v47
    %v632 = vsub.f32 %v331, %v32
    %v633 = vsub.f32 %v331, %v33
    %v634 = vsub.f32 %v331, %v34
    %v635 = vsub.f32 %v331, %v35
    %v636 = vsub.f32 %v331, %v36
    %v637 = vsub.f32 %v331, %v37
    %v638 = vsub.f32 %v331, %v38
    %v639 = vsub.f32 %v331, %v39
    %v640 = vsub.f32 %v331, %v40
    %v641 = vsub.f32 %v331, %v41
    %v642 = vsub.f32 %v331, %v42
    %v643 = vsub.f32 %v331, %v43
    %v644 = vsub.f32 %v331, %v44
    %v645 = vsub.f32 %v331, %v45
    %v646 = vsub.f32 %v331, %v46
    %v647 = vsub.f32 %v331, %v47
    %v648 = vsub.f32 %v335, %v32
    %v649 = vsub.f32 %v335, %v33
    %v650 = vsub.f32 %v335, %v34
    %v651 = vsub.f32 %v335, %v35
    %v652 = vsub.f32 %v335, %v36
    %v653 = vsub.f32 %v335, %v37
    %v654 = vsub.f32 %v335, %v38
    %v655 = vsub.f32 %v335, %v39
    %v656 = vsub.f32 %v335, %v40
    %v657 = vsub.f32 %v335, %v41
    %v658 = vsub.f32 %v335, %v42
    %v659 = vsub.f32 %v335, %v43
    %v660 = vsub.f32 %v335, %v44
    %v661 = vsub.f32 %v335, %v45
    %v662 = vsub.f32 %v335, %v46
    %v663 = vsub.f32 %v335, %v47
    %v664 = vsub.f32 %v339, %v32
    %v665 = vsub.f32 %v339, %v33
    %v666 = vsub.f32 %v339, %v34
    %v667 = vsub.f32 %v339, %v35
    %v668 = vsub.f32 %v339, %v36
    %v669 = vsub.f32 %v339, %v37
    %v670 = vsub.f32 %v339, %v38
    %v671 = vsub.f32 %v339, %v39
    %v672 = vsub.f32 %v339, %v40
    %v673 = vsub.f32 %v339, %v41
    %v674 = vsub.f32 %v339, %v42
    %v675 = vsub.f32 %v339, %v43
    %v676 = vsub.f32 %v339, %v44
    %v677 = vsub.f32 %v339, %v45
    %v678 = vsub.f32 %v339, %v46
    %v679 = vsub.f32 %v339, %v47
    %v680 = vsub.f32 %v343, %v32
    %v681 = vsub.f32 %v343, %v33
    %v682 = vsub.f32 %v343, %v34
    %v683 = vsub.f32 %v343, %v35
    %v684 = vsub.f32 %v343, %v36
    %v685 = vsub.f32 %v343, %v37
    %v686 = vsub.f32 %v343, %v38
    %v687 = vsub.f32 %v343, %v39
    %v688 = vsub.f32 %v343, %v40
    %v689 = vsub.f32 %v343, %v41
    %v690 = vsub.f32 %v343, %v42
    %v691 = vsub.f32 %v343, %v43
    %v692 = vsub.f32 %v343, %v44
    %v693 = vsub.f32 %v343, %v45
    %v694 = vsub.f32 %v343, %v46
    %v695 = vsub.f32 %v343, %v47
    %v696 = vsub.f32 %v347, %v48
    %v697 = vsub.f32 %v347, %v49
    %v698 = vsub.f32 %v347, %v50
    %v699 = vsub.f32 %v347, %v51
    %v700 = vsub.f32 %v347, %v52
    %v701 = vsub.f32 %v347, %v53
    %v702 = vsub.f32 %v347, %v54
    %v703 = vsub.f32 %v347, %v55
    %v704 = vsub.f32 %v347, %v56
    %v705 = vsub.f32 %v347, %v57
    %v706 = vsub.f32 %v347, %v58
    %v707 = vsub.f32 %v347, %v59
    %v708 = vsub.f32 %v347, %v60
    %v709 = vsub.f32 %v347, %v61
    %v710 = vsub.f32 %v347, %v62
    %v711 = vsub.f32 %v347, %v63
    %v712 = vsub.f32 %v351, %v48
    %v713 = vsub.f32 %v351, %v49
    %v714 = vsub.f32 %v351, %v50
    %v715 = vsub.f32 %v351, %v51
    %v716 = vsub.f32 %v351, %v52
    %v717 = vsub.f32 %v351, %v53
    %v718 = vsub.f32 %v351, %v54
    %v719 = vsub.f32 %v351, %v55
    %v720 = vsub.f32 %v351, %v56
    %v721 = vsub.f32 %v351, %v57
    %v722 = vsub.f32 %v351, %v58
    %v723 = vsub.f32 %v351, %v59
    %v724 = vsub.f32 %v351, %v60
    %v725 = vsub.f32 %v351, %v61
    %v726 = vsub.f32 %v351, %v62
    %v727 = vsub.f32 %v351, %v63
    %v728 = vsub.f32 %v355, %v48
    %v729 = vsub.f32 %v355, %v49
    %v730 = vsub.f32 %v355, %v50
    %v731 = vsub.f32 %v355, %v51
    %v732 = vsub.f32 %v355, %v52
    %v733 = vsub.f32 %v355, %v53
    %v734 = vsub.f32 %v355, %v54
    %v735 = vsub.f32 %v355, %v55
    %v736 = vsub.f32 %v355, %v56
    %v737 = vsub.f32 %v355, %v57
    %v738 = vsub.f32 %v355, %v58
    %v739 = vsub.f32 %v355, %v59
    %v740 = vsub.f32 %v355, %v60
    %v741 = vsub.f32 %v355, %v61
    %v742 = vsub.f32 %v355, %v62
    %v743 = vsub.f32 %v355, %v63
    %v744 = vsub.f32 %v359, %v48
    %v745 = vsub.f32 %v359, %v49
    %v746 = vsub.f32 %v359, %v50
    %v747 = vsub.f32 %v359, %v51
    %v748 = vsub.f32 %v359, %v52
    %v749 = vsub.f32 %v359, %v53
    %v750 = vsub.f32 %v359, %v54
    %v751 = vsub.f32 %v359, %v55
    %v752 = vsub.f32 %v359, %v56
    %v753 = vsub.f32 %v359, %v57
    %v754 = vsub.f32 %v359, %v58
    %v755 = vsub.f32 %v359, %v59
    %v756 = vsub.f32 %v359, %v60
    %v757 = vsub.f32 %v359, %v61
    %v758 = vsub.f32 %v359, %v62
    %v759 = vsub.f32 %v359, %v63
    %v760 = vsub.f32 %v363, %v48
    %v761 = vsub.f32 %v363, %v49
    %v762 = vsub.f32 %v363, %v50
    %v763 = vsub.f32 %v363, %v51
    %v764 = vsub.f32 %v363, %v52
    %v765 = vsub.f32 %v363, %v53
    %v766 = vsub.f32 %v363, %v54
    %v767 = vsub.f32 %v363, %v55
    %v768 = vsub.f32 %v363, %v56
    %v769 = vsub.f32 %v363, %v57
    %v770 = vsub.f32 %v363, %v58
    %v771 = vsub.f32 %v363, %v59
    %v772 = vsub.f32 %v363, %v60
    %v773 = vsub.f32 %v363, %v61
    %v774 = vsub.f32 %v363, %v62
    %v775 = vsub.f32 %v363, %v63
    %v776 = vsub.f32 %v367, %v48
    %v777 = vsub.f32 %v367, %v49
    %v778 = vsub.f32 %v367, %v50
    %v779 = vsub.f32 %v367, %v51
    %v780 = vsub.f32 %v367, %v52
    %v781 = vsub.f32 %v367, %v53
    %v782 = vsub.f32 %v367, %v54
    %v783 = vsub.f32 %v367, %v55
    %v784 = vsub.f32 %v367, %v56
    %v785 = vsub.f32 %v367, %v57
    %v786 = vsub.f32 %v367, %v58
    %v787 = vsub.f32 %v367, %v59
    %v788 = vsub.f32 %v367, %v60
    %v789 = vsub.f32 %v367, %v61
    %v790 = vsub.f32 %v367, %v62
    %v791 = vsub.f32 %v367, %v63
    %v792 = vsub.f32 %v371, %v48
    %v793 = vsub.f32 %v371, %v49
    %v794 = vsub.f32 %v371, %v50
    %v795 = vsub.f32 %v371, %v51
    %v796 = vsub.f32 %v371, %v52
    %v797 = vsub.f32 %v371, %v53
    %v798 = vsub.f32 %v371, %v54
    %v799 = vsub.f32 %v371, %v55
    %v800 = vsub.f32 %v371, %v56
    %v801 = vsub.f32 %v371, %v57
    %v802 = vsub.f32 %v371, %v58
    %v803 = vsub.f32 %v371, %v59
    %v804 = vsub.f32 %v371, %v60
    %v805 = vsub.f32 %v371, %v61
    %v806 = vsub.f32 %v371, %v62
    %v807 = vsub.f32 %v371, %v63
    %v808 = vsub.f32 %v375, %v48
    %v809 = vsub.f32 %v375, %v49
    %v810 = vsub.f32 %v375, %v50
    %v811 = vsub.f32 %v375, %v51
    %v812 = vsub.f32 %v375, %v52
    %v813 = vsub.f32 %v375, %v53
    %v814 = vsub.f32 %v375, %v54
    %v815 = vsub.f32 %v375, %v55
    %v816 = vsub.f32 %v375, %v56
    %v817 = vsub.f32 %v375, %v57
    %v818 = vsub.f32 %v375, %v58
    %v819 = vsub.f32 %v375, %v59
    %v820 = vsub.f32 %v375, %v60
    %v821 = vsub.f32 %v375, %v61
    %v822 = vsub.f32 %v375, %v62
    %v823 = vsub.f32 %v375, %v63
    %v824 = vsub.f32 %v379, %v64
    %v825 = vsub.f32 %v379, %v65
    %v826 = vsub.f32 %v379, %v66
    %v827 = vsub.f32 %v379, %v67
    %v828 = vsub.f32 %v379, %v68
    %v829 = vsub.f32 %v379, %v69
    %v830 = vsub.f32 %v379, %v70
    %v831 = vsub.f32 %v379, %v71
    %v832 = vsub.f32 %v379, %v72
    %v833 = vsub.f32 %v379, %v73
    %v834 = vsub.f32 %v379, %v74
    %v835 = vsub.f32 %v379, %v75
    %v836 = vsub.f32 %v379, %v76
    %v837 = vsub.f32 %v379, %v77
    %v838 = vsub.f32 %v379, %v78
    %v839 = vsub.f32 %v379, %v79
    %v840 = vsub.f32 %v383, %v64
    %v841 = vsub.f32 %v383, %v65
    %v842 = vsub.f32 %v383, %v66
    %v843 = vsub.f32 %v383, %v67
    %v844 = vsub.f32 %v383, %v68
    %v845 = vsub.f32 %v383, %v69
    %v846 = vsub.f32 %v383, %v70
    %v847 = vsub.f32 %v383, %v71
    %v848 = vsub.f32 %v383, %v72
    %v849 = vsub.f32 %v383, %v73
    %v850 = vsub.f32 %v383, %v74
    %v851 = vsub.f32 %v383, %v75
    %v852 = vsub.f32 %v383, %v76
    %v853 = vsub.f32 %v383, %v77
    %v854 = vsub.f32 %v383, %v78
    %v855 = vsub.f32 %v383, %v79
    %v856 = vsub.f32 %v387, %v64
    %v857 = vsub.f32 %v387, %v65
    %v858 = vsub.f32 %v387, %v66
    %v859 = vsub.f32 %v387, %v67
    %v860 = vsub.f32 %v387, %v68
    %v861 = vsub.f32 %v387, %v69
    %v862 = vsub.f32 %v387, %v70
    %v863 = vsub.f32 %v387, %v71
    %v864 = vsub.f32 %v387, %v72
    %v865 = vsub.f32 %v387, %v73
    %v866 = vsub.f32 %v387, %v74
    %v867 = vsub.f32 %v387, %v75
    %v868 = vsub.f32 %v387, %v76
    %v869 = vsub.f32 %v387, %v77
    %v870 = vsub.f32 %v387, %v78
    %v871 = vsub.f32 %v387, %v79
    %v872 = vsub.f32 %v391, %v64
    %v873 = vsub.f32 %v391, %v65
    %v874 = vsub.f32 %v391, %v66
    %v875 = vsub.f32 %v391, %v67
    %v876 = vsub.f32 %v391, %v68
    %v877 = vsub.f32 %v391, %v69
    %v878 = vsub.f32 %v391, %v70
    %v879 = vsub.f32 %v391, %v71
    %v880 = vsub.f32 %v391, %v72
    %v881 = vsub.f32 %v391, %v73
    %v882 = vsub.f32 %v391, %v74
    %v883 = vsub.f32 %v391, %v75
    %v884 = vsub.f32 %v391, %v76
    %v885 = vsub.f32 %v391, %v77
    %v886 = vsub.f32 %v391, %v78
    %v887 = vsub.f32 %v391, %v79
    %v888 = vsub.f32 %v395, %v64
    %v889 = vsub.f32 %v395, %v65
    %v890 = vsub.f32 %v395, %v66
    %v891 = vsub.f32 %v395, %v67
    %v892 = vsub.f32 %v395, %v68
    %v893 = vsub.f32 %v395, %v69
    %v894 = vsub.f32 %v395, %v70
    %v895 = vsub.f32 %v395, %v71
    %v896 = vsub.f32 %v395, %v72
    %v897 = vsub.f32 %v395, %v73
    %v898 = vsub.f32 %v395, %v74
    %v899 = vsub.f32 %v395, %v75
    %v900 = vsub.f32 %v395, %v76
    %v901 = vsub.f32 %v395, %v77
    %v902 = vsub.f32 %v395, %v78
    %v903 = vsub.f32 %v395, %v79
    %v904 = vsub.f32 %v399, %v64
    %v905 = vsub.f32 %v399, %v65
    %v906 = vsub.f32 %v399, %v66
    %v907 = vsub.f32 %v399, %v67
    %v908 = vsub.f32 %v399, %v68
    %v909 = vsub.f32 %v399, %v69
    %v910 = vsub.f32 %v399, %v70
    %v911 = vsub.f32 %v399, %v71
    %v912 = vsub.f32 %v399, %v72
    %v913 = vsub.f32 %v399, %v73
    %v914 = vsub.f32 %v399, %v74
    %v915 = vsub.f32 %v399, %v75
    %v916 = vsub.f32 %v399, %v76
    %v917 = vsub.f32 %v399, %v77
    %v918 = vsub.f32 %v399, %v78
    %v919 = vsub.f32 %v399, %v79
    %v920 = vsub.f32 %v403, %v64
    %v921 = vsub.f32 %v403, %v65
    %v922 = vsub.f32 %v403, %v66
    %v923 = vsub.f32 %v403, %v67
    %v924 = vsub.f32 %v403, %v68
    %v925 = vsub.f32 %v403, %v69
    %v926 = vsub.f32 %v403, %v70
    %v927 = vsub.f32 %v403, %v71
    %v928 = vsub.f32 %v403, %v72
    %v929 = vsub.f32 %v403, %v73
    %v930 = vsub.f32 %v403, %v74
    %v931 = vsub.f32 %v403, %v75
    %v932 = vsub.f32 %v403, %v76
    %v933 = vsub.f32 %v403, %v77
    %v934 = vsub.f32 %v403, %v78
    %v935 = vsub.f32 %v403, %v79
    %v936 = vsub.f32 %v407, %v64
    %v937 = vsub.f32 %v407, %v65
    %v938 = vsub.f32 %v407, %v66
    %v939 = vsub.f32 %v407, %v67
    %v940 = vsub.f32 %v407, %v68
    %v941 = vsub.f32 %v407, %v69
    %v942 = vsub.f32 %v407, %v70
    %v943 = vsub.f32 %v407, %v71
    %v944 = vsub.f32 %v407, %v72
    %v945 = vsub.f32 %v407, %v73
    %v946 = vsub.f32 %v407, %v74
    %v947 = vsub.f32 %v407, %v75
    %v948 = vsub.f32 %v407, %v76
    %v949 = vsub.f32 %v407, %v77
    %v950 = vsub.f32 %v407, %v78
    %v951 = vsub.f32 %v407, %v79
    %v952 = vmul.f32 %v440, %v440
    %v953 = vmul.f32 %v441, %v441
    %v954 = vmul.f32 %v442, %v442
    %v955 = vmul.f32 %v443, %v443
    %v956 = vmul.f32 %v444, %v444
    %v957 = vmul.f32 %v445, %v445
    %v958 = vmul.f32 %v446, %v446
    %v959 = vmul.f32 %v447, %v447
    %v960 = vmul.f32 %v448, %v448
    %v961 = vmul.f32 %v449, %v449
    %v962 = vmul.f32 %v450, %v450
    %v963 = vmul.f32 %v451, %v451
    %v964 = vmul.f32 %v452, %v452
    %v965 = vmul.f32 %v453, %v453
    %v966 = vmul.f32 %v454, %v454
    %v967 = vmul.f32 %v455, %v455
    %v968 = vmul.f32 %v456, %v456
    %v969 = vmul.f32 %v457, %v457
    %v970 = vmul.f32 %v458, %v458
    %v971 = vmul.f32 %v459, %v459
    %v972 = vmul.f32 %v460, %v460
    %v973 = vmul.f32 %v461, %v461
    %v974 = vmul.f32 %v462, %v462
    %v975 = vmul.f32 %v463, %v463
    %v976 = vmul.f32 %v464, %v464
    %v977 = vmul.f32 %v465, %v465
    %v978 = vmul.f32 %v466, %v466
    %v979 = vmul.f32 %v467, %v467
    %v980 = vmul.f32 %v468, %v468
    %v981 = vmul.f32 %v469, %v469
    %v982 = vmul.f32 %v470, %v470
    %v983 = vmul.f32 %v471, %v471
    %v984 = vmul.f32 %v472, %v472
    %v985 = vmul.f32 %v473, %v473
    %v986 = vmul.f32 %v474, %v474
    %v987 = vmul.f32 %v475, %v475
    %v988 = vmul.f32 %v476, %v476
    %v989 = vmul.f32 %v477, %v477
    %v990 = vmul.f32 %v478, %v478
    %v991 = vmul.f32 %v479, %v479
    %v992 = vmul.f32 %v480, %v480
    %v993 = vmul.f32 %v481, %v481
    %v994 = vmul.f32 %v482, %v482
    %v995 = vmul.f32 %v483, %v483
    %v996 = vmul.f32 %v484, %v484
    %v997 = vmul.f32 %v485, %v485
    %v998 = vmul.f32 %v486, %v486
    %v999 = vmul.f32 %v487, %v487
    %v1000 = vmul.f32 %v488, %v488
    %v1001 = vmul.f32 %v489, %v489
    %v1002 = vmul.f32 %v490, %v490
    %v1003 = vmul.f32 %v491, %v491
    %v1004 = vmul.f32 %v492, %v492
    %v1005 = vmul.f32 %v493, %v493
    %v1006 = vmul.f32 %v494, %v494
    %v1007 = vmul.f32 %v495, %v495
    %v1008 = vmul.f32 %v496, %v496
    %v1009 = vmul.f32 %v497, %v497
    %v1010 = vmul.f32 %v498, %v498
    %v1011 = vmul.f32 %v499, %v499
    %v1012 = vmul.f32 %v500, %v500
    %v1013 = vmul.f32 %v501, %v501
    %v1014 = vmul.f32 %v502, %v502
    %v1015 = vmul.f32 %v503, %v503
    %v1016 = vmul.f32 %v504, %v504
    %v1017 = vmul.f32 %v505, %v505
    %v1018 = vmul.f32 %v506, %v506
    %v1019 = vmul.f32 %v507, %v507
    %v1020 = vmul.f32 %v508, %v508
    %v1021 = vmul.f32 %v509, %v509
    %v1022 = vmul.f32 %v510, %v510
    %v1023 = vmul.f32 %v511, %v511
    %v1024 = vmul.f32 %v512, %v512
    %v1025 = vmul.f32 %v513, %v513
    %v1026 = vmul.f32 %v514, %v514
    %v1027 = vmul.f32 %v515, %v515
    %v1028 = vmul.f32 %v516, %v516
    %v1029 = vmul.f32 %v517, %v517
    %v1030 = vmul.f32 %v518, %v518
    %v1031 = vmul.f32 %v519, %v519
    %v1032 = vmul.f32 %v520, %v520
    %v1033 = vmul.f32 %v521, %v521
    %v1034 = vmul.f32 %v522, %v522
    %v1035 = vmul.f32 %v523, %v523
    %v1036 = vmul.f32 %v524, %v524
    %v1037 = vmul.f32 %v525, %v525
    %v1038 = vmul.f32 %v526, %v526
    %v1039 = vmul.f32 %v527, %v527
    %v1040 = vmul.f32 %v528, %v528
    %v1041 = vmul.f32 %v529, %v529
    %v1042 = vmul.f32 %v530, %v530
    %v1043 = vmul.f32 %v531, %v531
    %v1044 = vmul.f32 %v532, %v532
    %v1045 = vmul.f32 %v533, %v533
    %v1046 = vmul.f32 %v534, %v534
    %v1047 = vmul.f32 %v535, %v535
    %v1048 = vmul.f32 %v536, %v536
    %v1049 = vmul.f32 %v537, %v537
    %v1050 = vmul.f32 %v538, %v538
    %v1051 = vmul.f32 %v539, %v539
    %v1052 = vmul.f32 %v540, %v540
    %v1053 = vmul.f32 %v541, %v541
    %v1054 = vmul.f32 %v542, %v542
    %v1055 = vmul.f32 %v543, %v543
    %v1056 = vmul.f32 %v544, %v544
    %v1057 = vmul.f32 %v545, %v545
    %v1058 = vmul.f32 %v546, %v546
    %v1059 = vmul.f32 %v547, %v547
    %v1060 = vmul.f32 %v548, %v548
    %v1061 = vmul.f32 %v549, %v549
    %v1062 = vmul.f32 %v550, %v550
    %v1063 = vmul.f32 %v551, %v551
    %v1064 = vmul.f32 %v552, %v552
    %v1065 = vmul.f32 %v553, %v553
    %v1066 = vmul.f32 %v554, %v554
    %v1067 = vmul.f32 %v555, %v555
    %v1068 = vmul.f32 %v556, %v556
    %v1069 = vmul.f32 %v557, %v557
    %v1070 = vmul.f32 %v558, %v558
    %v1071 = vmul.f32 %v559, %v559
    %v1072 = vmul.f32 %v560, %v560
    %v1073 = vmul.f32 %v561, %v561
    %v1074 = vmul.f32 %v562, %v562
    %v1075 = vmul.f32 %v563, %v563
    %v1076 = vmul.f32 %v564, %v564
    %v1077 = vmul.f32 %v565, %v565
    %v1078 = vmul.f32 %v566, %v566
    %v1079 = vmul.f32 %v567, %v567
    %v1080 = vmul.f32 %v568, %v568
    %v1081 = vmul.f32 %v569, %v569
    %v1082 = vmul.f32 %v570, %v570
    %v1083 = vmul.f32 %v571, %v571
    %v1084 = vmul.f32 %v572, %v572
    %v1085 = vmul.f32 %v573, %v573
    %v1086 = vmul.f32 %v574, %v574
    %v1087 = vmul.f32 %v575, %v575
    %v1088 = vmul.f32 %v576, %v576
    %v1089 = vmul.f32 %v577, %v577
    %v1090 = vmul.f32 %v578, %v578
    %v1091 = vmul.f32 %v579, %v579
    %v1092 = vmul.f32 %v580, %v580
    %v1093 = vmul.f32 %v581, %v581
    %v1094 = vmul.f32 %v582, %v582
    %v1095 = vmul.f32 %v583, %v583
    %v1096 = vmul.f32 %v584, %v584
    %v1097 = vmul.f32 %v585, %v585
    %v1098 = vmul.f32 %v586, %v586
    %v1099 = vmul.f32 %v587, %v587
    %v1100 = vmul.f32 %v588, %v588
    %v1101 = vmul.f32 %v589, %v589
    %v1102 = vmul.f32 %v590, %v590
    %v1103 = vmul.f32 %v591, %v591
    %v1104 = vmul.f32 %v592, %v592
    %v1105 = vmul.f32 %v593, %v593
    %v1106 = vmul.f32 %v594, %v594
    %v1107 = vmul.f32 %v595, %v595
    %v1108 = vmul.f32 %v596, %v596
    %v1109 = vmul.f32 %v597, %v597
    %v1110 = vmul.f32 %v598, %v598
    %v1111 = vmul.f32 %v599, %v599
    %v1112 = vmul.f32 %v600, %v600
    %v1113 = vmul.f32 %v601, %v601
    %v1114 = vmul.f32 %v602, %v602
    %v1115 = vmul.f32 %v603, %v603
    %v1116 = vmul.f32 %v604, %v604
    %v1117 = vmul.f32 %v605, %v605
    %v1118 = vmul.f32 %v606, %v606
    %v1119 = vmul.f32 %v607, %v607
    %v1120 = vmul.f32 %v608, %v608
    %v1121 = vmul.f32 %v609, %v609
    %v1122 = vmul.f32 %v610, %v610
    %v1123 = vmul.f32 %v611, %v611
    %v1124 = vmul.f32 %v612, %v612
    %v1125 = vmul.f32 %v613, %v613
    %v1126 = vmul.f32 %v614, %v614
    %v1127 = vmul.f32 %v615, %v615
    %v1128 = vmul.f32 %v616, %v616
    %v1129 = vmul.f32 %v617, %v617
    %v1130 = vmul.f32 %v618, %v618
    %v1131 = vmul.f32 %v619, %v619
    %v1132 = vmul.f32 %v620, %v620
    %v1133 = vmul.f32 %v621, %v621
    %v1134 = vmul.f32 %v622, %v622
    %v1135 = vmul.f32 %v623, %v623
    %v1136 = vmul.f32 %v624, %v624
    %v1137 = vmul.f32 %v625, %v625
    %v1138 = vmul.f32 %v626, %v626
    %v1139 = vmul.f32 %v627, %v627
    %v1140 = vmul.f32 %v628, %v628
    %v1141 = vmul.f32 %v629, %v629
    %v1142 = vmul.f32 %v630, %v630
    %v1143 = vmul.f32 %v631, %v631
    %v1144 = vmul.f32 %v632, %v632
    %v1145 = vmul.f32 %v633, %v633
    %v1146 = vmul.f32 %v634, %v634
    %v1147 = vmul.f32 %v635, %v635
    %v1148 = vmul.f32 %v636, %v636
    %v1149 = vmul.f32 %v637, %v637
    %v1150 = vmul.f32 %v638, %v638
    %v1151 = vmul.f32 %v639, %v639
    %v1152 = vmul.f32 %v640, %v640
    %v1153 = vmul.f32 %v641, %v641
    %v1154 = vmul.f32 %v642, %v642
    %v1155 = vmul.f32 %v643, %v643
    %v1156 = vmul.f32 %v644, %v644
    %v1157 = vmul.f32 %v645, %v645
    %v1158 = vmul.f32 %v646, %v646
    %v1159 = vmul.f32 %v647, %v647
    %v1160 = vmul.f32 %v648, %v648
    %v1161 = vmul.f32 %v649, %v649
    %v1162 = vmul.f32 %v650, %v650
    %v1163 = vmul.f32 %v651, %v651
    %v1164 = vmul.f32 %v652, %v652
    %v1165 = vmul.f32 %v653, %v653
    %v1166 = vmul.f32 %v654, %v654
    %v1167 = vmul.f32 %v655, %v655
    %v1168 = vmul.f32 %v656, %v656
    %v1169 = vmul.f32 %v657, %v657
    %v1170 = vmul.f32 %v658, %v658
    %v1171 = vmul.f32 %v659, %v659
    %v1172 = vmul.f32 %v660, %v660
    %v1173 = vmul.f32 %v661, %v661
    %v1174 = vmul.f32 %v662, %v662
    %v1175 = vmul.f32 %v663, %v663
    %v1176 = vmul.f32 %v664, %v664
    %v1177 = vmul.f32 %v665, %v665
    %v1178 = vmul.f32 %v666, %v666
    %v1179 = vmul.f32 %v667, %v667
    %v1180 = vmul.f32 %v668, %v668
    %v1181 = vmul.f32 %v669, %v669
    %v1182 = vmul.f32 %v670, %v670
    %v1183 = vmul.f32 %v671, %v671
    %v1184 = vmul.f32 %v672, %v672
    %v1185 = vmul.f32 %v673, %v673
    %v1186 = vmul.f32 %v674, %v674
    %v1187 = vmul.f32 %v675, %v675
    %v1188 = vmul.f32 %v676, %v676
    %v1189 = vmul.f32 %v677, %v677
    %v1190 = vmul.f32 %v678, %v678
    %v1191 = vmul.f32 %v679, %v679
    %v1192 = vmul.f32 %v680, %v680
    %v1193 = vmul.f32 %v681, %v681
    %v1194 = vmul.f32 %v682, %v682
    %v1195 = vmul.f32 %v683, %v683
    %v1196 = vmul.f32 %v684, %v684
    %v1197 = vmul.f32 %v685, %v685
    %v1198 = vmul.f32 %v686, %v686
    %v1199 = vmul.f32 %v687, %v687
    %v1200 = vmul.f32 %v688, %v688
    %v1201 = vmul.f32 %v689, %v689
    %v1202 = vmul.f32 %v690, %v690
    %v1203 = vmul.f32 %v691, %v691
    %v1204 = vmul.f32 %v692, %v692
    %v1205 = vmul.f32 %v693, %v693
    %v1206 = vmul.f32 %v694, %v694
    %v1207 = vmul.f32 %v695, %v695
    %v1208 = vmul.f32 %v696, %v696
    %v1209 = vmul.f32 %v697, %v697
    %v1210 = vmul.f32 %v698, %v698
    %v1211 = vmul.f32 %v699, %v699
    %v1212 = vmul.f32 %v700, %v700
    %v1213 = vmul.f32 %v701, %v701
    %v1214 = vmul.f32 %v702, %v702
    %v1215 = vmul.f32 %v703, %v703
    %v1216 = vmul.f32 %v704, %v704
    %v1217 = vmul.f32 %v705, %v705
    %v1218 = vmul.f32 %v706, %v706
    %v1219 = vmul.f32 %v707, %v707
    %v1220 = vmul.f32 %v708, %v708
    %v1221 = vmul.f32 %v709, %v709
    %v1222 = vmul.f32 %v710, %v710
    %v1223 = vmul.f32 %v711, %v711
    %v1224 = vmul.f32 %v712, %v712
    %v1225 = vmul.f32 %v713, %v713
    %v1226 = vmul.f32 %v714, %v714
    %v1227 = vmul.f32 %v715, %v715
    %v1228 = vmul.f32 %v716, %v716
    %v1229 = vmul.f32 %v717, %v717
    %v1230 = vmul.f32 %v718, %v718
    %v1231 = vmul.f32 %v719, %v719
    %v1232 = vmul.f32 %v720, %v720
    %v1233 = vmul.f32 %v721, %v721
    %v1234 = vmul.f32 %v722, %v722
    %v1235 = vmul.f32 %v723, %v723
    %v1236 = vmul.f32 %v724, %v724
    %v1237 = vmul.f32 %v725, %v725
    %v1238 = vmul.f32 %v726, %v726
    %v1239 = vmul.f32 %v727, %v727
    %v1240 = vmul.f32 %v728, %v728
    %v1241 = vmul.f32 %v729, %v729
    %v1242 = vmul.f32 %v730, %v730
    %v1243 = vmul.f32 %v731, %v731
    %v1244 = vmul.f32 %v732, %v732
    %v1245 = vmul.f32 %v733, %v733
    %v1246 = vmul.f32 %v734, %v734
    %v1247 = vmul.f32 %v735, %v735
    %v1248 = vmul.f32 %v736, %v736
    %v1249 = vmul.f32 %v737, %v737
    %v1250 = vmul.f32 %v738, %v738
    %v1251 = vmul.f32 %v739, %v739
    %v1252 = vmul.f32 %v740, %v740
    %v1253 = vmul.f32 %v741, %v741
    %v1254 = vmul.f32 %v742, %v742
    %v1255 = vmul.f32 %v743, %v743
    %v1256 = vmul.f32 %v744, %v744
    %v1257 = vmul.f32 %v745, %v745
    %v1258 = vmul.f32 %v746, %v746
    %v1259 = vmul.f32 %v747, %v747
    %v1260 = vmul.f32 %v748, %v748
    %v1261 = vmul.f32 %v749, %v749
    %v1262 = vmul.f32 %v750, %v750
    %v1263 = vmul.f32 %v751, %v751
    %v1264 = vmul.f32 %v752, %v752
    %v1265 = vmul.f32 %v753, %v753
    %v1266 = vmul.f32 %v754, %v754
    %v1267 = vmul.f32 %v755, %v755
    %v1268 = vmul.f32 %v756, %v756
    %v1269 = vmul.f32 %v757, %v757
    %v1270 = vmul.f32 %v758, %v758
    %v1271 = vmul.f32 %v759, %v759
    %v1272 = vmul.f32 %v760, %v760
    %v1273 = vmul.f32 %v761, %v761
    %v1274 = vmul.f32 %v762, %v762
    %v1275 = vmul.f32 %v763, %v763
    %v1276 = vmul.f32 %v764, %v764
    %v1277 = vmul.f32 %v765, %v765
    %v1278 = vmul.f32 %v766, %v766
    %v1279 = vmul.f32 %v767, %v767
    %v1280 = vmul.f32 %v768, %v768
    %v1281 = vmul.f32 %v769, %v769
    %v1282 = vmul.f32 %v770, %v770
    %v1283 = vmul.f32 %v771, %v771
    %v1284 = vmul.f32 %v772, %v772
    %v1285 = vmul.f32 %v773, %v773
    %v1286 = vmul.f32 %v774, %v774
    %v1287 = vmul.f32 %v775, %v775
    %v1288 = vmul.f32 %v776, %v776
    %v1289 = vmul.f32 %v777, %v777
    %v1290 = vmul.f32 %v778, %v778
    %v1291 = vmul.f32 %v779, %v779
    %v1292 = vmul.f32 %v780, %v780
    %v1293 = vmul.f32 %v781, %v781
    %v1294 = vmul.f32 %v782, %v782
    %v1295 = vmul.f32 %v783, %v783
    %v1296 = vmul.f32 %v784, %v784
    %v1297 = vmul.f32 %v785, %v785
    %v1298 = vmul.f32 %v786, %v786
    %v1299 = vmul.f32 %v787, %v787
    %v1300 = vmul.f32 %v788, %v788
    %v1301 = vmul.f32 %v789, %v789
    %v1302 = vmul.f32 %v790, %v790
    %v1303 = vmul.f32 %v791, %v791
    %v1304 = vmul.f32 %v792, %v792
    %v1305 = vmul.f32 %v793, %v793
    %v1306 = vmul.f32 %v794, %v794
    %v1307 = vmul.f32 %v795, %v795
    %v1308 = vmul.f32 %v796, %v796
    %v1309 = vmul.f32 %v797, %v797
    %v1310 = vmul.f32 %v798, %v798
    %v1311 = vmul.f32 %v799, %v799
    %v1312 = vmul.f32 %v800, %v800
    %v1313 = vmul.f32 %v801, %v801
    %v1314 = vmul.f32 %v802, %v802
    %v1315 = vmul.f32 %v803, %v803
    %v1316 = vmul.f32 %v804, %v804
    %v1317 = vmul.f32 %v805, %v805
    %v1318 = vmul.f32 %v806, %v806
    %v1319 = vmul.f32 %v807, %v807
    %v1320 = vmul.f32 %v808, %v808
    %v1321 = vmul.f32 %v809, %v809
    %v1322 = vmul.f32 %v810, %v810
    %v1323 = vmul.f32 %v811, %v811
    %v1324 = vmul.f32 %v812, %v812
    %v1325 = vmul.f32 %v813, %v813
    %v1326 = vmul.f32 %v814, %v814
    %v1327 = vmul.f32 %v815, %v815
    %v1328 = vmul.f32 %v816, %v816
    %v1329 = vmul.f32 %v817, %v817
    %v1330 = vmul.f32 %v818, %v818
    %v1331 = vmul.f32 %v819, %v819
    %v1332 = vmul.f32 %v820, %v820
    %v1333 = vmul.f32 %v821, %v821
    %v1334 = vmul.f32 %v822, %v822
    %v1335 = vmul.f32 %v823, %v823
    %v1336 = vmul.f32 %v824, %v824
    %v1337 = vmul.f32 %v825, %v825
    %v1338 = vmul.f32 %v826, %v826
    %v1339 = vmul.f32 %v827, %v827
    %v1340 = vmul.f32 %v828, %v828
    %v1341 = vmul.f32 %v829, %v829
    %v1342 = vmul.f32 %v830, %v830
    %v1343 = vmul.f32 %v831, %v831
    %v1344 = vmul.f32 %v832, %v832
    %v1345 = vmul.f32 %v833, %v833
    %v1346 = vmul.f32 %v834, %v834
    %v1347 = vmul.f32 %v835, %v835
    %v1348 = vmul.f32 %v836, %v836
    %v1349 = vmul.f32 %v837, %v837
    %v1350 = vmul.f32 %v838, %v838
    %v1351 = vmul.f32 %v839, %v839
    %v1352 = vmul.f32 %v840, %v840
    %v1353 = vmul.f32 %v841, %v841
    %v1354 = vmul.f32 %v842, %v842
    %v1355 = vmul.f32 %v843, %v843
    %v1356 = vmul.f32 %v844, %v844
    %v1357 = vmul.f32 %v845, %v845
    %v1358 = vmul.f32 %v846, %v846
    %v1359 = vmul.f32 %v847, %v847
    %v1360 = vmul.f32 %v848, %v848
    %v1361 = vmul.f32 %v849, %v849
    %v1362 = vmul.f32 %v850, %v850
    %v1363 = vmul.f32 %v851, %v851
    %v1364 = vmul.f32 %v852, %v852
    %v1365 = vmul.f32 %v853, %v853
    %v1366 = vmul.f32 %v854, %v854
    %v1367 = vmul.f32 %v855, %v855
    %v1368 = vmul.f32 %v856, %v856
    %v1369 = vmul.f32 %v857, %v857
    %v1370 = vmul.f32 %v858, %v858
    %v1371 = vmul.f32 %v859, %v859
    %v1372 = vmul.f32 %v860, %v860
    %v1373 = vmul.f32 %v861, %v861
    %v1374 = vmul.f32 %v862, %v862
    %v1375 = vmul.f32 %v863, %v863
    %v1376 = vmul.f32 %v864, %v864
    %v1377 = vmul.f32 %v865, %v865
    %v1378 = vmul.f32 %v866, %v866
    %v1379 = vmul.f32 %v867, %v867
    %v1380 = vmul.f32 %v868, %v868
    %v1381 = vmul.f32 %v869, %v869
    %v1382 = vmul.f32 %v870, %v870
    %v1383 = vmul.f32 %v871, %v871
    %v1384 = vmul.f32 %v872, %v872
    %v1385 = vmul.f32 %v873, %v873
    %v1386 = vmul.f32 %v874, %v874
    %v1387 = vmul.f32 %v875, %v875
    %v1388 = vmul.f32 %v876, %v876
    %v1389 = vmul.f32 %v877, %v877
    %v1390 = vmul.f32 %v878, %v878
    %v1391 = vmul.f32 %v879, %v879
    %v1392 = vmul.f32 %v880, %v880
    %v1393 = vmul.f32 %v881, %v881
    %v1394 = vmul.f32 %v882, %v882
    %v1395 = vmul.f32 %v883, %v883
    %v1396 = vmul.f32 %v884, %v884
    %v1397 = vmul.f32 %v885, %v885
    %v1398 = vmul.f32 %v886, %v886
    %v1399 = vmul.f32 %v887, %v887
    %v1400 = vmul.f32 %v888, %v888
    %v1401 = vmul.f32 %v889, %v889
    %v1402 = vmul.f32 %v890, %v890
    %v1403 = vmul.f32 %v891, %v891
    %v1404 = vmul.f32 %v892, %v892
    %v1405 = vmul.f32 %v893, %v893
    %v1406 = vmul.f32 %v894, %v894
    %v1407 = vmul.f32 %v895, %v895
    %v1408 = vmul.f32 %v896, %v896
    %v1409 = vmul.f32 %v897, %v897
    %v1410 = vmul.f32 %v898, %v898
    %v1411 = vmul.f32 %v899, %v899
    %v1412 = vmul.f32 %v900, %v900
    %v1413 = vmul.f32 %v901, %v901
    %v1414 = vmul.f32 %v902, %v902
    %v1415 = vmul.f32 %v903, %v903
    %v1416 = vmul.f32 %v904, %v904
    %v1417 = vmul.f32 %v905, %v905
    %v1418 = vmul.f32 %v906, %v906
    %v1419 = vmul.f32 %v907, %v907
    %v1420 = vmul.f32 %v908, %v908
    %v1421 = vmul.f32 %v909, %v909
    %v1422 = vmul.f32 %v910, %v910
    %v1423 = vmul.f32 %v911, %v911
    %v1424 = vmul.f32 %v912, %v912
    %v1425 = vmul.f32 %v913, %v913
    %v1426 = vmul.f32 %v914, %v914
    %v1427 = vmul.f32 %v915, %v915
    %v1428 = vmul.f32 %v916, %v916
    %v1429 = vmul.f32 %v917, %v917
    %v1430 = vmul.f32 %v918, %v918
    %v1431 = vmul.f32 %v919, %v919
    %v1432 = vmul.f32 %v920, %v920
    %v1433 = vmul.f32 %v921, %v921
    %v1434 = vmul.f32 %v922, %v922
    %v1435 = vmul.f32 %v923, %v923
    %v1436 = vmul.f32 %v924, %v924
    %v1437 = vmul.f32 %v925, %v925
    %v1438 = vmul.f32 %v926, %v926
    %v1439 = vmul.f32 %v927, %v927
    %v1440 = vmul.f32 %v928, %v928
    %v1441 = vmul.f32 %v929, %v929
    %v1442 = vmul.f32 %v930, %v930
    %v1443 = vmul.f32 %v931, %v931
    %v1444 = vmul.f32 %v932, %v932
    %v1445 = vmul.f32 %v933, %v933
    %v1446 = vmul.f32 %v934, %v934
    %v1447 = vmul.f32 %v935, %v935
    %v1448 = vmul.f32 %v936, %v936
    %v1449 = vmul.f32 %v937, %v937
    %v1450 = vmul.f32 %v938, %v938
    %v1451 = vmul.f32 %v939, %v939
    %v1452 = vmul.f32 %v940, %v940
    %v1453 = vmul.f32 %v941, %v941
    %v1454 = vmul.f32 %v942, %v942
    %v1455 = vmul.f32 %v943, %v943
    %v1456 = vmul.f32 %v944, %v944
    %v1457 = vmul.f32 %v945, %v945
    %v1458 = vmul.f32 %v946, %v946
    %v1459 = vmul.f32 %v947, %v947
    %v1460 = vmul.f32 %v948, %v948
    %v1461 = vmul.f32 %v949, %v949
    %v1462 = vmul.f32 %v950, %v950
    %v1463 = vmul.f32 %v951, %v951
    %vm1464 = vcmask 130048
    %v1465 = vsel %vm1464, %v952, 0.0
    %1466 = vadd.xlane.f32.xlu0 %v1465
    %v1467 = vpop.xlane.xlu0 %1466
    %v1468 = vsel %vm1464, %v953, 0.0
    %1469 = vadd.xlane.f32.xlu0 %v1468
    %v1470 = vpop.xlane.xlu0 %1469
    %v1471 = vsel %vm1464, %v954, 0.0
    %1472 = vadd.xlane.f32.xlu0 %v1471
    %v1473 = vpop.xlane.xlu0 %1472
    %v1474 = vsel %vm1464, %v955, 0.0
    %1475 = vadd.xlane.f32.xlu0 %v1474
    %v1476 = vpop.xlane.xlu0 %1475
    %v1477 = vsel %vm1464, %v956, 0.0
    %1478 = vadd.xlane.f32.xlu0 %v1477
    %v1479 = vpop.xlane.xlu0 %1478
    %v1480 = vsel %vm1464, %v957, 0.0
    %1481 = vadd.xlane.f32.xlu0 %v1480
    %v1482 = vpop.xlane.xlu0 %1481
    %v1483 = vsel %vm1464, %v958, 0.0
    %1484 = vadd.xlane.f32.xlu0 %v1483
    %v1485 = vpop.xlane.xlu0 %1484
    %v1486 = vsel %vm1464, %v959, 0.0
    %1487 = vadd.xlane.f32.xlu0 %v1486
    %v1488 = vpop.xlane.xlu0 %1487
    %v1489 = vsel %vm1464, %v960, 0.0
    %1490 = vadd.xlane.f32.xlu0 %v1489
    %v1491 = vpop.xlane.xlu0 %1490
    %v1492 = vsel %vm1464, %v961, 0.0
    %1493 = vadd.xlane.f32.xlu0 %v1492
    %v1494 = vpop.xlane.xlu0 %1493
    %v1495 = vsel %vm1464, %v962, 0.0
    %1496 = vadd.xlane.f32.xlu0 %v1495
    %v1497 = vpop.xlane.xlu0 %1496
    %v1498 = vsel %vm1464, %v963, 0.0
    %1499 = vadd.xlane.f32.xlu0 %v1498
    %v1500 = vpop.xlane.xlu0 %1499
    %v1501 = vsel %vm1464, %v964, 0.0
    %1502 = vadd.xlane.f32.xlu0 %v1501
    %v1503 = vpop.xlane.xlu0 %1502
    %v1504 = vsel %vm1464, %v965, 0.0
    %1505 = vadd.xlane.f32.xlu0 %v1504
    %v1506 = vpop.xlane.xlu0 %1505
    %v1507 = vsel %vm1464, %v966, 0.0
    %1508 = vadd.xlane.f32.xlu0 %v1507
    %v1509 = vpop.xlane.xlu0 %1508
    %v1510 = vsel %vm1464, %v967, 0.0
    %1511 = vadd.xlane.f32.xlu0 %v1510
    %v1512 = vpop.xlane.xlu0 %1511
    %v1513 = vsel %vm1464, %v968, 0.0
    %1514 = vadd.xlane.f32.xlu0 %v1513
    %v1515 = vpop.xlane.xlu0 %1514
    %v1516 = vsel %vm1464, %v969, 0.0
    %1517 = vadd.xlane.f32.xlu0 %v1516
    %v1518 = vpop.xlane.xlu0 %1517
    %v1519 = vsel %vm1464, %v970, 0.0
    %1520 = vadd.xlane.f32.xlu0 %v1519
    %v1521 = vpop.xlane.xlu0 %1520
    %v1522 = vsel %vm1464, %v971, 0.0
    %1523 = vadd.xlane.f32.xlu0 %v1522
    %v1524 = vpop.xlane.xlu0 %1523
    %v1525 = vsel %vm1464, %v972, 0.0
    %1526 = vadd.xlane.f32.xlu0 %v1525
    %v1527 = vpop.xlane.xlu0 %1526
    %v1528 = vsel %vm1464, %v973, 0.0
    %1529 = vadd.xlane.f32.xlu0 %v1528
    %v1530 = vpop.xlane.xlu0 %1529
    %v1531 = vsel %vm1464, %v974, 0.0
    %1532 = vadd.xlane.f32.xlu0 %v1531
    %v1533 = vpop.xlane.xlu0 %1532
    %v1534 = vsel %vm1464, %v975, 0.0
    %1535 = vadd.xlane.f32.xlu0 %v1534
    %v1536 = vpop.xlane.xlu0 %1535
    %v1537 = vsel %vm1464, %v976, 0.0
    %1538 = vadd.xlane.f32.xlu0 %v1537
    %v1539 = vpop.xlane.xlu0 %1538
    %v1540 = vsel %vm1464, %v977, 0.0
    %1541 = vadd.xlane.f32.xlu0 %v1540
    %v1542 = vpop.xlane.xlu0 %1541
    %v1543 = vsel %vm1464, %v978, 0.0
    %1544 = vadd.xlane.f32.xlu0 %v1543
    %v1545 = vpop.xlane.xlu0 %1544
    %v1546 = vsel %vm1464, %v979, 0.0
    %1547 = vadd.xlane.f32.xlu0 %v1546
    %v1548 = vpop.xlane.xlu0 %1547
    %v1549 = vsel %vm1464, %v980, 0.0
    %1550 = vadd.xlane.f32.xlu0 %v1549
    %v1551 = vpop.xlane.xlu0 %1550
    %v1552 = vsel %vm1464, %v981, 0.0
    %1553 = vadd.xlane.f32.xlu0 %v1552
    %v1554 = vpop.xlane.xlu0 %1553
    %v1555 = vsel %vm1464, %v982, 0.0
    %1556 = vadd.xlane.f32.xlu0 %v1555
    %v1557 = vpop.xlane.xlu0 %1556
    %v1558 = vsel %vm1464, %v983, 0.0
    %1559 = vadd.xlane.f32.xlu0 %v1558
    %v1560 = vpop.xlane.xlu0 %1559
    %v1561 = vsel %vm1464, %v984, 0.0
    %1562 = vadd.xlane.f32.xlu0 %v1561
    %v1563 = vpop.xlane.xlu0 %1562
    %v1564 = vsel %vm1464, %v985, 0.0
    %1565 = vadd.xlane.f32.xlu0 %v1564
    %v1566 = vpop.xlane.xlu0 %1565
    %v1567 = vsel %vm1464, %v986, 0.0
    %1568 = vadd.xlane.f32.xlu0 %v1567
    %v1569 = vpop.xlane.xlu0 %1568
    %v1570 = vsel %vm1464, %v987, 0.0
    %1571 = vadd.xlane.f32.xlu0 %v1570
    %v1572 = vpop.xlane.xlu0 %1571
    %v1573 = vsel %vm1464, %v988, 0.0
    %1574 = vadd.xlane.f32.xlu0 %v1573
    %v1575 = vpop.xlane.xlu0 %1574
    %v1576 = vsel %vm1464, %v989, 0.0
    %1577 = vadd.xlane.f32.xlu0 %v1576
    %v1578 = vpop.xlane.xlu0 %1577
    %v1579 = vsel %vm1464, %v990, 0.0
    %1580 = vadd.xlane.f32.xlu0 %v1579
    %v1581 = vpop.xlane.xlu0 %1580
    %v1582 = vsel %vm1464, %v991, 0.0
    %1583 = vadd.xlane.f32.xlu0 %v1582
    %v1584 = vpop.xlane.xlu0 %1583
    %v1585 = vsel %vm1464, %v992, 0.0
    %1586 = vadd.xlane.f32.xlu0 %v1585
    %v1587 = vpop.xlane.xlu0 %1586
    %v1588 = vsel %vm1464, %v993, 0.0
    %1589 = vadd.xlane.f32.xlu0 %v1588
    %v1590 = vpop.xlane.xlu0 %1589
    %v1591 = vsel %vm1464, %v994, 0.0
    %1592 = vadd.xlane.f32.xlu0 %v1591
    %v1593 = vpop.xlane.xlu0 %1592
    %v1594 = vsel %vm1464, %v995, 0.0
    %1595 = vadd.xlane.f32.xlu0 %v1594
    %v1596 = vpop.xlane.xlu0 %1595
    %v1597 = vsel %vm1464, %v996, 0.0
    %1598 = vadd.xlane.f32.xlu0 %v1597
    %v1599 = vpop.xlane.xlu0 %1598
    %v1600 = vsel %vm1464, %v997, 0.0
    %1601 = vadd.xlane.f32.xlu0 %v1600
    %v1602 = vpop.xlane.xlu0 %1601
    %v1603 = vsel %vm1464, %v998, 0.0
    %1604 = vadd.xlane.f32.xlu0 %v1603
    %v1605 = vpop.xlane.xlu0 %1604
    %v1606 = vsel %vm1464, %v999, 0.0
    %1607 = vadd.xlane.f32.xlu0 %v1606
    %v1608 = vpop.xlane.xlu0 %1607
    %v1609 = vsel %vm1464, %v1000, 0.0
    %1610 = vadd.xlane.f32.xlu0 %v1609
    %v1611 = vpop.xlane.xlu0 %1610
    %v1612 = vsel %vm1464, %v1001, 0.0
    %1613 = vadd.xlane.f32.xlu0 %v1612
    %v1614 = vpop.xlane.xlu0 %1613
    %v1615 = vsel %vm1464, %v1002, 0.0
    %1616 = vadd.xlane.f32.xlu0 %v1615
    %v1617 = vpop.xlane.xlu0 %1616
    %v1618 = vsel %vm1464, %v1003, 0.0
    %1619 = vadd.xlane.f32.xlu0 %v1618
    %v1620 = vpop.xlane.xlu0 %1619
    %v1621 = vsel %vm1464, %v1004, 0.0
    %1622 = vadd.xlane.f32.xlu0 %v1621
    %v1623 = vpop.xlane.xlu0 %1622
    %v1624 = vsel %vm1464, %v1005, 0.0
    %1625 = vadd.xlane.f32.xlu0 %v1624
    %v1626 = vpop.xlane.xlu0 %1625
    %v1627 = vsel %vm1464, %v1006, 0.0
    %1628 = vadd.xlane.f32.xlu0 %v1627
    %v1629 = vpop.xlane.xlu0 %1628
    %v1630 = vsel %vm1464, %v1007, 0.0
    %1631 = vadd.xlane.f32.xlu0 %v1630
    %v1632 = vpop.xlane.xlu0 %1631
    %v1633 = vsel %vm1464, %v1008, 0.0
    %1634 = vadd.xlane.f32.xlu0 %v1633
    %v1635 = vpop.xlane.xlu0 %1634
    %v1636 = vsel %vm1464, %v1009, 0.0
    %1637 = vadd.xlane.f32.xlu0 %v1636
    %v1638 = vpop.xlane.xlu0 %1637
    %v1639 = vsel %vm1464, %v1010, 0.0
    %1640 = vadd.xlane.f32.xlu0 %v1639
    %v1641 = vpop.xlane.xlu0 %1640
    %v1642 = vsel %vm1464, %v1011, 0.0
    %1643 = vadd.xlane.f32.xlu0 %v1642
    %v1644 = vpop.xlane.xlu0 %1643
    %v1645 = vsel %vm1464, %v1012, 0.0
    %1646 = vadd.xlane.f32.xlu0 %v1645
    %v1647 = vpop.xlane.xlu0 %1646
    %v1648 = vsel %vm1464, %v1013, 0.0
    %1649 = vadd.xlane.f32.xlu0 %v1648
    %v1650 = vpop.xlane.xlu0 %1649
    %v1651 = vsel %vm1464, %v1014, 0.0
    %1652 = vadd.xlane.f32.xlu0 %v1651
    %v1653 = vpop.xlane.xlu0 %1652
    %v1654 = vsel %vm1464, %v1015, 0.0
    %1655 = vadd.xlane.f32.xlu0 %v1654
    %v1656 = vpop.xlane.xlu0 %1655
    %v1657 = vsel %vm1464, %v1016, 0.0
    %1658 = vadd.xlane.f32.xlu0 %v1657
    %v1659 = vpop.xlane.xlu0 %1658
    %v1660 = vsel %vm1464, %v1017, 0.0
    %1661 = vadd.xlane.f32.xlu0 %v1660
    %v1662 = vpop.xlane.xlu0 %1661
    %v1663 = vsel %vm1464, %v1018, 0.0
    %1664 = vadd.xlane.f32.xlu0 %v1663
    %v1665 = vpop.xlane.xlu0 %1664
    %v1666 = vsel %vm1464, %v1019, 0.0
    %1667 = vadd.xlane.f32.xlu0 %v1666
    %v1668 = vpop.xlane.xlu0 %1667
    %v1669 = vsel %vm1464, %v1020, 0.0
    %1670 = vadd.xlane.f32.xlu0 %v1669
    %v1671 = vpop.xlane.xlu0 %1670
    %v1672 = vsel %vm1464, %v1021, 0.0
    %1673 = vadd.xlane.f32.xlu0 %v1672
    %v1674 = vpop.xlane.xlu0 %1673
    %v1675 = vsel %vm1464, %v1022, 0.0
    %1676 = vadd.xlane.f32.xlu0 %v1675
    %v1677 = vpop.xlane.xlu0 %1676
    %v1678 = vsel %vm1464, %v1023, 0.0
    %1679 = vadd.xlane.f32.xlu0 %v1678
    %v1680 = vpop.xlane.xlu0 %1679
    %v1681 = vsel %vm1464, %v1024, 0.0
    %1682 = vadd.xlane.f32.xlu0 %v1681
    %v1683 = vpop.xlane.xlu0 %1682
    %v1684 = vsel %vm1464, %v1025, 0.0
    %1685 = vadd.xlane.f32.xlu0 %v1684
    %v1686 = vpop.xlane.xlu0 %1685
    %v1687 = vsel %vm1464, %v1026, 0.0
    %1688 = vadd.xlane.f32.xlu0 %v1687
    %v1689 = vpop.xlane.xlu0 %1688
    %v1690 = vsel %vm1464, %v1027, 0.0
    %1691 = vadd.xlane.f32.xlu0 %v1690
    %v1692 = vpop.xlane.xlu0 %1691
    %v1693 = vsel %vm1464, %v1028, 0.0
    %1694 = vadd.xlane.f32.xlu0 %v1693
    %v1695 = vpop.xlane.xlu0 %1694
    %v1696 = vsel %vm1464, %v1029, 0.0
    %1697 = vadd.xlane.f32.xlu0 %v1696
    %v1698 = vpop.xlane.xlu0 %1697
    %v1699 = vsel %vm1464, %v1030, 0.0
    %1700 = vadd.xlane.f32.xlu0 %v1699
    %v1701 = vpop.xlane.xlu0 %1700
    %v1702 = vsel %vm1464, %v1031, 0.0
    %1703 = vadd.xlane.f32.xlu0 %v1702
    %v1704 = vpop.xlane.xlu0 %1703
    %v1705 = vsel %vm1464, %v1032, 0.0
    %1706 = vadd.xlane.f32.xlu0 %v1705
    %v1707 = vpop.xlane.xlu0 %1706
    %v1708 = vsel %vm1464, %v1033, 0.0
    %1709 = vadd.xlane.f32.xlu0 %v1708
    %v1710 = vpop.xlane.xlu0 %1709
    %v1711 = vsel %vm1464, %v1034, 0.0
    %1712 = vadd.xlane.f32.xlu0 %v1711
    %v1713 = vpop.xlane.xlu0 %1712
    %v1714 = vsel %vm1464, %v1035, 0.0
    %1715 = vadd.xlane.f32.xlu0 %v1714
    %v1716 = vpop.xlane.xlu0 %1715
    %v1717 = vsel %vm1464, %v1036, 0.0
    %1718 = vadd.xlane.f32.xlu0 %v1717
    %v1719 = vpop.xlane.xlu0 %1718
    %v1720 = vsel %vm1464, %v1037, 0.0
    %1721 = vadd.xlane.f32.xlu0 %v1720
    %v1722 = vpop.xlane.xlu0 %1721
    %v1723 = vsel %vm1464, %v1038, 0.0
    %1724 = vadd.xlane.f32.xlu0 %v1723
    %v1725 = vpop.xlane.xlu0 %1724
    %v1726 = vsel %vm1464, %v1039, 0.0
    %1727 = vadd.xlane.f32.xlu0 %v1726
    %v1728 = vpop.xlane.xlu0 %1727
    %v1729 = vsel %vm1464, %v1040, 0.0
    %1730 = vadd.xlane.f32.xlu0 %v1729
    %v1731 = vpop.xlane.xlu0 %1730
    %v1732 = vsel %vm1464, %v1041, 0.0
    %1733 = vadd.xlane.f32.xlu0 %v1732
    %v1734 = vpop.xlane.xlu0 %1733
    %v1735 = vsel %vm1464, %v1042, 0.0
    %1736 = vadd.xlane.f32.xlu0 %v1735
    %v1737 = vpop.xlane.xlu0 %1736
    %v1738 = vsel %vm1464, %v1043, 0.0
    %1739 = vadd.xlane.f32.xlu0 %v1738
    %v1740 = vpop.xlane.xlu0 %1739
    %v1741 = vsel %vm1464, %v1044, 0.0
    %1742 = vadd.xlane.f32.xlu0 %v1741
    %v1743 = vpop.xlane.xlu0 %1742
    %v1744 = vsel %vm1464, %v1045, 0.0
    %1745 = vadd.xlane.f32.xlu0 %v1744
    %v1746 = vpop.xlane.xlu0 %1745
    %v1747 = vsel %vm1464, %v1046, 0.0
    %1748 = vadd.xlane.f32.xlu0 %v1747
    %v1749 = vpop.xlane.xlu0 %1748
    %v1750 = vsel %vm1464, %v1047, 0.0
    %1751 = vadd.xlane.f32.xlu0 %v1750
    %v1752 = vpop.xlane.xlu0 %1751
    %v1753 = vsel %vm1464, %v1048, 0.0
    %1754 = vadd.xlane.f32.xlu0 %v1753
    %v1755 = vpop.xlane.xlu0 %1754
    %v1756 = vsel %vm1464, %v1049, 0.0
    %1757 = vadd.xlane.f32.xlu0 %v1756
    %v1758 = vpop.xlane.xlu0 %1757
    %v1759 = vsel %vm1464, %v1050, 0.0
    %1760 = vadd.xlane.f32.xlu0 %v1759
    %v1761 = vpop.xlane.xlu0 %1760
    %v1762 = vsel %vm1464, %v1051, 0.0
    %1763 = vadd.xlane.f32.xlu0 %v1762
    %v1764 = vpop.xlane.xlu0 %1763
    %v1765 = vsel %vm1464, %v1052, 0.0
    %1766 = vadd.xlane.f32.xlu0 %v1765
    %v1767 = vpop.xlane.xlu0 %1766
    %v1768 = vsel %vm1464, %v1053, 0.0
    %1769 = vadd.xlane.f32.xlu0 %v1768
    %v1770 = vpop.xlane.xlu0 %1769
    %v1771 = vsel %vm1464, %v1054, 0.0
    %1772 = vadd.xlane.f32.xlu0 %v1771
    %v1773 = vpop.xlane.xlu0 %1772
    %v1774 = vsel %vm1464, %v1055, 0.0
    %1775 = vadd.xlane.f32.xlu0 %v1774
    %v1776 = vpop.xlane.xlu0 %1775
    %v1777 = vsel %vm1464, %v1056, 0.0
    %1778 = vadd.xlane.f32.xlu0 %v1777
    %v1779 = vpop.xlane.xlu0 %1778
    %v1780 = vsel %vm1464, %v1057, 0.0
    %1781 = vadd.xlane.f32.xlu0 %v1780
    %v1782 = vpop.xlane.xlu0 %1781
    %v1783 = vsel %vm1464, %v1058, 0.0
    %1784 = vadd.xlane.f32.xlu0 %v1783
    %v1785 = vpop.xlane.xlu0 %1784
    %v1786 = vsel %vm1464, %v1059, 0.0
    %1787 = vadd.xlane.f32.xlu0 %v1786
    %v1788 = vpop.xlane.xlu0 %1787
    %v1789 = vsel %vm1464, %v1060, 0.0
    %1790 = vadd.xlane.f32.xlu0 %v1789
    %v1791 = vpop.xlane.xlu0 %1790
    %v1792 = vsel %vm1464, %v1061, 0.0
    %1793 = vadd.xlane.f32.xlu0 %v1792
    %v1794 = vpop.xlane.xlu0 %1793
    %v1795 = vsel %vm1464, %v1062, 0.0
    %1796 = vadd.xlane.f32.xlu0 %v1795
    %v1797 = vpop.xlane.xlu0 %1796
    %v1798 = vsel %vm1464, %v1063, 0.0
    %1799 = vadd.xlane.f32.xlu0 %v1798
    %v1800 = vpop.xlane.xlu0 %1799
    %v1801 = vsel %vm1464, %v1064, 0.0
    %1802 = vadd.xlane.f32.xlu0 %v1801
    %v1803 = vpop.xlane.xlu0 %1802
    %v1804 = vsel %vm1464, %v1065, 0.0
    %1805 = vadd.xlane.f32.xlu0 %v1804
    %v1806 = vpop.xlane.xlu0 %1805
    %v1807 = vsel %vm1464, %v1066, 0.0
    %1808 = vadd.xlane.f32.xlu0 %v1807
    %v1809 = vpop.xlane.xlu0 %1808
    %v1810 = vsel %vm1464, %v1067, 0.0
    %1811 = vadd.xlane.f32.xlu0 %v1810
    %v1812 = vpop.xlane.xlu0 %1811
    %v1813 = vsel %vm1464, %v1068, 0.0
    %1814 = vadd.xlane.f32.xlu0 %v1813
    %v1815 = vpop.xlane.xlu0 %1814
    %v1816 = vsel %vm1464, %v1069, 0.0
    %1817 = vadd.xlane.f32.xlu0 %v1816
    %v1818 = vpop.xlane.xlu0 %1817
    %v1819 = vsel %vm1464, %v1070, 0.0
    %1820 = vadd.xlane.f32.xlu0 %v1819
    %v1821 = vpop.xlane.xlu0 %1820
    %v1822 = vsel %vm1464, %v1071, 0.0
    %1823 = vadd.xlane.f32.xlu0 %v1822
    %v1824 = vpop.xlane.xlu0 %1823
    %v1825 = vsel %vm1464, %v1072, 0.0
    %1826 = vadd.xlane.f32.xlu0 %v1825
    %v1827 = vpop.xlane.xlu0 %1826
    %v1828 = vsel %vm1464, %v1073, 0.0
    %1829 = vadd.xlane.f32.xlu0 %v1828
    %v1830 = vpop.xlane.xlu0 %1829
    %v1831 = vsel %vm1464, %v1074, 0.0
    %1832 = vadd.xlane.f32.xlu0 %v1831
    %v1833 = vpop.xlane.xlu0 %1832
    %v1834 = vsel %vm1464, %v1075, 0.0
    %1835 = vadd.xlane.f32.xlu0 %v1834
    %v1836 = vpop.xlane.xlu0 %1835
    %v1837 = vsel %vm1464, %v1076, 0.0
    %1838 = vadd.xlane.f32.xlu0 %v1837
    %v1839 = vpop.xlane.xlu0 %1838
    %v1840 = vsel %vm1464, %v1077, 0.0
    %1841 = vadd.xlane.f32.xlu0 %v1840
    %v1842 = vpop.xlane.xlu0 %1841
    %v1843 = vsel %vm1464, %v1078, 0.0
    %1844 = vadd.xlane.f32.xlu0 %v1843
    %v1845 = vpop.xlane.xlu0 %1844
    %v1846 = vsel %vm1464, %v1079, 0.0
    %1847 = vadd.xlane.f32.xlu0 %v1846
    %v1848 = vpop.xlane.xlu0 %1847
    %v1849 = vsel %vm1464, %v1080, 0.0
    %1850 = vadd.xlane.f32.xlu0 %v1849
    %v1851 = vpop.xlane.xlu0 %1850
    %v1852 = vsel %vm1464, %v1081, 0.0
    %1853 = vadd.xlane.f32.xlu0 %v1852
    %v1854 = vpop.xlane.xlu0 %1853
    %v1855 = vsel %vm1464, %v1082, 0.0
    %1856 = vadd.xlane.f32.xlu0 %v1855
    %v1857 = vpop.xlane.xlu0 %1856
    %v1858 = vsel %vm1464, %v1083, 0.0
    %1859 = vadd.xlane.f32.xlu0 %v1858
    %v1860 = vpop.xlane.xlu0 %1859
    %v1861 = vsel %vm1464, %v1084, 0.0
    %1862 = vadd.xlane.f32.xlu0 %v1861
    %v1863 = vpop.xlane.xlu0 %1862
    %v1864 = vsel %vm1464, %v1085, 0.0
    %1865 = vadd.xlane.f32.xlu0 %v1864
    %v1866 = vpop.xlane.xlu0 %1865
    %v1867 = vsel %vm1464, %v1086, 0.0
    %1868 = vadd.xlane.f32.xlu0 %v1867
    %v1869 = vpop.xlane.xlu0 %1868
    %v1870 = vsel %vm1464, %v1087, 0.0
    %1871 = vadd.xlane.f32.xlu0 %v1870
    %v1872 = vpop.xlane.xlu0 %1871
    %v1873 = vsel %vm1464, %v1088, 0.0
    %1874 = vadd.xlane.f32.xlu0 %v1873
    %v1875 = vpop.xlane.xlu0 %1874
    %v1876 = vsel %vm1464, %v1089, 0.0
    %1877 = vadd.xlane.f32.xlu0 %v1876
    %v1878 = vpop.xlane.xlu0 %1877
    %v1879 = vsel %vm1464, %v1090, 0.0
    %1880 = vadd.xlane.f32.xlu0 %v1879
    %v1881 = vpop.xlane.xlu0 %1880
    %v1882 = vsel %vm1464, %v1091, 0.0
    %1883 = vadd.xlane.f32.xlu0 %v1882
    %v1884 = vpop.xlane.xlu0 %1883
    %v1885 = vsel %vm1464, %v1092, 0.0
    %1886 = vadd.xlane.f32.xlu0 %v1885
    %v1887 = vpop.xlane.xlu0 %1886
    %v1888 = vsel %vm1464, %v1093, 0.0
    %1889 = vadd.xlane.f32.xlu0 %v1888
    %v1890 = vpop.xlane.xlu0 %1889
    %v1891 = vsel %vm1464, %v1094, 0.0
    %1892 = vadd.xlane.f32.xlu0 %v1891
    %v1893 = vpop.xlane.xlu0 %1892
    %v1894 = vsel %vm1464, %v1095, 0.0
    %1895 = vadd.xlane.f32.xlu0 %v1894
    %v1896 = vpop.xlane.xlu0 %1895
    %v1897 = vsel %vm1464, %v1096, 0.0
    %1898 = vadd.xlane.f32.xlu0 %v1897
    %v1899 = vpop.xlane.xlu0 %1898
    %v1900 = vsel %vm1464, %v1097, 0.0
    %1901 = vadd.xlane.f32.xlu0 %v1900
    %v1902 = vpop.xlane.xlu0 %1901
    %v1903 = vsel %vm1464, %v1098, 0.0
    %1904 = vadd.xlane.f32.xlu0 %v1903
    %v1905 = vpop.xlane.xlu0 %1904
    %v1906 = vsel %vm1464, %v1099, 0.0
    %1907 = vadd.xlane.f32.xlu0 %v1906
    %v1908 = vpop.xlane.xlu0 %1907
    %v1909 = vsel %vm1464, %v1100, 0.0
    %1910 = vadd.xlane.f32.xlu0 %v1909
    %v1911 = vpop.xlane.xlu0 %1910
    %v1912 = vsel %vm1464, %v1101, 0.0
    %1913 = vadd.xlane.f32.xlu0 %v1912
    %v1914 = vpop.xlane.xlu0 %1913
    %v1915 = vsel %vm1464, %v1102, 0.0
    %1916 = vadd.xlane.f32.xlu0 %v1915
    %v1917 = vpop.xlane.xlu0 %1916
    %v1918 = vsel %vm1464, %v1103, 0.0
    %1919 = vadd.xlane.f32.xlu0 %v1918
    %v1920 = vpop.xlane.xlu0 %1919
    %v1921 = vsel %vm1464, %v1104, 0.0
    %1922 = vadd.xlane.f32.xlu0 %v1921
    %v1923 = vpop.xlane.xlu0 %1922
    %v1924 = vsel %vm1464, %v1105, 0.0
    %1925 = vadd.xlane.f32.xlu0 %v1924
    %v1926 = vpop.xlane.xlu0 %1925
    %v1927 = vsel %vm1464, %v1106, 0.0
    %1928 = vadd.xlane.f32.xlu0 %v1927
    %v1929 = vpop.xlane.xlu0 %1928
    %v1930 = vsel %vm1464, %v1107, 0.0
    %1931 = vadd.xlane.f32.xlu0 %v1930
    %v1932 = vpop.xlane.xlu0 %1931
    %v1933 = vsel %vm1464, %v1108, 0.0
    %1934 = vadd.xlane.f32.xlu0 %v1933
    %v1935 = vpop.xlane.xlu0 %1934
    %v1936 = vsel %vm1464, %v1109, 0.0
    %1937 = vadd.xlane.f32.xlu0 %v1936
    %v1938 = vpop.xlane.xlu0 %1937
    %v1939 = vsel %vm1464, %v1110, 0.0
    %1940 = vadd.xlane.f32.xlu0 %v1939
    %v1941 = vpop.xlane.xlu0 %1940
    %v1942 = vsel %vm1464, %v1111, 0.0
    %1943 = vadd.xlane.f32.xlu0 %v1942
    %v1944 = vpop.xlane.xlu0 %1943
    %v1945 = vsel %vm1464, %v1112, 0.0
    %1946 = vadd.xlane.f32.xlu0 %v1945
    %v1947 = vpop.xlane.xlu0 %1946
    %v1948 = vsel %vm1464, %v1113, 0.0
    %1949 = vadd.xlane.f32.xlu0 %v1948
    %v1950 = vpop.xlane.xlu0 %1949
    %v1951 = vsel %vm1464, %v1114, 0.0
    %1952 = vadd.xlane.f32.xlu0 %v1951
    %v1953 = vpop.xlane.xlu0 %1952
    %v1954 = vsel %vm1464, %v1115, 0.0
    %1955 = vadd.xlane.f32.xlu0 %v1954
    %v1956 = vpop.xlane.xlu0 %1955
    %v1957 = vsel %vm1464, %v1116, 0.0
    %1958 = vadd.xlane.f32.xlu0 %v1957
    %v1959 = vpop.xlane.xlu0 %1958
    %v1960 = vsel %vm1464, %v1117, 0.0
    %1961 = vadd.xlane.f32.xlu0 %v1960
    %v1962 = vpop.xlane.xlu0 %1961
    %v1963 = vsel %vm1464, %v1118, 0.0
    %1964 = vadd.xlane.f32.xlu0 %v1963
    %v1965 = vpop.xlane.xlu0 %1964
    %v1966 = vsel %vm1464, %v1119, 0.0
    %1967 = vadd.xlane.f32.xlu0 %v1966
    %v1968 = vpop.xlane.xlu0 %1967
    %v1969 = vsel %vm1464, %v1120, 0.0
    %1970 = vadd.xlane.f32.xlu0 %v1969
    %v1971 = vpop.xlane.xlu0 %1970
    %v1972 = vsel %vm1464, %v1121, 0.0
    %1973 = vadd.xlane.f32.xlu0 %v1972
    %v1974 = vpop.xlane.xlu0 %1973
    %v1975 = vsel %vm1464, %v1122, 0.0
    %1976 = vadd.xlane.f32.xlu0 %v1975
    %v1977 = vpop.xlane.xlu0 %1976
    %v1978 = vsel %vm1464, %v1123, 0.0
    %1979 = vadd.xlane.f32.xlu0 %v1978
    %v1980 = vpop.xlane.xlu0 %1979
    %v1981 = vsel %vm1464, %v1124, 0.0
    %1982 = vadd.xlane.f32.xlu0 %v1981
    %v1983 = vpop.xlane.xlu0 %1982
    %v1984 = vsel %vm1464, %v1125, 0.0
    %1985 = vadd.xlane.f32.xlu0 %v1984
    %v1986 = vpop.xlane.xlu0 %1985
    %v1987 = vsel %vm1464, %v1126, 0.0
    %1988 = vadd.xlane.f32.xlu0 %v1987
    %v1989 = vpop.xlane.xlu0 %1988
    %v1990 = vsel %vm1464, %v1127, 0.0
    %1991 = vadd.xlane.f32.xlu0 %v1990
    %v1992 = vpop.xlane.xlu0 %1991
    %v1993 = vsel %vm1464, %v1128, 0.0
    %1994 = vadd.xlane.f32.xlu0 %v1993
    %v1995 = vpop.xlane.xlu0 %1994
    %v1996 = vsel %vm1464, %v1129, 0.0
    %1997 = vadd.xlane.f32.xlu0 %v1996
    %v1998 = vpop.xlane.xlu0 %1997
    %v1999 = vsel %vm1464, %v1130, 0.0
    %2000 = vadd.xlane.f32.xlu0 %v1999
    %v2001 = vpop.xlane.xlu0 %2000
    %v2002 = vsel %vm1464, %v1131, 0.0
    %2003 = vadd.xlane.f32.xlu0 %v2002
    %v2004 = vpop.xlane.xlu0 %2003
    %v2005 = vsel %vm1464, %v1132, 0.0
    %2006 = vadd.xlane.f32.xlu0 %v2005
    %v2007 = vpop.xlane.xlu0 %2006
    %v2008 = vsel %vm1464, %v1133, 0.0
    %2009 = vadd.xlane.f32.xlu0 %v2008
    %v2010 = vpop.xlane.xlu0 %2009
    %v2011 = vsel %vm1464, %v1134, 0.0
    %2012 = vadd.xlane.f32.xlu0 %v2011
    %v2013 = vpop.xlane.xlu0 %2012
    %v2014 = vsel %vm1464, %v1135, 0.0
    %2015 = vadd.xlane.f32.xlu0 %v2014
    %v2016 = vpop.xlane.xlu0 %2015
    %v2017 = vsel %vm1464, %v1136, 0.0
    %2018 = vadd.xlane.f32.xlu0 %v2017
    %v2019 = vpop.xlane.xlu0 %2018
    %v2020 = vsel %vm1464, %v1137, 0.0
    %2021 = vadd.xlane.f32.xlu0 %v2020
    %v2022 = vpop.xlane.xlu0 %2021
    %v2023 = vsel %vm1464, %v1138, 0.0
    %2024 = vadd.xlane.f32.xlu0 %v2023
    %v2025 = vpop.xlane.xlu0 %2024
    %v2026 = vsel %vm1464, %v1139, 0.0
    %2027 = vadd.xlane.f32.xlu0 %v2026
    %v2028 = vpop.xlane.xlu0 %2027
    %v2029 = vsel %vm1464, %v1140, 0.0
    %2030 = vadd.xlane.f32.xlu0 %v2029
    %v2031 = vpop.xlane.xlu0 %2030
    %v2032 = vsel %vm1464, %v1141, 0.0
    %2033 = vadd.xlane.f32.xlu0 %v2032
    %v2034 = vpop.xlane.xlu0 %2033
    %v2035 = vsel %vm1464, %v1142, 0.0
    %2036 = vadd.xlane.f32.xlu0 %v2035
    %v2037 = vpop.xlane.xlu0 %2036
    %v2038 = vsel %vm1464, %v1143, 0.0
    %2039 = vadd.xlane.f32.xlu0 %v2038
    %v2040 = vpop.xlane.xlu0 %2039
    %v2041 = vsel %vm1464, %v1144, 0.0
    %2042 = vadd.xlane.f32.xlu0 %v2041
    %v2043 = vpop.xlane.xlu0 %2042
    %v2044 = vsel %vm1464, %v1145, 0.0
    %2045 = vadd.xlane.f32.xlu0 %v2044
    %v2046 = vpop.xlane.xlu0 %2045
    %v2047 = vsel %vm1464, %v1146, 0.0
    %2048 = vadd.xlane.f32.xlu0 %v2047
    %v2049 = vpop.xlane.xlu0 %2048
    %v2050 = vsel %vm1464, %v1147, 0.0
    %2051 = vadd.xlane.f32.xlu0 %v2050
    %v2052 = vpop.xlane.xlu0 %2051
    %v2053 = vsel %vm1464, %v1148, 0.0
    %2054 = vadd.xlane.f32.xlu0 %v2053
    %v2055 = vpop.xlane.xlu0 %2054
    %v2056 = vsel %vm1464, %v1149, 0.0
    %2057 = vadd.xlane.f32.xlu0 %v2056
    %v2058 = vpop.xlane.xlu0 %2057
    %v2059 = vsel %vm1464, %v1150, 0.0
    %2060 = vadd.xlane.f32.xlu0 %v2059
    %v2061 = vpop.xlane.xlu0 %2060
    %v2062 = vsel %vm1464, %v1151, 0.0
    %2063 = vadd.xlane.f32.xlu0 %v2062
    %v2064 = vpop.xlane.xlu0 %2063
    %v2065 = vsel %vm1464, %v1152, 0.0
    %2066 = vadd.xlane.f32.xlu0 %v2065
    %v2067 = vpop.xlane.xlu0 %2066
    %v2068 = vsel %vm1464, %v1153, 0.0
    %2069 = vadd.xlane.f32.xlu0 %v2068
    %v2070 = vpop.xlane.xlu0 %2069
    %v2071 = vsel %vm1464, %v1154, 0.0
    %2072 = vadd.xlane.f32.xlu0 %v2071
    %v2073 = vpop.xlane.xlu0 %2072
    %v2074 = vsel %vm1464, %v1155, 0.0
    %2075 = vadd.xlane.f32.xlu0 %v2074
    %v2076 = vpop.xlane.xlu0 %2075
    %v2077 = vsel %vm1464, %v1156, 0.0
    %2078 = vadd.xlane.f32.xlu0 %v2077
    %v2079 = vpop.xlane.xlu0 %2078
    %v2080 = vsel %vm1464, %v1157, 0.0
    %2081 = vadd.xlane.f32.xlu0 %v2080
    %v2082 = vpop.xlane.xlu0 %2081
    %v2083 = vsel %vm1464, %v1158, 0.0
    %2084 = vadd.xlane.f32.xlu0 %v2083
    %v2085 = vpop.xlane.xlu0 %2084
    %v2086 = vsel %vm1464, %v1159, 0.0
    %2087 = vadd.xlane.f32.xlu0 %v2086
    %v2088 = vpop.xlane.xlu0 %2087
    %v2089 = vsel %vm1464, %v1160, 0.0
    %2090 = vadd.xlane.f32.xlu0 %v2089
    %v2091 = vpop.xlane.xlu0 %2090
    %v2092 = vsel %vm1464, %v1161, 0.0
    %2093 = vadd.xlane.f32.xlu0 %v2092
    %v2094 = vpop.xlane.xlu0 %2093
    %v2095 = vsel %vm1464, %v1162, 0.0
    %2096 = vadd.xlane.f32.xlu0 %v2095
    %v2097 = vpop.xlane.xlu0 %2096
    %v2098 = vsel %vm1464, %v1163, 0.0
    %2099 = vadd.xlane.f32.xlu0 %v2098
    %v2100 = vpop.xlane.xlu0 %2099
    %v2101 = vsel %vm1464, %v1164, 0.0
    %2102 = vadd.xlane.f32.xlu0 %v2101
    %v2103 = vpop.xlane.xlu0 %2102
    %v2104 = vsel %vm1464, %v1165, 0.0
    %2105 = vadd.xlane.f32.xlu0 %v2104
    %v2106 = vpop.xlane.xlu0 %2105
    %v2107 = vsel %vm1464, %v1166, 0.0
    %2108 = vadd.xlane.f32.xlu0 %v2107
    %v2109 = vpop.xlane.xlu0 %2108
    %v2110 = vsel %vm1464, %v1167, 0.0
    %2111 = vadd.xlane.f32.xlu0 %v2110
    %v2112 = vpop.xlane.xlu0 %2111
    %v2113 = vsel %vm1464, %v1168, 0.0
    %2114 = vadd.xlane.f32.xlu0 %v2113
    %v2115 = vpop.xlane.xlu0 %2114
    %v2116 = vsel %vm1464, %v1169, 0.0
    %2117 = vadd.xlane.f32.xlu0 %v2116
    %v2118 = vpop.xlane.xlu0 %2117
    %v2119 = vsel %vm1464, %v1170, 0.0
    %2120 = vadd.xlane.f32.xlu0 %v2119
    %v2121 = vpop.xlane.xlu0 %2120
    %v2122 = vsel %vm1464, %v1171, 0.0
    %2123 = vadd.xlane.f32.xlu0 %v2122
    %v2124 = vpop.xlane.xlu0 %2123
    %v2125 = vsel %vm1464, %v1172, 0.0
    %2126 = vadd.xlane.f32.xlu0 %v2125
    %v2127 = vpop.xlane.xlu0 %2126
    %v2128 = vsel %vm1464, %v1173, 0.0
    %2129 = vadd.xlane.f32.xlu0 %v2128
    %v2130 = vpop.xlane.xlu0 %2129
    %v2131 = vsel %vm1464, %v1174, 0.0
    %2132 = vadd.xlane.f32.xlu0 %v2131
    %v2133 = vpop.xlane.xlu0 %2132
    %v2134 = vsel %vm1464, %v1175, 0.0
    %2135 = vadd.xlane.f32.xlu0 %v2134
    %v2136 = vpop.xlane.xlu0 %2135
    %v2137 = vsel %vm1464, %v1176, 0.0
    %2138 = vadd.xlane.f32.xlu0 %v2137
    %v2139 = vpop.xlane.xlu0 %2138
    %v2140 = vsel %vm1464, %v1177, 0.0
    %2141 = vadd.xlane.f32.xlu0 %v2140
    %v2142 = vpop.xlane.xlu0 %2141
    %v2143 = vsel %vm1464, %v1178, 0.0
    %2144 = vadd.xlane.f32.xlu0 %v2143
    %v2145 = vpop.xlane.xlu0 %2144
    %v2146 = vsel %vm1464, %v1179, 0.0
    %2147 = vadd.xlane.f32.xlu0 %v2146
    %v2148 = vpop.xlane.xlu0 %2147
    %v2149 = vsel %vm1464, %v1180, 0.0
    %2150 = vadd.xlane.f32.xlu0 %v2149
    %v2151 = vpop.xlane.xlu0 %2150
    %v2152 = vsel %vm1464, %v1181, 0.0
    %2153 = vadd.xlane.f32.xlu0 %v2152
    %v2154 = vpop.xlane.xlu0 %2153
    %v2155 = vsel %vm1464, %v1182, 0.0
    %2156 = vadd.xlane.f32.xlu0 %v2155
    %v2157 = vpop.xlane.xlu0 %2156
    %v2158 = vsel %vm1464, %v1183, 0.0
    %2159 = vadd.xlane.f32.xlu0 %v2158
    %v2160 = vpop.xlane.xlu0 %2159
    %v2161 = vsel %vm1464, %v1184, 0.0
    %2162 = vadd.xlane.f32.xlu0 %v2161
    %v2163 = vpop.xlane.xlu0 %2162
    %v2164 = vsel %vm1464, %v1185, 0.0
    %2165 = vadd.xlane.f32.xlu0 %v2164
    %v2166 = vpop.xlane.xlu0 %2165
    %v2167 = vsel %vm1464, %v1186, 0.0
    %2168 = vadd.xlane.f32.xlu0 %v2167
    %v2169 = vpop.xlane.xlu0 %2168
    %v2170 = vsel %vm1464, %v1187, 0.0
    %2171 = vadd.xlane.f32.xlu0 %v2170
    %v2172 = vpop.xlane.xlu0 %2171
    %v2173 = vsel %vm1464, %v1188, 0.0
    %2174 = vadd.xlane.f32.xlu0 %v2173
    %v2175 = vpop.xlane.xlu0 %2174
    %v2176 = vsel %vm1464, %v1189, 0.0
    %2177 = vadd.xlane.f32.xlu0 %v2176
    %v2178 = vpop.xlane.xlu0 %2177
    %v2179 = vsel %vm1464, %v1190, 0.0
    %2180 = vadd.xlane.f32.xlu0 %v2179
    %v2181 = vpop.xlane.xlu0 %2180
    %v2182 = vsel %vm1464, %v1191, 0.0
    %2183 = vadd.xlane.f32.xlu0 %v2182
    %v2184 = vpop.xlane.xlu0 %2183
    %v2185 = vsel %vm1464, %v1192, 0.0
    %2186 = vadd.xlane.f32.xlu0 %v2185
    %v2187 = vpop.xlane.xlu0 %2186
    %v2188 = vsel %vm1464, %v1193, 0.0
    %2189 = vadd.xlane.f32.xlu0 %v2188
    %v2190 = vpop.xlane.xlu0 %2189
    %v2191 = vsel %vm1464, %v1194, 0.0
    %2192 = vadd.xlane.f32.xlu0 %v2191
    %v2193 = vpop.xlane.xlu0 %2192
    %v2194 = vsel %vm1464, %v1195, 0.0
    %2195 = vadd.xlane.f32.xlu0 %v2194
    %v2196 = vpop.xlane.xlu0 %2195
    %v2197 = vsel %vm1464, %v1196, 0.0
    %2198 = vadd.xlane.f32.xlu0 %v2197
    %v2199 = vpop.xlane.xlu0 %2198
    %v2200 = vsel %vm1464, %v1197, 0.0
    %2201 = vadd.xlane.f32.xlu0 %v2200
    %v2202 = vpop.xlane.xlu0 %2201
    %v2203 = vsel %vm1464, %v1198, 0.0
    %2204 = vadd.xlane.f32.xlu0 %v2203
    %v2205 = vpop.xlane.xlu0 %2204
    %v2206 = vsel %vm1464, %v1199, 0.0
    %2207 = vadd.xlane.f32.xlu0 %v2206
    %v2208 = vpop.xlane.xlu0 %2207
    %v2209 = vsel %vm1464, %v1200, 0.0
    %2210 = vadd.xlane.f32.xlu0 %v2209
    %v2211 = vpop.xlane.xlu0 %2210
    %v2212 = vsel %vm1464, %v1201, 0.0
    %2213 = vadd.xlane.f32.xlu0 %v2212
    %v2214 = vpop.xlane.xlu0 %2213
    %v2215 = vsel %vm1464, %v1202, 0.0
    %2216 = vadd.xlane.f32.xlu0 %v2215
    %v2217 = vpop.xlane.xlu0 %2216
    %v2218 = vsel %vm1464, %v1203, 0.0
    %2219 = vadd.xlane.f32.xlu0 %v2218
    %v2220 = vpop.xlane.xlu0 %2219
    %v2221 = vsel %vm1464, %v1204, 0.0
    %2222 = vadd.xlane.f32.xlu0 %v2221
    %v2223 = vpop.xlane.xlu0 %2222
    %v2224 = vsel %vm1464, %v1205, 0.0
    %2225 = vadd.xlane.f32.xlu0 %v2224
    %v2226 = vpop.xlane.xlu0 %2225
    %v2227 = vsel %vm1464, %v1206, 0.0
    %2228 = vadd.xlane.f32.xlu0 %v2227
    %v2229 = vpop.xlane.xlu0 %2228
    %v2230 = vsel %vm1464, %v1207, 0.0
    %2231 = vadd.xlane.f32.xlu0 %v2230
    %v2232 = vpop.xlane.xlu0 %2231
    %v2233 = vsel %vm1464, %v1208, 0.0
    %2234 = vadd.xlane.f32.xlu0 %v2233
    %v2235 = vpop.xlane.xlu0 %2234
    %v2236 = vsel %vm1464, %v1209, 0.0
    %2237 = vadd.xlane.f32.xlu0 %v2236
    %v2238 = vpop.xlane.xlu0 %2237
    %v2239 = vsel %vm1464, %v1210, 0.0
    %2240 = vadd.xlane.f32.xlu0 %v2239
    %v2241 = vpop.xlane.xlu0 %2240
    %v2242 = vsel %vm1464, %v1211, 0.0
    %2243 = vadd.xlane.f32.xlu0 %v2242
    %v2244 = vpop.xlane.xlu0 %2243
    %v2245 = vsel %vm1464, %v1212, 0.0
    %2246 = vadd.xlane.f32.xlu0 %v2245
    %v2247 = vpop.xlane.xlu0 %2246
    %v2248 = vsel %vm1464, %v1213, 0.0
    %2249 = vadd.xlane.f32.xlu0 %v2248
    %v2250 = vpop.xlane.xlu0 %2249
    %v2251 = vsel %vm1464, %v1214, 0.0
    %2252 = vadd.xlane.f32.xlu0 %v2251
    %v2253 = vpop.xlane.xlu0 %2252
    %v2254 = vsel %vm1464, %v1215, 0.0
    %2255 = vadd.xlane.f32.xlu0 %v2254
    %v2256 = vpop.xlane.xlu0 %2255
    %v2257 = vsel %vm1464, %v1216, 0.0
    %2258 = vadd.xlane.f32.xlu0 %v2257
    %v2259 = vpop.xlane.xlu0 %2258
    %v2260 = vsel %vm1464, %v1217, 0.0
    %2261 = vadd.xlane.f32.xlu0 %v2260
    %v2262 = vpop.xlane.xlu0 %2261
    %v2263 = vsel %vm1464, %v1218, 0.0
    %2264 = vadd.xlane.f32.xlu0 %v2263
    %v2265 = vpop.xlane.xlu0 %2264
    %v2266 = vsel %vm1464, %v1219, 0.0
    %2267 = vadd.xlane.f32.xlu0 %v2266
    %v2268 = vpop.xlane.xlu0 %2267
    %v2269 = vsel %vm1464, %v1220, 0.0
    %2270 = vadd.xlane.f32.xlu0 %v2269
    %v2271 = vpop.xlane.xlu0 %2270
    %v2272 = vsel %vm1464, %v1221, 0.0
    %2273 = vadd.xlane.f32.xlu0 %v2272
    %v2274 = vpop.xlane.xlu0 %2273
    %v2275 = vsel %vm1464, %v1222, 0.0
    %2276 = vadd.xlane.f32.xlu0 %v2275
    %v2277 = vpop.xlane.xlu0 %2276
    %v2278 = vsel %vm1464, %v1223, 0.0
    %2279 = vadd.xlane.f32.xlu0 %v2278
    %v2280 = vpop.xlane.xlu0 %2279
    %v2281 = vsel %vm1464, %v1224, 0.0
    %2282 = vadd.xlane.f32.xlu0 %v2281
    %v2283 = vpop.xlane.xlu0 %2282
    %v2284 = vsel %vm1464, %v1225, 0.0
    %2285 = vadd.xlane.f32.xlu0 %v2284
    %v2286 = vpop.xlane.xlu0 %2285
    %v2287 = vsel %vm1464, %v1226, 0.0
    %2288 = vadd.xlane.f32.xlu0 %v2287
    %v2289 = vpop.xlane.xlu0 %2288
    %v2290 = vsel %vm1464, %v1227, 0.0
    %2291 = vadd.xlane.f32.xlu0 %v2290
    %v2292 = vpop.xlane.xlu0 %2291
    %v2293 = vsel %vm1464, %v1228, 0.0
    %2294 = vadd.xlane.f32.xlu0 %v2293
    %v2295 = vpop.xlane.xlu0 %2294
    %v2296 = vsel %vm1464, %v1229, 0.0
    %2297 = vadd.xlane.f32.xlu0 %v2296
    %v2298 = vpop.xlane.xlu0 %2297
    %v2299 = vsel %vm1464, %v1230, 0.0
    %2300 = vadd.xlane.f32.xlu0 %v2299
    %v2301 = vpop.xlane.xlu0 %2300
    %v2302 = vsel %vm1464, %v1231, 0.0
    %2303 = vadd.xlane.f32.xlu0 %v2302
    %v2304 = vpop.xlane.xlu0 %2303
    %v2305 = vsel %vm1464, %v1232, 0.0
    %2306 = vadd.xlane.f32.xlu0 %v2305
    %v2307 = vpop.xlane.xlu0 %2306
    %v2308 = vsel %vm1464, %v1233, 0.0
    %2309 = vadd.xlane.f32.xlu0 %v2308
    %v2310 = vpop.xlane.xlu0 %2309
    %v2311 = vsel %vm1464, %v1234, 0.0
    %2312 = vadd.xlane.f32.xlu0 %v2311
    %v2313 = vpop.xlane.xlu0 %2312
    %v2314 = vsel %vm1464, %v1235, 0.0
    %2315 = vadd.xlane.f32.xlu0 %v2314
    %v2316 = vpop.xlane.xlu0 %2315
    %v2317 = vsel %vm1464, %v1236, 0.0
    %2318 = vadd.xlane.f32.xlu0 %v2317
    %v2319 = vpop.xlane.xlu0 %2318
    %v2320 = vsel %vm1464, %v1237, 0.0
    %2321 = vadd.xlane.f32.xlu0 %v2320
    %v2322 = vpop.xlane.xlu0 %2321
    %v2323 = vsel %vm1464, %v1238, 0.0
    %2324 = vadd.xlane.f32.xlu0 %v2323
    %v2325 = vpop.xlane.xlu0 %2324
    %v2326 = vsel %vm1464, %v1239, 0.0
    %2327 = vadd.xlane.f32.xlu0 %v2326
    %v2328 = vpop.xlane.xlu0 %2327
    %v2329 = vsel %vm1464, %v1240, 0.0
    %2330 = vadd.xlane.f32.xlu0 %v2329
    %v2331 = vpop.xlane.xlu0 %2330
    %v2332 = vsel %vm1464, %v1241, 0.0
    %2333 = vadd.xlane.f32.xlu0 %v2332
    %v2334 = vpop.xlane.xlu0 %2333
    %v2335 = vsel %vm1464, %v1242, 0.0
    %2336 = vadd.xlane.f32.xlu0 %v2335
    %v2337 = vpop.xlane.xlu0 %2336
    %v2338 = vsel %vm1464, %v1243, 0.0
    %2339 = vadd.xlane.f32.xlu0 %v2338
    %v2340 = vpop.xlane.xlu0 %2339
    %v2341 = vsel %vm1464, %v1244, 0.0
    %2342 = vadd.xlane.f32.xlu0 %v2341
    %v2343 = vpop.xlane.xlu0 %2342
    %v2344 = vsel %vm1464, %v1245, 0.0
    %2345 = vadd.xlane.f32.xlu0 %v2344
    %v2346 = vpop.xlane.xlu0 %2345
    %v2347 = vsel %vm1464, %v1246, 0.0
    %2348 = vadd.xlane.f32.xlu0 %v2347
    %v2349 = vpop.xlane.xlu0 %2348
    %v2350 = vsel %vm1464, %v1247, 0.0
    %2351 = vadd.xlane.f32.xlu0 %v2350
    %v2352 = vpop.xlane.xlu0 %2351
    %v2353 = vsel %vm1464, %v1248, 0.0
    %2354 = vadd.xlane.f32.xlu0 %v2353
    %v2355 = vpop.xlane.xlu0 %2354
    %v2356 = vsel %vm1464, %v1249, 0.0
    %2357 = vadd.xlane.f32.xlu0 %v2356
    %v2358 = vpop.xlane.xlu0 %2357
    %v2359 = vsel %vm1464, %v1250, 0.0
    %2360 = vadd.xlane.f32.xlu0 %v2359
    %v2361 = vpop.xlane.xlu0 %2360
    %v2362 = vsel %vm1464, %v1251, 0.0
    %2363 = vadd.xlane.f32.xlu0 %v2362
    %v2364 = vpop.xlane.xlu0 %2363
    %v2365 = vsel %vm1464, %v1252, 0.0
    %2366 = vadd.xlane.f32.xlu0 %v2365
    %v2367 = vpop.xlane.xlu0 %2366
    %v2368 = vsel %vm1464, %v1253, 0.0
    %2369 = vadd.xlane.f32.xlu0 %v2368
    %v2370 = vpop.xlane.xlu0 %2369
    %v2371 = vsel %vm1464, %v1254, 0.0
    %2372 = vadd.xlane.f32.xlu0 %v2371
    %v2373 = vpop.xlane.xlu0 %2372
    %v2374 = vsel %vm1464, %v1255, 0.0
    %2375 = vadd.xlane.f32.xlu0 %v2374
    %v2376 = vpop.xlane.xlu0 %2375
    %v2377 = vsel %vm1464, %v1256, 0.0
    %2378 = vadd.xlane.f32.xlu0 %v2377
    %v2379 = vpop.xlane.xlu0 %2378
    %v2380 = vsel %vm1464, %v1257, 0.0
    %2381 = vadd.xlane.f32.xlu0 %v2380
    %v2382 = vpop.xlane.xlu0 %2381
    %v2383 = vsel %vm1464, %v1258, 0.0
    %2384 = vadd.xlane.f32.xlu0 %v2383
    %v2385 = vpop.xlane.xlu0 %2384
    %v2386 = vsel %vm1464, %v1259, 0.0
    %2387 = vadd.xlane.f32.xlu0 %v2386
    %v2388 = vpop.xlane.xlu0 %2387
    %v2389 = vsel %vm1464, %v1260, 0.0
    %2390 = vadd.xlane.f32.xlu0 %v2389
    %v2391 = vpop.xlane.xlu0 %2390
    %v2392 = vsel %vm1464, %v1261, 0.0
    %2393 = vadd.xlane.f32.xlu0 %v2392
    %v2394 = vpop.xlane.xlu0 %2393
    %v2395 = vsel %vm1464, %v1262, 0.0
    %2396 = vadd.xlane.f32.xlu0 %v2395
    %v2397 = vpop.xlane.xlu0 %2396
    %v2398 = vsel %vm1464, %v1263, 0.0
    %2399 = vadd.xlane.f32.xlu0 %v2398
    %v2400 = vpop.xlane.xlu0 %2399
    %v2401 = vsel %vm1464, %v1264, 0.0
    %2402 = vadd.xlane.f32.xlu0 %v2401
    %v2403 = vpop.xlane.xlu0 %2402
    %v2404 = vsel %vm1464, %v1265, 0.0
    %2405 = vadd.xlane.f32.xlu0 %v2404
    %v2406 = vpop.xlane.xlu0 %2405
    %v2407 = vsel %vm1464, %v1266, 0.0
    %2408 = vadd.xlane.f32.xlu0 %v2407
    %v2409 = vpop.xlane.xlu0 %2408
    %v2410 = vsel %vm1464, %v1267, 0.0
    %2411 = vadd.xlane.f32.xlu0 %v2410
    %v2412 = vpop.xlane.xlu0 %2411
    %v2413 = vsel %vm1464, %v1268, 0.0
    %2414 = vadd.xlane.f32.xlu0 %v2413
    %v2415 = vpop.xlane.xlu0 %2414
    %v2416 = vsel %vm1464, %v1269, 0.0
    %2417 = vadd.xlane.f32.xlu0 %v2416
    %v2418 = vpop.xlane.xlu0 %2417
    %v2419 = vsel %vm1464, %v1270, 0.0
    %2420 = vadd.xlane.f32.xlu0 %v2419
    %v2421 = vpop.xlane.xlu0 %2420
    %v2422 = vsel %vm1464, %v1271, 0.0
    %2423 = vadd.xlane.f32.xlu0 %v2422
    %v2424 = vpop.xlane.xlu0 %2423
    %v2425 = vsel %vm1464, %v1272, 0.0
    %2426 = vadd.xlane.f32.xlu0 %v2425
    %v2427 = vpop.xlane.xlu0 %2426
    %v2428 = vsel %vm1464, %v1273, 0.0
    %2429 = vadd.xlane.f32.xlu0 %v2428
    %v2430 = vpop.xlane.xlu0 %2429
    %v2431 = vsel %vm1464, %v1274, 0.0
    %2432 = vadd.xlane.f32.xlu0 %v2431
    %v2433 = vpop.xlane.xlu0 %2432
    %v2434 = vsel %vm1464, %v1275, 0.0
    %2435 = vadd.xlane.f32.xlu0 %v2434
    %v2436 = vpop.xlane.xlu0 %2435
    %v2437 = vsel %vm1464, %v1276, 0.0
    %2438 = vadd.xlane.f32.xlu0 %v2437
    %v2439 = vpop.xlane.xlu0 %2438
    %v2440 = vsel %vm1464, %v1277, 0.0
    %2441 = vadd.xlane.f32.xlu0 %v2440
    %v2442 = vpop.xlane.xlu0 %2441
    %v2443 = vsel %vm1464, %v1278, 0.0
    %2444 = vadd.xlane.f32.xlu0 %v2443
    %v2445 = vpop.xlane.xlu0 %2444
    %v2446 = vsel %vm1464, %v1279, 0.0
    %2447 = vadd.xlane.f32.xlu0 %v2446
    %v2448 = vpop.xlane.xlu0 %2447
    %v2449 = vsel %vm1464, %v1280, 0.0
    %2450 = vadd.xlane.f32.xlu0 %v2449
    %v2451 = vpop.xlane.xlu0 %2450
    %v2452 = vsel %vm1464, %v1281, 0.0
    %2453 = vadd.xlane.f32.xlu0 %v2452
    %v2454 = vpop.xlane.xlu0 %2453
    %v2455 = vsel %vm1464, %v1282, 0.0
    %2456 = vadd.xlane.f32.xlu0 %v2455
    %v2457 = vpop.xlane.xlu0 %2456
    %v2458 = vsel %vm1464, %v1283, 0.0
    %2459 = vadd.xlane.f32.xlu0 %v2458
    %v2460 = vpop.xlane.xlu0 %2459
    %v2461 = vsel %vm1464, %v1284, 0.0
    %2462 = vadd.xlane.f32.xlu0 %v2461
    %v2463 = vpop.xlane.xlu0 %2462
    %v2464 = vsel %vm1464, %v1285, 0.0
    %2465 = vadd.xlane.f32.xlu0 %v2464
    %v2466 = vpop.xlane.xlu0 %2465
    %v2467 = vsel %vm1464, %v1286, 0.0
    %2468 = vadd.xlane.f32.xlu0 %v2467
    %v2469 = vpop.xlane.xlu0 %2468
    %v2470 = vsel %vm1464, %v1287, 0.0
    %2471 = vadd.xlane.f32.xlu0 %v2470
    %v2472 = vpop.xlane.xlu0 %2471
    %v2473 = vsel %vm1464, %v1288, 0.0
    %2474 = vadd.xlane.f32.xlu0 %v2473
    %v2475 = vpop.xlane.xlu0 %2474
    %v2476 = vsel %vm1464, %v1289, 0.0
    %2477 = vadd.xlane.f32.xlu0 %v2476
    %v2478 = vpop.xlane.xlu0 %2477
    %v2479 = vsel %vm1464, %v1290, 0.0
    %2480 = vadd.xlane.f32.xlu0 %v2479
    %v2481 = vpop.xlane.xlu0 %2480
    %v2482 = vsel %vm1464, %v1291, 0.0
    %2483 = vadd.xlane.f32.xlu0 %v2482
    %v2484 = vpop.xlane.xlu0 %2483
    %v2485 = vsel %vm1464, %v1292, 0.0
    %2486 = vadd.xlane.f32.xlu0 %v2485
    %v2487 = vpop.xlane.xlu0 %2486
    %v2488 = vsel %vm1464, %v1293, 0.0
    %2489 = vadd.xlane.f32.xlu0 %v2488
    %v2490 = vpop.xlane.xlu0 %2489
    %v2491 = vsel %vm1464, %v1294, 0.0
    %2492 = vadd.xlane.f32.xlu0 %v2491
    %v2493 = vpop.xlane.xlu0 %2492
    %v2494 = vsel %vm1464, %v1295, 0.0
    %2495 = vadd.xlane.f32.xlu0 %v2494
    %v2496 = vpop.xlane.xlu0 %2495
    %v2497 = vsel %vm1464, %v1296, 0.0
    %2498 = vadd.xlane.f32.xlu0 %v2497
    %v2499 = vpop.xlane.xlu0 %2498
    %v2500 = vsel %vm1464, %v1297, 0.0
    %2501 = vadd.xlane.f32.xlu0 %v2500
    %v2502 = vpop.xlane.xlu0 %2501
    %v2503 = vsel %vm1464, %v1298, 0.0
    %2504 = vadd.xlane.f32.xlu0 %v2503
    %v2505 = vpop.xlane.xlu0 %2504
    %v2506 = vsel %vm1464, %v1299, 0.0
    %2507 = vadd.xlane.f32.xlu0 %v2506
    %v2508 = vpop.xlane.xlu0 %2507
    %v2509 = vsel %vm1464, %v1300, 0.0
    %2510 = vadd.xlane.f32.xlu0 %v2509
    %v2511 = vpop.xlane.xlu0 %2510
    %v2512 = vsel %vm1464, %v1301, 0.0
    %2513 = vadd.xlane.f32.xlu0 %v2512
    %v2514 = vpop.xlane.xlu0 %2513
    %v2515 = vsel %vm1464, %v1302, 0.0
    %2516 = vadd.xlane.f32.xlu0 %v2515
    %v2517 = vpop.xlane.xlu0 %2516
    %v2518 = vsel %vm1464, %v1303, 0.0
    %2519 = vadd.xlane.f32.xlu0 %v2518
    %v2520 = vpop.xlane.xlu0 %2519
    %v2521 = vsel %vm1464, %v1304, 0.0
    %2522 = vadd.xlane.f32.xlu0 %v2521
    %v2523 = vpop.xlane.xlu0 %2522
    %v2524 = vsel %vm1464, %v1305, 0.0
    %2525 = vadd.xlane.f32.xlu0 %v2524
    %v2526 = vpop.xlane.xlu0 %2525
    %v2527 = vsel %vm1464, %v1306, 0.0
    %2528 = vadd.xlane.f32.xlu0 %v2527
    %v2529 = vpop.xlane.xlu0 %2528
    %v2530 = vsel %vm1464, %v1307, 0.0
    %2531 = vadd.xlane.f32.xlu0 %v2530
    %v2532 = vpop.xlane.xlu0 %2531
    %v2533 = vsel %vm1464, %v1308, 0.0
    %2534 = vadd.xlane.f32.xlu0 %v2533
    %v2535 = vpop.xlane.xlu0 %2534
    %v2536 = vsel %vm1464, %v1309, 0.0
    %2537 = vadd.xlane.f32.xlu0 %v2536
    %v2538 = vpop.xlane.xlu0 %2537
    %v2539 = vsel %vm1464, %v1310, 0.0
    %2540 = vadd.xlane.f32.xlu0 %v2539
    %v2541 = vpop.xlane.xlu0 %2540
    %v2542 = vsel %vm1464, %v1311, 0.0
    %2543 = vadd.xlane.f32.xlu0 %v2542
    %v2544 = vpop.xlane.xlu0 %2543
    %v2545 = vsel %vm1464, %v1312, 0.0
    %2546 = vadd.xlane.f32.xlu0 %v2545
    %v2547 = vpop.xlane.xlu0 %2546
    %v2548 = vsel %vm1464, %v1313, 0.0
    %2549 = vadd.xlane.f32.xlu0 %v2548
    %v2550 = vpop.xlane.xlu0 %2549
    %v2551 = vsel %vm1464, %v1314, 0.0
    %2552 = vadd.xlane.f32.xlu0 %v2551
    %v2553 = vpop.xlane.xlu0 %2552
    %v2554 = vsel %vm1464, %v1315, 0.0
    %2555 = vadd.xlane.f32.xlu0 %v2554
    %v2556 = vpop.xlane.xlu0 %2555
    %v2557 = vsel %vm1464, %v1316, 0.0
    %2558 = vadd.xlane.f32.xlu0 %v2557
    %v2559 = vpop.xlane.xlu0 %2558
    %v2560 = vsel %vm1464, %v1317, 0.0
    %2561 = vadd.xlane.f32.xlu0 %v2560
    %v2562 = vpop.xlane.xlu0 %2561
    %v2563 = vsel %vm1464, %v1318, 0.0
    %2564 = vadd.xlane.f32.xlu0 %v2563
    %v2565 = vpop.xlane.xlu0 %2564
    %v2566 = vsel %vm1464, %v1319, 0.0
    %2567 = vadd.xlane.f32.xlu0 %v2566
    %v2568 = vpop.xlane.xlu0 %2567
    %v2569 = vsel %vm1464, %v1320, 0.0
    %2570 = vadd.xlane.f32.xlu0 %v2569
    %v2571 = vpop.xlane.xlu0 %2570
    %v2572 = vsel %vm1464, %v1321, 0.0
    %2573 = vadd.xlane.f32.xlu0 %v2572
    %v2574 = vpop.xlane.xlu0 %2573
    %v2575 = vsel %vm1464, %v1322, 0.0
    %2576 = vadd.xlane.f32.xlu0 %v2575
    %v2577 = vpop.xlane.xlu0 %2576
    %v2578 = vsel %vm1464, %v1323, 0.0
    %2579 = vadd.xlane.f32.xlu0 %v2578
    %v2580 = vpop.xlane.xlu0 %2579
    %v2581 = vsel %vm1464, %v1324, 0.0
    %2582 = vadd.xlane.f32.xlu0 %v2581
    %v2583 = vpop.xlane.xlu0 %2582
    %v2584 = vsel %vm1464, %v1325, 0.0
    %2585 = vadd.xlane.f32.xlu0 %v2584
    %v2586 = vpop.xlane.xlu0 %2585
    %v2587 = vsel %vm1464, %v1326, 0.0
    %2588 = vadd.xlane.f32.xlu0 %v2587
    %v2589 = vpop.xlane.xlu0 %2588
    %v2590 = vsel %vm1464, %v1327, 0.0
    %2591 = vadd.xlane.f32.xlu0 %v2590
    %v2592 = vpop.xlane.xlu0 %2591
    %v2593 = vsel %vm1464, %v1328, 0.0
    %2594 = vadd.xlane.f32.xlu0 %v2593
    %v2595 = vpop.xlane.xlu0 %2594
    %v2596 = vsel %vm1464, %v1329, 0.0
    %2597 = vadd.xlane.f32.xlu0 %v2596
    %v2598 = vpop.xlane.xlu0 %2597
    %v2599 = vsel %vm1464, %v1330, 0.0
    %2600 = vadd.xlane.f32.xlu0 %v2599
    %v2601 = vpop.xlane.xlu0 %2600
    %v2602 = vsel %vm1464, %v1331, 0.0
    %2603 = vadd.xlane.f32.xlu0 %v2602
    %v2604 = vpop.xlane.xlu0 %2603
    %v2605 = vsel %vm1464, %v1332, 0.0
    %2606 = vadd.xlane.f32.xlu0 %v2605
    %v2607 = vpop.xlane.xlu0 %2606
    %v2608 = vsel %vm1464, %v1333, 0.0
    %2609 = vadd.xlane.f32.xlu0 %v2608
    %v2610 = vpop.xlane.xlu0 %2609
    %v2611 = vsel %vm1464, %v1334, 0.0
    %2612 = vadd.xlane.f32.xlu0 %v2611
    %v2613 = vpop.xlane.xlu0 %2612
    %v2614 = vsel %vm1464, %v1335, 0.0
    %2615 = vadd.xlane.f32.xlu0 %v2614
    %v2616 = vpop.xlane.xlu0 %2615
    %v2617 = vsel %vm1464, %v1336, 0.0
    %2618 = vadd.xlane.f32.xlu0 %v2617
    %v2619 = vpop.xlane.xlu0 %2618
    %v2620 = vsel %vm1464, %v1337, 0.0
    %2621 = vadd.xlane.f32.xlu0 %v2620
    %v2622 = vpop.xlane.xlu0 %2621
    %v2623 = vsel %vm1464, %v1338, 0.0
    %2624 = vadd.xlane.f32.xlu0 %v2623
    %v2625 = vpop.xlane.xlu0 %2624
    %v2626 = vsel %vm1464, %v1339, 0.0
    %2627 = vadd.xlane.f32.xlu0 %v2626
    %v2628 = vpop.xlane.xlu0 %2627
    %v2629 = vsel %vm1464, %v1340, 0.0
    %2630 = vadd.xlane.f32.xlu0 %v2629
    %v2631 = vpop.xlane.xlu0 %2630
    %v2632 = vsel %vm1464, %v1341, 0.0
    %2633 = vadd.xlane.f32.xlu0 %v2632
    %v2634 = vpop.xlane.xlu0 %2633
    %v2635 = vsel %vm1464, %v1342, 0.0
    %2636 = vadd.xlane.f32.xlu0 %v2635
    %v2637 = vpop.xlane.xlu0 %2636
    %v2638 = vsel %vm1464, %v1343, 0.0
    %2639 = vadd.xlane.f32.xlu0 %v2638
    %v2640 = vpop.xlane.xlu0 %2639
    %v2641 = vsel %vm1464, %v1344, 0.0
    %2642 = vadd.xlane.f32.xlu0 %v2641
    %v2643 = vpop.xlane.xlu0 %2642
    %v2644 = vsel %vm1464, %v1345, 0.0
    %2645 = vadd.xlane.f32.xlu0 %v2644
    %v2646 = vpop.xlane.xlu0 %2645
    %v2647 = vsel %vm1464, %v1346, 0.0
    %2648 = vadd.xlane.f32.xlu0 %v2647
    %v2649 = vpop.xlane.xlu0 %2648
    %v2650 = vsel %vm1464, %v1347, 0.0
    %2651 = vadd.xlane.f32.xlu0 %v2650
    %v2652 = vpop.xlane.xlu0 %2651
    %v2653 = vsel %vm1464, %v1348, 0.0
    %2654 = vadd.xlane.f32.xlu0 %v2653
    %v2655 = vpop.xlane.xlu0 %2654
    %v2656 = vsel %vm1464, %v1349, 0.0
    %2657 = vadd.xlane.f32.xlu0 %v2656
    %v2658 = vpop.xlane.xlu0 %2657
    %v2659 = vsel %vm1464, %v1350, 0.0
    %2660 = vadd.xlane.f32.xlu0 %v2659
    %v2661 = vpop.xlane.xlu0 %2660
    %v2662 = vsel %vm1464, %v1351, 0.0
    %2663 = vadd.xlane.f32.xlu0 %v2662
    %v2664 = vpop.xlane.xlu0 %2663
    %v2665 = vsel %vm1464, %v1352, 0.0
    %2666 = vadd.xlane.f32.xlu0 %v2665
    %v2667 = vpop.xlane.xlu0 %2666
    %v2668 = vsel %vm1464, %v1353, 0.0
    %2669 = vadd.xlane.f32.xlu0 %v2668
    %v2670 = vpop.xlane.xlu0 %2669
    %v2671 = vsel %vm1464, %v1354, 0.0
    %2672 = vadd.xlane.f32.xlu0 %v2671
    %v2673 = vpop.xlane.xlu0 %2672
    %v2674 = vsel %vm1464, %v1355, 0.0
    %2675 = vadd.xlane.f32.xlu0 %v2674
    %v2676 = vpop.xlane.xlu0 %2675
    %v2677 = vsel %vm1464, %v1356, 0.0
    %2678 = vadd.xlane.f32.xlu0 %v2677
    %v2679 = vpop.xlane.xlu0 %2678
    %v2680 = vsel %vm1464, %v1357, 0.0
    %2681 = vadd.xlane.f32.xlu0 %v2680
    %v2682 = vpop.xlane.xlu0 %2681
    %v2683 = vsel %vm1464, %v1358, 0.0
    %2684 = vadd.xlane.f32.xlu0 %v2683
    %v2685 = vpop.xlane.xlu0 %2684
    %v2686 = vsel %vm1464, %v1359, 0.0
    %2687 = vadd.xlane.f32.xlu0 %v2686
    %v2688 = vpop.xlane.xlu0 %2687
    %v2689 = vsel %vm1464, %v1360, 0.0
    %2690 = vadd.xlane.f32.xlu0 %v2689
    %v2691 = vpop.xlane.xlu0 %2690
    %v2692 = vsel %vm1464, %v1361, 0.0
    %2693 = vadd.xlane.f32.xlu0 %v2692
    %v2694 = vpop.xlane.xlu0 %2693
    %v2695 = vsel %vm1464, %v1362, 0.0
    %2696 = vadd.xlane.f32.xlu0 %v2695
    %v2697 = vpop.xlane.xlu0 %2696
    %v2698 = vsel %vm1464, %v1363, 0.0
    %2699 = vadd.xlane.f32.xlu0 %v2698
    %v2700 = vpop.xlane.xlu0 %2699
    %v2701 = vsel %vm1464, %v1364, 0.0
    %2702 = vadd.xlane.f32.xlu0 %v2701
    %v2703 = vpop.xlane.xlu0 %2702
    %v2704 = vsel %vm1464, %v1365, 0.0
    %2705 = vadd.xlane.f32.xlu0 %v2704
    %v2706 = vpop.xlane.xlu0 %2705
    %v2707 = vsel %vm1464, %v1366, 0.0
    %2708 = vadd.xlane.f32.xlu0 %v2707
    %v2709 = vpop.xlane.xlu0 %2708
    %v2710 = vsel %vm1464, %v1367, 0.0
    %2711 = vadd.xlane.f32.xlu0 %v2710
    %v2712 = vpop.xlane.xlu0 %2711
    %v2713 = vsel %vm1464, %v1368, 0.0
    %2714 = vadd.xlane.f32.xlu0 %v2713
    %v2715 = vpop.xlane.xlu0 %2714
    %v2716 = vsel %vm1464, %v1369, 0.0
    %2717 = vadd.xlane.f32.xlu0 %v2716
    %v2718 = vpop.xlane.xlu0 %2717
    %v2719 = vsel %vm1464, %v1370, 0.0
    %2720 = vadd.xlane.f32.xlu0 %v2719
    %v2721 = vpop.xlane.xlu0 %2720
    %v2722 = vsel %vm1464, %v1371, 0.0
    %2723 = vadd.xlane.f32.xlu0 %v2722
    %v2724 = vpop.xlane.xlu0 %2723
    %v2725 = vsel %vm1464, %v1372, 0.0
    %2726 = vadd.xlane.f32.xlu0 %v2725
    %v2727 = vpop.xlane.xlu0 %2726
    %v2728 = vsel %vm1464, %v1373, 0.0
    %2729 = vadd.xlane.f32.xlu0 %v2728
    %v2730 = vpop.xlane.xlu0 %2729
    %v2731 = vsel %vm1464, %v1374, 0.0
    %2732 = vadd.xlane.f32.xlu0 %v2731
    %v2733 = vpop.xlane.xlu0 %2732
    %v2734 = vsel %vm1464, %v1375, 0.0
    %2735 = vadd.xlane.f32.xlu0 %v2734
    %v2736 = vpop.xlane.xlu0 %2735
    %v2737 = vsel %vm1464, %v1376, 0.0
    %2738 = vadd.xlane.f32.xlu0 %v2737
    %v2739 = vpop.xlane.xlu0 %2738
    %v2740 = vsel %vm1464, %v1377, 0.0
    %2741 = vadd.xlane.f32.xlu0 %v2740
    %v2742 = vpop.xlane.xlu0 %2741
    %v2743 = vsel %vm1464, %v1378, 0.0
    %2744 = vadd.xlane.f32.xlu0 %v2743
    %v2745 = vpop.xlane.xlu0 %2744
    %v2746 = vsel %vm1464, %v1379, 0.0
    %2747 = vadd.xlane.f32.xlu0 %v2746
    %v2748 = vpop.xlane.xlu0 %2747
    %v2749 = vsel %vm1464, %v1380, 0.0
    %2750 = vadd.xlane.f32.xlu0 %v2749
    %v2751 = vpop.xlane.xlu0 %2750
    %v2752 = vsel %vm1464, %v1381, 0.0
    %2753 = vadd.xlane.f32.xlu0 %v2752
    %v2754 = vpop.xlane.xlu0 %2753
    %v2755 = vsel %vm1464, %v1382, 0.0
    %2756 = vadd.xlane.f32.xlu0 %v2755
    %v2757 = vpop.xlane.xlu0 %2756
    %v2758 = vsel %vm1464, %v1383, 0.0
    %2759 = vadd.xlane.f32.xlu0 %v2758
    %v2760 = vpop.xlane.xlu0 %2759
    %v2761 = vsel %vm1464, %v1384, 0.0
    %2762 = vadd.xlane.f32.xlu0 %v2761
    %v2763 = vpop.xlane.xlu0 %2762
    %v2764 = vsel %vm1464, %v1385, 0.0
    %2765 = vadd.xlane.f32.xlu0 %v2764
    %v2766 = vpop.xlane.xlu0 %2765
    %v2767 = vsel %vm1464, %v1386, 0.0
    %2768 = vadd.xlane.f32.xlu0 %v2767
    %v2769 = vpop.xlane.xlu0 %2768
    %v2770 = vsel %vm1464, %v1387, 0.0
    %2771 = vadd.xlane.f32.xlu0 %v2770
    %v2772 = vpop.xlane.xlu0 %2771
    %v2773 = vsel %vm1464, %v1388, 0.0
    %2774 = vadd.xlane.f32.xlu0 %v2773
    %v2775 = vpop.xlane.xlu0 %2774
    %v2776 = vsel %vm1464, %v1389, 0.0
    %2777 = vadd.xlane.f32.xlu0 %v2776
    %v2778 = vpop.xlane.xlu0 %2777
    %v2779 = vsel %vm1464, %v1390, 0.0
    %2780 = vadd.xlane.f32.xlu0 %v2779
    %v2781 = vpop.xlane.xlu0 %2780
    %v2782 = vsel %vm1464, %v1391, 0.0
    %2783 = vadd.xlane.f32.xlu0 %v2782
    %v2784 = vpop.xlane.xlu0 %2783
    %v2785 = vsel %vm1464, %v1392, 0.0
    %2786 = vadd.xlane.f32.xlu0 %v2785
    %v2787 = vpop.xlane.xlu0 %2786
    %v2788 = vsel %vm1464, %v1393, 0.0
    %2789 = vadd.xlane.f32.xlu0 %v2788
    %v2790 = vpop.xlane.xlu0 %2789
    %v2791 = vsel %vm1464, %v1394, 0.0
    %2792 = vadd.xlane.f32.xlu0 %v2791
    %v2793 = vpop.xlane.xlu0 %2792
    %v2794 = vsel %vm1464, %v1395, 0.0
    %2795 = vadd.xlane.f32.xlu0 %v2794
    %v2796 = vpop.xlane.xlu0 %2795
    %v2797 = vsel %vm1464, %v1396, 0.0
    %2798 = vadd.xlane.f32.xlu0 %v2797
    %v2799 = vpop.xlane.xlu0 %2798
    %v2800 = vsel %vm1464, %v1397, 0.0
    %2801 = vadd.xlane.f32.xlu0 %v2800
    %v2802 = vpop.xlane.xlu0 %2801
    %v2803 = vsel %vm1464, %v1398, 0.0
    %2804 = vadd.xlane.f32.xlu0 %v2803
    %v2805 = vpop.xlane.xlu0 %2804
    %v2806 = vsel %vm1464, %v1399, 0.0
    %2807 = vadd.xlane.f32.xlu0 %v2806
    %v2808 = vpop.xlane.xlu0 %2807
    %v2809 = vsel %vm1464, %v1400, 0.0
    %2810 = vadd.xlane.f32.xlu0 %v2809
    %v2811 = vpop.xlane.xlu0 %2810
    %v2812 = vsel %vm1464, %v1401, 0.0
    %2813 = vadd.xlane.f32.xlu0 %v2812
    %v2814 = vpop.xlane.xlu0 %2813
    %v2815 = vsel %vm1464, %v1402, 0.0
    %2816 = vadd.xlane.f32.xlu0 %v2815
    %v2817 = vpop.xlane.xlu0 %2816
    %v2818 = vsel %vm1464, %v1403, 0.0
    %2819 = vadd.xlane.f32.xlu0 %v2818
    %v2820 = vpop.xlane.xlu0 %2819
    %v2821 = vsel %vm1464, %v1404, 0.0
    %2822 = vadd.xlane.f32.xlu0 %v2821
    %v2823 = vpop.xlane.xlu0 %2822
    %v2824 = vsel %vm1464, %v1405, 0.0
    %2825 = vadd.xlane.f32.xlu0 %v2824
    %v2826 = vpop.xlane.xlu0 %2825
    %v2827 = vsel %vm1464, %v1406, 0.0
    %2828 = vadd.xlane.f32.xlu0 %v2827
    %v2829 = vpop.xlane.xlu0 %2828
    %v2830 = vsel %vm1464, %v1407, 0.0
    %2831 = vadd.xlane.f32.xlu0 %v2830
    %v2832 = vpop.xlane.xlu0 %2831
    %v2833 = vsel %vm1464, %v1408, 0.0
    %2834 = vadd.xlane.f32.xlu0 %v2833
    %v2835 = vpop.xlane.xlu0 %2834
    %v2836 = vsel %vm1464, %v1409, 0.0
    %2837 = vadd.xlane.f32.xlu0 %v2836
    %v2838 = vpop.xlane.xlu0 %2837
    %v2839 = vsel %vm1464, %v1410, 0.0
    %2840 = vadd.xlane.f32.xlu0 %v2839
    %v2841 = vpop.xlane.xlu0 %2840
    %v2842 = vsel %vm1464, %v1411, 0.0
    %2843 = vadd.xlane.f32.xlu0 %v2842
    %v2844 = vpop.xlane.xlu0 %2843
    %v2845 = vsel %vm1464, %v1412, 0.0
    %2846 = vadd.xlane.f32.xlu0 %v2845
    %v2847 = vpop.xlane.xlu0 %2846
    %v2848 = vsel %vm1464, %v1413, 0.0
    %2849 = vadd.xlane.f32.xlu0 %v2848
    %v2850 = vpop.xlane.xlu0 %2849
    %v2851 = vsel %vm1464, %v1414, 0.0
    %2852 = vadd.xlane.f32.xlu0 %v2851
    %v2853 = vpop.xlane.xlu0 %2852
    %v2854 = vsel %vm1464, %v1415, 0.0
    %2855 = vadd.xlane.f32.xlu0 %v2854
    %v2856 = vpop.xlane.xlu0 %2855
    %v2857 = vsel %vm1464, %v1416, 0.0
    %2858 = vadd.xlane.f32.xlu0 %v2857
    %v2859 = vpop.xlane.xlu0 %2858
    %v2860 = vsel %vm1464, %v1417, 0.0
    %2861 = vadd.xlane.f32.xlu0 %v2860
    %v2862 = vpop.xlane.xlu0 %2861
    %v2863 = vsel %vm1464, %v1418, 0.0
    %2864 = vadd.xlane.f32.xlu0 %v2863
    %v2865 = vpop.xlane.xlu0 %2864
    %v2866 = vsel %vm1464, %v1419, 0.0
    %2867 = vadd.xlane.f32.xlu0 %v2866
    %v2868 = vpop.xlane.xlu0 %2867
    %v2869 = vsel %vm1464, %v1420, 0.0
    %2870 = vadd.xlane.f32.xlu0 %v2869
    %v2871 = vpop.xlane.xlu0 %2870
    %v2872 = vsel %vm1464, %v1421, 0.0
    %2873 = vadd.xlane.f32.xlu0 %v2872
    %v2874 = vpop.xlane.xlu0 %2873
    %v2875 = vsel %vm1464, %v1422, 0.0
    %2876 = vadd.xlane.f32.xlu0 %v2875
    %v2877 = vpop.xlane.xlu0 %2876
    %v2878 = vsel %vm1464, %v1423, 0.0
    %2879 = vadd.xlane.f32.xlu0 %v2878
    %v2880 = vpop.xlane.xlu0 %2879
    %v2881 = vsel %vm1464, %v1424, 0.0
    %2882 = vadd.xlane.f32.xlu0 %v2881
    %v2883 = vpop.xlane.xlu0 %2882
    %v2884 = vsel %vm1464, %v1425, 0.0
    %2885 = vadd.xlane.f32.xlu0 %v2884
    %v2886 = vpop.xlane.xlu0 %2885
    %v2887 = vsel %vm1464, %v1426, 0.0
    %2888 = vadd.xlane.f32.xlu0 %v2887
    %v2889 = vpop.xlane.xlu0 %2888
    %v2890 = vsel %vm1464, %v1427, 0.0
    %2891 = vadd.xlane.f32.xlu0 %v2890
    %v2892 = vpop.xlane.xlu0 %2891
    %v2893 = vsel %vm1464, %v1428, 0.0
    %2894 = vadd.xlane.f32.xlu0 %v2893
    %v2895 = vpop.xlane.xlu0 %2894
    %v2896 = vsel %vm1464, %v1429, 0.0
    %2897 = vadd.xlane.f32.xlu0 %v2896
    %v2898 = vpop.xlane.xlu0 %2897
    %v2899 = vsel %vm1464, %v1430, 0.0
    %2900 = vadd.xlane.f32.xlu0 %v2899
    %v2901 = vpop.xlane.xlu0 %2900
    %v2902 = vsel %vm1464, %v1431, 0.0
    %2903 = vadd.xlane.f32.xlu0 %v2902
    %v2904 = vpop.xlane.xlu0 %2903
    %v2905 = vsel %vm1464, %v1432, 0.0
    %2906 = vadd.xlane.f32.xlu0 %v2905
    %v2907 = vpop.xlane.xlu0 %2906
    %v2908 = vsel %vm1464, %v1433, 0.0
    %2909 = vadd.xlane.f32.xlu0 %v2908
    %v2910 = vpop.xlane.xlu0 %2909
    %v2911 = vsel %vm1464, %v1434, 0.0
    %2912 = vadd.xlane.f32.xlu0 %v2911
    %v2913 = vpop.xlane.xlu0 %2912
    %v2914 = vsel %vm1464, %v1435, 0.0
    %2915 = vadd.xlane.f32.xlu0 %v2914
    %v2916 = vpop.xlane.xlu0 %2915
    %v2917 = vsel %vm1464, %v1436, 0.0
    %2918 = vadd.xlane.f32.xlu0 %v2917
    %v2919 = vpop.xlane.xlu0 %2918
    %v2920 = vsel %vm1464, %v1437, 0.0
    %2921 = vadd.xlane.f32.xlu0 %v2920
    %v2922 = vpop.xlane.xlu0 %2921
    %v2923 = vsel %vm1464, %v1438, 0.0
    %2924 = vadd.xlane.f32.xlu0 %v2923
    %v2925 = vpop.xlane.xlu0 %2924
    %v2926 = vsel %vm1464, %v1439, 0.0
    %2927 = vadd.xlane.f32.xlu0 %v2926
    %v2928 = vpop.xlane.xlu0 %2927
    %v2929 = vsel %vm1464, %v1440, 0.0
    %2930 = vadd.xlane.f32.xlu0 %v2929
    %v2931 = vpop.xlane.xlu0 %2930
    %v2932 = vsel %vm1464, %v1441, 0.0
    %2933 = vadd.xlane.f32.xlu0 %v2932
    %v2934 = vpop.xlane.xlu0 %2933
    %v2935 = vsel %vm1464, %v1442, 0.0
    %2936 = vadd.xlane.f32.xlu0 %v2935
    %v2937 = vpop.xlane.xlu0 %2936
    %v2938 = vsel %vm1464, %v1443, 0.0
    %2939 = vadd.xlane.f32.xlu0 %v2938
    %v2940 = vpop.xlane.xlu0 %2939
    %v2941 = vsel %vm1464, %v1444, 0.0
    %2942 = vadd.xlane.f32.xlu0 %v2941
    %v2943 = vpop.xlane.xlu0 %2942
    %v2944 = vsel %vm1464, %v1445, 0.0
    %2945 = vadd.xlane.f32.xlu0 %v2944
    %v2946 = vpop.xlane.xlu0 %2945
    %v2947 = vsel %vm1464, %v1446, 0.0
    %2948 = vadd.xlane.f32.xlu0 %v2947
    %v2949 = vpop.xlane.xlu0 %2948
    %v2950 = vsel %vm1464, %v1447, 0.0
    %2951 = vadd.xlane.f32.xlu0 %v2950
    %v2952 = vpop.xlane.xlu0 %2951
    %v2953 = vsel %vm1464, %v1448, 0.0
    %2954 = vadd.xlane.f32.xlu0 %v2953
    %v2955 = vpop.xlane.xlu0 %2954
    %v2956 = vsel %vm1464, %v1449, 0.0
    %2957 = vadd.xlane.f32.xlu0 %v2956
    %v2958 = vpop.xlane.xlu0 %2957
    %v2959 = vsel %vm1464, %v1450, 0.0
    %2960 = vadd.xlane.f32.xlu0 %v2959
    %v2961 = vpop.xlane.xlu0 %2960
    %v2962 = vsel %vm1464, %v1451, 0.0
    %2963 = vadd.xlane.f32.xlu0 %v2962
    %v2964 = vpop.xlane.xlu0 %2963
    %v2965 = vsel %vm1464, %v1452, 0.0
    %2966 = vadd.xlane.f32.xlu0 %v2965
    %v2967 = vpop.xlane.xlu0 %2966
    %v2968 = vsel %vm1464, %v1453, 0.0
    %2969 = vadd.xlane.f32.xlu0 %v2968
    %v2970 = vpop.xlane.xlu0 %2969
    %v2971 = vsel %vm1464, %v1454, 0.0
    %2972 = vadd.xlane.f32.xlu0 %v2971
    %v2973 = vpop.xlane.xlu0 %2972
    %v2974 = vsel %vm1464, %v1455, 0.0
    %2975 = vadd.xlane.f32.xlu0 %v2974
    %v2976 = vpop.xlane.xlu0 %2975
    %v2977 = vsel %vm1464, %v1456, 0.0
    %2978 = vadd.xlane.f32.xlu0 %v2977
    %v2979 = vpop.xlane.xlu0 %2978
    %v2980 = vsel %vm1464, %v1457, 0.0
    %2981 = vadd.xlane.f32.xlu0 %v2980
    %v2982 = vpop.xlane.xlu0 %2981
    %v2983 = vsel %vm1464, %v1458, 0.0
    %2984 = vadd.xlane.f32.xlu0 %v2983
    %v2985 = vpop.xlane.xlu0 %2984
    %v2986 = vsel %vm1464, %v1459, 0.0
    %2987 = vadd.xlane.f32.xlu0 %v2986
    %v2988 = vpop.xlane.xlu0 %2987
    %v2989 = vsel %vm1464, %v1460, 0.0
    %2990 = vadd.xlane.f32.xlu0 %v2989
    %v2991 = vpop.xlane.xlu0 %2990
    %v2992 = vsel %vm1464, %v1461, 0.0
    %2993 = vadd.xlane.f32.xlu0 %v2992
    %v2994 = vpop.xlane.xlu0 %2993
    %v2995 = vsel %vm1464, %v1462, 0.0
    %2996 = vadd.xlane.f32.xlu0 %v2995
    %v2997 = vpop.xlane.xlu0 %2996
    %v2998 = vsel %vm1464, %v1463, 0.0
    %2999 = vadd.xlane.f32.xlu0 %v2998
    %v3000 = vpop.xlane.xlu0 %2999
    %v3001 = vmax.f32 %v1467, 0.0
    %v3002 = vmax.f32 %v1470, 0.0
    %v3003 = vmax.f32 %v1473, 0.0
    %v3004 = vmax.f32 %v1476, 0.0
    %v3005 = vmax.f32 %v1479, 0.0
    %v3006 = vmax.f32 %v1482, 0.0
    %v3007 = vmax.f32 %v1485, 0.0
    %v3008 = vmax.f32 %v1488, 0.0
    %v3009 = vmax.f32 %v1491, 0.0
    %v3010 = vmax.f32 %v1494, 0.0
    %v3011 = vmax.f32 %v1497, 0.0
    %v3012 = vmax.f32 %v1500, 0.0
    %v3013 = vmax.f32 %v1503, 0.0
    %v3014 = vmax.f32 %v1506, 0.0
    %v3015 = vmax.f32 %v1509, 0.0
    %v3016 = vmax.f32 %v1512, 0.0
    %v3017 = vmax.f32 %v1515, 0.0
    %v3018 = vmax.f32 %v1518, 0.0
    %v3019 = vmax.f32 %v1521, 0.0
    %v3020 = vmax.f32 %v1524, 0.0
    %v3021 = vmax.f32 %v1527, 0.0
    %v3022 = vmax.f32 %v1530, 0.0
    %v3023 = vmax.f32 %v1533, 0.0
    %v3024 = vmax.f32 %v1536, 0.0
    %v3025 = vmax.f32 %v1539, 0.0
    %v3026 = vmax.f32 %v1542, 0.0
    %v3027 = vmax.f32 %v1545, 0.0
    %v3028 = vmax.f32 %v1548, 0.0
    %v3029 = vmax.f32 %v1551, 0.0
    %v3030 = vmax.f32 %v1554, 0.0
    %v3031 = vmax.f32 %v1557, 0.0
    %v3032 = vmax.f32 %v1560, 0.0
    %v3033 = vmax.f32 %v1563, 0.0
    %v3034 = vmax.f32 %v1566, 0.0
    %v3035 = vmax.f32 %v1569, 0.0
    %v3036 = vmax.f32 %v1572, 0.0
    %v3037 = vmax.f32 %v1575, 0.0
    %v3038 = vmax.f32 %v1578, 0.0
    %v3039 = vmax.f32 %v1581, 0.0
    %v3040 = vmax.f32 %v1584, 0.0
    %v3041 = vmax.f32 %v1587, 0.0
    %v3042 = vmax.f32 %v1590, 0.0
    %v3043 = vmax.f32 %v1593, 0.0
    %v3044 = vmax.f32 %v1596, 0.0
    %v3045 = vmax.f32 %v1599, 0.0
    %v3046 = vmax.f32 %v1602, 0.0
    %v3047 = vmax.f32 %v1605, 0.0
    %v3048 = vmax.f32 %v1608, 0.0
    %v3049 = vmax.f32 %v1611, 0.0
    %v3050 = vmax.f32 %v1614, 0.0
    %v3051 = vmax.f32 %v1617, 0.0
    %v3052 = vmax.f32 %v1620, 0.0
    %v3053 = vmax.f32 %v1623, 0.0
    %v3054 = vmax.f32 %v1626, 0.0
    %v3055 = vmax.f32 %v1629, 0.0
    %v3056 = vmax.f32 %v1632, 0.0
    %v3057 = vmax.f32 %v1635, 0.0
    %v3058 = vmax.f32 %v1638, 0.0
    %v3059 = vmax.f32 %v1641, 0.0
    %v3060 = vmax.f32 %v1644, 0.0
    %v3061 = vmax.f32 %v1647, 0.0
    %v3062 = vmax.f32 %v1650, 0.0
    %v3063 = vmax.f32 %v1653, 0.0
    %v3064 = vmax.f32 %v1656, 0.0
    %v3065 = vmax.f32 %v1659, 0.0
    %v3066 = vmax.f32 %v1662, 0.0
    %v3067 = vmax.f32 %v1665, 0.0
    %v3068 = vmax.f32 %v1668, 0.0
    %v3069 = vmax.f32 %v1671, 0.0
    %v3070 = vmax.f32 %v1674, 0.0
    %v3071 = vmax.f32 %v1677, 0.0
    %v3072 = vmax.f32 %v1680, 0.0
    %v3073 = vmax.f32 %v1683, 0.0
    %v3074 = vmax.f32 %v1686, 0.0
    %v3075 = vmax.f32 %v1689, 0.0
    %v3076 = vmax.f32 %v1692, 0.0
    %v3077 = vmax.f32 %v1695, 0.0
    %v3078 = vmax.f32 %v1698, 0.0
    %v3079 = vmax.f32 %v1701, 0.0
    %v3080 = vmax.f32 %v1704, 0.0
    %v3081 = vmax.f32 %v1707, 0.0
    %v3082 = vmax.f32 %v1710, 0.0
    %v3083 = vmax.f32 %v1713, 0.0
    %v3084 = vmax.f32 %v1716, 0.0
    %v3085 = vmax.f32 %v1719, 0.0
    %v3086 = vmax.f32 %v1722, 0.0
    %v3087 = vmax.f32 %v1725, 0.0
    %v3088 = vmax.f32 %v1728, 0.0
    %v3089 = vmax.f32 %v1731, 0.0
    %v3090 = vmax.f32 %v1734, 0.0
    %v3091 = vmax.f32 %v1737, 0.0
    %v3092 = vmax.f32 %v1740, 0.0
    %v3093 = vmax.f32 %v1743, 0.0
    %v3094 = vmax.f32 %v1746, 0.0
    %v3095 = vmax.f32 %v1749, 0.0
    %v3096 = vmax.f32 %v1752, 0.0
    %v3097 = vmax.f32 %v1755, 0.0
    %v3098 = vmax.f32 %v1758, 0.0
    %v3099 = vmax.f32 %v1761, 0.0
    %v3100 = vmax.f32 %v1764, 0.0
    %v3101 = vmax.f32 %v1767, 0.0
    %v3102 = vmax.f32 %v1770, 0.0
    %v3103 = vmax.f32 %v1773, 0.0
    %v3104 = vmax.f32 %v1776, 0.0
    %v3105 = vmax.f32 %v1779, 0.0
    %v3106 = vmax.f32 %v1782, 0.0
    %v3107 = vmax.f32 %v1785, 0.0
    %v3108 = vmax.f32 %v1788, 0.0
    %v3109 = vmax.f32 %v1791, 0.0
    %v3110 = vmax.f32 %v1794, 0.0
    %v3111 = vmax.f32 %v1797, 0.0
    %v3112 = vmax.f32 %v1800, 0.0
    %v3113 = vmax.f32 %v1803, 0.0
    %v3114 = vmax.f32 %v1806, 0.0
    %v3115 = vmax.f32 %v1809, 0.0
    %v3116 = vmax.f32 %v1812, 0.0
    %v3117 = vmax.f32 %v1815, 0.0
    %v3118 = vmax.f32 %v1818, 0.0
    %v3119 = vmax.f32 %v1821, 0.0
    %v3120 = vmax.f32 %v1824, 0.0
    %v3121 = vmax.f32 %v1827, 0.0
    %v3122 = vmax.f32 %v1830, 0.0
    %v3123 = vmax.f32 %v1833, 0.0
    %v3124 = vmax.f32 %v1836, 0.0
    %v3125 = vmax.f32 %v1839, 0.0
    %v3126 = vmax.f32 %v1842, 0.0
    %v3127 = vmax.f32 %v1845, 0.0
    %v3128 = vmax.f32 %v1848, 0.0
    %v3129 = vmax.f32 %v1851, 0.0
    %v3130 = vmax.f32 %v1854, 0.0
    %v3131 = vmax.f32 %v1857, 0.0
    %v3132 = vmax.f32 %v1860, 0.0
    %v3133 = vmax.f32 %v1863, 0.0
    %v3134 = vmax.f32 %v1866, 0.0
    %v3135 = vmax.f32 %v1869, 0.0
    %v3136 = vmax.f32 %v1872, 0.0
    %v3137 = vmax.f32 %v1875, 0.0
    %v3138 = vmax.f32 %v1878, 0.0
    %v3139 = vmax.f32 %v1881, 0.0
    %v3140 = vmax.f32 %v1884, 0.0
    %v3141 = vmax.f32 %v1887, 0.0
    %v3142 = vmax.f32 %v1890, 0.0
    %v3143 = vmax.f32 %v1893, 0.0
    %v3144 = vmax.f32 %v1896, 0.0
    %v3145 = vmax.f32 %v1899, 0.0
    %v3146 = vmax.f32 %v1902, 0.0
    %v3147 = vmax.f32 %v1905, 0.0
    %v3148 = vmax.f32 %v1908, 0.0
    %v3149 = vmax.f32 %v1911, 0.0
    %v3150 = vmax.f32 %v1914, 0.0
    %v3151 = vmax.f32 %v1917, 0.0
    %v3152 = vmax.f32 %v1920, 0.0
    %v3153 = vmax.f32 %v1923, 0.0
    %v3154 = vmax.f32 %v1926, 0.0
    %v3155 = vmax.f32 %v1929, 0.0
    %v3156 = vmax.f32 %v1932, 0.0
    %v3157 = vmax.f32 %v1935, 0.0
    %v3158 = vmax.f32 %v1938, 0.0
    %v3159 = vmax.f32 %v1941, 0.0
    %v3160 = vmax.f32 %v1944, 0.0
    %v3161 = vmax.f32 %v1947, 0.0
    %v3162 = vmax.f32 %v1950, 0.0
    %v3163 = vmax.f32 %v1953, 0.0
    %v3164 = vmax.f32 %v1956, 0.0
    %v3165 = vmax.f32 %v1959, 0.0
    %v3166 = vmax.f32 %v1962, 0.0
    %v3167 = vmax.f32 %v1965, 0.0
    %v3168 = vmax.f32 %v1968, 0.0
    %v3169 = vmax.f32 %v1971, 0.0
    %v3170 = vmax.f32 %v1974, 0.0
    %v3171 = vmax.f32 %v1977, 0.0
    %v3172 = vmax.f32 %v1980, 0.0
    %v3173 = vmax.f32 %v1983, 0.0
    %v3174 = vmax.f32 %v1986, 0.0
    %v3175 = vmax.f32 %v1989, 0.0
    %v3176 = vmax.f32 %v1992, 0.0
    %v3177 = vmax.f32 %v1995, 0.0
    %v3178 = vmax.f32 %v1998, 0.0
    %v3179 = vmax.f32 %v2001, 0.0
    %v3180 = vmax.f32 %v2004, 0.0
    %v3181 = vmax.f32 %v2007, 0.0
    %v3182 = vmax.f32 %v2010, 0.0
    %v3183 = vmax.f32 %v2013, 0.0
    %v3184 = vmax.f32 %v2016, 0.0
    %v3185 = vmax.f32 %v2019, 0.0
    %v3186 = vmax.f32 %v2022, 0.0
    %v3187 = vmax.f32 %v2025, 0.0
    %v3188 = vmax.f32 %v2028, 0.0
    %v3189 = vmax.f32 %v2031, 0.0
    %v3190 = vmax.f32 %v2034, 0.0
    %v3191 = vmax.f32 %v2037, 0.0
    %v3192 = vmax.f32 %v2040, 0.0
    %v3193 = vmax.f32 %v2043, 0.0
    %v3194 = vmax.f32 %v2046, 0.0
    %v3195 = vmax.f32 %v2049, 0.0
    %v3196 = vmax.f32 %v2052, 0.0
    %v3197 = vmax.f32 %v2055, 0.0
    %v3198 = vmax.f32 %v2058, 0.0
    %v3199 = vmax.f32 %v2061, 0.0
    %v3200 = vmax.f32 %v2064, 0.0
    %v3201 = vmax.f32 %v2067, 0.0
    %v3202 = vmax.f32 %v2070, 0.0
    %v3203 = vmax.f32 %v2073, 0.0
    %v3204 = vmax.f32 %v2076, 0.0
    %v3205 = vmax.f32 %v2079, 0.0
    %v3206 = vmax.f32 %v2082, 0.0
    %v3207 = vmax.f32 %v2085, 0.0
    %v3208 = vmax.f32 %v2088, 0.0
    %v3209 = vmax.f32 %v2091, 0.0
    %v3210 = vmax.f32 %v2094, 0.0
    %v3211 = vmax.f32 %v2097, 0.0
    %v3212 = vmax.f32 %v2100, 0.0
    %v3213 = vmax.f32 %v2103, 0.0
    %v3214 = vmax.f32 %v2106, 0.0
    %v3215 = vmax.f32 %v2109, 0.0
    %v3216 = vmax.f32 %v2112, 0.0
    %v3217 = vmax.f32 %v2115, 0.0
    %v3218 = vmax.f32 %v2118, 0.0
    %v3219 = vmax.f32 %v2121, 0.0
    %v3220 = vmax.f32 %v2124, 0.0
    %v3221 = vmax.f32 %v2127, 0.0
    %v3222 = vmax.f32 %v2130, 0.0
    %v3223 = vmax.f32 %v2133, 0.0
    %v3224 = vmax.f32 %v2136, 0.0
    %v3225 = vmax.f32 %v2139, 0.0
    %v3226 = vmax.f32 %v2142, 0.0
    %v3227 = vmax.f32 %v2145, 0.0
    %v3228 = vmax.f32 %v2148, 0.0
    %v3229 = vmax.f32 %v2151, 0.0
    %v3230 = vmax.f32 %v2154, 0.0
    %v3231 = vmax.f32 %v2157, 0.0
    %v3232 = vmax.f32 %v2160, 0.0
    %v3233 = vmax.f32 %v2163, 0.0
    %v3234 = vmax.f32 %v2166, 0.0
    %v3235 = vmax.f32 %v2169, 0.0
    %v3236 = vmax.f32 %v2172, 0.0
    %v3237 = vmax.f32 %v2175, 0.0
    %v3238 = vmax.f32 %v2178, 0.0
    %v3239 = vmax.f32 %v2181, 0.0
    %v3240 = vmax.f32 %v2184, 0.0
    %v3241 = vmax.f32 %v2187, 0.0
    %v3242 = vmax.f32 %v2190, 0.0
    %v3243 = vmax.f32 %v2193, 0.0
    %v3244 = vmax.f32 %v2196, 0.0
    %v3245 = vmax.f32 %v2199, 0.0
    %v3246 = vmax.f32 %v2202, 0.0
    %v3247 = vmax.f32 %v2205, 0.0
    %v3248 = vmax.f32 %v2208, 0.0
    %v3249 = vmax.f32 %v2211, 0.0
    %v3250 = vmax.f32 %v2214, 0.0
    %v3251 = vmax.f32 %v2217, 0.0
    %v3252 = vmax.f32 %v2220, 0.0
    %v3253 = vmax.f32 %v2223, 0.0
    %v3254 = vmax.f32 %v2226, 0.0
    %v3255 = vmax.f32 %v2229, 0.0
    %v3256 = vmax.f32 %v2232, 0.0
    %v3257 = vmax.f32 %v2235, 0.0
    %v3258 = vmax.f32 %v2238, 0.0
    %v3259 = vmax.f32 %v2241, 0.0
    %v3260 = vmax.f32 %v2244, 0.0
    %v3261 = vmax.f32 %v2247, 0.0
    %v3262 = vmax.f32 %v2250, 0.0
    %v3263 = vmax.f32 %v2253, 0.0
    %v3264 = vmax.f32 %v2256, 0.0
    %v3265 = vmax.f32 %v2259, 0.0
    %v3266 = vmax.f32 %v2262, 0.0
    %v3267 = vmax.f32 %v2265, 0.0
    %v3268 = vmax.f32 %v2268, 0.0
    %v3269 = vmax.f32 %v2271, 0.0
    %v3270 = vmax.f32 %v2274, 0.0
    %v3271 = vmax.f32 %v2277, 0.0
    %v3272 = vmax.f32 %v2280, 0.0
    %v3273 = vmax.f32 %v2283, 0.0
    %v3274 = vmax.f32 %v2286, 0.0
    %v3275 = vmax.f32 %v2289, 0.0
    %v3276 = vmax.f32 %v2292, 0.0
    %v3277 = vmax.f32 %v2295, 0.0
    %v3278 = vmax.f32 %v2298, 0.0
    %v3279 = vmax.f32 %v2301, 0.0
    %v3280 = vmax.f32 %v2304, 0.0
    %v3281 = vmax.f32 %v2307, 0.0
    %v3282 = vmax.f32 %v2310, 0.0
    %v3283 = vmax.f32 %v2313, 0.0
    %v3284 = vmax.f32 %v2316, 0.0
    %v3285 = vmax.f32 %v2319, 0.0
    %v3286 = vmax.f32 %v2322, 0.0
    %v3287 = vmax.f32 %v2325, 0.0
    %v3288 = vmax.f32 %v2328, 0.0
    %v3289 = vmax.f32 %v2331, 0.0
    %v3290 = vmax.f32 %v2334, 0.0
    %v3291 = vmax.f32 %v2337, 0.0
    %v3292 = vmax.f32 %v2340, 0.0
    %v3293 = vmax.f32 %v2343, 0.0
    %v3294 = vmax.f32 %v2346, 0.0
    %v3295 = vmax.f32 %v2349, 0.0
    %v3296 = vmax.f32 %v2352, 0.0
    %v3297 = vmax.f32 %v2355, 0.0
    %v3298 = vmax.f32 %v2358, 0.0
    %v3299 = vmax.f32 %v2361, 0.0
    %v3300 = vmax.f32 %v2364, 0.0
    %v3301 = vmax.f32 %v2367, 0.0
    %v3302 = vmax.f32 %v2370, 0.0
    %v3303 = vmax.f32 %v2373, 0.0
    %v3304 = vmax.f32 %v2376, 0.0
    %v3305 = vmax.f32 %v2379, 0.0
    %v3306 = vmax.f32 %v2382, 0.0
    %v3307 = vmax.f32 %v2385, 0.0
    %v3308 = vmax.f32 %v2388, 0.0
    %v3309 = vmax.f32 %v2391, 0.0
    %v3310 = vmax.f32 %v2394, 0.0
    %v3311 = vmax.f32 %v2397, 0.0
    %v3312 = vmax.f32 %v2400, 0.0
    %v3313 = vmax.f32 %v2403, 0.0
    %v3314 = vmax.f32 %v2406, 0.0
    %v3315 = vmax.f32 %v2409, 0.0
    %v3316 = vmax.f32 %v2412, 0.0
    %v3317 = vmax.f32 %v2415, 0.0
    %v3318 = vmax.f32 %v2418, 0.0
    %v3319 = vmax.f32 %v2421, 0.0
    %v3320 = vmax.f32 %v2424, 0.0
    %v3321 = vmax.f32 %v2427, 0.0
    %v3322 = vmax.f32 %v2430, 0.0
    %v3323 = vmax.f32 %v2433, 0.0
    %v3324 = vmax.f32 %v2436, 0.0
    %v3325 = vmax.f32 %v2439, 0.0
    %v3326 = vmax.f32 %v2442, 0.0
    %v3327 = vmax.f32 %v2445, 0.0
    %v3328 = vmax.f32 %v2448, 0.0
    %v3329 = vmax.f32 %v2451, 0.0
    %v3330 = vmax.f32 %v2454, 0.0
    %v3331 = vmax.f32 %v2457, 0.0
    %v3332 = vmax.f32 %v2460, 0.0
    %v3333 = vmax.f32 %v2463, 0.0
    %v3334 = vmax.f32 %v2466, 0.0
    %v3335 = vmax.f32 %v2469, 0.0
    %v3336 = vmax.f32 %v2472, 0.0
    %v3337 = vmax.f32 %v2475, 0.0
    %v3338 = vmax.f32 %v2478, 0.0
    %v3339 = vmax.f32 %v2481, 0.0
    %v3340 = vmax.f32 %v2484, 0.0
    %v3341 = vmax.f32 %v2487, 0.0
    %v3342 = vmax.f32 %v2490, 0.0
    %v3343 = vmax.f32 %v2493, 0.0
    %v3344 = vmax.f32 %v2496, 0.0
    %v3345 = vmax.f32 %v2499, 0.0
    %v3346 = vmax.f32 %v2502, 0.0
    %v3347 = vmax.f32 %v2505, 0.0
    %v3348 = vmax.f32 %v2508, 0.0
    %v3349 = vmax.f32 %v2511, 0.0
    %v3350 = vmax.f32 %v2514, 0.0
    %v3351 = vmax.f32 %v2517, 0.0
    %v3352 = vmax.f32 %v2520, 0.0
    %v3353 = vmax.f32 %v2523, 0.0
    %v3354 = vmax.f32 %v2526, 0.0
    %v3355 = vmax.f32 %v2529, 0.0
    %v3356 = vmax.f32 %v2532, 0.0
    %v3357 = vmax.f32 %v2535, 0.0
    %v3358 = vmax.f32 %v2538, 0.0
    %v3359 = vmax.f32 %v2541, 0.0
    %v3360 = vmax.f32 %v2544, 0.0
    %v3361 = vmax.f32 %v2547, 0.0
    %v3362 = vmax.f32 %v2550, 0.0
    %v3363 = vmax.f32 %v2553, 0.0
    %v3364 = vmax.f32 %v2556, 0.0
    %v3365 = vmax.f32 %v2559, 0.0
    %v3366 = vmax.f32 %v2562, 0.0
    %v3367 = vmax.f32 %v2565, 0.0
    %v3368 = vmax.f32 %v2568, 0.0
    %v3369 = vmax.f32 %v2571, 0.0
    %v3370 = vmax.f32 %v2574, 0.0
    %v3371 = vmax.f32 %v2577, 0.0
    %v3372 = vmax.f32 %v2580, 0.0
    %v3373 = vmax.f32 %v2583, 0.0
    %v3374 = vmax.f32 %v2586, 0.0
    %v3375 = vmax.f32 %v2589, 0.0
    %v3376 = vmax.f32 %v2592, 0.0
    %v3377 = vmax.f32 %v2595, 0.0
    %v3378 = vmax.f32 %v2598, 0.0
    %v3379 = vmax.f32 %v2601, 0.0
    %v3380 = vmax.f32 %v2604, 0.0
    %v3381 = vmax.f32 %v2607, 0.0
    %v3382 = vmax.f32 %v2610, 0.0
    %v3383 = vmax.f32 %v2613, 0.0
    %v3384 = vmax.f32 %v2616, 0.0
    %v3385 = vmax.f32 %v2619, 0.0
    %v3386 = vmax.f32 %v2622, 0.0
    %v3387 = vmax.f32 %v2625, 0.0
    %v3388 = vmax.f32 %v2628, 0.0
    %v3389 = vmax.f32 %v2631, 0.0
    %v3390 = vmax.f32 %v2634, 0.0
    %v3391 = vmax.f32 %v2637, 0.0
    %v3392 = vmax.f32 %v2640, 0.0
    %v3393 = vmax.f32 %v2643, 0.0
    %v3394 = vmax.f32 %v2646, 0.0
    %v3395 = vmax.f32 %v2649, 0.0
    %v3396 = vmax.f32 %v2652, 0.0
    %v3397 = vmax.f32 %v2655, 0.0
    %v3398 = vmax.f32 %v2658, 0.0
    %v3399 = vmax.f32 %v2661, 0.0
    %v3400 = vmax.f32 %v2664, 0.0
    %v3401 = vmax.f32 %v2667, 0.0
    %v3402 = vmax.f32 %v2670, 0.0
    %v3403 = vmax.f32 %v2673, 0.0
    %v3404 = vmax.f32 %v2676, 0.0
    %v3405 = vmax.f32 %v2679, 0.0
    %v3406 = vmax.f32 %v2682, 0.0
    %v3407 = vmax.f32 %v2685, 0.0
    %v3408 = vmax.f32 %v2688, 0.0
    %v3409 = vmax.f32 %v2691, 0.0
    %v3410 = vmax.f32 %v2694, 0.0
    %v3411 = vmax.f32 %v2697, 0.0
    %v3412 = vmax.f32 %v2700, 0.0
    %v3413 = vmax.f32 %v2703, 0.0
    %v3414 = vmax.f32 %v2706, 0.0
    %v3415 = vmax.f32 %v2709, 0.0
    %v3416 = vmax.f32 %v2712, 0.0
    %v3417 = vmax.f32 %v2715, 0.0
    %v3418 = vmax.f32 %v2718, 0.0
    %v3419 = vmax.f32 %v2721, 0.0
    %v3420 = vmax.f32 %v2724, 0.0
    %v3421 = vmax.f32 %v2727, 0.0
    %v3422 = vmax.f32 %v2730, 0.0
    %v3423 = vmax.f32 %v2733, 0.0
    %v3424 = vmax.f32 %v2736, 0.0
    %v3425 = vmax.f32 %v2739, 0.0
    %v3426 = vmax.f32 %v2742, 0.0
    %v3427 = vmax.f32 %v2745, 0.0
    %v3428 = vmax.f32 %v2748, 0.0
    %v3429 = vmax.f32 %v2751, 0.0
    %v3430 = vmax.f32 %v2754, 0.0
    %v3431 = vmax.f32 %v2757, 0.0
    %v3432 = vmax.f32 %v2760, 0.0
    %v3433 = vmax.f32 %v2763, 0.0
    %v3434 = vmax.f32 %v2766, 0.0
    %v3435 = vmax.f32 %v2769, 0.0
    %v3436 = vmax.f32 %v2772, 0.0
    %v3437 = vmax.f32 %v2775, 0.0
    %v3438 = vmax.f32 %v2778, 0.0
    %v3439 = vmax.f32 %v2781, 0.0
    %v3440 = vmax.f32 %v2784, 0.0
    %v3441 = vmax.f32 %v2787, 0.0
    %v3442 = vmax.f32 %v2790, 0.0
    %v3443 = vmax.f32 %v2793, 0.0
    %v3444 = vmax.f32 %v2796, 0.0
    %v3445 = vmax.f32 %v2799, 0.0
    %v3446 = vmax.f32 %v2802, 0.0
    %v3447 = vmax.f32 %v2805, 0.0
    %v3448 = vmax.f32 %v2808, 0.0
    %v3449 = vmax.f32 %v2811, 0.0
    %v3450 = vmax.f32 %v2814, 0.0
    %v3451 = vmax.f32 %v2817, 0.0
    %v3452 = vmax.f32 %v2820, 0.0
    %v3453 = vmax.f32 %v2823, 0.0
    %v3454 = vmax.f32 %v2826, 0.0
    %v3455 = vmax.f32 %v2829, 0.0
    %v3456 = vmax.f32 %v2832, 0.0
    %v3457 = vmax.f32 %v2835, 0.0
    %v3458 = vmax.f32 %v2838, 0.0
    %v3459 = vmax.f32 %v2841, 0.0
    %v3460 = vmax.f32 %v2844, 0.0
    %v3461 = vmax.f32 %v2847, 0.0
    %v3462 = vmax.f32 %v2850, 0.0
    %v3463 = vmax.f32 %v2853, 0.0
    %v3464 = vmax.f32 %v2856, 0.0
    %v3465 = vmax.f32 %v2859, 0.0
    %v3466 = vmax.f32 %v2862, 0.0
    %v3467 = vmax.f32 %v2865, 0.0
    %v3468 = vmax.f32 %v2868, 0.0
    %v3469 = vmax.f32 %v2871, 0.0
    %v3470 = vmax.f32 %v2874, 0.0
    %v3471 = vmax.f32 %v2877, 0.0
    %v3472 = vmax.f32 %v2880, 0.0
    %v3473 = vmax.f32 %v2883, 0.0
    %v3474 = vmax.f32 %v2886, 0.0
    %v3475 = vmax.f32 %v2889, 0.0
    %v3476 = vmax.f32 %v2892, 0.0
    %v3477 = vmax.f32 %v2895, 0.0
    %v3478 = vmax.f32 %v2898, 0.0
    %v3479 = vmax.f32 %v2901, 0.0
    %v3480 = vmax.f32 %v2904, 0.0
    %v3481 = vmax.f32 %v2907, 0.0
    %v3482 = vmax.f32 %v2910, 0.0
    %v3483 = vmax.f32 %v2913, 0.0
    %v3484 = vmax.f32 %v2916, 0.0
    %v3485 = vmax.f32 %v2919, 0.0
    %v3486 = vmax.f32 %v2922, 0.0
    %v3487 = vmax.f32 %v2925, 0.0
    %v3488 = vmax.f32 %v2928, 0.0
    %v3489 = vmax.f32 %v2931, 0.0
    %v3490 = vmax.f32 %v2934, 0.0
    %v3491 = vmax.f32 %v2937, 0.0
    %v3492 = vmax.f32 %v2940, 0.0
    %v3493 = vmax.f32 %v2943, 0.0
    %v3494 = vmax.f32 %v2946, 0.0
    %v3495 = vmax.f32 %v2949, 0.0
    %v3496 = vmax.f32 %v2952, 0.0
    %v3497 = vmax.f32 %v2955, 0.0
    %v3498 = vmax.f32 %v2958, 0.0
    %v3499 = vmax.f32 %v2961, 0.0
    %v3500 = vmax.f32 %v2964, 0.0
    %v3501 = vmax.f32 %v2967, 0.0
    %v3502 = vmax.f32 %v2970, 0.0
    %v3503 = vmax.f32 %v2973, 0.0
    %v3504 = vmax.f32 %v2976, 0.0
    %v3505 = vmax.f32 %v2979, 0.0
    %v3506 = vmax.f32 %v2982, 0.0
    %v3507 = vmax.f32 %v2985, 0.0
    %v3508 = vmax.f32 %v2988, 0.0
    %v3509 = vmax.f32 %v2991, 0.0
    %v3510 = vmax.f32 %v2994, 0.0
    %v3511 = vmax.f32 %v2997, 0.0
    %v3512 = vmax.f32 %v3000, 0.0
    %v3513 = vmul.f32 %v3001, -0.025
    %v3514 = vmul.f32 %v3002, -0.025
    %v3515 = vmul.f32 %v3003, -0.025
    %v3516 = vmul.f32 %v3004, -0.025
    %v3517 = vmul.f32 %v3005, -0.025
    %v3518 = vmul.f32 %v3006, -0.025
    %v3519 = vmul.f32 %v3007, -0.025
    %v3520 = vmul.f32 %v3008, -0.025
    %v3521 = vmul.f32 %v3009, -0.025
    %v3522 = vmul.f32 %v3010, -0.025
    %v3523 = vmul.f32 %v3011, -0.025
    %v3524 = vmul.f32 %v3012, -0.025
    %v3525 = vmul.f32 %v3013, -0.025
    %v3526 = vmul.f32 %v3014, -0.025
    %v3527 = vmul.f32 %v3015, -0.025
    %v3528 = vmul.f32 %v3016, -0.025
    %v3529 = vmul.f32 %v3017, -0.025
    %v3530 = vmul.f32 %v3018, -0.025
    %v3531 = vmul.f32 %v3019, -0.025
    %v3532 = vmul.f32 %v3020, -0.025
    %v3533 = vmul.f32 %v3021, -0.025
    %v3534 = vmul.f32 %v3022, -0.025
    %v3535 = vmul.f32 %v3023, -0.025
    %v3536 = vmul.f32 %v3024, -0.025
    %v3537 = vmul.f32 %v3025, -0.025
    %v3538 = vmul.f32 %v3026, -0.025
    %v3539 = vmul.f32 %v3027, -0.025
    %v3540 = vmul.f32 %v3028, -0.025
    %v3541 = vmul.f32 %v3029, -0.025
    %v3542 = vmul.f32 %v3030, -0.025
    %v3543 = vmul.f32 %v3031, -0.025
    %v3544 = vmul.f32 %v3032, -0.025
    %v3545 = vmul.f32 %v3033, -0.025
    %v3546 = vmul.f32 %v3034, -0.025
    %v3547 = vmul.f32 %v3035, -0.025
    %v3548 = vmul.f32 %v3036, -0.025
    %v3549 = vmul.f32 %v3037, -0.025
    %v3550 = vmul.f32 %v3038, -0.025
    %v3551 = vmul.f32 %v3039, -0.025
    %v3552 = vmul.f32 %v3040, -0.025
    %v3553 = vmul.f32 %v3041, -0.025
    %v3554 = vmul.f32 %v3042, -0.025
    %v3555 = vmul.f32 %v3043, -0.025
    %v3556 = vmul.f32 %v3044, -0.025
    %v3557 = vmul.f32 %v3045, -0.025
    %v3558 = vmul.f32 %v3046, -0.025
    %v3559 = vmul.f32 %v3047, -0.025
    %v3560 = vmul.f32 %v3048, -0.025
    %v3561 = vmul.f32 %v3049, -0.025
    %v3562 = vmul.f32 %v3050, -0.025
    %v3563 = vmul.f32 %v3051, -0.025
    %v3564 = vmul.f32 %v3052, -0.025
    %v3565 = vmul.f32 %v3053, -0.025
    %v3566 = vmul.f32 %v3054, -0.025
    %v3567 = vmul.f32 %v3055, -0.025
    %v3568 = vmul.f32 %v3056, -0.025
    %v3569 = vmul.f32 %v3057, -0.025
    %v3570 = vmul.f32 %v3058, -0.025
    %v3571 = vmul.f32 %v3059, -0.025
    %v3572 = vmul.f32 %v3060, -0.025
    %v3573 = vmul.f32 %v3061, -0.025
    %v3574 = vmul.f32 %v3062, -0.025
    %v3575 = vmul.f32 %v3063, -0.025
    %v3576 = vmul.f32 %v3064, -0.025
    %v3577 = vmul.f32 %v3065, -0.025
    %v3578 = vmul.f32 %v3066, -0.025
    %v3579 = vmul.f32 %v3067, -0.025
    %v3580 = vmul.f32 %v3068, -0.025
    %v3581 = vmul.f32 %v3069, -0.025
    %v3582 = vmul.f32 %v3070, -0.025
    %v3583 = vmul.f32 %v3071, -0.025
    %v3584 = vmul.f32 %v3072, -0.025
    %v3585 = vmul.f32 %v3073, -0.025
    %v3586 = vmul.f32 %v3074, -0.025
    %v3587 = vmul.f32 %v3075, -0.025
    %v3588 = vmul.f32 %v3076, -0.025
    %v3589 = vmul.f32 %v3077, -0.025
    %v3590 = vmul.f32 %v3078, -0.025
    %v3591 = vmul.f32 %v3079, -0.025
    %v3592 = vmul.f32 %v3080, -0.025
    %v3593 = vmul.f32 %v3081, -0.025
    %v3594 = vmul.f32 %v3082, -0.025
    %v3595 = vmul.f32 %v3083, -0.025
    %v3596 = vmul.f32 %v3084, -0.025
    %v3597 = vmul.f32 %v3085, -0.025
    %v3598 = vmul.f32 %v3086, -0.025
    %v3599 = vmul.f32 %v3087, -0.025
    %v3600 = vmul.f32 %v3088, -0.025
    %v3601 = vmul.f32 %v3089, -0.025
    %v3602 = vmul.f32 %v3090, -0.025
    %v3603 = vmul.f32 %v3091, -0.025
    %v3604 = vmul.f32 %v3092, -0.025
    %v3605 = vmul.f32 %v3093, -0.025
    %v3606 = vmul.f32 %v3094, -0.025
    %v3607 = vmul.f32 %v3095, -0.025
    %v3608 = vmul.f32 %v3096, -0.025
    %v3609 = vmul.f32 %v3097, -0.025
    %v3610 = vmul.f32 %v3098, -0.025
    %v3611 = vmul.f32 %v3099, -0.025
    %v3612 = vmul.f32 %v3100, -0.025
    %v3613 = vmul.f32 %v3101, -0.025
    %v3614 = vmul.f32 %v3102, -0.025
    %v3615 = vmul.f32 %v3103, -0.025
    %v3616 = vmul.f32 %v3104, -0.025
    %v3617 = vmul.f32 %v3105, -0.025
    %v3618 = vmul.f32 %v3106, -0.025
    %v3619 = vmul.f32 %v3107, -0.025
    %v3620 = vmul.f32 %v3108, -0.025
    %v3621 = vmul.f32 %v3109, -0.025
    %v3622 = vmul.f32 %v3110, -0.025
    %v3623 = vmul.f32 %v3111, -0.025
    %v3624 = vmul.f32 %v3112, -0.025
    %v3625 = vmul.f32 %v3113, -0.025
    %v3626 = vmul.f32 %v3114, -0.025
    %v3627 = vmul.f32 %v3115, -0.025
    %v3628 = vmul.f32 %v3116, -0.025
    %v3629 = vmul.f32 %v3117, -0.025
    %v3630 = vmul.f32 %v3118, -0.025
    %v3631 = vmul.f32 %v3119, -0.025
    %v3632 = vmul.f32 %v3120, -0.025
    %v3633 = vmul.f32 %v3121, -0.025
    %v3634 = vmul.f32 %v3122, -0.025
    %v3635 = vmul.f32 %v3123, -0.025
    %v3636 = vmul.f32 %v3124, -0.025
    %v3637 = vmul.f32 %v3125, -0.025
    %v3638 = vmul.f32 %v3126, -0.025
    %v3639 = vmul.f32 %v3127, -0.025
    %v3640 = vmul.f32 %v3128, -0.025
    %v3641 = vmul.f32 %v3129, -0.025
    %v3642 = vmul.f32 %v3130, -0.025
    %v3643 = vmul.f32 %v3131, -0.025
    %v3644 = vmul.f32 %v3132, -0.025
    %v3645 = vmul.f32 %v3133, -0.025
    %v3646 = vmul.f32 %v3134, -0.025
    %v3647 = vmul.f32 %v3135, -0.025
    %v3648 = vmul.f32 %v3136, -0.025
    %v3649 = vmul.f32 %v3137, -0.025
    %v3650 = vmul.f32 %v3138, -0.025
    %v3651 = vmul.f32 %v3139, -0.025
    %v3652 = vmul.f32 %v3140, -0.025
    %v3653 = vmul.f32 %v3141, -0.025
    %v3654 = vmul.f32 %v3142, -0.025
    %v3655 = vmul.f32 %v3143, -0.025
    %v3656 = vmul.f32 %v3144, -0.025
    %v3657 = vmul.f32 %v3145, -0.025
    %v3658 = vmul.f32 %v3146, -0.025
    %v3659 = vmul.f32 %v3147, -0.025
    %v3660 = vmul.f32 %v3148, -0.025
    %v3661 = vmul.f32 %v3149, -0.025
    %v3662 = vmul.f32 %v3150, -0.025
    %v3663 = vmul.f32 %v3151, -0.025
    %v3664 = vmul.f32 %v3152, -0.025
    %v3665 = vmul.f32 %v3153, -0.025
    %v3666 = vmul.f32 %v3154, -0.025
    %v3667 = vmul.f32 %v3155, -0.025
    %v3668 = vmul.f32 %v3156, -0.025
    %v3669 = vmul.f32 %v3157, -0.025
    %v3670 = vmul.f32 %v3158, -0.025
    %v3671 = vmul.f32 %v3159, -0.025
    %v3672 = vmul.f32 %v3160, -0.025
    %v3673 = vmul.f32 %v3161, -0.025
    %v3674 = vmul.f32 %v3162, -0.025
    %v3675 = vmul.f32 %v3163, -0.025
    %v3676 = vmul.f32 %v3164, -0.025
    %v3677 = vmul.f32 %v3165, -0.025
    %v3678 = vmul.f32 %v3166, -0.025
    %v3679 = vmul.f32 %v3167, -0.025
    %v3680 = vmul.f32 %v3168, -0.025
    %v3681 = vmul.f32 %v3169, -0.025
    %v3682 = vmul.f32 %v3170, -0.025
    %v3683 = vmul.f32 %v3171, -0.025
    %v3684 = vmul.f32 %v3172, -0.025
    %v3685 = vmul.f32 %v3173, -0.025
    %v3686 = vmul.f32 %v3174, -0.025
    %v3687 = vmul.f32 %v3175, -0.025
    %v3688 = vmul.f32 %v3176, -0.025
    %v3689 = vmul.f32 %v3177, -0.025
    %v3690 = vmul.f32 %v3178, -0.025
    %v3691 = vmul.f32 %v3179, -0.025
    %v3692 = vmul.f32 %v3180, -0.025
    %v3693 = vmul.f32 %v3181, -0.025
    %v3694 = vmul.f32 %v3182, -0.025
    %v3695 = vmul.f32 %v3183, -0.025
    %v3696 = vmul.f32 %v3184, -0.025
    %v3697 = vmul.f32 %v3185, -0.025
    %v3698 = vmul.f32 %v3186, -0.025
    %v3699 = vmul.f32 %v3187, -0.025
    %v3700 = vmul.f32 %v3188, -0.025
    %v3701 = vmul.f32 %v3189, -0.025
    %v3702 = vmul.f32 %v3190, -0.025
    %v3703 = vmul.f32 %v3191, -0.025
    %v3704 = vmul.f32 %v3192, -0.025
    %v3705 = vmul.f32 %v3193, -0.025
    %v3706 = vmul.f32 %v3194, -0.025
    %v3707 = vmul.f32 %v3195, -0.025
    %v3708 = vmul.f32 %v3196, -0.025
    %v3709 = vmul.f32 %v3197, -0.025
    %v3710 = vmul.f32 %v3198, -0.025
    %v3711 = vmul.f32 %v3199, -0.025
    %v3712 = vmul.f32 %v3200, -0.025
    %v3713 = vmul.f32 %v3201, -0.025
    %v3714 = vmul.f32 %v3202, -0.025
    %v3715 = vmul.f32 %v3203, -0.025
    %v3716 = vmul.f32 %v3204, -0.025
    %v3717 = vmul.f32 %v3205, -0.025
    %v3718 = vmul.f32 %v3206, -0.025
    %v3719 = vmul.f32 %v3207, -0.025
    %v3720 = vmul.f32 %v3208, -0.025
    %v3721 = vmul.f32 %v3209, -0.025
    %v3722 = vmul.f32 %v3210, -0.025
    %v3723 = vmul.f32 %v3211, -0.025
    %v3724 = vmul.f32 %v3212, -0.025
    %v3725 = vmul.f32 %v3213, -0.025
    %v3726 = vmul.f32 %v3214, -0.025
    %v3727 = vmul.f32 %v3215, -0.025
    %v3728 = vmul.f32 %v3216, -0.025
    %v3729 = vmul.f32 %v3217, -0.025
    %v3730 = vmul.f32 %v3218, -0.025
    %v3731 = vmul.f32 %v3219, -0.025
    %v3732 = vmul.f32 %v3220, -0.025
    %v3733 = vmul.f32 %v3221, -0.025
    %v3734 = vmul.f32 %v3222, -0.025
    %v3735 = vmul.f32 %v3223, -0.025
    %v3736 = vmul.f32 %v3224, -0.025
    %v3737 = vmul.f32 %v3225, -0.025
    %v3738 = vmul.f32 %v3226, -0.025
    %v3739 = vmul.f32 %v3227, -0.025
    %v3740 = vmul.f32 %v3228, -0.025
    %v3741 = vmul.f32 %v3229, -0.025
    %v3742 = vmul.f32 %v3230, -0.025
    %v3743 = vmul.f32 %v3231, -0.025
    %v3744 = vmul.f32 %v3232, -0.025
    %v3745 = vmul.f32 %v3233, -0.025
    %v3746 = vmul.f32 %v3234, -0.025
    %v3747 = vmul.f32 %v3235, -0.025
    %v3748 = vmul.f32 %v3236, -0.025
    %v3749 = vmul.f32 %v3237, -0.025
    %v3750 = vmul.f32 %v3238, -0.025
    %v3751 = vmul.f32 %v3239, -0.025
    %v3752 = vmul.f32 %v3240, -0.025
    %v3753 = vmul.f32 %v3241, -0.025
    %v3754 = vmul.f32 %v3242, -0.025
    %v3755 = vmul.f32 %v3243, -0.025
    %v3756 = vmul.f32 %v3244, -0.025
    %v3757 = vmul.f32 %v3245, -0.025
    %v3758 = vmul.f32 %v3246, -0.025
    %v3759 = vmul.f32 %v3247, -0.025
    %v3760 = vmul.f32 %v3248, -0.025
    %v3761 = vmul.f32 %v3249, -0.025
    %v3762 = vmul.f32 %v3250, -0.025
    %v3763 = vmul.f32 %v3251, -0.025
    %v3764 = vmul.f32 %v3252, -0.025
    %v3765 = vmul.f32 %v3253, -0.025
    %v3766 = vmul.f32 %v3254, -0.025
    %v3767 = vmul.f32 %v3255, -0.025
    %v3768 = vmul.f32 %v3256, -0.025
    %v3769 = vmul.f32 %v3257, -0.025
    %v3770 = vmul.f32 %v3258, -0.025
    %v3771 = vmul.f32 %v3259, -0.025
    %v3772 = vmul.f32 %v3260, -0.025
    %v3773 = vmul.f32 %v3261, -0.025
    %v3774 = vmul.f32 %v3262, -0.025
    %v3775 = vmul.f32 %v3263, -0.025
    %v3776 = vmul.f32 %v3264, -0.025
    %v3777 = vmul.f32 %v3265, -0.025
    %v3778 = vmul.f32 %v3266, -0.025
    %v3779 = vmul.f32 %v3267, -0.025
    %v3780 = vmul.f32 %v3268, -0.025
    %v3781 = vmul.f32 %v3269, -0.025
    %v3782 = vmul.f32 %v3270, -0.025
    %v3783 = vmul.f32 %v3271, -0.025
    %v3784 = vmul.f32 %v3272, -0.025
    %v3785 = vmul.f32 %v3273, -0.025
    %v3786 = vmul.f32 %v3274, -0.025
    %v3787 = vmul.f32 %v3275, -0.025
    %v3788 = vmul.f32 %v3276, -0.025
    %v3789 = vmul.f32 %v3277, -0.025
    %v3790 = vmul.f32 %v3278, -0.025
    %v3791 = vmul.f32 %v3279, -0.025
    %v3792 = vmul.f32 %v3280, -0.025
    %v3793 = vmul.f32 %v3281, -0.025
    %v3794 = vmul.f32 %v3282, -0.025
    %v3795 = vmul.f32 %v3283, -0.025
    %v3796 = vmul.f32 %v3284, -0.025
    %v3797 = vmul.f32 %v3285, -0.025
    %v3798 = vmul.f32 %v3286, -0.025
    %v3799 = vmul.f32 %v3287, -0.025
    %v3800 = vmul.f32 %v3288, -0.025
    %v3801 = vmul.f32 %v3289, -0.025
    %v3802 = vmul.f32 %v3290, -0.025
    %v3803 = vmul.f32 %v3291, -0.025
    %v3804 = vmul.f32 %v3292, -0.025
    %v3805 = vmul.f32 %v3293, -0.025
    %v3806 = vmul.f32 %v3294, -0.025
    %v3807 = vmul.f32 %v3295, -0.025
    %v3808 = vmul.f32 %v3296, -0.025
    %v3809 = vmul.f32 %v3297, -0.025
    %v3810 = vmul.f32 %v3298, -0.025
    %v3811 = vmul.f32 %v3299, -0.025
    %v3812 = vmul.f32 %v3300, -0.025
    %v3813 = vmul.f32 %v3301, -0.025
    %v3814 = vmul.f32 %v3302, -0.025
    %v3815 = vmul.f32 %v3303, -0.025
    %v3816 = vmul.f32 %v3304, -0.025
    %v3817 = vmul.f32 %v3305, -0.025
    %v3818 = vmul.f32 %v3306, -0.025
    %v3819 = vmul.f32 %v3307, -0.025
    %v3820 = vmul.f32 %v3308, -0.025
    %v3821 = vmul.f32 %v3309, -0.025
    %v3822 = vmul.f32 %v3310, -0.025
    %v3823 = vmul.f32 %v3311, -0.025
    %v3824 = vmul.f32 %v3312, -0.025
    %v3825 = vmul.f32 %v3313, -0.025
    %v3826 = vmul.f32 %v3314, -0.025
    %v3827 = vmul.f32 %v3315, -0.025
    %v3828 = vmul.f32 %v3316, -0.025
    %v3829 = vmul.f32 %v3317, -0.025
    %v3830 = vmul.f32 %v3318, -0.025
    %v3831 = vmul.f32 %v3319, -0.025
    %v3832 = vmul.f32 %v3320, -0.025
    %v3833 = vmul.f32 %v3321, -0.025
    %v3834 = vmul.f32 %v3322, -0.025
    %v3835 = vmul.f32 %v3323, -0.025
    %v3836 = vmul.f32 %v3324, -0.025
    %v3837 = vmul.f32 %v3325, -0.025
    %v3838 = vmul.f32 %v3326, -0.025
    %v3839 = vmul.f32 %v3327, -0.025
    %v3840 = vmul.f32 %v3328, -0.025
    %v3841 = vmul.f32 %v3329, -0.025
    %v3842 = vmul.f32 %v3330, -0.025
    %v3843 = vmul.f32 %v3331, -0.025
    %v3844 = vmul.f32 %v3332, -0.025
    %v3845 = vmul.f32 %v3333, -0.025
    %v3846 = vmul.f32 %v3334, -0.025
    %v3847 = vmul.f32 %v3335, -0.025
    %v3848 = vmul.f32 %v3336, -0.025
    %v3849 = vmul.f32 %v3337, -0.025
    %v3850 = vmul.f32 %v3338, -0.025
    %v3851 = vmul.f32 %v3339, -0.025
    %v3852 = vmul.f32 %v3340, -0.025
    %v3853 = vmul.f32 %v3341, -0.025
    %v3854 = vmul.f32 %v3342, -0.025
    %v3855 = vmul.f32 %v3343, -0.025
    %v3856 = vmul.f32 %v3344, -0.025
    %v3857 = vmul.f32 %v3345, -0.025
    %v3858 = vmul.f32 %v3346, -0.025
    %v3859 = vmul.f32 %v3347, -0.025
    %v3860 = vmul.f32 %v3348, -0.025
    %v3861 = vmul.f32 %v3349, -0.025
    %v3862 = vmul.f32 %v3350, -0.025
    %v3863 = vmul.f32 %v3351, -0.025
    %v3864 = vmul.f32 %v3352, -0.025
    %v3865 = vmul.f32 %v3353, -0.025
    %v3866 = vmul.f32 %v3354, -0.025
    %v3867 = vmul.f32 %v3355, -0.025
    %v3868 = vmul.f32 %v3356, -0.025
    %v3869 = vmul.f32 %v3357, -0.025
    %v3870 = vmul.f32 %v3358, -0.025
    %v3871 = vmul.f32 %v3359, -0.025
    %v3872 = vmul.f32 %v3360, -0.025
    %v3873 = vmul.f32 %v3361, -0.025
    %v3874 = vmul.f32 %v3362, -0.025
    %v3875 = vmul.f32 %v3363, -0.025
    %v3876 = vmul.f32 %v3364, -0.025
    %v3877 = vmul.f32 %v3365, -0.025
    %v3878 = vmul.f32 %v3366, -0.025
    %v3879 = vmul.f32 %v3367, -0.025
    %v3880 = vmul.f32 %v3368, -0.025
    %v3881 = vmul.f32 %v3369, -0.025
    %v3882 = vmul.f32 %v3370, -0.025
    %v3883 = vmul.f32 %v3371, -0.025
    %v3884 = vmul.f32 %v3372, -0.025
    %v3885 = vmul.f32 %v3373, -0.025
    %v3886 = vmul.f32 %v3374, -0.025
    %v3887 = vmul.f32 %v3375, -0.025
    %v3888 = vmul.f32 %v3376, -0.025
    %v3889 = vmul.f32 %v3377, -0.025
    %v3890 = vmul.f32 %v3378, -0.025
    %v3891 = vmul.f32 %v3379, -0.025
    %v3892 = vmul.f32 %v3380, -0.025
    %v3893 = vmul.f32 %v3381, -0.025
    %v3894 = vmul.f32 %v3382, -0.025
    %v3895 = vmul.f32 %v3383, -0.025
    %v3896 = vmul.f32 %v3384, -0.025
    %v3897 = vmul.f32 %v3385, -0.025
    %v3898 = vmul.f32 %v3386, -0.025
    %v3899 = vmul.f32 %v3387, -0.025
    %v3900 = vmul.f32 %v3388, -0.025
    %v3901 = vmul.f32 %v3389, -0.025
    %v3902 = vmul.f32 %v3390, -0.025
    %v3903 = vmul.f32 %v3391, -0.025
    %v3904 = vmul.f32 %v3392, -0.025
    %v3905 = vmul.f32 %v3393, -0.025
    %v3906 = vmul.f32 %v3394, -0.025
    %v3907 = vmul.f32 %v3395, -0.025
    %v3908 = vmul.f32 %v3396, -0.025
    %v3909 = vmul.f32 %v3397, -0.025
    %v3910 = vmul.f32 %v3398, -0.025
    %v3911 = vmul.f32 %v3399, -0.025
    %v3912 = vmul.f32 %v3400, -0.025
    %v3913 = vmul.f32 %v3401, -0.025
    %v3914 = vmul.f32 %v3402, -0.025
    %v3915 = vmul.f32 %v3403, -0.025
    %v3916 = vmul.f32 %v3404, -0.025
    %v3917 = vmul.f32 %v3405, -0.025
    %v3918 = vmul.f32 %v3406, -0.025
    %v3919 = vmul.f32 %v3407, -0.025
    %v3920 = vmul.f32 %v3408, -0.025
    %v3921 = vmul.f32 %v3409, -0.025
    %v3922 = vmul.f32 %v3410, -0.025
    %v3923 = vmul.f32 %v3411, -0.025
    %v3924 = vmul.f32 %v3412, -0.025
    %v3925 = vmul.f32 %v3413, -0.025
    %v3926 = vmul.f32 %v3414, -0.025
    %v3927 = vmul.f32 %v3415, -0.025
    %v3928 = vmul.f32 %v3416, -0.025
    %v3929 = vmul.f32 %v3417, -0.025
    %v3930 = vmul.f32 %v3418, -0.025
    %v3931 = vmul.f32 %v3419, -0.025
    %v3932 = vmul.f32 %v3420, -0.025
    %v3933 = vmul.f32 %v3421, -0.025
    %v3934 = vmul.f32 %v3422, -0.025
    %v3935 = vmul.f32 %v3423, -0.025
    %v3936 = vmul.f32 %v3424, -0.025
    %v3937 = vmul.f32 %v3425, -0.025
    %v3938 = vmul.f32 %v3426, -0.025
    %v3939 = vmul.f32 %v3427, -0.025
    %v3940 = vmul.f32 %v3428, -0.025
    %v3941 = vmul.f32 %v3429, -0.025
    %v3942 = vmul.f32 %v3430, -0.025
    %v3943 = vmul.f32 %v3431, -0.025
    %v3944 = vmul.f32 %v3432, -0.025
    %v3945 = vmul.f32 %v3433, -0.025
    %v3946 = vmul.f32 %v3434, -0.025
    %v3947 = vmul.f32 %v3435, -0.025
    %v3948 = vmul.f32 %v3436, -0.025
    %v3949 = vmul.f32 %v3437, -0.025
    %v3950 = vmul.f32 %v3438, -0.025
    %v3951 = vmul.f32 %v3439, -0.025
    %v3952 = vmul.f32 %v3440, -0.025
    %v3953 = vmul.f32 %v3441, -0.025
    %v3954 = vmul.f32 %v3442, -0.025
    %v3955 = vmul.f32 %v3443, -0.025
    %v3956 = vmul.f32 %v3444, -0.025
    %v3957 = vmul.f32 %v3445, -0.025
    %v3958 = vmul.f32 %v3446, -0.025
    %v3959 = vmul.f32 %v3447, -0.025
    %v3960 = vmul.f32 %v3448, -0.025
    %v3961 = vmul.f32 %v3449, -0.025
    %v3962 = vmul.f32 %v3450, -0.025
    %v3963 = vmul.f32 %v3451, -0.025
    %v3964 = vmul.f32 %v3452, -0.025
    %v3965 = vmul.f32 %v3453, -0.025
    %v3966 = vmul.f32 %v3454, -0.025
    %v3967 = vmul.f32 %v3455, -0.025
    %v3968 = vmul.f32 %v3456, -0.025
    %v3969 = vmul.f32 %v3457, -0.025
    %v3970 = vmul.f32 %v3458, -0.025
    %v3971 = vmul.f32 %v3459, -0.025
    %v3972 = vmul.f32 %v3460, -0.025
    %v3973 = vmul.f32 %v3461, -0.025
    %v3974 = vmul.f32 %v3462, -0.025
    %v3975 = vmul.f32 %v3463, -0.025
    %v3976 = vmul.f32 %v3464, -0.025
    %v3977 = vmul.f32 %v3465, -0.025
    %v3978 = vmul.f32 %v3466, -0.025
    %v3979 = vmul.f32 %v3467, -0.025
    %v3980 = vmul.f32 %v3468, -0.025
    %v3981 = vmul.f32 %v3469, -0.025
    %v3982 = vmul.f32 %v3470, -0.025
    %v3983 = vmul.f32 %v3471, -0.025
    %v3984 = vmul.f32 %v3472, -0.025
    %v3985 = vmul.f32 %v3473, -0.025
    %v3986 = vmul.f32 %v3474, -0.025
    %v3987 = vmul.f32 %v3475, -0.025
    %v3988 = vmul.f32 %v3476, -0.025
    %v3989 = vmul.f32 %v3477, -0.025
    %v3990 = vmul.f32 %v3478, -0.025
    %v3991 = vmul.f32 %v3479, -0.025
    %v3992 = vmul.f32 %v3480, -0.025
    %v3993 = vmul.f32 %v3481, -0.025
    %v3994 = vmul.f32 %v3482, -0.025
    %v3995 = vmul.f32 %v3483, -0.025
    %v3996 = vmul.f32 %v3484, -0.025
    %v3997 = vmul.f32 %v3485, -0.025
    %v3998 = vmul.f32 %v3486, -0.025
    %v3999 = vmul.f32 %v3487, -0.025
    %v4000 = vmul.f32 %v3488, -0.025
    %v4001 = vmul.f32 %v3489, -0.025
    %v4002 = vmul.f32 %v3490, -0.025
    %v4003 = vmul.f32 %v3491, -0.025
    %v4004 = vmul.f32 %v3492, -0.025
    %v4005 = vmul.f32 %v3493, -0.025
    %v4006 = vmul.f32 %v3494, -0.025
    %v4007 = vmul.f32 %v3495, -0.025
    %v4008 = vmul.f32 %v3496, -0.025
    %v4009 = vmul.f32 %v3497, -0.025
    %v4010 = vmul.f32 %v3498, -0.025
    %v4011 = vmul.f32 %v3499, -0.025
    %v4012 = vmul.f32 %v3500, -0.025
    %v4013 = vmul.f32 %v3501, -0.025
    %v4014 = vmul.f32 %v3502, -0.025
    %v4015 = vmul.f32 %v3503, -0.025
    %v4016 = vmul.f32 %v3504, -0.025
    %v4017 = vmul.f32 %v3505, -0.025
    %v4018 = vmul.f32 %v3506, -0.025
    %v4019 = vmul.f32 %v3507, -0.025
    %v4020 = vmul.f32 %v3508, -0.025
    %v4021 = vmul.f32 %v3509, -0.025
    %v4022 = vmul.f32 %v3510, -0.025
    %v4023 = vmul.f32 %v3511, -0.025
    %v4024 = vmul.f32 %v3512, -0.025
    %v4025 = vmul.f32 %v3513, 1.442695
    %v4026 = vpow.pop %v4025
    %v4027 = vmul.f32 %v3514, 1.442695
    %v4028 = vpow.pop %v4027
    %v4029 = vmul.f32 %v3515, 1.442695
    %v4030 = vpow.pop %v4029
    %v4031 = vmul.f32 %v3516, 1.442695
    %v4032 = vpow.pop %v4031
    %v4033 = vmul.f32 %v3517, 1.442695
    %v4034 = vpow.pop %v4033
    %v4035 = vmul.f32 %v3518, 1.442695
    %v4036 = vpow.pop %v4035
    %v4037 = vmul.f32 %v3519, 1.442695
    %v4038 = vpow.pop %v4037
    %v4039 = vmul.f32 %v3520, 1.442695
    %v4040 = vpow.pop %v4039
    %v4041 = vmul.f32 %v3521, 1.442695
    %v4042 = vpow.pop %v4041
    %v4043 = vmul.f32 %v3522, 1.442695
    %v4044 = vpow.pop %v4043
    %v4045 = vmul.f32 %v3523, 1.442695
    %v4046 = vpow.pop %v4045
    %v4047 = vmul.f32 %v3524, 1.442695
    %v4048 = vpow.pop %v4047
    %v4049 = vmul.f32 %v3525, 1.442695
    %v4050 = vpow.pop %v4049
    %v4051 = vmul.f32 %v3526, 1.442695
    %v4052 = vpow.pop %v4051
    %v4053 = vmul.f32 %v3527, 1.442695
    %v4054 = vpow.pop %v4053
    %v4055 = vmul.f32 %v3528, 1.442695
    %v4056 = vpow.pop %v4055
    %v4057 = vmul.f32 %v3529, 1.442695
    %v4058 = vpow.pop %v4057
    %v4059 = vmul.f32 %v3530, 1.442695
    %v4060 = vpow.pop %v4059
    %v4061 = vmul.f32 %v3531, 1.442695
    %v4062 = vpow.pop %v4061
    %v4063 = vmul.f32 %v3532, 1.442695
    %v4064 = vpow.pop %v4063
    %v4065 = vmul.f32 %v3533, 1.442695
    %v4066 = vpow.pop %v4065
    %v4067 = vmul.f32 %v3534, 1.442695
    %v4068 = vpow.pop %v4067
    %v4069 = vmul.f32 %v3535, 1.442695
    %v4070 = vpow.pop %v4069
    %v4071 = vmul.f32 %v3536, 1.442695
    %v4072 = vpow.pop %v4071
    %v4073 = vmul.f32 %v3537, 1.442695
    %v4074 = vpow.pop %v4073
    %v4075 = vmul.f32 %v3538, 1.442695
    %v4076 = vpow.pop %v4075
    %v4077 = vmul.f32 %v3539, 1.442695
    %v4078 = vpow.pop %v4077
    %v4079 = vmul.f32 %v3540, 1.442695
    %v4080 = vpow.pop %v4079
    %v4081 = vmul.f32 %v3541, 1.442695
    %v4082 = vpow.pop %v4081
    %v4083 = vmul.f32 %v3542, 1.442695
    %v4084 = vpow.pop %v4083
    %v4085 = vmul.f32 %v3543, 1.442695
    %v4086 = vpow.pop %v4085
    %v4087 = vmul.f32 %v3544, 1.442695
    %v4088 = vpow.pop %v4087
    %v4089 = vmul.f32 %v3545, 1.442695
    %v4090 = vpow.pop %v4089
    %v4091 = vmul.f32 %v3546, 1.442695
    %v4092 = vpow.pop %v4091
    %v4093 = vmul.f32 %v3547, 1.442695
    %v4094 = vpow.pop %v4093
    %v4095 = vmul.f32 %v3548, 1.442695
    %v4096 = vpow.pop %v4095
    %v4097 = vmul.f32 %v3549, 1.442695
    %v4098 = vpow.pop %v4097
    %v4099 = vmul.f32 %v3550, 1.442695
    %v4100 = vpow.pop %v4099
    %v4101 = vmul.f32 %v3551, 1.442695
    %v4102 = vpow.pop %v4101
    %v4103 = vmul.f32 %v3552, 1.442695
    %v4104 = vpow.pop %v4103
    %v4105 = vmul.f32 %v3553, 1.442695
    %v4106 = vpow.pop %v4105
    %v4107 = vmul.f32 %v3554, 1.442695
    %v4108 = vpow.pop %v4107
    %v4109 = vmul.f32 %v3555, 1.442695
    %v4110 = vpow.pop %v4109
    %v4111 = vmul.f32 %v3556, 1.442695
    %v4112 = vpow.pop %v4111
    %v4113 = vmul.f32 %v3557, 1.442695
    %v4114 = vpow.pop %v4113
    %v4115 = vmul.f32 %v3558, 1.442695
    %v4116 = vpow.pop %v4115
    %v4117 = vmul.f32 %v3559, 1.442695
    %v4118 = vpow.pop %v4117
    %v4119 = vmul.f32 %v3560, 1.442695
    %v4120 = vpow.pop %v4119
    %v4121 = vmul.f32 %v3561, 1.442695
    %v4122 = vpow.pop %v4121
    %v4123 = vmul.f32 %v3562, 1.442695
    %v4124 = vpow.pop %v4123
    %v4125 = vmul.f32 %v3563, 1.442695
    %v4126 = vpow.pop %v4125
    %v4127 = vmul.f32 %v3564, 1.442695
    %v4128 = vpow.pop %v4127
    %v4129 = vmul.f32 %v3565, 1.442695
    %v4130 = vpow.pop %v4129
    %v4131 = vmul.f32 %v3566, 1.442695
    %v4132 = vpow.pop %v4131
    %v4133 = vmul.f32 %v3567, 1.442695
    %v4134 = vpow.pop %v4133
    %v4135 = vmul.f32 %v3568, 1.442695
    %v4136 = vpow.pop %v4135
    %v4137 = vmul.f32 %v3569, 1.442695
    %v4138 = vpow.pop %v4137
    %v4139 = vmul.f32 %v3570, 1.442695
    %v4140 = vpow.pop %v4139
    %v4141 = vmul.f32 %v3571, 1.442695
    %v4142 = vpow.pop %v4141
    %v4143 = vmul.f32 %v3572, 1.442695
    %v4144 = vpow.pop %v4143
    %v4145 = vmul.f32 %v3573, 1.442695
    %v4146 = vpow.pop %v4145
    %v4147 = vmul.f32 %v3574, 1.442695
    %v4148 = vpow.pop %v4147
    %v4149 = vmul.f32 %v3575, 1.442695
    %v4150 = vpow.pop %v4149
    %v4151 = vmul.f32 %v3576, 1.442695
    %v4152 = vpow.pop %v4151
    %v4153 = vmul.f32 %v3577, 1.442695
    %v4154 = vpow.pop %v4153
    %v4155 = vmul.f32 %v3578, 1.442695
    %v4156 = vpow.pop %v4155
    %v4157 = vmul.f32 %v3579, 1.442695
    %v4158 = vpow.pop %v4157
    %v4159 = vmul.f32 %v3580, 1.442695
    %v4160 = vpow.pop %v4159
    %v4161 = vmul.f32 %v3581, 1.442695
    %v4162 = vpow.pop %v4161
    %v4163 = vmul.f32 %v3582, 1.442695
    %v4164 = vpow.pop %v4163
    %v4165 = vmul.f32 %v3583, 1.442695
    %v4166 = vpow.pop %v4165
    %v4167 = vmul.f32 %v3584, 1.442695
    %v4168 = vpow.pop %v4167
    %v4169 = vmul.f32 %v3585, 1.442695
    %v4170 = vpow.pop %v4169
    %v4171 = vmul.f32 %v3586, 1.442695
    %v4172 = vpow.pop %v4171
    %v4173 = vmul.f32 %v3587, 1.442695
    %v4174 = vpow.pop %v4173
    %v4175 = vmul.f32 %v3588, 1.442695
    %v4176 = vpow.pop %v4175
    %v4177 = vmul.f32 %v3589, 1.442695
    %v4178 = vpow.pop %v4177
    %v4179 = vmul.f32 %v3590, 1.442695
    %v4180 = vpow.pop %v4179
    %v4181 = vmul.f32 %v3591, 1.442695
    %v4182 = vpow.pop %v4181
    %v4183 = vmul.f32 %v3592, 1.442695
    %v4184 = vpow.pop %v4183
    %v4185 = vmul.f32 %v3593, 1.442695
    %v4186 = vpow.pop %v4185
    %v4187 = vmul.f32 %v3594, 1.442695
    %v4188 = vpow.pop %v4187
    %v4189 = vmul.f32 %v3595, 1.442695
    %v4190 = vpow.pop %v4189
    %v4191 = vmul.f32 %v3596, 1.442695
    %v4192 = vpow.pop %v4191
    %v4193 = vmul.f32 %v3597, 1.442695
    %v4194 = vpow.pop %v4193
    %v4195 = vmul.f32 %v3598, 1.442695
    %v4196 = vpow.pop %v4195
    %v4197 = vmul.f32 %v3599, 1.442695
    %v4198 = vpow.pop %v4197
    %v4199 = vmul.f32 %v3600, 1.442695
    %v4200 = vpow.pop %v4199
    %v4201 = vmul.f32 %v3601, 1.442695
    %v4202 = vpow.pop %v4201
    %v4203 = vmul.f32 %v3602, 1.442695
    %v4204 = vpow.pop %v4203
    %v4205 = vmul.f32 %v3603, 1.442695
    %v4206 = vpow.pop %v4205
    %v4207 = vmul.f32 %v3604, 1.442695
    %v4208 = vpow.pop %v4207
    %v4209 = vmul.f32 %v3605, 1.442695
    %v4210 = vpow.pop %v4209
    %v4211 = vmul.f32 %v3606, 1.442695
    %v4212 = vpow.pop %v4211
    %v4213 = vmul.f32 %v3607, 1.442695
    %v4214 = vpow.pop %v4213
    %v4215 = vmul.f32 %v3608, 1.442695
    %v4216 = vpow.pop %v4215
    %v4217 = vmul.f32 %v3609, 1.442695
    %v4218 = vpow.pop %v4217
    %v4219 = vmul.f32 %v3610, 1.442695
    %v4220 = vpow.pop %v4219
    %v4221 = vmul.f32 %v3611, 1.442695
    %v4222 = vpow.pop %v4221
    %v4223 = vmul.f32 %v3612, 1.442695
    %v4224 = vpow.pop %v4223
    %v4225 = vmul.f32 %v3613, 1.442695
    %v4226 = vpow.pop %v4225
    %v4227 = vmul.f32 %v3614, 1.442695
    %v4228 = vpow.pop %v4227
    %v4229 = vmul.f32 %v3615, 1.442695
    %v4230 = vpow.pop %v4229
    %v4231 = vmul.f32 %v3616, 1.442695
    %v4232 = vpow.pop %v4231
    %v4233 = vmul.f32 %v3617, 1.442695
    %v4234 = vpow.pop %v4233
    %v4235 = vmul.f32 %v3618, 1.442695
    %v4236 = vpow.pop %v4235
    %v4237 = vmul.f32 %v3619, 1.442695
    %v4238 = vpow.pop %v4237
    %v4239 = vmul.f32 %v3620, 1.442695
    %v4240 = vpow.pop %v4239
    %v4241 = vmul.f32 %v3621, 1.442695
    %v4242 = vpow.pop %v4241
    %v4243 = vmul.f32 %v3622, 1.442695
    %v4244 = vpow.pop %v4243
    %v4245 = vmul.f32 %v3623, 1.442695
    %v4246 = vpow.pop %v4245
    %v4247 = vmul.f32 %v3624, 1.442695
    %v4248 = vpow.pop %v4247
    %v4249 = vmul.f32 %v3625, 1.442695
    %v4250 = vpow.pop %v4249
    %v4251 = vmul.f32 %v3626, 1.442695
    %v4252 = vpow.pop %v4251
    %v4253 = vmul.f32 %v3627, 1.442695
    %v4254 = vpow.pop %v4253
    %v4255 = vmul.f32 %v3628, 1.442695
    %v4256 = vpow.pop %v4255
    %v4257 = vmul.f32 %v3629, 1.442695
    %v4258 = vpow.pop %v4257
    %v4259 = vmul.f32 %v3630, 1.442695
    %v4260 = vpow.pop %v4259
    %v4261 = vmul.f32 %v3631, 1.442695
    %v4262 = vpow.pop %v4261
    %v4263 = vmul.f32 %v3632, 1.442695
    %v4264 = vpow.pop %v4263
    %v4265 = vmul.f32 %v3633, 1.442695
    %v4266 = vpow.pop %v4265
    %v4267 = vmul.f32 %v3634, 1.442695
    %v4268 = vpow.pop %v4267
    %v4269 = vmul.f32 %v3635, 1.442695
    %v4270 = vpow.pop %v4269
    %v4271 = vmul.f32 %v3636, 1.442695
    %v4272 = vpow.pop %v4271
    %v4273 = vmul.f32 %v3637, 1.442695
    %v4274 = vpow.pop %v4273
    %v4275 = vmul.f32 %v3638, 1.442695
    %v4276 = vpow.pop %v4275
    %v4277 = vmul.f32 %v3639, 1.442695
    %v4278 = vpow.pop %v4277
    %v4279 = vmul.f32 %v3640, 1.442695
    %v4280 = vpow.pop %v4279
    %v4281 = vmul.f32 %v3641, 1.442695
    %v4282 = vpow.pop %v4281
    %v4283 = vmul.f32 %v3642, 1.442695
    %v4284 = vpow.pop %v4283
    %v4285 = vmul.f32 %v3643, 1.442695
    %v4286 = vpow.pop %v4285
    %v4287 = vmul.f32 %v3644, 1.442695
    %v4288 = vpow.pop %v4287
    %v4289 = vmul.f32 %v3645, 1.442695
    %v4290 = vpow.pop %v4289
    %v4291 = vmul.f32 %v3646, 1.442695
    %v4292 = vpow.pop %v4291
    %v4293 = vmul.f32 %v3647, 1.442695
    %v4294 = vpow.pop %v4293
    %v4295 = vmul.f32 %v3648, 1.442695
    %v4296 = vpow.pop %v4295
    %v4297 = vmul.f32 %v3649, 1.442695
    %v4298 = vpow.pop %v4297
    %v4299 = vmul.f32 %v3650, 1.442695
    %v4300 = vpow.pop %v4299
    %v4301 = vmul.f32 %v3651, 1.442695
    %v4302 = vpow.pop %v4301
    %v4303 = vmul.f32 %v3652, 1.442695
    %v4304 = vpow.pop %v4303
    %v4305 = vmul.f32 %v3653, 1.442695
    %v4306 = vpow.pop %v4305
    %v4307 = vmul.f32 %v3654, 1.442695
    %v4308 = vpow.pop %v4307
    %v4309 = vmul.f32 %v3655, 1.442695
    %v4310 = vpow.pop %v4309
    %v4311 = vmul.f32 %v3656, 1.442695
    %v4312 = vpow.pop %v4311
    %v4313 = vmul.f32 %v3657, 1.442695
    %v4314 = vpow.pop %v4313
    %v4315 = vmul.f32 %v3658, 1.442695
    %v4316 = vpow.pop %v4315
    %v4317 = vmul.f32 %v3659, 1.442695
    %v4318 = vpow.pop %v4317
    %v4319 = vmul.f32 %v3660, 1.442695
    %v4320 = vpow.pop %v4319
    %v4321 = vmul.f32 %v3661, 1.442695
    %v4322 = vpow.pop %v4321
    %v4323 = vmul.f32 %v3662, 1.442695
    %v4324 = vpow.pop %v4323
    %v4325 = vmul.f32 %v3663, 1.442695
    %v4326 = vpow.pop %v4325
    %v4327 = vmul.f32 %v3664, 1.442695
    %v4328 = vpow.pop %v4327
    %v4329 = vmul.f32 %v3665, 1.442695
    %v4330 = vpow.pop %v4329
    %v4331 = vmul.f32 %v3666, 1.442695
    %v4332 = vpow.pop %v4331
    %v4333 = vmul.f32 %v3667, 1.442695
    %v4334 = vpow.pop %v4333
    %v4335 = vmul.f32 %v3668, 1.442695
    %v4336 = vpow.pop %v4335
    %v4337 = vmul.f32 %v3669, 1.442695
    %v4338 = vpow.pop %v4337
    %v4339 = vmul.f32 %v3670, 1.442695
    %v4340 = vpow.pop %v4339
    %v4341 = vmul.f32 %v3671, 1.442695
    %v4342 = vpow.pop %v4341
    %v4343 = vmul.f32 %v3672, 1.442695
    %v4344 = vpow.pop %v4343
    %v4345 = vmul.f32 %v3673, 1.442695
    %v4346 = vpow.pop %v4345
    %v4347 = vmul.f32 %v3674, 1.442695
    %v4348 = vpow.pop %v4347
    %v4349 = vmul.f32 %v3675, 1.442695
    %v4350 = vpow.pop %v4349
    %v4351 = vmul.f32 %v3676, 1.442695
    %v4352 = vpow.pop %v4351
    %v4353 = vmul.f32 %v3677, 1.442695
    %v4354 = vpow.pop %v4353
    %v4355 = vmul.f32 %v3678, 1.442695
    %v4356 = vpow.pop %v4355
    %v4357 = vmul.f32 %v3679, 1.442695
    %v4358 = vpow.pop %v4357
    %v4359 = vmul.f32 %v3680, 1.442695
    %v4360 = vpow.pop %v4359
    %v4361 = vmul.f32 %v3681, 1.442695
    %v4362 = vpow.pop %v4361
    %v4363 = vmul.f32 %v3682, 1.442695
    %v4364 = vpow.pop %v4363
    %v4365 = vmul.f32 %v3683, 1.442695
    %v4366 = vpow.pop %v4365
    %v4367 = vmul.f32 %v3684, 1.442695
    %v4368 = vpow.pop %v4367
    %v4369 = vmul.f32 %v3685, 1.442695
    %v4370 = vpow.pop %v4369
    %v4371 = vmul.f32 %v3686, 1.442695
    %v4372 = vpow.pop %v4371
    %v4373 = vmul.f32 %v3687, 1.442695
    %v4374 = vpow.pop %v4373
    %v4375 = vmul.f32 %v3688, 1.442695
    %v4376 = vpow.pop %v4375
    %v4377 = vmul.f32 %v3689, 1.442695
    %v4378 = vpow.pop %v4377
    %v4379 = vmul.f32 %v3690, 1.442695
    %v4380 = vpow.pop %v4379
    %v4381 = vmul.f32 %v3691, 1.442695
    %v4382 = vpow.pop %v4381
    %v4383 = vmul.f32 %v3692, 1.442695
    %v4384 = vpow.pop %v4383
    %v4385 = vmul.f32 %v3693, 1.442695
    %v4386 = vpow.pop %v4385
    %v4387 = vmul.f32 %v3694, 1.442695
    %v4388 = vpow.pop %v4387
    %v4389 = vmul.f32 %v3695, 1.442695
    %v4390 = vpow.pop %v4389
    %v4391 = vmul.f32 %v3696, 1.442695
    %v4392 = vpow.pop %v4391
    %v4393 = vmul.f32 %v3697, 1.442695
    %v4394 = vpow.pop %v4393
    %v4395 = vmul.f32 %v3698, 1.442695
    %v4396 = vpow.pop %v4395
    %v4397 = vmul.f32 %v3699, 1.442695
    %v4398 = vpow.pop %v4397
    %v4399 = vmul.f32 %v3700, 1.442695
    %v4400 = vpow.pop %v4399
    %v4401 = vmul.f32 %v3701, 1.442695
    %v4402 = vpow.pop %v4401
    %v4403 = vmul.f32 %v3702, 1.442695
    %v4404 = vpow.pop %v4403
    %v4405 = vmul.f32 %v3703, 1.442695
    %v4406 = vpow.pop %v4405
    %v4407 = vmul.f32 %v3704, 1.442695
    %v4408 = vpow.pop %v4407
    %v4409 = vmul.f32 %v3705, 1.442695
    %v4410 = vpow.pop %v4409
    %v4411 = vmul.f32 %v3706, 1.442695
    %v4412 = vpow.pop %v4411
    %v4413 = vmul.f32 %v3707, 1.442695
    %v4414 = vpow.pop %v4413
    %v4415 = vmul.f32 %v3708, 1.442695
    %v4416 = vpow.pop %v4415
    %v4417 = vmul.f32 %v3709, 1.442695
    %v4418 = vpow.pop %v4417
    %v4419 = vmul.f32 %v3710, 1.442695
    %v4420 = vpow.pop %v4419
    %v4421 = vmul.f32 %v3711, 1.442695
    %v4422 = vpow.pop %v4421
    %v4423 = vmul.f32 %v3712, 1.442695
    %v4424 = vpow.pop %v4423
    %v4425 = vmul.f32 %v3713, 1.442695
    %v4426 = vpow.pop %v4425
    %v4427 = vmul.f32 %v3714, 1.442695
    %v4428 = vpow.pop %v4427
    %v4429 = vmul.f32 %v3715, 1.442695
    %v4430 = vpow.pop %v4429
    %v4431 = vmul.f32 %v3716, 1.442695
    %v4432 = vpow.pop %v4431
    %v4433 = vmul.f32 %v3717, 1.442695
    %v4434 = vpow.pop %v4433
    %v4435 = vmul.f32 %v3718, 1.442695
    %v4436 = vpow.pop %v4435
    %v4437 = vmul.f32 %v3719, 1.442695
    %v4438 = vpow.pop %v4437
    %v4439 = vmul.f32 %v3720, 1.442695
    %v4440 = vpow.pop %v4439
    %v4441 = vmul.f32 %v3721, 1.442695
    %v4442 = vpow.pop %v4441
    %v4443 = vmul.f32 %v3722, 1.442695
    %v4444 = vpow.pop %v4443
    %v4445 = vmul.f32 %v3723, 1.442695
    %v4446 = vpow.pop %v4445
    %v4447 = vmul.f32 %v3724, 1.442695
    %v4448 = vpow.pop %v4447
    %v4449 = vmul.f32 %v3725, 1.442695
    %v4450 = vpow.pop %v4449
    %v4451 = vmul.f32 %v3726, 1.442695
    %v4452 = vpow.pop %v4451
    %v4453 = vmul.f32 %v3727, 1.442695
    %v4454 = vpow.pop %v4453
    %v4455 = vmul.f32 %v3728, 1.442695
    %v4456 = vpow.pop %v4455
    %v4457 = vmul.f32 %v3729, 1.442695
    %v4458 = vpow.pop %v4457
    %v4459 = vmul.f32 %v3730, 1.442695
    %v4460 = vpow.pop %v4459
    %v4461 = vmul.f32 %v3731, 1.442695
    %v4462 = vpow.pop %v4461
    %v4463 = vmul.f32 %v3732, 1.442695
    %v4464 = vpow.pop %v4463
    %v4465 = vmul.f32 %v3733, 1.442695
    %v4466 = vpow.pop %v4465
    %v4467 = vmul.f32 %v3734, 1.442695
    %v4468 = vpow.pop %v4467
    %v4469 = vmul.f32 %v3735, 1.442695
    %v4470 = vpow.pop %v4469
    %v4471 = vmul.f32 %v3736, 1.442695
    %v4472 = vpow.pop %v4471
    %v4473 = vmul.f32 %v3737, 1.442695
    %v4474 = vpow.pop %v4473
    %v4475 = vmul.f32 %v3738, 1.442695
    %v4476 = vpow.pop %v4475
    %v4477 = vmul.f32 %v3739, 1.442695
    %v4478 = vpow.pop %v4477
    %v4479 = vmul.f32 %v3740, 1.442695
    %v4480 = vpow.pop %v4479
    %v4481 = vmul.f32 %v3741, 1.442695
    %v4482 = vpow.pop %v4481
    %v4483 = vmul.f32 %v3742, 1.442695
    %v4484 = vpow.pop %v4483
    %v4485 = vmul.f32 %v3743, 1.442695
    %v4486 = vpow.pop %v4485
    %v4487 = vmul.f32 %v3744, 1.442695
    %v4488 = vpow.pop %v4487
    %v4489 = vmul.f32 %v3745, 1.442695
    %v4490 = vpow.pop %v4489
    %v4491 = vmul.f32 %v3746, 1.442695
    %v4492 = vpow.pop %v4491
    %v4493 = vmul.f32 %v3747, 1.442695
    %v4494 = vpow.pop %v4493
    %v4495 = vmul.f32 %v3748, 1.442695
    %v4496 = vpow.pop %v4495
    %v4497 = vmul.f32 %v3749, 1.442695
    %v4498 = vpow.pop %v4497
    %v4499 = vmul.f32 %v3750, 1.442695
    %v4500 = vpow.pop %v4499
    %v4501 = vmul.f32 %v3751, 1.442695
    %v4502 = vpow.pop %v4501
    %v4503 = vmul.f32 %v3752, 1.442695
    %v4504 = vpow.pop %v4503
    %v4505 = vmul.f32 %v3753, 1.442695
    %v4506 = vpow.pop %v4505
    %v4507 = vmul.f32 %v3754, 1.442695
    %v4508 = vpow.pop %v4507
    %v4509 = vmul.f32 %v3755, 1.442695
    %v4510 = vpow.pop %v4509
    %v4511 = vmul.f32 %v3756, 1.442695
    %v4512 = vpow.pop %v4511
    %v4513 = vmul.f32 %v3757, 1.442695
    %v4514 = vpow.pop %v4513
    %v4515 = vmul.f32 %v3758, 1.442695
    %v4516 = vpow.pop %v4515
    %v4517 = vmul.f32 %v3759, 1.442695
    %v4518 = vpow.pop %v4517
    %v4519 = vmul.f32 %v3760, 1.442695
    %v4520 = vpow.pop %v4519
    %v4521 = vmul.f32 %v3761, 1.442695
    %v4522 = vpow.pop %v4521
    %v4523 = vmul.f32 %v3762, 1.442695
    %v4524 = vpow.pop %v4523
    %v4525 = vmul.f32 %v3763, 1.442695
    %v4526 = vpow.pop %v4525
    %v4527 = vmul.f32 %v3764, 1.442695
    %v4528 = vpow.pop %v4527
    %v4529 = vmul.f32 %v3765, 1.442695
    %v4530 = vpow.pop %v4529
    %v4531 = vmul.f32 %v3766, 1.442695
    %v4532 = vpow.pop %v4531
    %v4533 = vmul.f32 %v3767, 1.442695
    %v4534 = vpow.pop %v4533
    %v4535 = vmul.f32 %v3768, 1.442695
    %v4536 = vpow.pop %v4535
    %v4537 = vmul.f32 %v3769, 1.442695
    %v4538 = vpow.pop %v4537
    %v4539 = vmul.f32 %v3770, 1.442695
    %v4540 = vpow.pop %v4539
    %v4541 = vmul.f32 %v3771, 1.442695
    %v4542 = vpow.pop %v4541
    %v4543 = vmul.f32 %v3772, 1.442695
    %v4544 = vpow.pop %v4543
    %v4545 = vmul.f32 %v3773, 1.442695
    %v4546 = vpow.pop %v4545
    %v4547 = vmul.f32 %v3774, 1.442695
    %v4548 = vpow.pop %v4547
    %v4549 = vmul.f32 %v3775, 1.442695
    %v4550 = vpow.pop %v4549
    %v4551 = vmul.f32 %v3776, 1.442695
    %v4552 = vpow.pop %v4551
    %v4553 = vmul.f32 %v3777, 1.442695
    %v4554 = vpow.pop %v4553
    %v4555 = vmul.f32 %v3778, 1.442695
    %v4556 = vpow.pop %v4555
    %v4557 = vmul.f32 %v3779, 1.442695
    %v4558 = vpow.pop %v4557
    %v4559 = vmul.f32 %v3780, 1.442695
    %v4560 = vpow.pop %v4559
    %v4561 = vmul.f32 %v3781, 1.442695
    %v4562 = vpow.pop %v4561
    %v4563 = vmul.f32 %v3782, 1.442695
    %v4564 = vpow.pop %v4563
    %v4565 = vmul.f32 %v3783, 1.442695
    %v4566 = vpow.pop %v4565
    %v4567 = vmul.f32 %v3784, 1.442695
    %v4568 = vpow.pop %v4567
    %v4569 = vmul.f32 %v3785, 1.442695
    %v4570 = vpow.pop %v4569
    %v4571 = vmul.f32 %v3786, 1.442695
    %v4572 = vpow.pop %v4571
    %v4573 = vmul.f32 %v3787, 1.442695
    %v4574 = vpow.pop %v4573
    %v4575 = vmul.f32 %v3788, 1.442695
    %v4576 = vpow.pop %v4575
    %v4577 = vmul.f32 %v3789, 1.442695
    %v4578 = vpow.pop %v4577
    %v4579 = vmul.f32 %v3790, 1.442695
    %v4580 = vpow.pop %v4579
    %v4581 = vmul.f32 %v3791, 1.442695
    %v4582 = vpow.pop %v4581
    %v4583 = vmul.f32 %v3792, 1.442695
    %v4584 = vpow.pop %v4583
    %v4585 = vmul.f32 %v3793, 1.442695
    %v4586 = vpow.pop %v4585
    %v4587 = vmul.f32 %v3794, 1.442695
    %v4588 = vpow.pop %v4587
    %v4589 = vmul.f32 %v3795, 1.442695
    %v4590 = vpow.pop %v4589
    %v4591 = vmul.f32 %v3796, 1.442695
    %v4592 = vpow.pop %v4591
    %v4593 = vmul.f32 %v3797, 1.442695
    %v4594 = vpow.pop %v4593
    %v4595 = vmul.f32 %v3798, 1.442695
    %v4596 = vpow.pop %v4595
    %v4597 = vmul.f32 %v3799, 1.442695
    %v4598 = vpow.pop %v4597
    %v4599 = vmul.f32 %v3800, 1.442695
    %v4600 = vpow.pop %v4599
    %v4601 = vmul.f32 %v3801, 1.442695
    %v4602 = vpow.pop %v4601
    %v4603 = vmul.f32 %v3802, 1.442695
    %v4604 = vpow.pop %v4603
    %v4605 = vmul.f32 %v3803, 1.442695
    %v4606 = vpow.pop %v4605
    %v4607 = vmul.f32 %v3804, 1.442695
    %v4608 = vpow.pop %v4607
    %v4609 = vmul.f32 %v3805, 1.442695
    %v4610 = vpow.pop %v4609
    %v4611 = vmul.f32 %v3806, 1.442695
    %v4612 = vpow.pop %v4611
    %v4613 = vmul.f32 %v3807, 1.442695
    %v4614 = vpow.pop %v4613
    %v4615 = vmul.f32 %v3808, 1.442695
    %v4616 = vpow.pop %v4615
    %v4617 = vmul.f32 %v3809, 1.442695
    %v4618 = vpow.pop %v4617
    %v4619 = vmul.f32 %v3810, 1.442695
    %v4620 = vpow.pop %v4619
    %v4621 = vmul.f32 %v3811, 1.442695
    %v4622 = vpow.pop %v4621
    %v4623 = vmul.f32 %v3812, 1.442695
    %v4624 = vpow.pop %v4623
    %v4625 = vmul.f32 %v3813, 1.442695
    %v4626 = vpow.pop %v4625
    %v4627 = vmul.f32 %v3814, 1.442695
    %v4628 = vpow.pop %v4627
    %v4629 = vmul.f32 %v3815, 1.442695
    %v4630 = vpow.pop %v4629
    %v4631 = vmul.f32 %v3816, 1.442695
    %v4632 = vpow.pop %v4631
    %v4633 = vmul.f32 %v3817, 1.442695
    %v4634 = vpow.pop %v4633
    %v4635 = vmul.f32 %v3818, 1.442695
    %v4636 = vpow.pop %v4635
    %v4637 = vmul.f32 %v3819, 1.442695
    %v4638 = vpow.pop %v4637
    %v4639 = vmul.f32 %v3820, 1.442695
    %v4640 = vpow.pop %v4639
    %v4641 = vmul.f32 %v3821, 1.442695
    %v4642 = vpow.pop %v4641
    %v4643 = vmul.f32 %v3822, 1.442695
    %v4644 = vpow.pop %v4643
    %v4645 = vmul.f32 %v3823, 1.442695
    %v4646 = vpow.pop %v4645
    %v4647 = vmul.f32 %v3824, 1.442695
    %v4648 = vpow.pop %v4647
    %v4649 = vmul.f32 %v3825, 1.442695
    %v4650 = vpow.pop %v4649
    %v4651 = vmul.f32 %v3826, 1.442695
    %v4652 = vpow.pop %v4651
    %v4653 = vmul.f32 %v3827, 1.442695
    %v4654 = vpow.pop %v4653
    %v4655 = vmul.f32 %v3828, 1.442695
    %v4656 = vpow.pop %v4655
    %v4657 = vmul.f32 %v3829, 1.442695
    %v4658 = vpow.pop %v4657
    %v4659 = vmul.f32 %v3830, 1.442695
    %v4660 = vpow.pop %v4659
    %v4661 = vmul.f32 %v3831, 1.442695
    %v4662 = vpow.pop %v4661
    %v4663 = vmul.f32 %v3832, 1.442695
    %v4664 = vpow.pop %v4663
    %v4665 = vmul.f32 %v3833, 1.442695
    %v4666 = vpow.pop %v4665
    %v4667 = vmul.f32 %v3834, 1.442695
    %v4668 = vpow.pop %v4667
    %v4669 = vmul.f32 %v3835, 1.442695
    %v4670 = vpow.pop %v4669
    %v4671 = vmul.f32 %v3836, 1.442695
    %v4672 = vpow.pop %v4671
    %v4673 = vmul.f32 %v3837, 1.442695
    %v4674 = vpow.pop %v4673
    %v4675 = vmul.f32 %v3838, 1.442695
    %v4676 = vpow.pop %v4675
    %v4677 = vmul.f32 %v3839, 1.442695
    %v4678 = vpow.pop %v4677
    %v4679 = vmul.f32 %v3840, 1.442695
    %v4680 = vpow.pop %v4679
    %v4681 = vmul.f32 %v3841, 1.442695
    %v4682 = vpow.pop %v4681
    %v4683 = vmul.f32 %v3842, 1.442695
    %v4684 = vpow.pop %v4683
    %v4685 = vmul.f32 %v3843, 1.442695
    %v4686 = vpow.pop %v4685
    %v4687 = vmul.f32 %v3844, 1.442695
    %v4688 = vpow.pop %v4687
    %v4689 = vmul.f32 %v3845, 1.442695
    %v4690 = vpow.pop %v4689
    %v4691 = vmul.f32 %v3846, 1.442695
    %v4692 = vpow.pop %v4691
    %v4693 = vmul.f32 %v3847, 1.442695
    %v4694 = vpow.pop %v4693
    %v4695 = vmul.f32 %v3848, 1.442695
    %v4696 = vpow.pop %v4695
    %v4697 = vmul.f32 %v3849, 1.442695
    %v4698 = vpow.pop %v4697
    %v4699 = vmul.f32 %v3850, 1.442695
    %v4700 = vpow.pop %v4699
    %v4701 = vmul.f32 %v3851, 1.442695
    %v4702 = vpow.pop %v4701
    %v4703 = vmul.f32 %v3852, 1.442695
    %v4704 = vpow.pop %v4703
    %v4705 = vmul.f32 %v3853, 1.442695
    %v4706 = vpow.pop %v4705
    %v4707 = vmul.f32 %v3854, 1.442695
    %v4708 = vpow.pop %v4707
    %v4709 = vmul.f32 %v3855, 1.442695
    %v4710 = vpow.pop %v4709
    %v4711 = vmul.f32 %v3856, 1.442695
    %v4712 = vpow.pop %v4711
    %v4713 = vmul.f32 %v3857, 1.442695
    %v4714 = vpow.pop %v4713
    %v4715 = vmul.f32 %v3858, 1.442695
    %v4716 = vpow.pop %v4715
    %v4717 = vmul.f32 %v3859, 1.442695
    %v4718 = vpow.pop %v4717
    %v4719 = vmul.f32 %v3860, 1.442695
    %v4720 = vpow.pop %v4719
    %v4721 = vmul.f32 %v3861, 1.442695
    %v4722 = vpow.pop %v4721
    %v4723 = vmul.f32 %v3862, 1.442695
    %v4724 = vpow.pop %v4723
    %v4725 = vmul.f32 %v3863, 1.442695
    %v4726 = vpow.pop %v4725
    %v4727 = vmul.f32 %v3864, 1.442695
    %v4728 = vpow.pop %v4727
    %v4729 = vmul.f32 %v3865, 1.442695
    %v4730 = vpow.pop %v4729
    %v4731 = vmul.f32 %v3866, 1.442695
    %v4732 = vpow.pop %v4731
    %v4733 = vmul.f32 %v3867, 1.442695
    %v4734 = vpow.pop %v4733
    %v4735 = vmul.f32 %v3868, 1.442695
    %v4736 = vpow.pop %v4735
    %v4737 = vmul.f32 %v3869, 1.442695
    %v4738 = vpow.pop %v4737
    %v4739 = vmul.f32 %v3870, 1.442695
    %v4740 = vpow.pop %v4739
    %v4741 = vmul.f32 %v3871, 1.442695
    %v4742 = vpow.pop %v4741
    %v4743 = vmul.f32 %v3872, 1.442695
    %v4744 = vpow.pop %v4743
    %v4745 = vmul.f32 %v3873, 1.442695
    %v4746 = vpow.pop %v4745
    %v4747 = vmul.f32 %v3874, 1.442695
    %v4748 = vpow.pop %v4747
    %v4749 = vmul.f32 %v3875, 1.442695
    %v4750 = vpow.pop %v4749
    %v4751 = vmul.f32 %v3876, 1.442695
    %v4752 = vpow.pop %v4751
    %v4753 = vmul.f32 %v3877, 1.442695
    %v4754 = vpow.pop %v4753
    %v4755 = vmul.f32 %v3878, 1.442695
    %v4756 = vpow.pop %v4755
    %v4757 = vmul.f32 %v3879, 1.442695
    %v4758 = vpow.pop %v4757
    %v4759 = vmul.f32 %v3880, 1.442695
    %v4760 = vpow.pop %v4759
    %v4761 = vmul.f32 %v3881, 1.442695
    %v4762 = vpow.pop %v4761
    %v4763 = vmul.f32 %v3882, 1.442695
    %v4764 = vpow.pop %v4763
    %v4765 = vmul.f32 %v3883, 1.442695
    %v4766 = vpow.pop %v4765
    %v4767 = vmul.f32 %v3884, 1.442695
    %v4768 = vpow.pop %v4767
    %v4769 = vmul.f32 %v3885, 1.442695
    %v4770 = vpow.pop %v4769
    %v4771 = vmul.f32 %v3886, 1.442695
    %v4772 = vpow.pop %v4771
    %v4773 = vmul.f32 %v3887, 1.442695
    %v4774 = vpow.pop %v4773
    %v4775 = vmul.f32 %v3888, 1.442695
    %v4776 = vpow.pop %v4775
    %v4777 = vmul.f32 %v3889, 1.442695
    %v4778 = vpow.pop %v4777
    %v4779 = vmul.f32 %v3890, 1.442695
    %v4780 = vpow.pop %v4779
    %v4781 = vmul.f32 %v3891, 1.442695
    %v4782 = vpow.pop %v4781
    %v4783 = vmul.f32 %v3892, 1.442695
    %v4784 = vpow.pop %v4783
    %v4785 = vmul.f32 %v3893, 1.442695
    %v4786 = vpow.pop %v4785
    %v4787 = vmul.f32 %v3894, 1.442695
    %v4788 = vpow.pop %v4787
    %v4789 = vmul.f32 %v3895, 1.442695
    %v4790 = vpow.pop %v4789
    %v4791 = vmul.f32 %v3896, 1.442695
    %v4792 = vpow.pop %v4791
    %v4793 = vmul.f32 %v3897, 1.442695
    %v4794 = vpow.pop %v4793
    %v4795 = vmul.f32 %v3898, 1.442695
    %v4796 = vpow.pop %v4795
    %v4797 = vmul.f32 %v3899, 1.442695
    %v4798 = vpow.pop %v4797
    %v4799 = vmul.f32 %v3900, 1.442695
    %v4800 = vpow.pop %v4799
    %v4801 = vmul.f32 %v3901, 1.442695
    %v4802 = vpow.pop %v4801
    %v4803 = vmul.f32 %v3902, 1.442695
    %v4804 = vpow.pop %v4803
    %v4805 = vmul.f32 %v3903, 1.442695
    %v4806 = vpow.pop %v4805
    %v4807 = vmul.f32 %v3904, 1.442695
    %v4808 = vpow.pop %v4807
    %v4809 = vmul.f32 %v3905, 1.442695
    %v4810 = vpow.pop %v4809
    %v4811 = vmul.f32 %v3906, 1.442695
    %v4812 = vpow.pop %v4811
    %v4813 = vmul.f32 %v3907, 1.442695
    %v4814 = vpow.pop %v4813
    %v4815 = vmul.f32 %v3908, 1.442695
    %v4816 = vpow.pop %v4815
    %v4817 = vmul.f32 %v3909, 1.442695
    %v4818 = vpow.pop %v4817
    %v4819 = vmul.f32 %v3910, 1.442695
    %v4820 = vpow.pop %v4819
    %v4821 = vmul.f32 %v3911, 1.442695
    %v4822 = vpow.pop %v4821
    %v4823 = vmul.f32 %v3912, 1.442695
    %v4824 = vpow.pop %v4823
    %v4825 = vmul.f32 %v3913, 1.442695
    %v4826 = vpow.pop %v4825
    %v4827 = vmul.f32 %v3914, 1.442695
    %v4828 = vpow.pop %v4827
    %v4829 = vmul.f32 %v3915, 1.442695
    %v4830 = vpow.pop %v4829
    %v4831 = vmul.f32 %v3916, 1.442695
    %v4832 = vpow.pop %v4831
    %v4833 = vmul.f32 %v3917, 1.442695
    %v4834 = vpow.pop %v4833
    %v4835 = vmul.f32 %v3918, 1.442695
    %v4836 = vpow.pop %v4835
    %v4837 = vmul.f32 %v3919, 1.442695
    %v4838 = vpow.pop %v4837
    %v4839 = vmul.f32 %v3920, 1.442695
    %v4840 = vpow.pop %v4839
    %v4841 = vmul.f32 %v3921, 1.442695
    %v4842 = vpow.pop %v4841
    %v4843 = vmul.f32 %v3922, 1.442695
    %v4844 = vpow.pop %v4843
    %v4845 = vmul.f32 %v3923, 1.442695
    %v4846 = vpow.pop %v4845
    %v4847 = vmul.f32 %v3924, 1.442695
    %v4848 = vpow.pop %v4847
    %v4849 = vmul.f32 %v3925, 1.442695
    %v4850 = vpow.pop %v4849
    %v4851 = vmul.f32 %v3926, 1.442695
    %v4852 = vpow.pop %v4851
    %v4853 = vmul.f32 %v3927, 1.442695
    %v4854 = vpow.pop %v4853
    %v4855 = vmul.f32 %v3928, 1.442695
    %v4856 = vpow.pop %v4855
    %v4857 = vmul.f32 %v3929, 1.442695
    %v4858 = vpow.pop %v4857
    %v4859 = vmul.f32 %v3930, 1.442695
    %v4860 = vpow.pop %v4859
    %v4861 = vmul.f32 %v3931, 1.442695
    %v4862 = vpow.pop %v4861
    %v4863 = vmul.f32 %v3932, 1.442695
    %v4864 = vpow.pop %v4863
    %v4865 = vmul.f32 %v3933, 1.442695
    %v4866 = vpow.pop %v4865
    %v4867 = vmul.f32 %v3934, 1.442695
    %v4868 = vpow.pop %v4867
    %v4869 = vmul.f32 %v3935, 1.442695
    %v4870 = vpow.pop %v4869
    %v4871 = vmul.f32 %v3936, 1.442695
    %v4872 = vpow.pop %v4871
    %v4873 = vmul.f32 %v3937, 1.442695
    %v4874 = vpow.pop %v4873
    %v4875 = vmul.f32 %v3938, 1.442695
    %v4876 = vpow.pop %v4875
    %v4877 = vmul.f32 %v3939, 1.442695
    %v4878 = vpow.pop %v4877
    %v4879 = vmul.f32 %v3940, 1.442695
    %v4880 = vpow.pop %v4879
    %v4881 = vmul.f32 %v3941, 1.442695
    %v4882 = vpow.pop %v4881
    %v4883 = vmul.f32 %v3942, 1.442695
    %v4884 = vpow.pop %v4883
    %v4885 = vmul.f32 %v3943, 1.442695
    %v4886 = vpow.pop %v4885
    %v4887 = vmul.f32 %v3944, 1.442695
    %v4888 = vpow.pop %v4887
    %v4889 = vmul.f32 %v3945, 1.442695
    %v4890 = vpow.pop %v4889
    %v4891 = vmul.f32 %v3946, 1.442695
    %v4892 = vpow.pop %v4891
    %v4893 = vmul.f32 %v3947, 1.442695
    %v4894 = vpow.pop %v4893
    %v4895 = vmul.f32 %v3948, 1.442695
    %v4896 = vpow.pop %v4895
    %v4897 = vmul.f32 %v3949, 1.442695
    %v4898 = vpow.pop %v4897
    %v4899 = vmul.f32 %v3950, 1.442695
    %v4900 = vpow.pop %v4899
    %v4901 = vmul.f32 %v3951, 1.442695
    %v4902 = vpow.pop %v4901
    %v4903 = vmul.f32 %v3952, 1.442695
    %v4904 = vpow.pop %v4903
    %v4905 = vmul.f32 %v3953, 1.442695
    %v4906 = vpow.pop %v4905
    %v4907 = vmul.f32 %v3954, 1.442695
    %v4908 = vpow.pop %v4907
    %v4909 = vmul.f32 %v3955, 1.442695
    %v4910 = vpow.pop %v4909
    %v4911 = vmul.f32 %v3956, 1.442695
    %v4912 = vpow.pop %v4911
    %v4913 = vmul.f32 %v3957, 1.442695
    %v4914 = vpow.pop %v4913
    %v4915 = vmul.f32 %v3958, 1.442695
    %v4916 = vpow.pop %v4915
    %v4917 = vmul.f32 %v3959, 1.442695
    %v4918 = vpow.pop %v4917
    %v4919 = vmul.f32 %v3960, 1.442695
    %v4920 = vpow.pop %v4919
    %v4921 = vmul.f32 %v3961, 1.442695
    %v4922 = vpow.pop %v4921
    %v4923 = vmul.f32 %v3962, 1.442695
    %v4924 = vpow.pop %v4923
    %v4925 = vmul.f32 %v3963, 1.442695
    %v4926 = vpow.pop %v4925
    %v4927 = vmul.f32 %v3964, 1.442695
    %v4928 = vpow.pop %v4927
    %v4929 = vmul.f32 %v3965, 1.442695
    %v4930 = vpow.pop %v4929
    %v4931 = vmul.f32 %v3966, 1.442695
    %v4932 = vpow.pop %v4931
    %v4933 = vmul.f32 %v3967, 1.442695
    %v4934 = vpow.pop %v4933
    %v4935 = vmul.f32 %v3968, 1.442695
    %v4936 = vpow.pop %v4935
    %v4937 = vmul.f32 %v3969, 1.442695
    %v4938 = vpow.pop %v4937
    %v4939 = vmul.f32 %v3970, 1.442695
    %v4940 = vpow.pop %v4939
    %v4941 = vmul.f32 %v3971, 1.442695
    %v4942 = vpow.pop %v4941
    %v4943 = vmul.f32 %v3972, 1.442695
    %v4944 = vpow.pop %v4943
    %v4945 = vmul.f32 %v3973, 1.442695
    %v4946 = vpow.pop %v4945
    %v4947 = vmul.f32 %v3974, 1.442695
    %v4948 = vpow.pop %v4947
    %v4949 = vmul.f32 %v3975, 1.442695
    %v4950 = vpow.pop %v4949
    %v4951 = vmul.f32 %v3976, 1.442695
    %v4952 = vpow.pop %v4951
    %v4953 = vmul.f32 %v3977, 1.442695
    %v4954 = vpow.pop %v4953
    %v4955 = vmul.f32 %v3978, 1.442695
    %v4956 = vpow.pop %v4955
    %v4957 = vmul.f32 %v3979, 1.442695
    %v4958 = vpow.pop %v4957
    %v4959 = vmul.f32 %v3980, 1.442695
    %v4960 = vpow.pop %v4959
    %v4961 = vmul.f32 %v3981, 1.442695
    %v4962 = vpow.pop %v4961
    %v4963 = vmul.f32 %v3982, 1.442695
    %v4964 = vpow.pop %v4963
    %v4965 = vmul.f32 %v3983, 1.442695
    %v4966 = vpow.pop %v4965
    %v4967 = vmul.f32 %v3984, 1.442695
    %v4968 = vpow.pop %v4967
    %v4969 = vmul.f32 %v3985, 1.442695
    %v4970 = vpow.pop %v4969
    %v4971 = vmul.f32 %v3986, 1.442695
    %v4972 = vpow.pop %v4971
    %v4973 = vmul.f32 %v3987, 1.442695
    %v4974 = vpow.pop %v4973
    %v4975 = vmul.f32 %v3988, 1.442695
    %v4976 = vpow.pop %v4975
    %v4977 = vmul.f32 %v3989, 1.442695
    %v4978 = vpow.pop %v4977
    %v4979 = vmul.f32 %v3990, 1.442695
    %v4980 = vpow.pop %v4979
    %v4981 = vmul.f32 %v3991, 1.442695
    %v4982 = vpow.pop %v4981
    %v4983 = vmul.f32 %v3992, 1.442695
    %v4984 = vpow.pop %v4983
    %v4985 = vmul.f32 %v3993, 1.442695
    %v4986 = vpow.pop %v4985
    %v4987 = vmul.f32 %v3994, 1.442695
    %v4988 = vpow.pop %v4987
    %v4989 = vmul.f32 %v3995, 1.442695
    %v4990 = vpow.pop %v4989
    %v4991 = vmul.f32 %v3996, 1.442695
    %v4992 = vpow.pop %v4991
    %v4993 = vmul.f32 %v3997, 1.442695
    %v4994 = vpow.pop %v4993
    %v4995 = vmul.f32 %v3998, 1.442695
    %v4996 = vpow.pop %v4995
    %v4997 = vmul.f32 %v3999, 1.442695
    %v4998 = vpow.pop %v4997
    %v4999 = vmul.f32 %v4000, 1.442695
    %v5000 = vpow.pop %v4999
    %v5001 = vmul.f32 %v4001, 1.442695
    %v5002 = vpow.pop %v5001
    %v5003 = vmul.f32 %v4002, 1.442695
    %v5004 = vpow.pop %v5003
    %v5005 = vmul.f32 %v4003, 1.442695
    %v5006 = vpow.pop %v5005
    %v5007 = vmul.f32 %v4004, 1.442695
    %v5008 = vpow.pop %v5007
    %v5009 = vmul.f32 %v4005, 1.442695
    %v5010 = vpow.pop %v5009
    %v5011 = vmul.f32 %v4006, 1.442695
    %v5012 = vpow.pop %v5011
    %v5013 = vmul.f32 %v4007, 1.442695
    %v5014 = vpow.pop %v5013
    %v5015 = vmul.f32 %v4008, 1.442695
    %v5016 = vpow.pop %v5015
    %v5017 = vmul.f32 %v4009, 1.442695
    %v5018 = vpow.pop %v5017
    %v5019 = vmul.f32 %v4010, 1.442695
    %v5020 = vpow.pop %v5019
    %v5021 = vmul.f32 %v4011, 1.442695
    %v5022 = vpow.pop %v5021
    %v5023 = vmul.f32 %v4012, 1.442695
    %v5024 = vpow.pop %v5023
    %v5025 = vmul.f32 %v4013, 1.442695
    %v5026 = vpow.pop %v5025
    %v5027 = vmul.f32 %v4014, 1.442695
    %v5028 = vpow.pop %v5027
    %v5029 = vmul.f32 %v4015, 1.442695
    %v5030 = vpow.pop %v5029
    %v5031 = vmul.f32 %v4016, 1.442695
    %v5032 = vpow.pop %v5031
    %v5033 = vmul.f32 %v4017, 1.442695
    %v5034 = vpow.pop %v5033
    %v5035 = vmul.f32 %v4018, 1.442695
    %v5036 = vpow.pop %v5035
    %v5037 = vmul.f32 %v4019, 1.442695
    %v5038 = vpow.pop %v5037
    %v5039 = vmul.f32 %v4020, 1.442695
    %v5040 = vpow.pop %v5039
    %v5041 = vmul.f32 %v4021, 1.442695
    %v5042 = vpow.pop %v5041
    %v5043 = vmul.f32 %v4022, 1.442695
    %v5044 = vpow.pop %v5043
    %v5045 = vmul.f32 %v4023, 1.442695
    %v5046 = vpow.pop %v5045
    %v5047 = vmul.f32 %v4024, 1.442695
    %v5048 = vpow.pop %v5047
    %v5561 = vlaneseq
    %v5562 = vand.u32 %v5561, 127
    %v5563 = vlaneseq
    %v5564 = vshrl.u32 %v5563, 7
    %v5565 = vsub.s32 %v5562, %v5564
    %v5566 = vrot.slane %v4026, %v5565
    %v5567 = vadd.s32 %v5562, 4294967288
    %v5568 = vlaneseq
    %v5569 = vshrl.u32 %v5568, 7
    %v5570 = vsub.s32 %v5567, %v5569
    %v5571 = vrot.slane %v4028, %v5570
    %vm5572 = vcmask 130112
    %v5573 = vsel %vm5572, %v5571, %v5566
    %v5574 = vadd.s32 %v5562, 4294967280
    %v5575 = vlaneseq
    %v5576 = vshrl.u32 %v5575, 7
    %v5577 = vsub.s32 %v5574, %v5576
    %v5578 = vrot.slane %v4030, %v5577
    %vm5579 = vcmask 195712
    %v5580 = vsel %vm5579, %v5578, %v5573
    %v5581 = vadd.s32 %v5562, 4294967272
    %v5582 = vlaneseq
    %v5583 = vshrl.u32 %v5582, 7
    %v5584 = vsub.s32 %v5581, %v5583
    %v5585 = vrot.slane %v4032, %v5584
    %vm5586 = vcmask 261312
    %v5587 = vsel %vm5586, %v5585, %v5580
    %v5588 = vadd.s32 %v5562, 4294967264
    %v5589 = vlaneseq
    %v5590 = vshrl.u32 %v5589, 7
    %v5591 = vsub.s32 %v5588, %v5590
    %v5592 = vrot.slane %v4034, %v5591
    %vm5593 = vcmask 326912
    %v5594 = vsel %vm5593, %v5592, %v5587
    %v5595 = vadd.s32 %v5562, 4294967256
    %v5596 = vlaneseq
    %v5597 = vshrl.u32 %v5596, 7
    %v5598 = vsub.s32 %v5595, %v5597
    %v5599 = vrot.slane %v4036, %v5598
    %vm5600 = vcmask 392512
    %v5601 = vsel %vm5600, %v5599, %v5594
    %v5602 = vadd.s32 %v5562, 4294967248
    %v5603 = vlaneseq
    %v5604 = vshrl.u32 %v5603, 7
    %v5605 = vsub.s32 %v5602, %v5604
    %v5606 = vrot.slane %v4038, %v5605
    %vm5607 = vcmask 458112
    %v5608 = vsel %vm5607, %v5606, %v5601
    %v5609 = vadd.s32 %v5562, 4294967240
    %v5610 = vlaneseq
    %v5611 = vshrl.u32 %v5610, 7
    %v5612 = vsub.s32 %v5609, %v5611
    %v5613 = vrot.slane %v4040, %v5612
    %vm5614 = vcmask 523712
    %v5615 = vsel %vm5614, %v5613, %v5608
    %v5616 = vadd.s32 %v5562, 4294967232
    %v5617 = vlaneseq
    %v5618 = vshrl.u32 %v5617, 7
    %v5619 = vsub.s32 %v5616, %v5618
    %v5620 = vrot.slane %v4042, %v5619
    %vm5621 = vcmask 589312
    %v5622 = vsel %vm5621, %v5620, %v5615
    %v5623 = vadd.s32 %v5562, 4294967224
    %v5624 = vlaneseq
    %v5625 = vshrl.u32 %v5624, 7
    %v5626 = vsub.s32 %v5623, %v5625
    %v5627 = vrot.slane %v4044, %v5626
    %vm5628 = vcmask 654912
    %v5629 = vsel %vm5628, %v5627, %v5622
    %v5630 = vadd.s32 %v5562, 4294967216
    %v5631 = vlaneseq
    %v5632 = vshrl.u32 %v5631, 7
    %v5633 = vsub.s32 %v5630, %v5632
    %v5634 = vrot.slane %v4046, %v5633
    %vm5635 = vcmask 720512
    %v5636 = vsel %vm5635, %v5634, %v5629
    %v5637 = vadd.s32 %v5562, 4294967208
    %v5638 = vlaneseq
    %v5639 = vshrl.u32 %v5638, 7
    %v5640 = vsub.s32 %v5637, %v5639
    %v5641 = vrot.slane %v4048, %v5640
    %vm5642 = vcmask 786112
    %v5643 = vsel %vm5642, %v5641, %v5636
    %v5644 = vadd.s32 %v5562, 4294967200
    %v5645 = vlaneseq
    %v5646 = vshrl.u32 %v5645, 7
    %v5647 = vsub.s32 %v5644, %v5646
    %v5648 = vrot.slane %v4050, %v5647
    %vm5649 = vcmask 851712
    %v5650 = vsel %vm5649, %v5648, %v5643
    %v5651 = vadd.s32 %v5562, 4294967192
    %v5652 = vlaneseq
    %v5653 = vshrl.u32 %v5652, 7
    %v5654 = vsub.s32 %v5651, %v5653
    %v5655 = vrot.slane %v4052, %v5654
    %vm5656 = vcmask 917312
    %v5657 = vsel %vm5656, %v5655, %v5650
    %v5658 = vadd.s32 %v5562, 4294967184
    %v5659 = vlaneseq
    %v5660 = vshrl.u32 %v5659, 7
    %v5661 = vsub.s32 %v5658, %v5660
    %v5662 = vrot.slane %v4054, %v5661
    %vm5663 = vcmask 982912
    %v5664 = vsel %vm5663, %v5662, %v5657
    %v5665 = vadd.s32 %v5562, 4294967176
    %v5666 = vlaneseq
    %v5667 = vshrl.u32 %v5666, 7
    %v5668 = vsub.s32 %v5665, %v5667
    %v5669 = vrot.slane %v4056, %v5668
    %vm5670 = vcmask 1048512
    %v5671 = vsel %vm5670, %v5669, %v5664
    %v5672 = vlaneseq
    %v5673 = vshrl.u32 %v5672, 7
    %v5674 = vsub.s32 %v5562, %v5673
    %v5675 = vrot.slane %v4058, %v5674
    %v5676 = vlaneseq
    %v5677 = vshrl.u32 %v5676, 7
    %v5678 = vsub.s32 %v5567, %v5677
    %v5679 = vrot.slane %v4060, %v5678
    %v5680 = vsel %vm5572, %v5679, %v5675
    %v5681 = vlaneseq
    %v5682 = vshrl.u32 %v5681, 7
    %v5683 = vsub.s32 %v5574, %v5682
    %v5684 = vrot.slane %v4062, %v5683
    %v5685 = vsel %vm5579, %v5684, %v5680
    %v5686 = vlaneseq
    %v5687 = vshrl.u32 %v5686, 7
    %v5688 = vsub.s32 %v5581, %v5687
    %v5689 = vrot.slane %v4064, %v5688
    %v5690 = vsel %vm5586, %v5689, %v5685
    %v5691 = vlaneseq
    %v5692 = vshrl.u32 %v5691, 7
    %v5693 = vsub.s32 %v5588, %v5692
    %v5694 = vrot.slane %v4066, %v5693
    %v5695 = vsel %vm5593, %v5694, %v5690
    %v5696 = vlaneseq
    %v5697 = vshrl.u32 %v5696, 7
    %v5698 = vsub.s32 %v5595, %v5697
    %v5699 = vrot.slane %v4068, %v5698
    %v5700 = vsel %vm5600, %v5699, %v5695
    %v5701 = vlaneseq
    %v5702 = vshrl.u32 %v5701, 7
    %v5703 = vsub.s32 %v5602, %v5702
    %v5704 = vrot.slane %v4070, %v5703
    %v5705 = vsel %vm5607, %v5704, %v5700
    %v5706 = vlaneseq
    %v5707 = vshrl.u32 %v5706, 7
    %v5708 = vsub.s32 %v5609, %v5707
    %v5709 = vrot.slane %v4072, %v5708
    %v5710 = vsel %vm5614, %v5709, %v5705
    %v5711 = vlaneseq
    %v5712 = vshrl.u32 %v5711, 7
    %v5713 = vsub.s32 %v5616, %v5712
    %v5714 = vrot.slane %v4074, %v5713
    %v5715 = vsel %vm5621, %v5714, %v5710
    %v5716 = vlaneseq
    %v5717 = vshrl.u32 %v5716, 7
    %v5718 = vsub.s32 %v5623, %v5717
    %v5719 = vrot.slane %v4076, %v5718
    %v5720 = vsel %vm5628, %v5719, %v5715
    %v5721 = vlaneseq
    %v5722 = vshrl.u32 %v5721, 7
    %v5723 = vsub.s32 %v5630, %v5722
    %v5724 = vrot.slane %v4078, %v5723
    %v5725 = vsel %vm5635, %v5724, %v5720
    %v5726 = vlaneseq
    %v5727 = vshrl.u32 %v5726, 7
    %v5728 = vsub.s32 %v5637, %v5727
    %v5729 = vrot.slane %v4080, %v5728
    %v5730 = vsel %vm5642, %v5729, %v5725
    %v5731 = vlaneseq
    %v5732 = vshrl.u32 %v5731, 7
    %v5733 = vsub.s32 %v5644, %v5732
    %v5734 = vrot.slane %v4082, %v5733
    %v5735 = vsel %vm5649, %v5734, %v5730
    %v5736 = vlaneseq
    %v5737 = vshrl.u32 %v5736, 7
    %v5738 = vsub.s32 %v5651, %v5737
    %v5739 = vrot.slane %v4084, %v5738
    %v5740 = vsel %vm5656, %v5739, %v5735
    %v5741 = vlaneseq
    %v5742 = vshrl.u32 %v5741, 7
    %v5743 = vsub.s32 %v5658, %v5742
    %v5744 = vrot.slane %v4086, %v5743
    %v5745 = vsel %vm5663, %v5744, %v5740
    %v5746 = vlaneseq
    %v5747 = vshrl.u32 %v5746, 7
    %v5748 = vsub.s32 %v5665, %v5747
    %v5749 = vrot.slane %v4088, %v5748
    %v5750 = vsel %vm5670, %v5749, %v5745
    %v5751 = vlaneseq
    %v5752 = vshrl.u32 %v5751, 7
    %v5753 = vsub.s32 %v5562, %v5752
    %v5754 = vrot.slane %v4090, %v5753
    %v5755 = vlaneseq
    %v5756 = vshrl.u32 %v5755, 7
    %v5757 = vsub.s32 %v5567, %v5756
    %v5758 = vrot.slane %v4092, %v5757
    %v5759 = vsel %vm5572, %v5758, %v5754
    %v5760 = vlaneseq
    %v5761 = vshrl.u32 %v5760, 7
    %v5762 = vsub.s32 %v5574, %v5761
    %v5763 = vrot.slane %v4094, %v5762
    %v5764 = vsel %vm5579, %v5763, %v5759
    %v5765 = vlaneseq
    %v5766 = vshrl.u32 %v5765, 7
    %v5767 = vsub.s32 %v5581, %v5766
    %v5768 = vrot.slane %v4096, %v5767
    %v5769 = vsel %vm5586, %v5768, %v5764
    %v5770 = vlaneseq
    %v5771 = vshrl.u32 %v5770, 7
    %v5772 = vsub.s32 %v5588, %v5771
    %v5773 = vrot.slane %v4098, %v5772
    %v5774 = vsel %vm5593, %v5773, %v5769
    %v5775 = vlaneseq
    %v5776 = vshrl.u32 %v5775, 7
    %v5777 = vsub.s32 %v5595, %v5776
    %v5778 = vrot.slane %v4100, %v5777
    %v5779 = vsel %vm5600, %v5778, %v5774
    %v5780 = vlaneseq
    %v5781 = vshrl.u32 %v5780, 7
    %v5782 = vsub.s32 %v5602, %v5781
    %v5783 = vrot.slane %v4102, %v5782
    %v5784 = vsel %vm5607, %v5783, %v5779
    %v5785 = vlaneseq
    %v5786 = vshrl.u32 %v5785, 7
    %v5787 = vsub.s32 %v5609, %v5786
    %v5788 = vrot.slane %v4104, %v5787
    %v5789 = vsel %vm5614, %v5788, %v5784
    %v5790 = vlaneseq
    %v5791 = vshrl.u32 %v5790, 7
    %v5792 = vsub.s32 %v5616, %v5791
    %v5793 = vrot.slane %v4106, %v5792
    %v5794 = vsel %vm5621, %v5793, %v5789
    %v5795 = vlaneseq
    %v5796 = vshrl.u32 %v5795, 7
    %v5797 = vsub.s32 %v5623, %v5796
    %v5798 = vrot.slane %v4108, %v5797
    %v5799 = vsel %vm5628, %v5798, %v5794
    %v5800 = vlaneseq
    %v5801 = vshrl.u32 %v5800, 7
    %v5802 = vsub.s32 %v5630, %v5801
    %v5803 = vrot.slane %v4110, %v5802
    %v5804 = vsel %vm5635, %v5803, %v5799
    %v5805 = vlaneseq
    %v5806 = vshrl.u32 %v5805, 7
    %v5807 = vsub.s32 %v5637, %v5806
    %v5808 = vrot.slane %v4112, %v5807
    %v5809 = vsel %vm5642, %v5808, %v5804
    %v5810 = vlaneseq
    %v5811 = vshrl.u32 %v5810, 7
    %v5812 = vsub.s32 %v5644, %v5811
    %v5813 = vrot.slane %v4114, %v5812
    %v5814 = vsel %vm5649, %v5813, %v5809
    %v5815 = vlaneseq
    %v5816 = vshrl.u32 %v5815, 7
    %v5817 = vsub.s32 %v5651, %v5816
    %v5818 = vrot.slane %v4116, %v5817
    %v5819 = vsel %vm5656, %v5818, %v5814
    %v5820 = vlaneseq
    %v5821 = vshrl.u32 %v5820, 7
    %v5822 = vsub.s32 %v5658, %v5821
    %v5823 = vrot.slane %v4118, %v5822
    %v5824 = vsel %vm5663, %v5823, %v5819
    %v5825 = vlaneseq
    %v5826 = vshrl.u32 %v5825, 7
    %v5827 = vsub.s32 %v5665, %v5826
    %v5828 = vrot.slane %v4120, %v5827
    %v5829 = vsel %vm5670, %v5828, %v5824
    %v5830 = vlaneseq
    %v5831 = vshrl.u32 %v5830, 7
    %v5832 = vsub.s32 %v5562, %v5831
    %v5833 = vrot.slane %v4122, %v5832
    %v5834 = vlaneseq
    %v5835 = vshrl.u32 %v5834, 7
    %v5836 = vsub.s32 %v5567, %v5835
    %v5837 = vrot.slane %v4124, %v5836
    %v5838 = vsel %vm5572, %v5837, %v5833
    %v5839 = vlaneseq
    %v5840 = vshrl.u32 %v5839, 7
    %v5841 = vsub.s32 %v5574, %v5840
    %v5842 = vrot.slane %v4126, %v5841
    %v5843 = vsel %vm5579, %v5842, %v5838
    %v5844 = vlaneseq
    %v5845 = vshrl.u32 %v5844, 7
    %v5846 = vsub.s32 %v5581, %v5845
    %v5847 = vrot.slane %v4128, %v5846
    %v5848 = vsel %vm5586, %v5847, %v5843
    %v5849 = vlaneseq
    %v5850 = vshrl.u32 %v5849, 7
    %v5851 = vsub.s32 %v5588, %v5850
    %v5852 = vrot.slane %v4130, %v5851
    %v5853 = vsel %vm5593, %v5852, %v5848
    %v5854 = vlaneseq
    %v5855 = vshrl.u32 %v5854, 7
    %v5856 = vsub.s32 %v5595, %v5855
    %v5857 = vrot.slane %v4132, %v5856
    %v5858 = vsel %vm5600, %v5857, %v5853
    %v5859 = vlaneseq
    %v5860 = vshrl.u32 %v5859, 7
    %v5861 = vsub.s32 %v5602, %v5860
    %v5862 = vrot.slane %v4134, %v5861
    %v5863 = vsel %vm5607, %v5862, %v5858
    %v5864 = vlaneseq
    %v5865 = vshrl.u32 %v5864, 7
    %v5866 = vsub.s32 %v5609, %v5865
    %v5867 = vrot.slane %v4136, %v5866
    %v5868 = vsel %vm5614, %v5867, %v5863
    %v5869 = vlaneseq
    %v5870 = vshrl.u32 %v5869, 7
    %v5871 = vsub.s32 %v5616, %v5870
    %v5872 = vrot.slane %v4138, %v5871
    %v5873 = vsel %vm5621, %v5872, %v5868
    %v5874 = vlaneseq
    %v5875 = vshrl.u32 %v5874, 7
    %v5876 = vsub.s32 %v5623, %v5875
    %v5877 = vrot.slane %v4140, %v5876
    %v5878 = vsel %vm5628, %v5877, %v5873
    %v5879 = vlaneseq
    %v5880 = vshrl.u32 %v5879, 7
    %v5881 = vsub.s32 %v5630, %v5880
    %v5882 = vrot.slane %v4142, %v5881
    %v5883 = vsel %vm5635, %v5882, %v5878
    %v5884 = vlaneseq
    %v5885 = vshrl.u32 %v5884, 7
    %v5886 = vsub.s32 %v5637, %v5885
    %v5887 = vrot.slane %v4144, %v5886
    %v5888 = vsel %vm5642, %v5887, %v5883
    %v5889 = vlaneseq
    %v5890 = vshrl.u32 %v5889, 7
    %v5891 = vsub.s32 %v5644, %v5890
    %v5892 = vrot.slane %v4146, %v5891
    %v5893 = vsel %vm5649, %v5892, %v5888
    %v5894 = vlaneseq
    %v5895 = vshrl.u32 %v5894, 7
    %v5896 = vsub.s32 %v5651, %v5895
    %v5897 = vrot.slane %v4148, %v5896
    %v5898 = vsel %vm5656, %v5897, %v5893
    %v5899 = vlaneseq
    %v5900 = vshrl.u32 %v5899, 7
    %v5901 = vsub.s32 %v5658, %v5900
    %v5902 = vrot.slane %v4150, %v5901
    %v5903 = vsel %vm5663, %v5902, %v5898
    %v5904 = vlaneseq
    %v5905 = vshrl.u32 %v5904, 7
    %v5906 = vsub.s32 %v5665, %v5905
    %v5907 = vrot.slane %v4152, %v5906
    %v5908 = vsel %vm5670, %v5907, %v5903
    %v5909 = vlaneseq
    %v5910 = vshrl.u32 %v5909, 7
    %v5911 = vsub.s32 %v5562, %v5910
    %v5912 = vrot.slane %v4154, %v5911
    %v5913 = vlaneseq
    %v5914 = vshrl.u32 %v5913, 7
    %v5915 = vsub.s32 %v5567, %v5914
    %v5916 = vrot.slane %v4156, %v5915
    %v5917 = vsel %vm5572, %v5916, %v5912
    %v5918 = vlaneseq
    %v5919 = vshrl.u32 %v5918, 7
    %v5920 = vsub.s32 %v5574, %v5919
    %v5921 = vrot.slane %v4158, %v5920
    %v5922 = vsel %vm5579, %v5921, %v5917
    %v5923 = vlaneseq
    %v5924 = vshrl.u32 %v5923, 7
    %v5925 = vsub.s32 %v5581, %v5924
    %v5926 = vrot.slane %v4160, %v5925
    %v5927 = vsel %vm5586, %v5926, %v5922
    %v5928 = vlaneseq
    %v5929 = vshrl.u32 %v5928, 7
    %v5930 = vsub.s32 %v5588, %v5929
    %v5931 = vrot.slane %v4162, %v5930
    %v5932 = vsel %vm5593, %v5931, %v5927
    %v5933 = vlaneseq
    %v5934 = vshrl.u32 %v5933, 7
    %v5935 = vsub.s32 %v5595, %v5934
    %v5936 = vrot.slane %v4164, %v5935
    %v5937 = vsel %vm5600, %v5936, %v5932
    %v5938 = vlaneseq
    %v5939 = vshrl.u32 %v5938, 7
    %v5940 = vsub.s32 %v5602, %v5939
    %v5941 = vrot.slane %v4166, %v5940
    %v5942 = vsel %vm5607, %v5941, %v5937
    %v5943 = vlaneseq
    %v5944 = vshrl.u32 %v5943, 7
    %v5945 = vsub.s32 %v5609, %v5944
    %v5946 = vrot.slane %v4168, %v5945
    %v5947 = vsel %vm5614, %v5946, %v5942
    %v5948 = vlaneseq
    %v5949 = vshrl.u32 %v5948, 7
    %v5950 = vsub.s32 %v5616, %v5949
    %v5951 = vrot.slane %v4170, %v5950
    %v5952 = vsel %vm5621, %v5951, %v5947
    %v5953 = vlaneseq
    %v5954 = vshrl.u32 %v5953, 7
    %v5955 = vsub.s32 %v5623, %v5954
    %v5956 = vrot.slane %v4172, %v5955
    %v5957 = vsel %vm5628, %v5956, %v5952
    %v5958 = vlaneseq
    %v5959 = vshrl.u32 %v5958, 7
    %v5960 = vsub.s32 %v5630, %v5959
    %v5961 = vrot.slane %v4174, %v5960
    %v5962 = vsel %vm5635, %v5961, %v5957
    %v5963 = vlaneseq
    %v5964 = vshrl.u32 %v5963, 7
    %v5965 = vsub.s32 %v5637, %v5964
    %v5966 = vrot.slane %v4176, %v5965
    %v5967 = vsel %vm5642, %v5966, %v5962
    %v5968 = vlaneseq
    %v5969 = vshrl.u32 %v5968, 7
    %v5970 = vsub.s32 %v5644, %v5969
    %v5971 = vrot.slane %v4178, %v5970
    %v5972 = vsel %vm5649, %v5971, %v5967
    %v5973 = vlaneseq
    %v5974 = vshrl.u32 %v5973, 7
    %v5975 = vsub.s32 %v5651, %v5974
    %v5976 = vrot.slane %v4180, %v5975
    %v5977 = vsel %vm5656, %v5976, %v5972
    %v5978 = vlaneseq
    %v5979 = vshrl.u32 %v5978, 7
    %v5980 = vsub.s32 %v5658, %v5979
    %v5981 = vrot.slane %v4182, %v5980
    %v5982 = vsel %vm5663, %v5981, %v5977
    %v5983 = vlaneseq
    %v5984 = vshrl.u32 %v5983, 7
    %v5985 = vsub.s32 %v5665, %v5984
    %v5986 = vrot.slane %v4184, %v5985
    %v5987 = vsel %vm5670, %v5986, %v5982
    %v5988 = vlaneseq
    %v5989 = vshrl.u32 %v5988, 7
    %v5990 = vsub.s32 %v5562, %v5989
    %v5991 = vrot.slane %v4186, %v5990
    %v5992 = vlaneseq
    %v5993 = vshrl.u32 %v5992, 7
    %v5994 = vsub.s32 %v5567, %v5993
    %v5995 = vrot.slane %v4188, %v5994
    %v5996 = vsel %vm5572, %v5995, %v5991
    %v5997 = vlaneseq
    %v5998 = vshrl.u32 %v5997, 7
    %v5999 = vsub.s32 %v5574, %v5998
    %v6000 = vrot.slane %v4190, %v5999
    %v6001 = vsel %vm5579, %v6000, %v5996
    %v6002 = vlaneseq
    %v6003 = vshrl.u32 %v6002, 7
    %v6004 = vsub.s32 %v5581, %v6003
    %v6005 = vrot.slane %v4192, %v6004
    %v6006 = vsel %vm5586, %v6005, %v6001
    %v6007 = vlaneseq
    %v6008 = vshrl.u32 %v6007, 7
    %v6009 = vsub.s32 %v5588, %v6008
    %v6010 = vrot.slane %v4194, %v6009
    %v6011 = vsel %vm5593, %v6010, %v6006
    %v6012 = vlaneseq
    %v6013 = vshrl.u32 %v6012, 7
    %v6014 = vsub.s32 %v5595, %v6013
    %v6015 = vrot.slane %v4196, %v6014
    %v6016 = vsel %vm5600, %v6015, %v6011
    %v6017 = vlaneseq
    %v6018 = vshrl.u32 %v6017, 7
    %v6019 = vsub.s32 %v5602, %v6018
    %v6020 = vrot.slane %v4198, %v6019
    %v6021 = vsel %vm5607, %v6020, %v6016
    %v6022 = vlaneseq
    %v6023 = vshrl.u32 %v6022, 7
    %v6024 = vsub.s32 %v5609, %v6023
    %v6025 = vrot.slane %v4200, %v6024
    %v6026 = vsel %vm5614, %v6025, %v6021
    %v6027 = vlaneseq
    %v6028 = vshrl.u32 %v6027, 7
    %v6029 = vsub.s32 %v5616, %v6028
    %v6030 = vrot.slane %v4202, %v6029
    %v6031 = vsel %vm5621, %v6030, %v6026
    %v6032 = vlaneseq
    %v6033 = vshrl.u32 %v6032, 7
    %v6034 = vsub.s32 %v5623, %v6033
    %v6035 = vrot.slane %v4204, %v6034
    %v6036 = vsel %vm5628, %v6035, %v6031
    %v6037 = vlaneseq
    %v6038 = vshrl.u32 %v6037, 7
    %v6039 = vsub.s32 %v5630, %v6038
    %v6040 = vrot.slane %v4206, %v6039
    %v6041 = vsel %vm5635, %v6040, %v6036
    %v6042 = vlaneseq
    %v6043 = vshrl.u32 %v6042, 7
    %v6044 = vsub.s32 %v5637, %v6043
    %v6045 = vrot.slane %v4208, %v6044
    %v6046 = vsel %vm5642, %v6045, %v6041
    %v6047 = vlaneseq
    %v6048 = vshrl.u32 %v6047, 7
    %v6049 = vsub.s32 %v5644, %v6048
    %v6050 = vrot.slane %v4210, %v6049
    %v6051 = vsel %vm5649, %v6050, %v6046
    %v6052 = vlaneseq
    %v6053 = vshrl.u32 %v6052, 7
    %v6054 = vsub.s32 %v5651, %v6053
    %v6055 = vrot.slane %v4212, %v6054
    %v6056 = vsel %vm5656, %v6055, %v6051
    %v6057 = vlaneseq
    %v6058 = vshrl.u32 %v6057, 7
    %v6059 = vsub.s32 %v5658, %v6058
    %v6060 = vrot.slane %v4214, %v6059
    %v6061 = vsel %vm5663, %v6060, %v6056
    %v6062 = vlaneseq
    %v6063 = vshrl.u32 %v6062, 7
    %v6064 = vsub.s32 %v5665, %v6063
    %v6065 = vrot.slane %v4216, %v6064
    %v6066 = vsel %vm5670, %v6065, %v6061
    %v6067 = vlaneseq
    %v6068 = vshrl.u32 %v6067, 7
    %v6069 = vsub.s32 %v5562, %v6068
    %v6070 = vrot.slane %v4218, %v6069
    %v6071 = vlaneseq
    %v6072 = vshrl.u32 %v6071, 7
    %v6073 = vsub.s32 %v5567, %v6072
    %v6074 = vrot.slane %v4220, %v6073
    %v6075 = vsel %vm5572, %v6074, %v6070
    %v6076 = vlaneseq
    %v6077 = vshrl.u32 %v6076, 7
    %v6078 = vsub.s32 %v5574, %v6077
    %v6079 = vrot.slane %v4222, %v6078
    %v6080 = vsel %vm5579, %v6079, %v6075
    %v6081 = vlaneseq
    %v6082 = vshrl.u32 %v6081, 7
    %v6083 = vsub.s32 %v5581, %v6082
    %v6084 = vrot.slane %v4224, %v6083
    %v6085 = vsel %vm5586, %v6084, %v6080
    %v6086 = vlaneseq
    %v6087 = vshrl.u32 %v6086, 7
    %v6088 = vsub.s32 %v5588, %v6087
    %v6089 = vrot.slane %v4226, %v6088
    %v6090 = vsel %vm5593, %v6089, %v6085
    %v6091 = vlaneseq
    %v6092 = vshrl.u32 %v6091, 7
    %v6093 = vsub.s32 %v5595, %v6092
    %v6094 = vrot.slane %v4228, %v6093
    %v6095 = vsel %vm5600, %v6094, %v6090
    %v6096 = vlaneseq
    %v6097 = vshrl.u32 %v6096, 7
    %v6098 = vsub.s32 %v5602, %v6097
    %v6099 = vrot.slane %v4230, %v6098
    %v6100 = vsel %vm5607, %v6099, %v6095
    %v6101 = vlaneseq
    %v6102 = vshrl.u32 %v6101, 7
    %v6103 = vsub.s32 %v5609, %v6102
    %v6104 = vrot.slane %v4232, %v6103
    %v6105 = vsel %vm5614, %v6104, %v6100
    %v6106 = vlaneseq
    %v6107 = vshrl.u32 %v6106, 7
    %v6108 = vsub.s32 %v5616, %v6107
    %v6109 = vrot.slane %v4234, %v6108
    %v6110 = vsel %vm5621, %v6109, %v6105
    %v6111 = vlaneseq
    %v6112 = vshrl.u32 %v6111, 7
    %v6113 = vsub.s32 %v5623, %v6112
    %v6114 = vrot.slane %v4236, %v6113
    %v6115 = vsel %vm5628, %v6114, %v6110
    %v6116 = vlaneseq
    %v6117 = vshrl.u32 %v6116, 7
    %v6118 = vsub.s32 %v5630, %v6117
    %v6119 = vrot.slane %v4238, %v6118
    %v6120 = vsel %vm5635, %v6119, %v6115
    %v6121 = vlaneseq
    %v6122 = vshrl.u32 %v6121, 7
    %v6123 = vsub.s32 %v5637, %v6122
    %v6124 = vrot.slane %v4240, %v6123
    %v6125 = vsel %vm5642, %v6124, %v6120
    %v6126 = vlaneseq
    %v6127 = vshrl.u32 %v6126, 7
    %v6128 = vsub.s32 %v5644, %v6127
    %v6129 = vrot.slane %v4242, %v6128
    %v6130 = vsel %vm5649, %v6129, %v6125
    %v6131 = vlaneseq
    %v6132 = vshrl.u32 %v6131, 7
    %v6133 = vsub.s32 %v5651, %v6132
    %v6134 = vrot.slane %v4244, %v6133
    %v6135 = vsel %vm5656, %v6134, %v6130
    %v6136 = vlaneseq
    %v6137 = vshrl.u32 %v6136, 7
    %v6138 = vsub.s32 %v5658, %v6137
    %v6139 = vrot.slane %v4246, %v6138
    %v6140 = vsel %vm5663, %v6139, %v6135
    %v6141 = vlaneseq
    %v6142 = vshrl.u32 %v6141, 7
    %v6143 = vsub.s32 %v5665, %v6142
    %v6144 = vrot.slane %v4248, %v6143
    %v6145 = vsel %vm5670, %v6144, %v6140
    %v6146 = vlaneseq
    %v6147 = vshrl.u32 %v6146, 7
    %v6148 = vsub.s32 %v5562, %v6147
    %v6149 = vrot.slane %v4250, %v6148
    %v6150 = vlaneseq
    %v6151 = vshrl.u32 %v6150, 7
    %v6152 = vsub.s32 %v5567, %v6151
    %v6153 = vrot.slane %v4252, %v6152
    %v6154 = vsel %vm5572, %v6153, %v6149
    %v6155 = vlaneseq
    %v6156 = vshrl.u32 %v6155, 7
    %v6157 = vsub.s32 %v5574, %v6156
    %v6158 = vrot.slane %v4254, %v6157
    %v6159 = vsel %vm5579, %v6158, %v6154
    %v6160 = vlaneseq
    %v6161 = vshrl.u32 %v6160, 7
    %v6162 = vsub.s32 %v5581, %v6161
    %v6163 = vrot.slane %v4256, %v6162
    %v6164 = vsel %vm5586, %v6163, %v6159
    %v6165 = vlaneseq
    %v6166 = vshrl.u32 %v6165, 7
    %v6167 = vsub.s32 %v5588, %v6166
    %v6168 = vrot.slane %v4258, %v6167
    %v6169 = vsel %vm5593, %v6168, %v6164
    %v6170 = vlaneseq
    %v6171 = vshrl.u32 %v6170, 7
    %v6172 = vsub.s32 %v5595, %v6171
    %v6173 = vrot.slane %v4260, %v6172
    %v6174 = vsel %vm5600, %v6173, %v6169
    %v6175 = vlaneseq
    %v6176 = vshrl.u32 %v6175, 7
    %v6177 = vsub.s32 %v5602, %v6176
    %v6178 = vrot.slane %v4262, %v6177
    %v6179 = vsel %vm5607, %v6178, %v6174
    %v6180 = vlaneseq
    %v6181 = vshrl.u32 %v6180, 7
    %v6182 = vsub.s32 %v5609, %v6181
    %v6183 = vrot.slane %v4264, %v6182
    %v6184 = vsel %vm5614, %v6183, %v6179
    %v6185 = vlaneseq
    %v6186 = vshrl.u32 %v6185, 7
    %v6187 = vsub.s32 %v5616, %v6186
    %v6188 = vrot.slane %v4266, %v6187
    %v6189 = vsel %vm5621, %v6188, %v6184
    %v6190 = vlaneseq
    %v6191 = vshrl.u32 %v6190, 7
    %v6192 = vsub.s32 %v5623, %v6191
    %v6193 = vrot.slane %v4268, %v6192
    %v6194 = vsel %vm5628, %v6193, %v6189
    %v6195 = vlaneseq
    %v6196 = vshrl.u32 %v6195, 7
    %v6197 = vsub.s32 %v5630, %v6196
    %v6198 = vrot.slane %v4270, %v6197
    %v6199 = vsel %vm5635, %v6198, %v6194
    %v6200 = vlaneseq
    %v6201 = vshrl.u32 %v6200, 7
    %v6202 = vsub.s32 %v5637, %v6201
    %v6203 = vrot.slane %v4272, %v6202
    %v6204 = vsel %vm5642, %v6203, %v6199
    %v6205 = vlaneseq
    %v6206 = vshrl.u32 %v6205, 7
    %v6207 = vsub.s32 %v5644, %v6206
    %v6208 = vrot.slane %v4274, %v6207
    %v6209 = vsel %vm5649, %v6208, %v6204
    %v6210 = vlaneseq
    %v6211 = vshrl.u32 %v6210, 7
    %v6212 = vsub.s32 %v5651, %v6211
    %v6213 = vrot.slane %v4276, %v6212
    %v6214 = vsel %vm5656, %v6213, %v6209
    %v6215 = vlaneseq
    %v6216 = vshrl.u32 %v6215, 7
    %v6217 = vsub.s32 %v5658, %v6216
    %v6218 = vrot.slane %v4278, %v6217
    %v6219 = vsel %vm5663, %v6218, %v6214
    %v6220 = vlaneseq
    %v6221 = vshrl.u32 %v6220, 7
    %v6222 = vsub.s32 %v5665, %v6221
    %v6223 = vrot.slane %v4280, %v6222
    %v6224 = vsel %vm5670, %v6223, %v6219
    %v6225 = vlaneseq
    %v6226 = vshrl.u32 %v6225, 7
    %v6227 = vsub.s32 %v5562, %v6226
    %v6228 = vrot.slane %v4282, %v6227
    %v6229 = vlaneseq
    %v6230 = vshrl.u32 %v6229, 7
    %v6231 = vsub.s32 %v5567, %v6230
    %v6232 = vrot.slane %v4284, %v6231
    %v6233 = vsel %vm5572, %v6232, %v6228
    %v6234 = vlaneseq
    %v6235 = vshrl.u32 %v6234, 7
    %v6236 = vsub.s32 %v5574, %v6235
    %v6237 = vrot.slane %v4286, %v6236
    %v6238 = vsel %vm5579, %v6237, %v6233
    %v6239 = vlaneseq
    %v6240 = vshrl.u32 %v6239, 7
    %v6241 = vsub.s32 %v5581, %v6240
    %v6242 = vrot.slane %v4288, %v6241
    %v6243 = vsel %vm5586, %v6242, %v6238
    %v6244 = vlaneseq
    %v6245 = vshrl.u32 %v6244, 7
    %v6246 = vsub.s32 %v5588, %v6245
    %v6247 = vrot.slane %v4290, %v6246
    %v6248 = vsel %vm5593, %v6247, %v6243
    %v6249 = vlaneseq
    %v6250 = vshrl.u32 %v6249, 7
    %v6251 = vsub.s32 %v5595, %v6250
    %v6252 = vrot.slane %v4292, %v6251
    %v6253 = vsel %vm5600, %v6252, %v6248
    %v6254 = vlaneseq
    %v6255 = vshrl.u32 %v6254, 7
    %v6256 = vsub.s32 %v5602, %v6255
    %v6257 = vrot.slane %v4294, %v6256
    %v6258 = vsel %vm5607, %v6257, %v6253
    %v6259 = vlaneseq
    %v6260 = vshrl.u32 %v6259, 7
    %v6261 = vsub.s32 %v5609, %v6260
    %v6262 = vrot.slane %v4296, %v6261
    %v6263 = vsel %vm5614, %v6262, %v6258
    %v6264 = vlaneseq
    %v6265 = vshrl.u32 %v6264, 7
    %v6266 = vsub.s32 %v5616, %v6265
    %v6267 = vrot.slane %v4298, %v6266
    %v6268 = vsel %vm5621, %v6267, %v6263
    %v6269 = vlaneseq
    %v6270 = vshrl.u32 %v6269, 7
    %v6271 = vsub.s32 %v5623, %v6270
    %v6272 = vrot.slane %v4300, %v6271
    %v6273 = vsel %vm5628, %v6272, %v6268
    %v6274 = vlaneseq
    %v6275 = vshrl.u32 %v6274, 7
    %v6276 = vsub.s32 %v5630, %v6275
    %v6277 = vrot.slane %v4302, %v6276
    %v6278 = vsel %vm5635, %v6277, %v6273
    %v6279 = vlaneseq
    %v6280 = vshrl.u32 %v6279, 7
    %v6281 = vsub.s32 %v5637, %v6280
    %v6282 = vrot.slane %v4304, %v6281
    %v6283 = vsel %vm5642, %v6282, %v6278
    %v6284 = vlaneseq
    %v6285 = vshrl.u32 %v6284, 7
    %v6286 = vsub.s32 %v5644, %v6285
    %v6287 = vrot.slane %v4306, %v6286
    %v6288 = vsel %vm5649, %v6287, %v6283
    %v6289 = vlaneseq
    %v6290 = vshrl.u32 %v6289, 7
    %v6291 = vsub.s32 %v5651, %v6290
    %v6292 = vrot.slane %v4308, %v6291
    %v6293 = vsel %vm5656, %v6292, %v6288
    %v6294 = vlaneseq
    %v6295 = vshrl.u32 %v6294, 7
    %v6296 = vsub.s32 %v5658, %v6295
    %v6297 = vrot.slane %v4310, %v6296
    %v6298 = vsel %vm5663, %v6297, %v6293
    %v6299 = vlaneseq
    %v6300 = vshrl.u32 %v6299, 7
    %v6301 = vsub.s32 %v5665, %v6300
    %v6302 = vrot.slane %v4312, %v6301
    %v6303 = vsel %vm5670, %v6302, %v6298
    %v6304 = vlaneseq
    %v6305 = vshrl.u32 %v6304, 7
    %v6306 = vsub.s32 %v5562, %v6305
    %v6307 = vrot.slane %v4314, %v6306
    %v6308 = vlaneseq
    %v6309 = vshrl.u32 %v6308, 7
    %v6310 = vsub.s32 %v5567, %v6309
    %v6311 = vrot.slane %v4316, %v6310
    %v6312 = vsel %vm5572, %v6311, %v6307
    %v6313 = vlaneseq
    %v6314 = vshrl.u32 %v6313, 7
    %v6315 = vsub.s32 %v5574, %v6314
    %v6316 = vrot.slane %v4318, %v6315
    %v6317 = vsel %vm5579, %v6316, %v6312
    %v6318 = vlaneseq
    %v6319 = vshrl.u32 %v6318, 7
    %v6320 = vsub.s32 %v5581, %v6319
    %v6321 = vrot.slane %v4320, %v6320
    %v6322 = vsel %vm5586, %v6321, %v6317
    %v6323 = vlaneseq
    %v6324 = vshrl.u32 %v6323, 7
    %v6325 = vsub.s32 %v5588, %v6324
    %v6326 = vrot.slane %v4322, %v6325
    %v6327 = vsel %vm5593, %v6326, %v6322
    %v6328 = vlaneseq
    %v6329 = vshrl.u32 %v6328, 7
    %v6330 = vsub.s32 %v5595, %v6329
    %v6331 = vrot.slane %v4324, %v6330
    %v6332 = vsel %vm5600, %v6331, %v6327
    %v6333 = vlaneseq
    %v6334 = vshrl.u32 %v6333, 7
    %v6335 = vsub.s32 %v5602, %v6334
    %v6336 = vrot.slane %v4326, %v6335
    %v6337 = vsel %vm5607, %v6336, %v6332
    %v6338 = vlaneseq
    %v6339 = vshrl.u32 %v6338, 7
    %v6340 = vsub.s32 %v5609, %v6339
    %v6341 = vrot.slane %v4328, %v6340
    %v6342 = vsel %vm5614, %v6341, %v6337
    %v6343 = vlaneseq
    %v6344 = vshrl.u32 %v6343, 7
    %v6345 = vsub.s32 %v5616, %v6344
    %v6346 = vrot.slane %v4330, %v6345
    %v6347 = vsel %vm5621, %v6346, %v6342
    %v6348 = vlaneseq
    %v6349 = vshrl.u32 %v6348, 7
    %v6350 = vsub.s32 %v5623, %v6349
    %v6351 = vrot.slane %v4332, %v6350
    %v6352 = vsel %vm5628, %v6351, %v6347
    %v6353 = vlaneseq
    %v6354 = vshrl.u32 %v6353, 7
    %v6355 = vsub.s32 %v5630, %v6354
    %v6356 = vrot.slane %v4334, %v6355
    %v6357 = vsel %vm5635, %v6356, %v6352
    %v6358 = vlaneseq
    %v6359 = vshrl.u32 %v6358, 7
    %v6360 = vsub.s32 %v5637, %v6359
    %v6361 = vrot.slane %v4336, %v6360
    %v6362 = vsel %vm5642, %v6361, %v6357
    %v6363 = vlaneseq
    %v6364 = vshrl.u32 %v6363, 7
    %v6365 = vsub.s32 %v5644, %v6364
    %v6366 = vrot.slane %v4338, %v6365
    %v6367 = vsel %vm5649, %v6366, %v6362
    %v6368 = vlaneseq
    %v6369 = vshrl.u32 %v6368, 7
    %v6370 = vsub.s32 %v5651, %v6369
    %v6371 = vrot.slane %v4340, %v6370
    %v6372 = vsel %vm5656, %v6371, %v6367
    %v6373 = vlaneseq
    %v6374 = vshrl.u32 %v6373, 7
    %v6375 = vsub.s32 %v5658, %v6374
    %v6376 = vrot.slane %v4342, %v6375
    %v6377 = vsel %vm5663, %v6376, %v6372
    %v6378 = vlaneseq
    %v6379 = vshrl.u32 %v6378, 7
    %v6380 = vsub.s32 %v5665, %v6379
    %v6381 = vrot.slane %v4344, %v6380
    %v6382 = vsel %vm5670, %v6381, %v6377
    %v6383 = vlaneseq
    %v6384 = vshrl.u32 %v6383, 7
    %v6385 = vsub.s32 %v5562, %v6384
    %v6386 = vrot.slane %v4346, %v6385
    %v6387 = vlaneseq
    %v6388 = vshrl.u32 %v6387, 7
    %v6389 = vsub.s32 %v5567, %v6388
    %v6390 = vrot.slane %v4348, %v6389
    %v6391 = vsel %vm5572, %v6390, %v6386
    %v6392 = vlaneseq
    %v6393 = vshrl.u32 %v6392, 7
    %v6394 = vsub.s32 %v5574, %v6393
    %v6395 = vrot.slane %v4350, %v6394
    %v6396 = vsel %vm5579, %v6395, %v6391
    %v6397 = vlaneseq
    %v6398 = vshrl.u32 %v6397, 7
    %v6399 = vsub.s32 %v5581, %v6398
    %v6400 = vrot.slane %v4352, %v6399
    %v6401 = vsel %vm5586, %v6400, %v6396
    %v6402 = vlaneseq
    %v6403 = vshrl.u32 %v6402, 7
    %v6404 = vsub.s32 %v5588, %v6403
    %v6405 = vrot.slane %v4354, %v6404
    %v6406 = vsel %vm5593, %v6405, %v6401
    %v6407 = vlaneseq
    %v6408 = vshrl.u32 %v6407, 7
    %v6409 = vsub.s32 %v5595, %v6408
    %v6410 = vrot.slane %v4356, %v6409
    %v6411 = vsel %vm5600, %v6410, %v6406
    %v6412 = vlaneseq
    %v6413 = vshrl.u32 %v6412, 7
    %v6414 = vsub.s32 %v5602, %v6413
    %v6415 = vrot.slane %v4358, %v6414
    %v6416 = vsel %vm5607, %v6415, %v6411
    %v6417 = vlaneseq
    %v6418 = vshrl.u32 %v6417, 7
    %v6419 = vsub.s32 %v5609, %v6418
    %v6420 = vrot.slane %v4360, %v6419
    %v6421 = vsel %vm5614, %v6420, %v6416
    %v6422 = vlaneseq
    %v6423 = vshrl.u32 %v6422, 7
    %v6424 = vsub.s32 %v5616, %v6423
    %v6425 = vrot.slane %v4362, %v6424
    %v6426 = vsel %vm5621, %v6425, %v6421
    %v6427 = vlaneseq
    %v6428 = vshrl.u32 %v6427, 7
    %v6429 = vsub.s32 %v5623, %v6428
    %v6430 = vrot.slane %v4364, %v6429
    %v6431 = vsel %vm5628, %v6430, %v6426
    %v6432 = vlaneseq
    %v6433 = vshrl.u32 %v6432, 7
    %v6434 = vsub.s32 %v5630, %v6433
    %v6435 = vrot.slane %v4366, %v6434
    %v6436 = vsel %vm5635, %v6435, %v6431
    %v6437 = vlaneseq
    %v6438 = vshrl.u32 %v6437, 7
    %v6439 = vsub.s32 %v5637, %v6438
    %v6440 = vrot.slane %v4368, %v6439
    %v6441 = vsel %vm5642, %v6440, %v6436
    %v6442 = vlaneseq
    %v6443 = vshrl.u32 %v6442, 7
    %v6444 = vsub.s32 %v5644, %v6443
    %v6445 = vrot.slane %v4370, %v6444
    %v6446 = vsel %vm5649, %v6445, %v6441
    %v6447 = vlaneseq
    %v6448 = vshrl.u32 %v6447, 7
    %v6449 = vsub.s32 %v5651, %v6448
    %v6450 = vrot.slane %v4372, %v6449
    %v6451 = vsel %vm5656, %v6450, %v6446
    %v6452 = vlaneseq
    %v6453 = vshrl.u32 %v6452, 7
    %v6454 = vsub.s32 %v5658, %v6453
    %v6455 = vrot.slane %v4374, %v6454
    %v6456 = vsel %vm5663, %v6455, %v6451
    %v6457 = vlaneseq
    %v6458 = vshrl.u32 %v6457, 7
    %v6459 = vsub.s32 %v5665, %v6458
    %v6460 = vrot.slane %v4376, %v6459
    %v6461 = vsel %vm5670, %v6460, %v6456
    %v6462 = vlaneseq
    %v6463 = vshrl.u32 %v6462, 7
    %v6464 = vsub.s32 %v5562, %v6463
    %v6465 = vrot.slane %v4378, %v6464
    %v6466 = vlaneseq
    %v6467 = vshrl.u32 %v6466, 7
    %v6468 = vsub.s32 %v5567, %v6467
    %v6469 = vrot.slane %v4380, %v6468
    %v6470 = vsel %vm5572, %v6469, %v6465
    %v6471 = vlaneseq
    %v6472 = vshrl.u32 %v6471, 7
    %v6473 = vsub.s32 %v5574, %v6472
    %v6474 = vrot.slane %v4382, %v6473
    %v6475 = vsel %vm5579, %v6474, %v6470
    %v6476 = vlaneseq
    %v6477 = vshrl.u32 %v6476, 7
    %v6478 = vsub.s32 %v5581, %v6477
    %v6479 = vrot.slane %v4384, %v6478
    %v6480 = vsel %vm5586, %v6479, %v6475
    %v6481 = vlaneseq
    %v6482 = vshrl.u32 %v6481, 7
    %v6483 = vsub.s32 %v5588, %v6482
    %v6484 = vrot.slane %v4386, %v6483
    %v6485 = vsel %vm5593, %v6484, %v6480
    %v6486 = vlaneseq
    %v6487 = vshrl.u32 %v6486, 7
    %v6488 = vsub.s32 %v5595, %v6487
    %v6489 = vrot.slane %v4388, %v6488
    %v6490 = vsel %vm5600, %v6489, %v6485
    %v6491 = vlaneseq
    %v6492 = vshrl.u32 %v6491, 7
    %v6493 = vsub.s32 %v5602, %v6492
    %v6494 = vrot.slane %v4390, %v6493
    %v6495 = vsel %vm5607, %v6494, %v6490
    %v6496 = vlaneseq
    %v6497 = vshrl.u32 %v6496, 7
    %v6498 = vsub.s32 %v5609, %v6497
    %v6499 = vrot.slane %v4392, %v6498
    %v6500 = vsel %vm5614, %v6499, %v6495
    %v6501 = vlaneseq
    %v6502 = vshrl.u32 %v6501, 7
    %v6503 = vsub.s32 %v5616, %v6502
    %v6504 = vrot.slane %v4394, %v6503
    %v6505 = vsel %vm5621, %v6504, %v6500
    %v6506 = vlaneseq
    %v6507 = vshrl.u32 %v6506, 7
    %v6508 = vsub.s32 %v5623, %v6507
    %v6509 = vrot.slane %v4396, %v6508
    %v6510 = vsel %vm5628, %v6509, %v6505
    %v6511 = vlaneseq
    %v6512 = vshrl.u32 %v6511, 7
    %v6513 = vsub.s32 %v5630, %v6512
    %v6514 = vrot.slane %v4398, %v6513
    %v6515 = vsel %vm5635, %v6514, %v6510
    %v6516 = vlaneseq
    %v6517 = vshrl.u32 %v6516, 7
    %v6518 = vsub.s32 %v5637, %v6517
    %v6519 = vrot.slane %v4400, %v6518
    %v6520 = vsel %vm5642, %v6519, %v6515
    %v6521 = vlaneseq
    %v6522 = vshrl.u32 %v6521, 7
    %v6523 = vsub.s32 %v5644, %v6522
    %v6524 = vrot.slane %v4402, %v6523
    %v6525 = vsel %vm5649, %v6524, %v6520
    %v6526 = vlaneseq
    %v6527 = vshrl.u32 %v6526, 7
    %v6528 = vsub.s32 %v5651, %v6527
    %v6529 = vrot.slane %v4404, %v6528
    %v6530 = vsel %vm5656, %v6529, %v6525
    %v6531 = vlaneseq
    %v6532 = vshrl.u32 %v6531, 7
    %v6533 = vsub.s32 %v5658, %v6532
    %v6534 = vrot.slane %v4406, %v6533
    %v6535 = vsel %vm5663, %v6534, %v6530
    %v6536 = vlaneseq
    %v6537 = vshrl.u32 %v6536, 7
    %v6538 = vsub.s32 %v5665, %v6537
    %v6539 = vrot.slane %v4408, %v6538
    %v6540 = vsel %vm5670, %v6539, %v6535
    %v6541 = vlaneseq
    %v6542 = vshrl.u32 %v6541, 7
    %v6543 = vsub.s32 %v5562, %v6542
    %v6544 = vrot.slane %v4410, %v6543
    %v6545 = vlaneseq
    %v6546 = vshrl.u32 %v6545, 7
    %v6547 = vsub.s32 %v5567, %v6546
    %v6548 = vrot.slane %v4412, %v6547
    %v6549 = vsel %vm5572, %v6548, %v6544
    %v6550 = vlaneseq
    %v6551 = vshrl.u32 %v6550, 7
    %v6552 = vsub.s32 %v5574, %v6551
    %v6553 = vrot.slane %v4414, %v6552
    %v6554 = vsel %vm5579, %v6553, %v6549
    %v6555 = vlaneseq
    %v6556 = vshrl.u32 %v6555, 7
    %v6557 = vsub.s32 %v5581, %v6556
    %v6558 = vrot.slane %v4416, %v6557
    %v6559 = vsel %vm5586, %v6558, %v6554
    %v6560 = vlaneseq
    %v6561 = vshrl.u32 %v6560, 7
    %v6562 = vsub.s32 %v5588, %v6561
    %v6563 = vrot.slane %v4418, %v6562
    %v6564 = vsel %vm5593, %v6563, %v6559
    %v6565 = vlaneseq
    %v6566 = vshrl.u32 %v6565, 7
    %v6567 = vsub.s32 %v5595, %v6566
    %v6568 = vrot.slane %v4420, %v6567
    %v6569 = vsel %vm5600, %v6568, %v6564
    %v6570 = vlaneseq
    %v6571 = vshrl.u32 %v6570, 7
    %v6572 = vsub.s32 %v5602, %v6571
    %v6573 = vrot.slane %v4422, %v6572
    %v6574 = vsel %vm5607, %v6573, %v6569
    %v6575 = vlaneseq
    %v6576 = vshrl.u32 %v6575, 7
    %v6577 = vsub.s32 %v5609, %v6576
    %v6578 = vrot.slane %v4424, %v6577
    %v6579 = vsel %vm5614, %v6578, %v6574
    %v6580 = vlaneseq
    %v6581 = vshrl.u32 %v6580, 7
    %v6582 = vsub.s32 %v5616, %v6581
    %v6583 = vrot.slane %v4426, %v6582
    %v6584 = vsel %vm5621, %v6583, %v6579
    %v6585 = vlaneseq
    %v6586 = vshrl.u32 %v6585, 7
    %v6587 = vsub.s32 %v5623, %v6586
    %v6588 = vrot.slane %v4428, %v6587
    %v6589 = vsel %vm5628, %v6588, %v6584
    %v6590 = vlaneseq
    %v6591 = vshrl.u32 %v6590, 7
    %v6592 = vsub.s32 %v5630, %v6591
    %v6593 = vrot.slane %v4430, %v6592
    %v6594 = vsel %vm5635, %v6593, %v6589
    %v6595 = vlaneseq
    %v6596 = vshrl.u32 %v6595, 7
    %v6597 = vsub.s32 %v5637, %v6596
    %v6598 = vrot.slane %v4432, %v6597
    %v6599 = vsel %vm5642, %v6598, %v6594
    %v6600 = vlaneseq
    %v6601 = vshrl.u32 %v6600, 7
    %v6602 = vsub.s32 %v5644, %v6601
    %v6603 = vrot.slane %v4434, %v6602
    %v6604 = vsel %vm5649, %v6603, %v6599
    %v6605 = vlaneseq
    %v6606 = vshrl.u32 %v6605, 7
    %v6607 = vsub.s32 %v5651, %v6606
    %v6608 = vrot.slane %v4436, %v6607
    %v6609 = vsel %vm5656, %v6608, %v6604
    %v6610 = vlaneseq
    %v6611 = vshrl.u32 %v6610, 7
    %v6612 = vsub.s32 %v5658, %v6611
    %v6613 = vrot.slane %v4438, %v6612
    %v6614 = vsel %vm5663, %v6613, %v6609
    %v6615 = vlaneseq
    %v6616 = vshrl.u32 %v6615, 7
    %v6617 = vsub.s32 %v5665, %v6616
    %v6618 = vrot.slane %v4440, %v6617
    %v6619 = vsel %vm5670, %v6618, %v6614
    %v6620 = vlaneseq
    %v6621 = vshrl.u32 %v6620, 7
    %v6622 = vsub.s32 %v5562, %v6621
    %v6623 = vrot.slane %v4442, %v6622
    %v6624 = vlaneseq
    %v6625 = vshrl.u32 %v6624, 7
    %v6626 = vsub.s32 %v5567, %v6625
    %v6627 = vrot.slane %v4444, %v6626
    %v6628 = vsel %vm5572, %v6627, %v6623
    %v6629 = vlaneseq
    %v6630 = vshrl.u32 %v6629, 7
    %v6631 = vsub.s32 %v5574, %v6630
    %v6632 = vrot.slane %v4446, %v6631
    %v6633 = vsel %vm5579, %v6632, %v6628
    %v6634 = vlaneseq
    %v6635 = vshrl.u32 %v6634, 7
    %v6636 = vsub.s32 %v5581, %v6635
    %v6637 = vrot.slane %v4448, %v6636
    %v6638 = vsel %vm5586, %v6637, %v6633
    %v6639 = vlaneseq
    %v6640 = vshrl.u32 %v6639, 7
    %v6641 = vsub.s32 %v5588, %v6640
    %v6642 = vrot.slane %v4450, %v6641
    %v6643 = vsel %vm5593, %v6642, %v6638
    %v6644 = vlaneseq
    %v6645 = vshrl.u32 %v6644, 7
    %v6646 = vsub.s32 %v5595, %v6645
    %v6647 = vrot.slane %v4452, %v6646
    %v6648 = vsel %vm5600, %v6647, %v6643
    %v6649 = vlaneseq
    %v6650 = vshrl.u32 %v6649, 7
    %v6651 = vsub.s32 %v5602, %v6650
    %v6652 = vrot.slane %v4454, %v6651
    %v6653 = vsel %vm5607, %v6652, %v6648
    %v6654 = vlaneseq
    %v6655 = vshrl.u32 %v6654, 7
    %v6656 = vsub.s32 %v5609, %v6655
    %v6657 = vrot.slane %v4456, %v6656
    %v6658 = vsel %vm5614, %v6657, %v6653
    %v6659 = vlaneseq
    %v6660 = vshrl.u32 %v6659, 7
    %v6661 = vsub.s32 %v5616, %v6660
    %v6662 = vrot.slane %v4458, %v6661
    %v6663 = vsel %vm5621, %v6662, %v6658
    %v6664 = vlaneseq
    %v6665 = vshrl.u32 %v6664, 7
    %v6666 = vsub.s32 %v5623, %v6665
    %v6667 = vrot.slane %v4460, %v6666
    %v6668 = vsel %vm5628, %v6667, %v6663
    %v6669 = vlaneseq
    %v6670 = vshrl.u32 %v6669, 7
    %v6671 = vsub.s32 %v5630, %v6670
    %v6672 = vrot.slane %v4462, %v6671
    %v6673 = vsel %vm5635, %v6672, %v6668
    %v6674 = vlaneseq
    %v6675 = vshrl.u32 %v6674, 7
    %v6676 = vsub.s32 %v5637, %v6675
    %v6677 = vrot.slane %v4464, %v6676
    %v6678 = vsel %vm5642, %v6677, %v6673
    %v6679 = vlaneseq
    %v6680 = vshrl.u32 %v6679, 7
    %v6681 = vsub.s32 %v5644, %v6680
    %v6682 = vrot.slane %v4466, %v6681
    %v6683 = vsel %vm5649, %v6682, %v6678
    %v6684 = vlaneseq
    %v6685 = vshrl.u32 %v6684, 7
    %v6686 = vsub.s32 %v5651, %v6685
    %v6687 = vrot.slane %v4468, %v6686
    %v6688 = vsel %vm5656, %v6687, %v6683
    %v6689 = vlaneseq
    %v6690 = vshrl.u32 %v6689, 7
    %v6691 = vsub.s32 %v5658, %v6690
    %v6692 = vrot.slane %v4470, %v6691
    %v6693 = vsel %vm5663, %v6692, %v6688
    %v6694 = vlaneseq
    %v6695 = vshrl.u32 %v6694, 7
    %v6696 = vsub.s32 %v5665, %v6695
    %v6697 = vrot.slane %v4472, %v6696
    %v6698 = vsel %vm5670, %v6697, %v6693
    %v6699 = vlaneseq
    %v6700 = vshrl.u32 %v6699, 7
    %v6701 = vsub.s32 %v5562, %v6700
    %v6702 = vrot.slane %v4474, %v6701
    %v6703 = vlaneseq
    %v6704 = vshrl.u32 %v6703, 7
    %v6705 = vsub.s32 %v5567, %v6704
    %v6706 = vrot.slane %v4476, %v6705
    %v6707 = vsel %vm5572, %v6706, %v6702
    %v6708 = vlaneseq
    %v6709 = vshrl.u32 %v6708, 7
    %v6710 = vsub.s32 %v5574, %v6709
    %v6711 = vrot.slane %v4478, %v6710
    %v6712 = vsel %vm5579, %v6711, %v6707
    %v6713 = vlaneseq
    %v6714 = vshrl.u32 %v6713, 7
    %v6715 = vsub.s32 %v5581, %v6714
    %v6716 = vrot.slane %v4480, %v6715
    %v6717 = vsel %vm5586, %v6716, %v6712
    %v6718 = vlaneseq
    %v6719 = vshrl.u32 %v6718, 7
    %v6720 = vsub.s32 %v5588, %v6719
    %v6721 = vrot.slane %v4482, %v6720
    %v6722 = vsel %vm5593, %v6721, %v6717
    %v6723 = vlaneseq
    %v6724 = vshrl.u32 %v6723, 7
    %v6725 = vsub.s32 %v5595, %v6724
    %v6726 = vrot.slane %v4484, %v6725
    %v6727 = vsel %vm5600, %v6726, %v6722
    %v6728 = vlaneseq
    %v6729 = vshrl.u32 %v6728, 7
    %v6730 = vsub.s32 %v5602, %v6729
    %v6731 = vrot.slane %v4486, %v6730
    %v6732 = vsel %vm5607, %v6731, %v6727
    %v6733 = vlaneseq
    %v6734 = vshrl.u32 %v6733, 7
    %v6735 = vsub.s32 %v5609, %v6734
    %v6736 = vrot.slane %v4488, %v6735
    %v6737 = vsel %vm5614, %v6736, %v6732
    %v6738 = vlaneseq
    %v6739 = vshrl.u32 %v6738, 7
    %v6740 = vsub.s32 %v5616, %v6739
    %v6741 = vrot.slane %v4490, %v6740
    %v6742 = vsel %vm5621, %v6741, %v6737
    %v6743 = vlaneseq
    %v6744 = vshrl.u32 %v6743, 7
    %v6745 = vsub.s32 %v5623, %v6744
    %v6746 = vrot.slane %v4492, %v6745
    %v6747 = vsel %vm5628, %v6746, %v6742
    %v6748 = vlaneseq
    %v6749 = vshrl.u32 %v6748, 7
    %v6750 = vsub.s32 %v5630, %v6749
    %v6751 = vrot.slane %v4494, %v6750
    %v6752 = vsel %vm5635, %v6751, %v6747
    %v6753 = vlaneseq
    %v6754 = vshrl.u32 %v6753, 7
    %v6755 = vsub.s32 %v5637, %v6754
    %v6756 = vrot.slane %v4496, %v6755
    %v6757 = vsel %vm5642, %v6756, %v6752
    %v6758 = vlaneseq
    %v6759 = vshrl.u32 %v6758, 7
    %v6760 = vsub.s32 %v5644, %v6759
    %v6761 = vrot.slane %v4498, %v6760
    %v6762 = vsel %vm5649, %v6761, %v6757
    %v6763 = vlaneseq
    %v6764 = vshrl.u32 %v6763, 7
    %v6765 = vsub.s32 %v5651, %v6764
    %v6766 = vrot.slane %v4500, %v6765
    %v6767 = vsel %vm5656, %v6766, %v6762
    %v6768 = vlaneseq
    %v6769 = vshrl.u32 %v6768, 7
    %v6770 = vsub.s32 %v5658, %v6769
    %v6771 = vrot.slane %v4502, %v6770
    %v6772 = vsel %vm5663, %v6771, %v6767
    %v6773 = vlaneseq
    %v6774 = vshrl.u32 %v6773, 7
    %v6775 = vsub.s32 %v5665, %v6774
    %v6776 = vrot.slane %v4504, %v6775
    %v6777 = vsel %vm5670, %v6776, %v6772
    %v6778 = vlaneseq
    %v6779 = vshrl.u32 %v6778, 7
    %v6780 = vsub.s32 %v5562, %v6779
    %v6781 = vrot.slane %v4506, %v6780
    %v6782 = vlaneseq
    %v6783 = vshrl.u32 %v6782, 7
    %v6784 = vsub.s32 %v5567, %v6783
    %v6785 = vrot.slane %v4508, %v6784
    %v6786 = vsel %vm5572, %v6785, %v6781
    %v6787 = vlaneseq
    %v6788 = vshrl.u32 %v6787, 7
    %v6789 = vsub.s32 %v5574, %v6788
    %v6790 = vrot.slane %v4510, %v6789
    %v6791 = vsel %vm5579, %v6790, %v6786
    %v6792 = vlaneseq
    %v6793 = vshrl.u32 %v6792, 7
    %v6794 = vsub.s32 %v5581, %v6793
    %v6795 = vrot.slane %v4512, %v6794
    %v6796 = vsel %vm5586, %v6795, %v6791
    %v6797 = vlaneseq
    %v6798 = vshrl.u32 %v6797, 7
    %v6799 = vsub.s32 %v5588, %v6798
    %v6800 = vrot.slane %v4514, %v6799
    %v6801 = vsel %vm5593, %v6800, %v6796
    %v6802 = vlaneseq
    %v6803 = vshrl.u32 %v6802, 7
    %v6804 = vsub.s32 %v5595, %v6803
    %v6805 = vrot.slane %v4516, %v6804
    %v6806 = vsel %vm5600, %v6805, %v6801
    %v6807 = vlaneseq
    %v6808 = vshrl.u32 %v6807, 7
    %v6809 = vsub.s32 %v5602, %v6808
    %v6810 = vrot.slane %v4518, %v6809
    %v6811 = vsel %vm5607, %v6810, %v6806
    %v6812 = vlaneseq
    %v6813 = vshrl.u32 %v6812, 7
    %v6814 = vsub.s32 %v5609, %v6813
    %v6815 = vrot.slane %v4520, %v6814
    %v6816 = vsel %vm5614, %v6815, %v6811
    %v6817 = vlaneseq
    %v6818 = vshrl.u32 %v6817, 7
    %v6819 = vsub.s32 %v5616, %v6818
    %v6820 = vrot.slane %v4522, %v6819
    %v6821 = vsel %vm5621, %v6820, %v6816
    %v6822 = vlaneseq
    %v6823 = vshrl.u32 %v6822, 7
    %v6824 = vsub.s32 %v5623, %v6823
    %v6825 = vrot.slane %v4524, %v6824
    %v6826 = vsel %vm5628, %v6825, %v6821
    %v6827 = vlaneseq
    %v6828 = vshrl.u32 %v6827, 7
    %v6829 = vsub.s32 %v5630, %v6828
    %v6830 = vrot.slane %v4526, %v6829
    %v6831 = vsel %vm5635, %v6830, %v6826
    %v6832 = vlaneseq
    %v6833 = vshrl.u32 %v6832, 7
    %v6834 = vsub.s32 %v5637, %v6833
    %v6835 = vrot.slane %v4528, %v6834
    %v6836 = vsel %vm5642, %v6835, %v6831
    %v6837 = vlaneseq
    %v6838 = vshrl.u32 %v6837, 7
    %v6839 = vsub.s32 %v5644, %v6838
    %v6840 = vrot.slane %v4530, %v6839
    %v6841 = vsel %vm5649, %v6840, %v6836
    %v6842 = vlaneseq
    %v6843 = vshrl.u32 %v6842, 7
    %v6844 = vsub.s32 %v5651, %v6843
    %v6845 = vrot.slane %v4532, %v6844
    %v6846 = vsel %vm5656, %v6845, %v6841
    %v6847 = vlaneseq
    %v6848 = vshrl.u32 %v6847, 7
    %v6849 = vsub.s32 %v5658, %v6848
    %v6850 = vrot.slane %v4534, %v6849
    %v6851 = vsel %vm5663, %v6850, %v6846
    %v6852 = vlaneseq
    %v6853 = vshrl.u32 %v6852, 7
    %v6854 = vsub.s32 %v5665, %v6853
    %v6855 = vrot.slane %v4536, %v6854
    %v6856 = vsel %vm5670, %v6855, %v6851
    %v6857 = vlaneseq
    %v6858 = vshrl.u32 %v6857, 7
    %v6859 = vsub.s32 %v5562, %v6858
    %v6860 = vrot.slane %v4538, %v6859
    %v6861 = vlaneseq
    %v6862 = vshrl.u32 %v6861, 7
    %v6863 = vsub.s32 %v5567, %v6862
    %v6864 = vrot.slane %v4540, %v6863
    %v6865 = vsel %vm5572, %v6864, %v6860
    %v6866 = vlaneseq
    %v6867 = vshrl.u32 %v6866, 7
    %v6868 = vsub.s32 %v5574, %v6867
    %v6869 = vrot.slane %v4542, %v6868
    %v6870 = vsel %vm5579, %v6869, %v6865
    %v6871 = vlaneseq
    %v6872 = vshrl.u32 %v6871, 7
    %v6873 = vsub.s32 %v5581, %v6872
    %v6874 = vrot.slane %v4544, %v6873
    %v6875 = vsel %vm5586, %v6874, %v6870
    %v6876 = vlaneseq
    %v6877 = vshrl.u32 %v6876, 7
    %v6878 = vsub.s32 %v5588, %v6877
    %v6879 = vrot.slane %v4546, %v6878
    %v6880 = vsel %vm5593, %v6879, %v6875
    %v6881 = vlaneseq
    %v6882 = vshrl.u32 %v6881, 7
    %v6883 = vsub.s32 %v5595, %v6882
    %v6884 = vrot.slane %v4548, %v6883
    %v6885 = vsel %vm5600, %v6884, %v6880
    %v6886 = vlaneseq
    %v6887 = vshrl.u32 %v6886, 7
    %v6888 = vsub.s32 %v5602, %v6887
    %v6889 = vrot.slane %v4550, %v6888
    %v6890 = vsel %vm5607, %v6889, %v6885
    %v6891 = vlaneseq
    %v6892 = vshrl.u32 %v6891, 7
    %v6893 = vsub.s32 %v5609, %v6892
    %v6894 = vrot.slane %v4552, %v6893
    %v6895 = vsel %vm5614, %v6894, %v6890
    %v6896 = vlaneseq
    %v6897 = vshrl.u32 %v6896, 7
    %v6898 = vsub.s32 %v5616, %v6897
    %v6899 = vrot.slane %v4554, %v6898
    %v6900 = vsel %vm5621, %v6899, %v6895
    %v6901 = vlaneseq
    %v6902 = vshrl.u32 %v6901, 7
    %v6903 = vsub.s32 %v5623, %v6902
    %v6904 = vrot.slane %v4556, %v6903
    %v6905 = vsel %vm5628, %v6904, %v6900
    %v6906 = vlaneseq
    %v6907 = vshrl.u32 %v6906, 7
    %v6908 = vsub.s32 %v5630, %v6907
    %v6909 = vrot.slane %v4558, %v6908
    %v6910 = vsel %vm5635, %v6909, %v6905
    %v6911 = vlaneseq
    %v6912 = vshrl.u32 %v6911, 7
    %v6913 = vsub.s32 %v5637, %v6912
    %v6914 = vrot.slane %v4560, %v6913
    %v6915 = vsel %vm5642, %v6914, %v6910
    %v6916 = vlaneseq
    %v6917 = vshrl.u32 %v6916, 7
    %v6918 = vsub.s32 %v5644, %v6917
    %v6919 = vrot.slane %v4562, %v6918
    %v6920 = vsel %vm5649, %v6919, %v6915
    %v6921 = vlaneseq
    %v6922 = vshrl.u32 %v6921, 7
    %v6923 = vsub.s32 %v5651, %v6922
    %v6924 = vrot.slane %v4564, %v6923
    %v6925 = vsel %vm5656, %v6924, %v6920
    %v6926 = vlaneseq
    %v6927 = vshrl.u32 %v6926, 7
    %v6928 = vsub.s32 %v5658, %v6927
    %v6929 = vrot.slane %v4566, %v6928
    %v6930 = vsel %vm5663, %v6929, %v6925
    %v6931 = vlaneseq
    %v6932 = vshrl.u32 %v6931, 7
    %v6933 = vsub.s32 %v5665, %v6932
    %v6934 = vrot.slane %v4568, %v6933
    %v6935 = vsel %vm5670, %v6934, %v6930
    %v6936 = vlaneseq
    %v6937 = vshrl.u32 %v6936, 7
    %v6938 = vsub.s32 %v5562, %v6937
    %v6939 = vrot.slane %v4570, %v6938
    %v6940 = vlaneseq
    %v6941 = vshrl.u32 %v6940, 7
    %v6942 = vsub.s32 %v5567, %v6941
    %v6943 = vrot.slane %v4572, %v6942
    %v6944 = vsel %vm5572, %v6943, %v6939
    %v6945 = vlaneseq
    %v6946 = vshrl.u32 %v6945, 7
    %v6947 = vsub.s32 %v5574, %v6946
    %v6948 = vrot.slane %v4574, %v6947
    %v6949 = vsel %vm5579, %v6948, %v6944
    %v6950 = vlaneseq
    %v6951 = vshrl.u32 %v6950, 7
    %v6952 = vsub.s32 %v5581, %v6951
    %v6953 = vrot.slane %v4576, %v6952
    %v6954 = vsel %vm5586, %v6953, %v6949
    %v6955 = vlaneseq
    %v6956 = vshrl.u32 %v6955, 7
    %v6957 = vsub.s32 %v5588, %v6956
    %v6958 = vrot.slane %v4578, %v6957
    %v6959 = vsel %vm5593, %v6958, %v6954
    %v6960 = vlaneseq
    %v6961 = vshrl.u32 %v6960, 7
    %v6962 = vsub.s32 %v5595, %v6961
    %v6963 = vrot.slane %v4580, %v6962
    %v6964 = vsel %vm5600, %v6963, %v6959
    %v6965 = vlaneseq
    %v6966 = vshrl.u32 %v6965, 7
    %v6967 = vsub.s32 %v5602, %v6966
    %v6968 = vrot.slane %v4582, %v6967
    %v6969 = vsel %vm5607, %v6968, %v6964
    %v6970 = vlaneseq
    %v6971 = vshrl.u32 %v6970, 7
    %v6972 = vsub.s32 %v5609, %v6971
    %v6973 = vrot.slane %v4584, %v6972
    %v6974 = vsel %vm5614, %v6973, %v6969
    %v6975 = vlaneseq
    %v6976 = vshrl.u32 %v6975, 7
    %v6977 = vsub.s32 %v5616, %v6976
    %v6978 = vrot.slane %v4586, %v6977
    %v6979 = vsel %vm5621, %v6978, %v6974
    %v6980 = vlaneseq
    %v6981 = vshrl.u32 %v6980, 7
    %v6982 = vsub.s32 %v5623, %v6981
    %v6983 = vrot.slane %v4588, %v6982
    %v6984 = vsel %vm5628, %v6983, %v6979
    %v6985 = vlaneseq
    %v6986 = vshrl.u32 %v6985, 7
    %v6987 = vsub.s32 %v5630, %v6986
    %v6988 = vrot.slane %v4590, %v6987
    %v6989 = vsel %vm5635, %v6988, %v6984
    %v6990 = vlaneseq
    %v6991 = vshrl.u32 %v6990, 7
    %v6992 = vsub.s32 %v5637, %v6991
    %v6993 = vrot.slane %v4592, %v6992
    %v6994 = vsel %vm5642, %v6993, %v6989
    %v6995 = vlaneseq
    %v6996 = vshrl.u32 %v6995, 7
    %v6997 = vsub.s32 %v5644, %v6996
    %v6998 = vrot.slane %v4594, %v6997
    %v6999 = vsel %vm5649, %v6998, %v6994
    %v7000 = vlaneseq
    %v7001 = vshrl.u32 %v7000, 7
    %v7002 = vsub.s32 %v5651, %v7001
    %v7003 = vrot.slane %v4596, %v7002
    %v7004 = vsel %vm5656, %v7003, %v6999
    %v7005 = vlaneseq
    %v7006 = vshrl.u32 %v7005, 7
    %v7007 = vsub.s32 %v5658, %v7006
    %v7008 = vrot.slane %v4598, %v7007
    %v7009 = vsel %vm5663, %v7008, %v7004
    %v7010 = vlaneseq
    %v7011 = vshrl.u32 %v7010, 7
    %v7012 = vsub.s32 %v5665, %v7011
    %v7013 = vrot.slane %v4600, %v7012
    %v7014 = vsel %vm5670, %v7013, %v7009
    %v7015 = vlaneseq
    %v7016 = vshrl.u32 %v7015, 7
    %v7017 = vsub.s32 %v5562, %v7016
    %v7018 = vrot.slane %v4602, %v7017
    %v7019 = vlaneseq
    %v7020 = vshrl.u32 %v7019, 7
    %v7021 = vsub.s32 %v5567, %v7020
    %v7022 = vrot.slane %v4604, %v7021
    %v7023 = vsel %vm5572, %v7022, %v7018
    %v7024 = vlaneseq
    %v7025 = vshrl.u32 %v7024, 7
    %v7026 = vsub.s32 %v5574, %v7025
    %v7027 = vrot.slane %v4606, %v7026
    %v7028 = vsel %vm5579, %v7027, %v7023
    %v7029 = vlaneseq
    %v7030 = vshrl.u32 %v7029, 7
    %v7031 = vsub.s32 %v5581, %v7030
    %v7032 = vrot.slane %v4608, %v7031
    %v7033 = vsel %vm5586, %v7032, %v7028
    %v7034 = vlaneseq
    %v7035 = vshrl.u32 %v7034, 7
    %v7036 = vsub.s32 %v5588, %v7035
    %v7037 = vrot.slane %v4610, %v7036
    %v7038 = vsel %vm5593, %v7037, %v7033
    %v7039 = vlaneseq
    %v7040 = vshrl.u32 %v7039, 7
    %v7041 = vsub.s32 %v5595, %v7040
    %v7042 = vrot.slane %v4612, %v7041
    %v7043 = vsel %vm5600, %v7042, %v7038
    %v7044 = vlaneseq
    %v7045 = vshrl.u32 %v7044, 7
    %v7046 = vsub.s32 %v5602, %v7045
    %v7047 = vrot.slane %v4614, %v7046
    %v7048 = vsel %vm5607, %v7047, %v7043
    %v7049 = vlaneseq
    %v7050 = vshrl.u32 %v7049, 7
    %v7051 = vsub.s32 %v5609, %v7050
    %v7052 = vrot.slane %v4616, %v7051
    %v7053 = vsel %vm5614, %v7052, %v7048
    %v7054 = vlaneseq
    %v7055 = vshrl.u32 %v7054, 7
    %v7056 = vsub.s32 %v5616, %v7055
    %v7057 = vrot.slane %v4618, %v7056
    %v7058 = vsel %vm5621, %v7057, %v7053
    %v7059 = vlaneseq
    %v7060 = vshrl.u32 %v7059, 7
    %v7061 = vsub.s32 %v5623, %v7060
    %v7062 = vrot.slane %v4620, %v7061
    %v7063 = vsel %vm5628, %v7062, %v7058
    %v7064 = vlaneseq
    %v7065 = vshrl.u32 %v7064, 7
    %v7066 = vsub.s32 %v5630, %v7065
    %v7067 = vrot.slane %v4622, %v7066
    %v7068 = vsel %vm5635, %v7067, %v7063
    %v7069 = vlaneseq
    %v7070 = vshrl.u32 %v7069, 7
    %v7071 = vsub.s32 %v5637, %v7070
    %v7072 = vrot.slane %v4624, %v7071
    %v7073 = vsel %vm5642, %v7072, %v7068
    %v7074 = vlaneseq
    %v7075 = vshrl.u32 %v7074, 7
    %v7076 = vsub.s32 %v5644, %v7075
    %v7077 = vrot.slane %v4626, %v7076
    %v7078 = vsel %vm5649, %v7077, %v7073
    %v7079 = vlaneseq
    %v7080 = vshrl.u32 %v7079, 7
    %v7081 = vsub.s32 %v5651, %v7080
    %v7082 = vrot.slane %v4628, %v7081
    %v7083 = vsel %vm5656, %v7082, %v7078
    %v7084 = vlaneseq
    %v7085 = vshrl.u32 %v7084, 7
    %v7086 = vsub.s32 %v5658, %v7085
    %v7087 = vrot.slane %v4630, %v7086
    %v7088 = vsel %vm5663, %v7087, %v7083
    %v7089 = vlaneseq
    %v7090 = vshrl.u32 %v7089, 7
    %v7091 = vsub.s32 %v5665, %v7090
    %v7092 = vrot.slane %v4632, %v7091
    %v7093 = vsel %vm5670, %v7092, %v7088
    %v7094 = vlaneseq
    %v7095 = vshrl.u32 %v7094, 7
    %v7096 = vsub.s32 %v5562, %v7095
    %v7097 = vrot.slane %v4634, %v7096
    %v7098 = vlaneseq
    %v7099 = vshrl.u32 %v7098, 7
    %v7100 = vsub.s32 %v5567, %v7099
    %v7101 = vrot.slane %v4636, %v7100
    %v7102 = vsel %vm5572, %v7101, %v7097
    %v7103 = vlaneseq
    %v7104 = vshrl.u32 %v7103, 7
    %v7105 = vsub.s32 %v5574, %v7104
    %v7106 = vrot.slane %v4638, %v7105
    %v7107 = vsel %vm5579, %v7106, %v7102
    %v7108 = vlaneseq
    %v7109 = vshrl.u32 %v7108, 7
    %v7110 = vsub.s32 %v5581, %v7109
    %v7111 = vrot.slane %v4640, %v7110
    %v7112 = vsel %vm5586, %v7111, %v7107
    %v7113 = vlaneseq
    %v7114 = vshrl.u32 %v7113, 7
    %v7115 = vsub.s32 %v5588, %v7114
    %v7116 = vrot.slane %v4642, %v7115
    %v7117 = vsel %vm5593, %v7116, %v7112
    %v7118 = vlaneseq
    %v7119 = vshrl.u32 %v7118, 7
    %v7120 = vsub.s32 %v5595, %v7119
    %v7121 = vrot.slane %v4644, %v7120
    %v7122 = vsel %vm5600, %v7121, %v7117
    %v7123 = vlaneseq
    %v7124 = vshrl.u32 %v7123, 7
    %v7125 = vsub.s32 %v5602, %v7124
    %v7126 = vrot.slane %v4646, %v7125
    %v7127 = vsel %vm5607, %v7126, %v7122
    %v7128 = vlaneseq
    %v7129 = vshrl.u32 %v7128, 7
    %v7130 = vsub.s32 %v5609, %v7129
    %v7131 = vrot.slane %v4648, %v7130
    %v7132 = vsel %vm5614, %v7131, %v7127
    %v7133 = vlaneseq
    %v7134 = vshrl.u32 %v7133, 7
    %v7135 = vsub.s32 %v5616, %v7134
    %v7136 = vrot.slane %v4650, %v7135
    %v7137 = vsel %vm5621, %v7136, %v7132
    %v7138 = vlaneseq
    %v7139 = vshrl.u32 %v7138, 7
    %v7140 = vsub.s32 %v5623, %v7139
    %v7141 = vrot.slane %v4652, %v7140
    %v7142 = vsel %vm5628, %v7141, %v7137
    %v7143 = vlaneseq
    %v7144 = vshrl.u32 %v7143, 7
    %v7145 = vsub.s32 %v5630, %v7144
    %v7146 = vrot.slane %v4654, %v7145
    %v7147 = vsel %vm5635, %v7146, %v7142
    %v7148 = vlaneseq
    %v7149 = vshrl.u32 %v7148, 7
    %v7150 = vsub.s32 %v5637, %v7149
    %v7151 = vrot.slane %v4656, %v7150
    %v7152 = vsel %vm5642, %v7151, %v7147
    %v7153 = vlaneseq
    %v7154 = vshrl.u32 %v7153, 7
    %v7155 = vsub.s32 %v5644, %v7154
    %v7156 = vrot.slane %v4658, %v7155
    %v7157 = vsel %vm5649, %v7156, %v7152
    %v7158 = vlaneseq
    %v7159 = vshrl.u32 %v7158, 7
    %v7160 = vsub.s32 %v5651, %v7159
    %v7161 = vrot.slane %v4660, %v7160
    %v7162 = vsel %vm5656, %v7161, %v7157
    %v7163 = vlaneseq
    %v7164 = vshrl.u32 %v7163, 7
    %v7165 = vsub.s32 %v5658, %v7164
    %v7166 = vrot.slane %v4662, %v7165
    %v7167 = vsel %vm5663, %v7166, %v7162
    %v7168 = vlaneseq
    %v7169 = vshrl.u32 %v7168, 7
    %v7170 = vsub.s32 %v5665, %v7169
    %v7171 = vrot.slane %v4664, %v7170
    %v7172 = vsel %vm5670, %v7171, %v7167
    %v7173 = vlaneseq
    %v7174 = vshrl.u32 %v7173, 7
    %v7175 = vsub.s32 %v5562, %v7174
    %v7176 = vrot.slane %v4666, %v7175
    %v7177 = vlaneseq
    %v7178 = vshrl.u32 %v7177, 7
    %v7179 = vsub.s32 %v5567, %v7178
    %v7180 = vrot.slane %v4668, %v7179
    %v7181 = vsel %vm5572, %v7180, %v7176
    %v7182 = vlaneseq
    %v7183 = vshrl.u32 %v7182, 7
    %v7184 = vsub.s32 %v5574, %v7183
    %v7185 = vrot.slane %v4670, %v7184
    %v7186 = vsel %vm5579, %v7185, %v7181
    %v7187 = vlaneseq
    %v7188 = vshrl.u32 %v7187, 7
    %v7189 = vsub.s32 %v5581, %v7188
    %v7190 = vrot.slane %v4672, %v7189
    %v7191 = vsel %vm5586, %v7190, %v7186
    %v7192 = vlaneseq
    %v7193 = vshrl.u32 %v7192, 7
    %v7194 = vsub.s32 %v5588, %v7193
    %v7195 = vrot.slane %v4674, %v7194
    %v7196 = vsel %vm5593, %v7195, %v7191
    %v7197 = vlaneseq
    %v7198 = vshrl.u32 %v7197, 7
    %v7199 = vsub.s32 %v5595, %v7198
    %v7200 = vrot.slane %v4676, %v7199
    %v7201 = vsel %vm5600, %v7200, %v7196
    %v7202 = vlaneseq
    %v7203 = vshrl.u32 %v7202, 7
    %v7204 = vsub.s32 %v5602, %v7203
    %v7205 = vrot.slane %v4678, %v7204
    %v7206 = vsel %vm5607, %v7205, %v7201
    %v7207 = vlaneseq
    %v7208 = vshrl.u32 %v7207, 7
    %v7209 = vsub.s32 %v5609, %v7208
    %v7210 = vrot.slane %v4680, %v7209
    %v7211 = vsel %vm5614, %v7210, %v7206
    %v7212 = vlaneseq
    %v7213 = vshrl.u32 %v7212, 7
    %v7214 = vsub.s32 %v5616, %v7213
    %v7215 = vrot.slane %v4682, %v7214
    %v7216 = vsel %vm5621, %v7215, %v7211
    %v7217 = vlaneseq
    %v7218 = vshrl.u32 %v7217, 7
    %v7219 = vsub.s32 %v5623, %v7218
    %v7220 = vrot.slane %v4684, %v7219
    %v7221 = vsel %vm5628, %v7220, %v7216
    %v7222 = vlaneseq
    %v7223 = vshrl.u32 %v7222, 7
    %v7224 = vsub.s32 %v5630, %v7223
    %v7225 = vrot.slane %v4686, %v7224
    %v7226 = vsel %vm5635, %v7225, %v7221
    %v7227 = vlaneseq
    %v7228 = vshrl.u32 %v7227, 7
    %v7229 = vsub.s32 %v5637, %v7228
    %v7230 = vrot.slane %v4688, %v7229
    %v7231 = vsel %vm5642, %v7230, %v7226
    %v7232 = vlaneseq
    %v7233 = vshrl.u32 %v7232, 7
    %v7234 = vsub.s32 %v5644, %v7233
    %v7235 = vrot.slane %v4690, %v7234
    %v7236 = vsel %vm5649, %v7235, %v7231
    %v7237 = vlaneseq
    %v7238 = vshrl.u32 %v7237, 7
    %v7239 = vsub.s32 %v5651, %v7238
    %v7240 = vrot.slane %v4692, %v7239
    %v7241 = vsel %vm5656, %v7240, %v7236
    %v7242 = vlaneseq
    %v7243 = vshrl.u32 %v7242, 7
    %v7244 = vsub.s32 %v5658, %v7243
    %v7245 = vrot.slane %v4694, %v7244
    %v7246 = vsel %vm5663, %v7245, %v7241
    %v7247 = vlaneseq
    %v7248 = vshrl.u32 %v7247, 7
    %v7249 = vsub.s32 %v5665, %v7248
    %v7250 = vrot.slane %v4696, %v7249
    %v7251 = vsel %vm5670, %v7250, %v7246
    %v7252 = vlaneseq
    %v7253 = vshrl.u32 %v7252, 7
    %v7254 = vsub.s32 %v5562, %v7253
    %v7255 = vrot.slane %v4698, %v7254
    %v7256 = vlaneseq
    %v7257 = vshrl.u32 %v7256, 7
    %v7258 = vsub.s32 %v5567, %v7257
    %v7259 = vrot.slane %v4700, %v7258
    %v7260 = vsel %vm5572, %v7259, %v7255
    %v7261 = vlaneseq
    %v7262 = vshrl.u32 %v7261, 7
    %v7263 = vsub.s32 %v5574, %v7262
    %v7264 = vrot.slane %v4702, %v7263
    %v7265 = vsel %vm5579, %v7264, %v7260
    %v7266 = vlaneseq
    %v7267 = vshrl.u32 %v7266, 7
    %v7268 = vsub.s32 %v5581, %v7267
    %v7269 = vrot.slane %v4704, %v7268
    %v7270 = vsel %vm5586, %v7269, %v7265
    %v7271 = vlaneseq
    %v7272 = vshrl.u32 %v7271, 7
    %v7273 = vsub.s32 %v5588, %v7272
    %v7274 = vrot.slane %v4706, %v7273
    %v7275 = vsel %vm5593, %v7274, %v7270
    %v7276 = vlaneseq
    %v7277 = vshrl.u32 %v7276, 7
    %v7278 = vsub.s32 %v5595, %v7277
    %v7279 = vrot.slane %v4708, %v7278
    %v7280 = vsel %vm5600, %v7279, %v7275
    %v7281 = vlaneseq
    %v7282 = vshrl.u32 %v7281, 7
    %v7283 = vsub.s32 %v5602, %v7282
    %v7284 = vrot.slane %v4710, %v7283
    %v7285 = vsel %vm5607, %v7284, %v7280
    %v7286 = vlaneseq
    %v7287 = vshrl.u32 %v7286, 7
    %v7288 = vsub.s32 %v5609, %v7287
    %v7289 = vrot.slane %v4712, %v7288
    %v7290 = vsel %vm5614, %v7289, %v7285
    %v7291 = vlaneseq
    %v7292 = vshrl.u32 %v7291, 7
    %v7293 = vsub.s32 %v5616, %v7292
    %v7294 = vrot.slane %v4714, %v7293
    %v7295 = vsel %vm5621, %v7294, %v7290
    %v7296 = vlaneseq
    %v7297 = vshrl.u32 %v7296, 7
    %v7298 = vsub.s32 %v5623, %v7297
    %v7299 = vrot.slane %v4716, %v7298
    %v7300 = vsel %vm5628, %v7299, %v7295
    %v7301 = vlaneseq
    %v7302 = vshrl.u32 %v7301, 7
    %v7303 = vsub.s32 %v5630, %v7302
    %v7304 = vrot.slane %v4718, %v7303
    %v7305 = vsel %vm5635, %v7304, %v7300
    %v7306 = vlaneseq
    %v7307 = vshrl.u32 %v7306, 7
    %v7308 = vsub.s32 %v5637, %v7307
    %v7309 = vrot.slane %v4720, %v7308
    %v7310 = vsel %vm5642, %v7309, %v7305
    %v7311 = vlaneseq
    %v7312 = vshrl.u32 %v7311, 7
    %v7313 = vsub.s32 %v5644, %v7312
    %v7314 = vrot.slane %v4722, %v7313
    %v7315 = vsel %vm5649, %v7314, %v7310
    %v7316 = vlaneseq
    %v7317 = vshrl.u32 %v7316, 7
    %v7318 = vsub.s32 %v5651, %v7317
    %v7319 = vrot.slane %v4724, %v7318
    %v7320 = vsel %vm5656, %v7319, %v7315
    %v7321 = vlaneseq
    %v7322 = vshrl.u32 %v7321, 7
    %v7323 = vsub.s32 %v5658, %v7322
    %v7324 = vrot.slane %v4726, %v7323
    %v7325 = vsel %vm5663, %v7324, %v7320
    %v7326 = vlaneseq
    %v7327 = vshrl.u32 %v7326, 7
    %v7328 = vsub.s32 %v5665, %v7327
    %v7329 = vrot.slane %v4728, %v7328
    %v7330 = vsel %vm5670, %v7329, %v7325
    %v7331 = vlaneseq
    %v7332 = vshrl.u32 %v7331, 7
    %v7333 = vsub.s32 %v5562, %v7332
    %v7334 = vrot.slane %v4730, %v7333
    %v7335 = vlaneseq
    %v7336 = vshrl.u32 %v7335, 7
    %v7337 = vsub.s32 %v5567, %v7336
    %v7338 = vrot.slane %v4732, %v7337
    %v7339 = vsel %vm5572, %v7338, %v7334
    %v7340 = vlaneseq
    %v7341 = vshrl.u32 %v7340, 7
    %v7342 = vsub.s32 %v5574, %v7341
    %v7343 = vrot.slane %v4734, %v7342
    %v7344 = vsel %vm5579, %v7343, %v7339
    %v7345 = vlaneseq
    %v7346 = vshrl.u32 %v7345, 7
    %v7347 = vsub.s32 %v5581, %v7346
    %v7348 = vrot.slane %v4736, %v7347
    %v7349 = vsel %vm5586, %v7348, %v7344
    %v7350 = vlaneseq
    %v7351 = vshrl.u32 %v7350, 7
    %v7352 = vsub.s32 %v5588, %v7351
    %v7353 = vrot.slane %v4738, %v7352
    %v7354 = vsel %vm5593, %v7353, %v7349
    %v7355 = vlaneseq
    %v7356 = vshrl.u32 %v7355, 7
    %v7357 = vsub.s32 %v5595, %v7356
    %v7358 = vrot.slane %v4740, %v7357
    %v7359 = vsel %vm5600, %v7358, %v7354
    %v7360 = vlaneseq
    %v7361 = vshrl.u32 %v7360, 7
    %v7362 = vsub.s32 %v5602, %v7361
    %v7363 = vrot.slane %v4742, %v7362
    %v7364 = vsel %vm5607, %v7363, %v7359
    %v7365 = vlaneseq
    %v7366 = vshrl.u32 %v7365, 7
    %v7367 = vsub.s32 %v5609, %v7366
    %v7368 = vrot.slane %v4744, %v7367
    %v7369 = vsel %vm5614, %v7368, %v7364
    %v7370 = vlaneseq
    %v7371 = vshrl.u32 %v7370, 7
    %v7372 = vsub.s32 %v5616, %v7371
    %v7373 = vrot.slane %v4746, %v7372
    %v7374 = vsel %vm5621, %v7373, %v7369
    %v7375 = vlaneseq
    %v7376 = vshrl.u32 %v7375, 7
    %v7377 = vsub.s32 %v5623, %v7376
    %v7378 = vrot.slane %v4748, %v7377
    %v7379 = vsel %vm5628, %v7378, %v7374
    %v7380 = vlaneseq
    %v7381 = vshrl.u32 %v7380, 7
    %v7382 = vsub.s32 %v5630, %v7381
    %v7383 = vrot.slane %v4750, %v7382
    %v7384 = vsel %vm5635, %v7383, %v7379
    %v7385 = vlaneseq
    %v7386 = vshrl.u32 %v7385, 7
    %v7387 = vsub.s32 %v5637, %v7386
    %v7388 = vrot.slane %v4752, %v7387
    %v7389 = vsel %vm5642, %v7388, %v7384
    %v7390 = vlaneseq
    %v7391 = vshrl.u32 %v7390, 7
    %v7392 = vsub.s32 %v5644, %v7391
    %v7393 = vrot.slane %v4754, %v7392
    %v7394 = vsel %vm5649, %v7393, %v7389
    %v7395 = vlaneseq
    %v7396 = vshrl.u32 %v7395, 7
    %v7397 = vsub.s32 %v5651, %v7396
    %v7398 = vrot.slane %v4756, %v7397
    %v7399 = vsel %vm5656, %v7398, %v7394
    %v7400 = vlaneseq
    %v7401 = vshrl.u32 %v7400, 7
    %v7402 = vsub.s32 %v5658, %v7401
    %v7403 = vrot.slane %v4758, %v7402
    %v7404 = vsel %vm5663, %v7403, %v7399
    %v7405 = vlaneseq
    %v7406 = vshrl.u32 %v7405, 7
    %v7407 = vsub.s32 %v5665, %v7406
    %v7408 = vrot.slane %v4760, %v7407
    %v7409 = vsel %vm5670, %v7408, %v7404
    %v7410 = vlaneseq
    %v7411 = vshrl.u32 %v7410, 7
    %v7412 = vsub.s32 %v5562, %v7411
    %v7413 = vrot.slane %v4762, %v7412
    %v7414 = vlaneseq
    %v7415 = vshrl.u32 %v7414, 7
    %v7416 = vsub.s32 %v5567, %v7415
    %v7417 = vrot.slane %v4764, %v7416
    %v7418 = vsel %vm5572, %v7417, %v7413
    %v7419 = vlaneseq
    %v7420 = vshrl.u32 %v7419, 7
    %v7421 = vsub.s32 %v5574, %v7420
    %v7422 = vrot.slane %v4766, %v7421
    %v7423 = vsel %vm5579, %v7422, %v7418
    %v7424 = vlaneseq
    %v7425 = vshrl.u32 %v7424, 7
    %v7426 = vsub.s32 %v5581, %v7425
    %v7427 = vrot.slane %v4768, %v7426
    %v7428 = vsel %vm5586, %v7427, %v7423
    %v7429 = vlaneseq
    %v7430 = vshrl.u32 %v7429, 7
    %v7431 = vsub.s32 %v5588, %v7430
    %v7432 = vrot.slane %v4770, %v7431
    %v7433 = vsel %vm5593, %v7432, %v7428
    %v7434 = vlaneseq
    %v7435 = vshrl.u32 %v7434, 7
    %v7436 = vsub.s32 %v5595, %v7435
    %v7437 = vrot.slane %v4772, %v7436
    %v7438 = vsel %vm5600, %v7437, %v7433
    %v7439 = vlaneseq
    %v7440 = vshrl.u32 %v7439, 7
    %v7441 = vsub.s32 %v5602, %v7440
    %v7442 = vrot.slane %v4774, %v7441
    %v7443 = vsel %vm5607, %v7442, %v7438
    %v7444 = vlaneseq
    %v7445 = vshrl.u32 %v7444, 7
    %v7446 = vsub.s32 %v5609, %v7445
    %v7447 = vrot.slane %v4776, %v7446
    %v7448 = vsel %vm5614, %v7447, %v7443
    %v7449 = vlaneseq
    %v7450 = vshrl.u32 %v7449, 7
    %v7451 = vsub.s32 %v5616, %v7450
    %v7452 = vrot.slane %v4778, %v7451
    %v7453 = vsel %vm5621, %v7452, %v7448
    %v7454 = vlaneseq
    %v7455 = vshrl.u32 %v7454, 7
    %v7456 = vsub.s32 %v5623, %v7455
    %v7457 = vrot.slane %v4780, %v7456
    %v7458 = vsel %vm5628, %v7457, %v7453
    %v7459 = vlaneseq
    %v7460 = vshrl.u32 %v7459, 7
    %v7461 = vsub.s32 %v5630, %v7460
    %v7462 = vrot.slane %v4782, %v7461
    %v7463 = vsel %vm5635, %v7462, %v7458
    %v7464 = vlaneseq
    %v7465 = vshrl.u32 %v7464, 7
    %v7466 = vsub.s32 %v5637, %v7465
    %v7467 = vrot.slane %v4784, %v7466
    %v7468 = vsel %vm5642, %v7467, %v7463
    %v7469 = vlaneseq
    %v7470 = vshrl.u32 %v7469, 7
    %v7471 = vsub.s32 %v5644, %v7470
    %v7472 = vrot.slane %v4786, %v7471
    %v7473 = vsel %vm5649, %v7472, %v7468
    %v7474 = vlaneseq
    %v7475 = vshrl.u32 %v7474, 7
    %v7476 = vsub.s32 %v5651, %v7475
    %v7477 = vrot.slane %v4788, %v7476
    %v7478 = vsel %vm5656, %v7477, %v7473
    %v7479 = vlaneseq
    %v7480 = vshrl.u32 %v7479, 7
    %v7481 = vsub.s32 %v5658, %v7480
    %v7482 = vrot.slane %v4790, %v7481
    %v7483 = vsel %vm5663, %v7482, %v7478
    %v7484 = vlaneseq
    %v7485 = vshrl.u32 %v7484, 7
    %v7486 = vsub.s32 %v5665, %v7485
    %v7487 = vrot.slane %v4792, %v7486
    %v7488 = vsel %vm5670, %v7487, %v7483
    %v7489 = vlaneseq
    %v7490 = vshrl.u32 %v7489, 7
    %v7491 = vsub.s32 %v5562, %v7490
    %v7492 = vrot.slane %v4794, %v7491
    %v7493 = vlaneseq
    %v7494 = vshrl.u32 %v7493, 7
    %v7495 = vsub.s32 %v5567, %v7494
    %v7496 = vrot.slane %v4796, %v7495
    %v7497 = vsel %vm5572, %v7496, %v7492
    %v7498 = vlaneseq
    %v7499 = vshrl.u32 %v7498, 7
    %v7500 = vsub.s32 %v5574, %v7499
    %v7501 = vrot.slane %v4798, %v7500
    %v7502 = vsel %vm5579, %v7501, %v7497
    %v7503 = vlaneseq
    %v7504 = vshrl.u32 %v7503, 7
    %v7505 = vsub.s32 %v5581, %v7504
    %v7506 = vrot.slane %v4800, %v7505
    %v7507 = vsel %vm5586, %v7506, %v7502
    %v7508 = vlaneseq
    %v7509 = vshrl.u32 %v7508, 7
    %v7510 = vsub.s32 %v5588, %v7509
    %v7511 = vrot.slane %v4802, %v7510
    %v7512 = vsel %vm5593, %v7511, %v7507
    %v7513 = vlaneseq
    %v7514 = vshrl.u32 %v7513, 7
    %v7515 = vsub.s32 %v5595, %v7514
    %v7516 = vrot.slane %v4804, %v7515
    %v7517 = vsel %vm5600, %v7516, %v7512
    %v7518 = vlaneseq
    %v7519 = vshrl.u32 %v7518, 7
    %v7520 = vsub.s32 %v5602, %v7519
    %v7521 = vrot.slane %v4806, %v7520
    %v7522 = vsel %vm5607, %v7521, %v7517
    %v7523 = vlaneseq
    %v7524 = vshrl.u32 %v7523, 7
    %v7525 = vsub.s32 %v5609, %v7524
    %v7526 = vrot.slane %v4808, %v7525
    %v7527 = vsel %vm5614, %v7526, %v7522
    %v7528 = vlaneseq
    %v7529 = vshrl.u32 %v7528, 7
    %v7530 = vsub.s32 %v5616, %v7529
    %v7531 = vrot.slane %v4810, %v7530
    %v7532 = vsel %vm5621, %v7531, %v7527
    %v7533 = vlaneseq
    %v7534 = vshrl.u32 %v7533, 7
    %v7535 = vsub.s32 %v5623, %v7534
    %v7536 = vrot.slane %v4812, %v7535
    %v7537 = vsel %vm5628, %v7536, %v7532
    %v7538 = vlaneseq
    %v7539 = vshrl.u32 %v7538, 7
    %v7540 = vsub.s32 %v5630, %v7539
    %v7541 = vrot.slane %v4814, %v7540
    %v7542 = vsel %vm5635, %v7541, %v7537
    %v7543 = vlaneseq
    %v7544 = vshrl.u32 %v7543, 7
    %v7545 = vsub.s32 %v5637, %v7544
    %v7546 = vrot.slane %v4816, %v7545
    %v7547 = vsel %vm5642, %v7546, %v7542
    %v7548 = vlaneseq
    %v7549 = vshrl.u32 %v7548, 7
    %v7550 = vsub.s32 %v5644, %v7549
    %v7551 = vrot.slane %v4818, %v7550
    %v7552 = vsel %vm5649, %v7551, %v7547
    %v7553 = vlaneseq
    %v7554 = vshrl.u32 %v7553, 7
    %v7555 = vsub.s32 %v5651, %v7554
    %v7556 = vrot.slane %v4820, %v7555
    %v7557 = vsel %vm5656, %v7556, %v7552
    %v7558 = vlaneseq
    %v7559 = vshrl.u32 %v7558, 7
    %v7560 = vsub.s32 %v5658, %v7559
    %v7561 = vrot.slane %v4822, %v7560
    %v7562 = vsel %vm5663, %v7561, %v7557
    %v7563 = vlaneseq
    %v7564 = vshrl.u32 %v7563, 7
    %v7565 = vsub.s32 %v5665, %v7564
    %v7566 = vrot.slane %v4824, %v7565
    %v7567 = vsel %vm5670, %v7566, %v7562
    %v7568 = vlaneseq
    %v7569 = vshrl.u32 %v7568, 7
    %v7570 = vsub.s32 %v5562, %v7569
    %v7571 = vrot.slane %v4826, %v7570
    %v7572 = vlaneseq
    %v7573 = vshrl.u32 %v7572, 7
    %v7574 = vsub.s32 %v5567, %v7573
    %v7575 = vrot.slane %v4828, %v7574
    %v7576 = vsel %vm5572, %v7575, %v7571
    %v7577 = vlaneseq
    %v7578 = vshrl.u32 %v7577, 7
    %v7579 = vsub.s32 %v5574, %v7578
    %v7580 = vrot.slane %v4830, %v7579
    %v7581 = vsel %vm5579, %v7580, %v7576
    %v7582 = vlaneseq
    %v7583 = vshrl.u32 %v7582, 7
    %v7584 = vsub.s32 %v5581, %v7583
    %v7585 = vrot.slane %v4832, %v7584
    %v7586 = vsel %vm5586, %v7585, %v7581
    %v7587 = vlaneseq
    %v7588 = vshrl.u32 %v7587, 7
    %v7589 = vsub.s32 %v5588, %v7588
    %v7590 = vrot.slane %v4834, %v7589
    %v7591 = vsel %vm5593, %v7590, %v7586
    %v7592 = vlaneseq
    %v7593 = vshrl.u32 %v7592, 7
    %v7594 = vsub.s32 %v5595, %v7593
    %v7595 = vrot.slane %v4836, %v7594
    %v7596 = vsel %vm5600, %v7595, %v7591
    %v7597 = vlaneseq
    %v7598 = vshrl.u32 %v7597, 7
    %v7599 = vsub.s32 %v5602, %v7598
    %v7600 = vrot.slane %v4838, %v7599
    %v7601 = vsel %vm5607, %v7600, %v7596
    %v7602 = vlaneseq
    %v7603 = vshrl.u32 %v7602, 7
    %v7604 = vsub.s32 %v5609, %v7603
    %v7605 = vrot.slane %v4840, %v7604
    %v7606 = vsel %vm5614, %v7605, %v7601
    %v7607 = vlaneseq
    %v7608 = vshrl.u32 %v7607, 7
    %v7609 = vsub.s32 %v5616, %v7608
    %v7610 = vrot.slane %v4842, %v7609
    %v7611 = vsel %vm5621, %v7610, %v7606
    %v7612 = vlaneseq
    %v7613 = vshrl.u32 %v7612, 7
    %v7614 = vsub.s32 %v5623, %v7613
    %v7615 = vrot.slane %v4844, %v7614
    %v7616 = vsel %vm5628, %v7615, %v7611
    %v7617 = vlaneseq
    %v7618 = vshrl.u32 %v7617, 7
    %v7619 = vsub.s32 %v5630, %v7618
    %v7620 = vrot.slane %v4846, %v7619
    %v7621 = vsel %vm5635, %v7620, %v7616
    %v7622 = vlaneseq
    %v7623 = vshrl.u32 %v7622, 7
    %v7624 = vsub.s32 %v5637, %v7623
    %v7625 = vrot.slane %v4848, %v7624
    %v7626 = vsel %vm5642, %v7625, %v7621
    %v7627 = vlaneseq
    %v7628 = vshrl.u32 %v7627, 7
    %v7629 = vsub.s32 %v5644, %v7628
    %v7630 = vrot.slane %v4850, %v7629
    %v7631 = vsel %vm5649, %v7630, %v7626
    %v7632 = vlaneseq
    %v7633 = vshrl.u32 %v7632, 7
    %v7634 = vsub.s32 %v5651, %v7633
    %v7635 = vrot.slane %v4852, %v7634
    %v7636 = vsel %vm5656, %v7635, %v7631
    %v7637 = vlaneseq
    %v7638 = vshrl.u32 %v7637, 7
    %v7639 = vsub.s32 %v5658, %v7638
    %v7640 = vrot.slane %v4854, %v7639
    %v7641 = vsel %vm5663, %v7640, %v7636
    %v7642 = vlaneseq
    %v7643 = vshrl.u32 %v7642, 7
    %v7644 = vsub.s32 %v5665, %v7643
    %v7645 = vrot.slane %v4856, %v7644
    %v7646 = vsel %vm5670, %v7645, %v7641
    %v7647 = vlaneseq
    %v7648 = vshrl.u32 %v7647, 7
    %v7649 = vsub.s32 %v5562, %v7648
    %v7650 = vrot.slane %v4858, %v7649
    %v7651 = vlaneseq
    %v7652 = vshrl.u32 %v7651, 7
    %v7653 = vsub.s32 %v5567, %v7652
    %v7654 = vrot.slane %v4860, %v7653
    %v7655 = vsel %vm5572, %v7654, %v7650
    %v7656 = vlaneseq
    %v7657 = vshrl.u32 %v7656, 7
    %v7658 = vsub.s32 %v5574, %v7657
    %v7659 = vrot.slane %v4862, %v7658
    %v7660 = vsel %vm5579, %v7659, %v7655
    %v7661 = vlaneseq
    %v7662 = vshrl.u32 %v7661, 7
    %v7663 = vsub.s32 %v5581, %v7662
    %v7664 = vrot.slane %v4864, %v7663
    %v7665 = vsel %vm5586, %v7664, %v7660
    %v7666 = vlaneseq
    %v7667 = vshrl.u32 %v7666, 7
    %v7668 = vsub.s32 %v5588, %v7667
    %v7669 = vrot.slane %v4866, %v7668
    %v7670 = vsel %vm5593, %v7669, %v7665
    %v7671 = vlaneseq
    %v7672 = vshrl.u32 %v7671, 7
    %v7673 = vsub.s32 %v5595, %v7672
    %v7674 = vrot.slane %v4868, %v7673
    %v7675 = vsel %vm5600, %v7674, %v7670
    %v7676 = vlaneseq
    %v7677 = vshrl.u32 %v7676, 7
    %v7678 = vsub.s32 %v5602, %v7677
    %v7679 = vrot.slane %v4870, %v7678
    %v7680 = vsel %vm5607, %v7679, %v7675
    %v7681 = vlaneseq
    %v7682 = vshrl.u32 %v7681, 7
    %v7683 = vsub.s32 %v5609, %v7682
    %v7684 = vrot.slane %v4872, %v7683
    %v7685 = vsel %vm5614, %v7684, %v7680
    %v7686 = vlaneseq
    %v7687 = vshrl.u32 %v7686, 7
    %v7688 = vsub.s32 %v5616, %v7687
    %v7689 = vrot.slane %v4874, %v7688
    %v7690 = vsel %vm5621, %v7689, %v7685
    %v7691 = vlaneseq
    %v7692 = vshrl.u32 %v7691, 7
    %v7693 = vsub.s32 %v5623, %v7692
    %v7694 = vrot.slane %v4876, %v7693
    %v7695 = vsel %vm5628, %v7694, %v7690
    %v7696 = vlaneseq
    %v7697 = vshrl.u32 %v7696, 7
    %v7698 = vsub.s32 %v5630, %v7697
    %v7699 = vrot.slane %v4878, %v7698
    %v7700 = vsel %vm5635, %v7699, %v7695
    %v7701 = vlaneseq
    %v7702 = vshrl.u32 %v7701, 7
    %v7703 = vsub.s32 %v5637, %v7702
    %v7704 = vrot.slane %v4880, %v7703
    %v7705 = vsel %vm5642, %v7704, %v7700
    %v7706 = vlaneseq
    %v7707 = vshrl.u32 %v7706, 7
    %v7708 = vsub.s32 %v5644, %v7707
    %v7709 = vrot.slane %v4882, %v7708
    %v7710 = vsel %vm5649, %v7709, %v7705
    %v7711 = vlaneseq
    %v7712 = vshrl.u32 %v7711, 7
    %v7713 = vsub.s32 %v5651, %v7712
    %v7714 = vrot.slane %v4884, %v7713
    %v7715 = vsel %vm5656, %v7714, %v7710
    %v7716 = vlaneseq
    %v7717 = vshrl.u32 %v7716, 7
    %v7718 = vsub.s32 %v5658, %v7717
    %v7719 = vrot.slane %v4886, %v7718
    %v7720 = vsel %vm5663, %v7719, %v7715
    %v7721 = vlaneseq
    %v7722 = vshrl.u32 %v7721, 7
    %v7723 = vsub.s32 %v5665, %v7722
    %v7724 = vrot.slane %v4888, %v7723
    %v7725 = vsel %vm5670, %v7724, %v7720
    %v7726 = vlaneseq
    %v7727 = vshrl.u32 %v7726, 7
    %v7728 = vsub.s32 %v5562, %v7727
    %v7729 = vrot.slane %v4890, %v7728
    %v7730 = vlaneseq
    %v7731 = vshrl.u32 %v7730, 7
    %v7732 = vsub.s32 %v5567, %v7731
    %v7733 = vrot.slane %v4892, %v7732
    %v7734 = vsel %vm5572, %v7733, %v7729
    %v7735 = vlaneseq
    %v7736 = vshrl.u32 %v7735, 7
    %v7737 = vsub.s32 %v5574, %v7736
    %v7738 = vrot.slane %v4894, %v7737
    %v7739 = vsel %vm5579, %v7738, %v7734
    %v7740 = vlaneseq
    %v7741 = vshrl.u32 %v7740, 7
    %v7742 = vsub.s32 %v5581, %v7741
    %v7743 = vrot.slane %v4896, %v7742
    %v7744 = vsel %vm5586, %v7743, %v7739
    %v7745 = vlaneseq
    %v7746 = vshrl.u32 %v7745, 7
    %v7747 = vsub.s32 %v5588, %v7746
    %v7748 = vrot.slane %v4898, %v7747
    %v7749 = vsel %vm5593, %v7748, %v7744
    %v7750 = vlaneseq
    %v7751 = vshrl.u32 %v7750, 7
    %v7752 = vsub.s32 %v5595, %v7751
    %v7753 = vrot.slane %v4900, %v7752
    %v7754 = vsel %vm5600, %v7753, %v7749
    %v7755 = vlaneseq
    %v7756 = vshrl.u32 %v7755, 7
    %v7757 = vsub.s32 %v5602, %v7756
    %v7758 = vrot.slane %v4902, %v7757
    %v7759 = vsel %vm5607, %v7758, %v7754
    %v7760 = vlaneseq
    %v7761 = vshrl.u32 %v7760, 7
    %v7762 = vsub.s32 %v5609, %v7761
    %v7763 = vrot.slane %v4904, %v7762
    %v7764 = vsel %vm5614, %v7763, %v7759
    %v7765 = vlaneseq
    %v7766 = vshrl.u32 %v7765, 7
    %v7767 = vsub.s32 %v5616, %v7766
    %v7768 = vrot.slane %v4906, %v7767
    %v7769 = vsel %vm5621, %v7768, %v7764
    %v7770 = vlaneseq
    %v7771 = vshrl.u32 %v7770, 7
    %v7772 = vsub.s32 %v5623, %v7771
    %v7773 = vrot.slane %v4908, %v7772
    %v7774 = vsel %vm5628, %v7773, %v7769
    %v7775 = vlaneseq
    %v7776 = vshrl.u32 %v7775, 7
    %v7777 = vsub.s32 %v5630, %v7776
    %v7778 = vrot.slane %v4910, %v7777
    %v7779 = vsel %vm5635, %v7778, %v7774
    %v7780 = vlaneseq
    %v7781 = vshrl.u32 %v7780, 7
    %v7782 = vsub.s32 %v5637, %v7781
    %v7783 = vrot.slane %v4912, %v7782
    %v7784 = vsel %vm5642, %v7783, %v7779
    %v7785 = vlaneseq
    %v7786 = vshrl.u32 %v7785, 7
    %v7787 = vsub.s32 %v5644, %v7786
    %v7788 = vrot.slane %v4914, %v7787
    %v7789 = vsel %vm5649, %v7788, %v7784
    %v7790 = vlaneseq
    %v7791 = vshrl.u32 %v7790, 7
    %v7792 = vsub.s32 %v5651, %v7791
    %v7793 = vrot.slane %v4916, %v7792
    %v7794 = vsel %vm5656, %v7793, %v7789
    %v7795 = vlaneseq
    %v7796 = vshrl.u32 %v7795, 7
    %v7797 = vsub.s32 %v5658, %v7796
    %v7798 = vrot.slane %v4918, %v7797
    %v7799 = vsel %vm5663, %v7798, %v7794
    %v7800 = vlaneseq
    %v7801 = vshrl.u32 %v7800, 7
    %v7802 = vsub.s32 %v5665, %v7801
    %v7803 = vrot.slane %v4920, %v7802
    %v7804 = vsel %vm5670, %v7803, %v7799
    %v7805 = vlaneseq
    %v7806 = vshrl.u32 %v7805, 7
    %v7807 = vsub.s32 %v5562, %v7806
    %v7808 = vrot.slane %v4922, %v7807
    %v7809 = vlaneseq
    %v7810 = vshrl.u32 %v7809, 7
    %v7811 = vsub.s32 %v5567, %v7810
    %v7812 = vrot.slane %v4924, %v7811
    %v7813 = vsel %vm5572, %v7812, %v7808
    %v7814 = vlaneseq
    %v7815 = vshrl.u32 %v7814, 7
    %v7816 = vsub.s32 %v5574, %v7815
    %v7817 = vrot.slane %v4926, %v7816
    %v7818 = vsel %vm5579, %v7817, %v7813
    %v7819 = vlaneseq
    %v7820 = vshrl.u32 %v7819, 7
    %v7821 = vsub.s32 %v5581, %v7820
    %v7822 = vrot.slane %v4928, %v7821
    %v7823 = vsel %vm5586, %v7822, %v7818
    %v7824 = vlaneseq
    %v7825 = vshrl.u32 %v7824, 7
    %v7826 = vsub.s32 %v5588, %v7825
    %v7827 = vrot.slane %v4930, %v7826
    %v7828 = vsel %vm5593, %v7827, %v7823
    %v7829 = vlaneseq
    %v7830 = vshrl.u32 %v7829, 7
    %v7831 = vsub.s32 %v5595, %v7830
    %v7832 = vrot.slane %v4932, %v7831
    %v7833 = vsel %vm5600, %v7832, %v7828
    %v7834 = vlaneseq
    %v7835 = vshrl.u32 %v7834, 7
    %v7836 = vsub.s32 %v5602, %v7835
    %v7837 = vrot.slane %v4934, %v7836
    %v7838 = vsel %vm5607, %v7837, %v7833
    %v7839 = vlaneseq
    %v7840 = vshrl.u32 %v7839, 7
    %v7841 = vsub.s32 %v5609, %v7840
    %v7842 = vrot.slane %v4936, %v7841
    %v7843 = vsel %vm5614, %v7842, %v7838
    %v7844 = vlaneseq
    %v7845 = vshrl.u32 %v7844, 7
    %v7846 = vsub.s32 %v5616, %v7845
    %v7847 = vrot.slane %v4938, %v7846
    %v7848 = vsel %vm5621, %v7847, %v7843
    %v7849 = vlaneseq
    %v7850 = vshrl.u32 %v7849, 7
    %v7851 = vsub.s32 %v5623, %v7850
    %v7852 = vrot.slane %v4940, %v7851
    %v7853 = vsel %vm5628, %v7852, %v7848
    %v7854 = vlaneseq
    %v7855 = vshrl.u32 %v7854, 7
    %v7856 = vsub.s32 %v5630, %v7855
    %v7857 = vrot.slane %v4942, %v7856
    %v7858 = vsel %vm5635, %v7857, %v7853
    %v7859 = vlaneseq
    %v7860 = vshrl.u32 %v7859, 7
    %v7861 = vsub.s32 %v5637, %v7860
    %v7862 = vrot.slane %v4944, %v7861
    %v7863 = vsel %vm5642, %v7862, %v7858
    %v7864 = vlaneseq
    %v7865 = vshrl.u32 %v7864, 7
    %v7866 = vsub.s32 %v5644, %v7865
    %v7867 = vrot.slane %v4946, %v7866
    %v7868 = vsel %vm5649, %v7867, %v7863
    %v7869 = vlaneseq
    %v7870 = vshrl.u32 %v7869, 7
    %v7871 = vsub.s32 %v5651, %v7870
    %v7872 = vrot.slane %v4948, %v7871
    %v7873 = vsel %vm5656, %v7872, %v7868
    %v7874 = vlaneseq
    %v7875 = vshrl.u32 %v7874, 7
    %v7876 = vsub.s32 %v5658, %v7875
    %v7877 = vrot.slane %v4950, %v7876
    %v7878 = vsel %vm5663, %v7877, %v7873
    %v7879 = vlaneseq
    %v7880 = vshrl.u32 %v7879, 7
    %v7881 = vsub.s32 %v5665, %v7880
    %v7882 = vrot.slane %v4952, %v7881
    %v7883 = vsel %vm5670, %v7882, %v7878
    %v7884 = vlaneseq
    %v7885 = vshrl.u32 %v7884, 7
    %v7886 = vsub.s32 %v5562, %v7885
    %v7887 = vrot.slane %v4954, %v7886
    %v7888 = vlaneseq
    %v7889 = vshrl.u32 %v7888, 7
    %v7890 = vsub.s32 %v5567, %v7889
    %v7891 = vrot.slane %v4956, %v7890
    %v7892 = vsel %vm5572, %v7891, %v7887
    %v7893 = vlaneseq
    %v7894 = vshrl.u32 %v7893, 7
    %v7895 = vsub.s32 %v5574, %v7894
    %v7896 = vrot.slane %v4958, %v7895
    %v7897 = vsel %vm5579, %v7896, %v7892
    %v7898 = vlaneseq
    %v7899 = vshrl.u32 %v7898, 7
    %v7900 = vsub.s32 %v5581, %v7899
    %v7901 = vrot.slane %v4960, %v7900
    %v7902 = vsel %vm5586, %v7901, %v7897
    %v7903 = vlaneseq
    %v7904 = vshrl.u32 %v7903, 7
    %v7905 = vsub.s32 %v5588, %v7904
    %v7906 = vrot.slane %v4962, %v7905
    %v7907 = vsel %vm5593, %v7906, %v7902
    %v7908 = vlaneseq
    %v7909 = vshrl.u32 %v7908, 7
    %v7910 = vsub.s32 %v5595, %v7909
    %v7911 = vrot.slane %v4964, %v7910
    %v7912 = vsel %vm5600, %v7911, %v7907
    %v7913 = vlaneseq
    %v7914 = vshrl.u32 %v7913, 7
    %v7915 = vsub.s32 %v5602, %v7914
    %v7916 = vrot.slane %v4966, %v7915
    %v7917 = vsel %vm5607, %v7916, %v7912
    %v7918 = vlaneseq
    %v7919 = vshrl.u32 %v7918, 7
    %v7920 = vsub.s32 %v5609, %v7919
    %v7921 = vrot.slane %v4968, %v7920
    %v7922 = vsel %vm5614, %v7921, %v7917
    %v7923 = vlaneseq
    %v7924 = vshrl.u32 %v7923, 7
    %v7925 = vsub.s32 %v5616, %v7924
    %v7926 = vrot.slane %v4970, %v7925
    %v7927 = vsel %vm5621, %v7926, %v7922
    %v7928 = vlaneseq
    %v7929 = vshrl.u32 %v7928, 7
    %v7930 = vsub.s32 %v5623, %v7929
    %v7931 = vrot.slane %v4972, %v7930
    %v7932 = vsel %vm5628, %v7931, %v7927
    %v7933 = vlaneseq
    %v7934 = vshrl.u32 %v7933, 7
    %v7935 = vsub.s32 %v5630, %v7934
    %v7936 = vrot.slane %v4974, %v7935
    %v7937 = vsel %vm5635, %v7936, %v7932
    %v7938 = vlaneseq
    %v7939 = vshrl.u32 %v7938, 7
    %v7940 = vsub.s32 %v5637, %v7939
    %v7941 = vrot.slane %v4976, %v7940
    %v7942 = vsel %vm5642, %v7941, %v7937
    %v7943 = vlaneseq
    %v7944 = vshrl.u32 %v7943, 7
    %v7945 = vsub.s32 %v5644, %v7944
    %v7946 = vrot.slane %v4978, %v7945
    %v7947 = vsel %vm5649, %v7946, %v7942
    %v7948 = vlaneseq
    %v7949 = vshrl.u32 %v7948, 7
    %v7950 = vsub.s32 %v5651, %v7949
    %v7951 = vrot.slane %v4980, %v7950
    %v7952 = vsel %vm5656, %v7951, %v7947
    %v7953 = vlaneseq
    %v7954 = vshrl.u32 %v7953, 7
    %v7955 = vsub.s32 %v5658, %v7954
    %v7956 = vrot.slane %v4982, %v7955
    %v7957 = vsel %vm5663, %v7956, %v7952
    %v7958 = vlaneseq
    %v7959 = vshrl.u32 %v7958, 7
    %v7960 = vsub.s32 %v5665, %v7959
    %v7961 = vrot.slane %v4984, %v7960
    %v7962 = vsel %vm5670, %v7961, %v7957
    %v7963 = vlaneseq
    %v7964 = vshrl.u32 %v7963, 7
    %v7965 = vsub.s32 %v5562, %v7964
    %v7966 = vrot.slane %v4986, %v7965
    %v7967 = vlaneseq
    %v7968 = vshrl.u32 %v7967, 7
    %v7969 = vsub.s32 %v5567, %v7968
    %v7970 = vrot.slane %v4988, %v7969
    %v7971 = vsel %vm5572, %v7970, %v7966
    %v7972 = vlaneseq
    %v7973 = vshrl.u32 %v7972, 7
    %v7974 = vsub.s32 %v5574, %v7973
    %v7975 = vrot.slane %v4990, %v7974
    %v7976 = vsel %vm5579, %v7975, %v7971
    %v7977 = vlaneseq
    %v7978 = vshrl.u32 %v7977, 7
    %v7979 = vsub.s32 %v5581, %v7978
    %v7980 = vrot.slane %v4992, %v7979
    %v7981 = vsel %vm5586, %v7980, %v7976
    %v7982 = vlaneseq
    %v7983 = vshrl.u32 %v7982, 7
    %v7984 = vsub.s32 %v5588, %v7983
    %v7985 = vrot.slane %v4994, %v7984
    %v7986 = vsel %vm5593, %v7985, %v7981
    %v7987 = vlaneseq
    %v7988 = vshrl.u32 %v7987, 7
    %v7989 = vsub.s32 %v5595, %v7988
    %v7990 = vrot.slane %v4996, %v7989
    %v7991 = vsel %vm5600, %v7990, %v7986
    %v7992 = vlaneseq
    %v7993 = vshrl.u32 %v7992, 7
    %v7994 = vsub.s32 %v5602, %v7993
    %v7995 = vrot.slane %v4998, %v7994
    %v7996 = vsel %vm5607, %v7995, %v7991
    %v7997 = vlaneseq
    %v7998 = vshrl.u32 %v7997, 7
    %v7999 = vsub.s32 %v5609, %v7998
    %v8000 = vrot.slane %v5000, %v7999
    %v8001 = vsel %vm5614, %v8000, %v7996
    %v8002 = vlaneseq
    %v8003 = vshrl.u32 %v8002, 7
    %v8004 = vsub.s32 %v5616, %v8003
    %v8005 = vrot.slane %v5002, %v8004
    %v8006 = vsel %vm5621, %v8005, %v8001
    %v8007 = vlaneseq
    %v8008 = vshrl.u32 %v8007, 7
    %v8009 = vsub.s32 %v5623, %v8008
    %v8010 = vrot.slane %v5004, %v8009
    %v8011 = vsel %vm5628, %v8010, %v8006
    %v8012 = vlaneseq
    %v8013 = vshrl.u32 %v8012, 7
    %v8014 = vsub.s32 %v5630, %v8013
    %v8015 = vrot.slane %v5006, %v8014
    %v8016 = vsel %vm5635, %v8015, %v8011
    %v8017 = vlaneseq
    %v8018 = vshrl.u32 %v8017, 7
    %v8019 = vsub.s32 %v5637, %v8018
    %v8020 = vrot.slane %v5008, %v8019
    %v8021 = vsel %vm5642, %v8020, %v8016
    %v8022 = vlaneseq
    %v8023 = vshrl.u32 %v8022, 7
    %v8024 = vsub.s32 %v5644, %v8023
    %v8025 = vrot.slane %v5010, %v8024
    %v8026 = vsel %vm5649, %v8025, %v8021
    %v8027 = vlaneseq
    %v8028 = vshrl.u32 %v8027, 7
    %v8029 = vsub.s32 %v5651, %v8028
    %v8030 = vrot.slane %v5012, %v8029
    %v8031 = vsel %vm5656, %v8030, %v8026
    %v8032 = vlaneseq
    %v8033 = vshrl.u32 %v8032, 7
    %v8034 = vsub.s32 %v5658, %v8033
    %v8035 = vrot.slane %v5014, %v8034
    %v8036 = vsel %vm5663, %v8035, %v8031
    %v8037 = vlaneseq
    %v8038 = vshrl.u32 %v8037, 7
    %v8039 = vsub.s32 %v5665, %v8038
    %v8040 = vrot.slane %v5016, %v8039
    %v8041 = vsel %vm5670, %v8040, %v8036
    %v8042 = vlaneseq
    %v8043 = vshrl.u32 %v8042, 7
    %v8044 = vsub.s32 %v5562, %v8043
    %v8045 = vrot.slane %v5018, %v8044
    %v8046 = vlaneseq
    %v8047 = vshrl.u32 %v8046, 7
    %v8048 = vsub.s32 %v5567, %v8047
    %v8049 = vrot.slane %v5020, %v8048
    %v8050 = vsel %vm5572, %v8049, %v8045
    %v8051 = vlaneseq
    %v8052 = vshrl.u32 %v8051, 7
    %v8053 = vsub.s32 %v5574, %v8052
    %v8054 = vrot.slane %v5022, %v8053
    %v8055 = vsel %vm5579, %v8054, %v8050
    %v8056 = vlaneseq
    %v8057 = vshrl.u32 %v8056, 7
    %v8058 = vsub.s32 %v5581, %v8057
    %v8059 = vrot.slane %v5024, %v8058
    %v8060 = vsel %vm5586, %v8059, %v8055
    %v8061 = vlaneseq
    %v8062 = vshrl.u32 %v8061, 7
    %v8063 = vsub.s32 %v5588, %v8062
    %v8064 = vrot.slane %v5026, %v8063
    %v8065 = vsel %vm5593, %v8064, %v8060
    %v8066 = vlaneseq
    %v8067 = vshrl.u32 %v8066, 7
    %v8068 = vsub.s32 %v5595, %v8067
    %v8069 = vrot.slane %v5028, %v8068
    %v8070 = vsel %vm5600, %v8069, %v8065
    %v8071 = vlaneseq
    %v8072 = vshrl.u32 %v8071, 7
    %v8073 = vsub.s32 %v5602, %v8072
    %v8074 = vrot.slane %v5030, %v8073
    %v8075 = vsel %vm5607, %v8074, %v8070
    %v8076 = vlaneseq
    %v8077 = vshrl.u32 %v8076, 7
    %v8078 = vsub.s32 %v5609, %v8077
    %v8079 = vrot.slane %v5032, %v8078
    %v8080 = vsel %vm5614, %v8079, %v8075
    %v8081 = vlaneseq
    %v8082 = vshrl.u32 %v8081, 7
    %v8083 = vsub.s32 %v5616, %v8082
    %v8084 = vrot.slane %v5034, %v8083
    %v8085 = vsel %vm5621, %v8084, %v8080
    %v8086 = vlaneseq
    %v8087 = vshrl.u32 %v8086, 7
    %v8088 = vsub.s32 %v5623, %v8087
    %v8089 = vrot.slane %v5036, %v8088
    %v8090 = vsel %vm5628, %v8089, %v8085
    %v8091 = vlaneseq
    %v8092 = vshrl.u32 %v8091, 7
    %v8093 = vsub.s32 %v5630, %v8092
    %v8094 = vrot.slane %v5038, %v8093
    %v8095 = vsel %vm5635, %v8094, %v8090
    %v8096 = vlaneseq
    %v8097 = vshrl.u32 %v8096, 7
    %v8098 = vsub.s32 %v5637, %v8097
    %v8099 = vrot.slane %v5040, %v8098
    %v8100 = vsel %vm5642, %v8099, %v8095
    %v8101 = vlaneseq
    %v8102 = vshrl.u32 %v8101, 7
    %v8103 = vsub.s32 %v5644, %v8102
    %v8104 = vrot.slane %v5042, %v8103
    %v8105 = vsel %vm5649, %v8104, %v8100
    %v8106 = vlaneseq
    %v8107 = vshrl.u32 %v8106, 7
    %v8108 = vsub.s32 %v5651, %v8107
    %v8109 = vrot.slane %v5044, %v8108
    %v8110 = vsel %vm5656, %v8109, %v8105
    %v8111 = vlaneseq
    %v8112 = vshrl.u32 %v8111, 7
    %v8113 = vsub.s32 %v5658, %v8112
    %v8114 = vrot.slane %v5046, %v8113
    %v8115 = vsel %vm5663, %v8114, %v8110
    %v8116 = vlaneseq
    %v8117 = vshrl.u32 %v8116, 7
    %v8118 = vsub.s32 %v5665, %v8117
    %v8119 = vrot.slane %v5048, %v8118
    %v8120 = vsel %vm5670, %v8119, %v8115
    %vm8121 = vcmask 1041409
    %v8122 = vsel %vm8121, %v5750, %v5671
    %vm8123 = vcmask 1042434
    %v8124 = vsel %vm8123, %v5829, %v8122
    %vm8125 = vcmask 1043459
    %v8126 = vsel %vm8125, %v5908, %v8124
    %vm8127 = vcmask 1044484
    %v8128 = vsel %vm8127, %v5987, %v8126
    %vm8129 = vcmask 1045509
    %v8130 = vsel %vm8129, %v6066, %v8128
    %vm8131 = vcmask 1046534
    %v8132 = vsel %vm8131, %v6145, %v8130
    %vm8133 = vcmask 1047559
    %v8134 = vsel %vm8133, %v6224, %v8132
    %v8135 = vsel %vm8121, %v6382, %v6303
    %v8136 = vsel %vm8123, %v6461, %v8135
    %v8137 = vsel %vm8125, %v6540, %v8136
    %v8138 = vsel %vm8127, %v6619, %v8137
    %v8139 = vsel %vm8129, %v6698, %v8138
    %v8140 = vsel %vm8131, %v6777, %v8139
    %v8141 = vsel %vm8133, %v6856, %v8140
    %v8142 = vsel %vm8121, %v7014, %v6935
    %v8143 = vsel %vm8123, %v7093, %v8142
    %v8144 = vsel %vm8125, %v7172, %v8143
    %v8145 = vsel %vm8127, %v7251, %v8144
    %v8146 = vsel %vm8129, %v7330, %v8145
    %v8147 = vsel %vm8131, %v7409, %v8146
    %v8148 = vsel %vm8133, %v7488, %v8147
    %v8149 = vsel %vm8121, %v7646, %v7567
    %v8150 = vsel %vm8123, %v7725, %v8149
    %v8151 = vsel %vm8125, %v7804, %v8150
    %v8152 = vsel %vm8127, %v7883, %v8151
    %v8153 = vsel %vm8129, %v7962, %v8152
    %v8154 = vsel %vm8131, %v8041, %v8153
    %v8155 = vsel %vm8133, %v8120, %v8154
    %8160 = vst [vmem:[#allocation2] sm:$0xff] %v8134
    %8161 = vst [vmem:[#allocation2 + $0x8] sm:$0xff] %v8141
    %8162 = vst [vmem:[#allocation2 + $0x10] sm:$0xff] %v8148
    %8163 = vst [vmem:[#allocation2 + $0x18] sm:$0xff] %v8155
    // Predicated region
    $region10: #{tpu_custom_call.1} parent=1 // pred_check
      _
    $region11: #{tpu_custom_call.1} parent=1 // pred_check_branch
      %8165 = sbr.rel (0) target = $region13
    $region12: #{tpu_custom_call.1} parent=1 // pred_region
      %s8167 = ssub.s32 512, 512
      %8168 = vsyncadd [#allocation3], %s8167
      %s8169 = sshll.u32 [#allocation2], 4
      %s8170 = int_to_ptr.vmem [resolvable:$true] %s8169
      %8175 = dma.vmem_to_hbm [thread:$0]  %s8170, 512, %s2, [#allocation3], 128, 128, 8
    $region13: #{tpu_custom_call.1} parent=1 // pred_fallthru
      _
    // Predicated region
    $region14: #{tpu_custom_call.1} parent=1 // pred_check
      _
    $region15: #{tpu_custom_call.1} parent=1 // pred_check_branch
      %8177 = sbr.rel (0) target = $region17
    $region16: #{tpu_custom_call.1} parent=1 // pred_region
      %8178 = dma.done [#allocation3], 512
    $region17: #{tpu_custom_call.1} parent=1 // pred_fallthru
      _
    %8179 = vsyncpa [#allocation3], 1

</llo_original>
